<compile_context>
chip_gen: v5e
topology: v5e:2x2
jax: 0.10.0
libtpu: 0.0.40
codegen_flags: <defaults>
</compile_context>

<pallas_src>
import numpy as np

import jax
import jax.numpy as jnp
from jax import lax
from jax.experimental import pallas as pl
from jax.experimental.pallas import tpu as pltpu

# Fixed network geometry (MNIST / LeNet-ish).
H1, W1, C1_IN, C1_OUT = 28, 28, 1, 16
H2, W2, C2_IN, C2_OUT = 14, 14, 16, 32
H3, W3 = 7, 7
FC_IN, FC_OUT, FC_PAD = 32 * 7 * 7, 10, 128   # fc output padded to 128 lanes
KS = 5                                         # conv kernel size
LANES = 256                                    # per-parity lane slab (224 -> 256)


# ---------------------------------------------------------------------------
# Kernel: whole forward for `bs` samples per grid step, all 2-D bf16 dots.
# ---------------------------------------------------------------------------
def _my_dnn_kernel(x_ref, a1_ref, t1_ref, b1_ref, pe_ref, po_ref,
                   a2_ref, t2_ref, b2_ref, wfc_ref, bfc_ref, o_ref):
    bs = o_ref.shape[0]                     # samples per grid step
    r1 = bs * H1                            # conv1 rows (sample-major: i*28+y)
    r2 = bs * H2                            # conv2 rows (y-major: y*bs+i)
    bf16 = jnp.bfloat16

    # ---- conv1: pad+shift selector, 5 Toeplitz dots, bias+ReLU+horiz pool ----
    x = x_ref[...].astype(bf16)                                   # (bs*28, 28)
    sh1 = jnp.dot(a1_ref[...], x,
                  preferred_element_type=jnp.float32).astype(bf16)  # (5*bs*28, 28)
    acc1 = jnp.zeros((r1, 2 * LANES), jnp.float32)
    for dy in range(KS):                                          # static unroll
        acc1 = acc1 + jnp.dot(sh1[dy * r1:(dy + 1) * r1, :], t1_ref[dy],
                              preferred_element_type=jnp.float32)
    h1 = jnp.maximum(jnp.maximum(acc1[:, :LANES], acc1[:, LANES:])
                     + b1_ref[...], 0.0).astype(bf16)             # (bs*28, 256)

    # vertical half of conv1's 2x2 pool: exact 0/1 selector dots + VPU max
    p1 = jnp.maximum(
        jnp.dot(pe_ref[...], h1, preferred_element_type=jnp.float32),
        jnp.dot(po_ref[...], h1, preferred_element_type=jnp.float32),
    ).astype(bf16)                                                # (bs*14, 256)

    # ---- conv2 (output rows ordered y-major: row = y*bs + i) ----
    sh2 = jnp.dot(a2_ref[...], p1,
                  preferred_element_type=jnp.float32).astype(bf16)  # (5*bs*14, 256)
    acc2 = jnp.zeros((r2, 2 * LANES), jnp.float32)
    for dy in range(KS):
        acc2 = acc2 + jnp.dot(sh2[dy * r2:(dy + 1) * r2, :], t2_ref[dy],
                              preferred_element_type=jnp.float32)
    h2 = jnp.maximum(jnp.maximum(acc2[:, :LANES], acc2[:, LANES:])
                     + b2_ref[...], 0.0)                          # (bs*14, 256) f32

    # ---- fc: conv2's vertical pool folded into the per-row gather ----------
    # y-major rows => pool pair (2y, 2y+1) of every sample is two contiguous
    # bs-row slices; gather + max on the VPU, then one K=7*256 dot.
    cols = []
    for y in range(H3):                                           # static unroll
        e = h2[(2 * y) * bs:(2 * y + 1) * bs, :]                  # (bs, 256)
        o = h2[(2 * y + 1) * bs:(2 * y + 2) * bs, :]
        cols.append(jnp.maximum(e, o))
    xfc = jnp.concatenate(cols, axis=1).astype(bf16)              # (bs, 1792)
    out = jnp.dot(xfc, wfc_ref[...],
                  preferred_element_type=jnp.float32) + bfc_ref[...]
    o_ref[...] = out                                              # (bs, 128) f32


# ---------------------------------------------------------------------------
# Wrapper
# ---------------------------------------------------------------------------
def my_dnn_forward(x_nchw, kparams):
    a1, t1, b1r, pe, po, a2, t2, b2r, wfc, bfcr = kparams
    bs = a1.shape[1] // H1                       # samples per grid step (static)
    n = x_nchw.shape[0]
    n_pad = ((n + bs - 1) // bs) * bs
    x = x_nchw.reshape(n, H1, W1).astype(jnp.float32)
    if n_pad != n:
        x = jnp.concatenate(
            [x, jnp.zeros((n_pad - n, H1, W1), jnp.float32)], axis=0)
    x2d = x.reshape(n_pad * H1, W1)              # flat rows = sample-major
    steps = n_pad // bs

    flops_step = (
        2 * (KS * bs * H1) * (bs * H1) * W1            # conv1 pad/shift selector
        + 2 * KS * (bs * H1) * W1 * (2 * LANES)        # conv1 Toeplitz dots
        + 2 * 2 * (bs * H2) * (bs * H1) * LANES        # conv1 vertical-pool sels
        + 2 * (KS * bs * H2) * (bs * H2) * LANES       # conv2 pad/shift selector
        + 2 * KS * (bs * H2) * LANES * (2 * LANES)     # conv2 Toeplitz dots
        + 2 * bs * (H3 * LANES) * FC_PAD               # fc dot
    )
    bytes_accessed = (
        n_pad * (H1 * W1 * 4 + FC_PAD * 4)
        + sum(int(np.prod(a.shape)) * 2 for a in (a1, t1, pe, po, a2, t2, wfc))
        + sum(int(np.prod(a.shape)) * 4 for a in (b1r, b2r, bfcr))
    )

    out = pl.pallas_call(
        _my_dnn_kernel,
        out_shape=jax.ShapeDtypeStruct((n_pad, FC_PAD), jnp.float32),
        grid=(steps,),
        in_specs=[
            pl.BlockSpec((bs * H1, W1), lambda i: (i, 0)),   # bs images (flat rows)
            pl.BlockSpec(a1.shape, lambda i: (0, 0)),        # conv1 pad/shift sel
            pl.BlockSpec(t1.shape, lambda i: (0, 0, 0)),     # conv1 Toeplitz (5,28,512)
            pl.BlockSpec(b1r.shape, lambda i: (0, 0)),       # conv1 bias row
            pl.BlockSpec(pe.shape, lambda i: (0, 0)),        # conv1 v-pool sel even
            pl.BlockSpec(po.shape, lambda i: (0, 0)),        # conv1 v-pool sel odd
            pl.BlockSpec(a2.shape, lambda i: (0, 0)),        # conv2 pad/shift sel
            pl.BlockSpec(t2.shape, lambda i: (0, 0, 0)),     # conv2 Toeplitz (5,256,512)
            pl.BlockSpec(b2r.shape, lambda i: (0, 0)),       # conv2 bias row
            pl.BlockSpec(wfc.shape, lambda i: (0, 0)),       # fc weight (1792,128)
            pl.BlockSpec(bfcr.shape, lambda i: (0, 0)),      # fc bias (1,128)
        ],
        out_specs=pl.BlockSpec((bs, FC_PAD), lambda i: (i, 0)),
        compiler_params=pltpu.CompilerParams(
            dimension_semantics=("parallel",),
            vmem_limit_bytes=32 * 1024 * 1024),
        cost_estimate=pl.CostEstimate(flops=steps * flops_step,
                                      transcendentals=0,
                                      bytes_accessed=bytes_accessed),
    )(x2d, a1, t1, b1r, pe, po, a2, t2, b2r, wfc, bfcr)
    return out[:n, :FC_OUT]


# ---------------------------------------------------------------------------
# One-time static parameter preparation (torch layout -> kernel layout)
# ---------------------------------------------------------------------------
def _conv_toeplitz(w, width, k_rows):
    """(Cout,Cin,5,5) -> (5, k_rows, 2*LANES) block-Toeplitz weights.
    Rows = input lanes ci*width + xi (zero padded to k_rows); column
    p*LANES + c*(width//2) + xo gives output column 2*xo+p of a stride-1,
    pad-2 'same' conv (horizontal pool parities pre-split, each padded to 256)."""
    w = np.asarray(w, np.float32)
    cout, cin, k, _ = w.shape
    wo = width // 2
    t = np.zeros((k, k_rows, 2 * LANES), np.float32)
    rows_c = np.arange(cin) * width
    cols_c = np.arange(cout) * wo
    for dy in range(k):
        for dx in range(k):
            for p in range(2):
                for xo in range(wo):
                    xi = 2 * xo + p + dx - 2
                    if 0 <= xi < width:
                        t[dy, (rows_c + xi)[:, None],
                          (p * LANES + cols_c + xo)[None, :]] = w[:, :, dy, dx].T
    return t


def _shift_selector(bs, h, y_major):
    """(5*bs*h, bs*h) 0/1 matrix: row (dy, i, y) selects input row i*h + (y+dy-2)
    of sample i, or is all-zero when out of range (folds the 2-row zero pad).
    Output rows inside each dy block are i-major (i*h+y) or y-major (y*bs+i)."""
    a = np.zeros((KS * bs * h, bs * h), np.float32)
    for dy in range(KS):
        for i in range(bs):
            for y in range(h):
                src = y + dy - 2
                if 0 <= src < h:
                    r = y * bs + i if y_major else i * h + y
                    a[dy * bs * h + r, i * h + src] = 1.0
    return a


def _pool_selector(bs, h_out, parity):
    """(bs*h_out, bs*2*h_out) 0/1 matrix selecting row i*2*h_out + 2*j + parity."""
    p = np.zeros((bs * h_out, bs * 2 * h_out), np.float32)
    for i in range(bs):
        for j in range(h_out):
            p[i * h_out + j, i * 2 * h_out + 2 * j + parity] = 1.0
    return p


def prepare_params(params, bs=8):
    assert bs % 8 == 0, "samples per grid step must be a multiple of 8"
    w1, b1, w2, b2, wfc, bfc = [np.asarray(p, np.float32) for p in params]

    t1 = _conv_toeplitz(w1, W1, W1)                 # (5, 28, 512)
    t2 = _conv_toeplitz(w2, W2, LANES)              # (5, 256, 512)
    a1 = _shift_selector(bs, H1, y_major=False)     # (5*bs*28, bs*28)
    a2 = _shift_selector(bs, H2, y_major=True)      # (5*bs*14, bs*14)
    pe = _pool_selector(bs, H2, 0)                  # (bs*14, bs*28)
    po = _pool_selector(bs, H2, 1)

    b1r = np.zeros((1, LANES), np.float32)
    b1r[0, :C1_OUT * (W1 // 2)] = np.repeat(b1, W1 // 2)
    b2r = np.zeros((1, LANES), np.float32)
    b2r[0, :C2_OUT * (W2 // 2)] = np.repeat(b2, W2 // 2)

    # fc1 consumes 7 per-y slabs with lane = c*7 + x (padded to 256); torch's
    # NCHW .view flattens as c*49 + y*7 + x.  Permute/pad rows once.
    wfc_cat = np.zeros((H3 * LANES, FC_PAD), np.float32)
    for y in range(H3):
        for c in range(C2_OUT):
            for xx in range(W3):
                wfc_cat[y * LANES + c * W3 + xx, :FC_OUT] = \
                    wfc[c * (H3 * W3) + y * W3 + xx]
    bfcr = np.zeros((1, FC_PAD), np.float32)
    bfcr[0, :FC_OUT] = bfc

    bf16 = jnp.bfloat16
    return (jnp.asarray(a1, bf16), jnp.asarray(t1, bf16),
            jnp.asarray(b1r, jnp.float32),
            jnp.asarray(pe, bf16), jnp.asarray(po, bf16),
            jnp.asarray(a2, bf16), jnp.asarray(t2, bf16),
            jnp.asarray(b2r, jnp.float32),
            jnp.asarray(wfc_cat, bf16), jnp.asarray(bfcr, jnp.float32))


# ---------------------------------------------------------------------------
# Deterministic init (torch layouts) + pure-JAX f32 reference
# ---------------------------------------------------------------------------
def init_params(key):
    ks = jax.random.split(key, 6)
    w1 = jax.random.normal(ks[0], (16, 1, 5, 5), jnp.float32) * 0.20
    b1 = jax.random.normal(ks[1], (16,), jnp.float32) * 0.05
    w2 = jax.random.normal(ks[2], (32, 16, 5, 5), jnp.float32) * 0.05
    b2 = jax.random.normal(ks[3], (32,), jnp.float32) * 0.05
    wfc_t = jax.random.normal(ks[4], (10, 32 * 7 * 7), jnp.float32) * 0.02
    bfc = jax.random.normal(ks[5], (10,), jnp.float32) * 0.02
    return (w1, b1, w2, b2, wfc_t.T, bfc)


def reference_forward(x_nchw, params):
    w1, b1, w2, b2, wfc, bfc = params

    def conv(x, w, b):
        y = lax.conv_general_dilated(
            x, w, window_strides=(1, 1), padding=((2, 2), (2, 2)),
            dimension_numbers=("NCHW", "OIHW", "NCHW"))
        return jax.nn.relu(y + b[None, :, None, None])

    def pool(x):
        return lax.reduce_window(x, -jnp.inf, lax.max,
                                 (1, 1, 2, 2), (1, 1, 2, 2), "VALID")

    x = pool(conv(x_nchw, w1, b1))
    x = pool(conv(x, w2, b2))
    x = x.reshape(x.shape[0], -1)
    return x @ wfc + bfc


if __name__ == "__main__":
    key_x, key_p = jax.random.split(jax.random.PRNGKey(0))
    n = 32                                                   # grid of 4 steps @ bs=8
    x = jax.random.normal(key_x, (n, 1, 28, 28), jnp.float32)  # NCHW, MNIST-sized
    params = init_params(key_p)
    kparams = prepare_params(params, bs=8)                   # static, one-time

    fwd = jax.jit(my_dnn_forward)
    out = jax.block_until_ready(fwd(x, kparams))

    ref = reference_forward(x, params)
    assert out.shape == (n, 10), out.shape
    # bf16 MXU inputs vs. the f32 XLA reference -> standard bf16 tolerance.
    assert jnp.allclose(out, ref, atol=5e-2, rtol=5e-2)
    print("KERNEL_OK")
</pallas_src>

<mosaic_0001>
module attributes {stable_mosaic.version = 11 : i64} {
  func.func @_my_dnn_kernel(%arg0: i32, %arg1: memref<224x28xf32, #tpu.memory_space<vmem>>, %arg2: memref<1120x224xbf16, #tpu.memory_space<vmem>>, %arg3: memref<5x28x512xbf16, #tpu.memory_space<vmem>>, %arg4: memref<1x256xf32, #tpu.memory_space<vmem>>, %arg5: memref<112x224xbf16, #tpu.memory_space<vmem>>, %arg6: memref<112x224xbf16, #tpu.memory_space<vmem>>, %arg7: memref<560x112xbf16, #tpu.memory_space<vmem>>, %arg8: memref<5x256x512xbf16, #tpu.memory_space<vmem>>, %arg9: memref<1x256xf32, #tpu.memory_space<vmem>>, %arg10: memref<1792x128xbf16, #tpu.memory_space<vmem>>, %arg11: memref<1x128xf32, #tpu.memory_space<vmem>>, %arg12: memref<8x128xf32, #tpu.memory_space<vmem>>) attributes {dimension_semantics = [#tpu.dimension_semantics<parallel>], iteration_bounds = array<i64: 4>, scalar_prefetch = 0 : i64, scratch_operands = 0 : i64, tpu.core_type = #tpu.core_type<tc>, window_params = [{transform_indices = @transform_0, window_bounds = array<i64: 224, 28>}, {pipeline_mode = #tpu.pipeline_mode<synchronous>, transform_indices = @transform_1, window_bounds = array<i64: 1120, 224>}, {pipeline_mode = #tpu.pipeline_mode<synchronous>, transform_indices = @transform_2, window_bounds = array<i64: 5, 28, 512>}, {pipeline_mode = #tpu.pipeline_mode<synchronous>, transform_indices = @transform_3, window_bounds = array<i64: 1, 256>}, {pipeline_mode = #tpu.pipeline_mode<synchronous>, transform_indices = @transform_4, window_bounds = array<i64: 112, 224>}, {pipeline_mode = #tpu.pipeline_mode<synchronous>, transform_indices = @transform_5, window_bounds = array<i64: 112, 224>}, {pipeline_mode = #tpu.pipeline_mode<synchronous>, transform_indices = @transform_6, window_bounds = array<i64: 560, 112>}, {pipeline_mode = #tpu.pipeline_mode<synchronous>, transform_indices = @transform_7, window_bounds = array<i64: 5, 256, 512>}, {pipeline_mode = #tpu.pipeline_mode<synchronous>, transform_indices = @transform_8, window_bounds = array<i64: 1, 256>}, {pipeline_mode = #tpu.pipeline_mode<synchronous>, transform_indices = @transform_9, window_bounds = array<i64: 1792, 128>}, {pipeline_mode = #tpu.pipeline_mode<synchronous>, transform_indices = @transform_10, window_bounds = array<i64: 1, 128>}, {transform_indices = @transform_11, window_bounds = array<i64: 8, 128>}]} {
    %c0 = arith.constant 0 : index
    %c0_0 = arith.constant 0 : index
    %0 = vector.load %arg1[%c0, %c0_0] : memref<224x28xf32, #tpu.memory_space<vmem>>, vector<224x28xf32>
    %1 = arith.truncf %0 : vector<224x28xf32> to vector<224x28xbf16>
    %c0_1 = arith.constant 0 : index
    %c0_2 = arith.constant 0 : index
    %2 = vector.load %arg2[%c0_1, %c0_2] : memref<1120x224xbf16, #tpu.memory_space<vmem>>, vector<1120x224xbf16>
    %cst = arith.constant dense<0.000000e+00> : vector<1120x28xf32>
    %3 = tpu.matmul %2, %1, %cst {dimension_numbers = #tpu.dot_dimension_numbers<[1], [0], [0], [1], [0, 0, 1, 1], [], []>} : vector<1120x224xbf16>, vector<224x28xbf16>, vector<1120x28xf32> -> vector<1120x28xf32>
    %4 = arith.truncf %3 : vector<1120x28xf32> to vector<1120x28xbf16>
    %cst_3 = arith.constant 0.000000e+00 : f32
    %5 = vector.broadcast %cst_3 : f32 to vector<224x512xf32>
    %6 = vector.extract_strided_slice %4 {offsets = [0, 0], sizes = [224, 28], strides = [1, 1]} : vector<1120x28xbf16> to vector<224x28xbf16>
    %c0_4 = arith.constant 0 : index
    %c0_5 = arith.constant 0 : index
    %c0_6 = arith.constant 0 : index
    %7 = vector.load %arg3[%c0_4, %c0_5, %c0_6] : memref<5x28x512xbf16, #tpu.memory_space<vmem>>, vector<1x28x512xbf16>
    %8 = vector.shape_cast %7 : vector<1x28x512xbf16> to vector<28x512xbf16>
    %cst_7 = arith.constant dense<0.000000e+00> : vector<224x512xf32>
    %9 = tpu.matmul %6, %8, %cst_7 {dimension_numbers = #tpu.dot_dimension_numbers<[1], [0], [0], [1], [0, 0, 1, 1], [], []>} : vector<224x28xbf16>, vector<28x512xbf16>, vector<224x512xf32> -> vector<224x512xf32>
    %10 = arith.addf %5, %9 : vector<224x512xf32>
    %11 = vector.extract_strided_slice %4 {offsets = [224, 0], sizes = [224, 28], strides = [1, 1]} : vector<1120x28xbf16> to vector<224x28xbf16>
    %c1 = arith.constant 1 : index
    %c0_8 = arith.constant 0 : index
    %c0_9 = arith.constant 0 : index
    %12 = vector.load %arg3[%c1, %c0_8, %c0_9] : memref<5x28x512xbf16, #tpu.memory_space<vmem>>, vector<1x28x512xbf16>
    %13 = vector.shape_cast %12 : vector<1x28x512xbf16> to vector<28x512xbf16>
    %cst_10 = arith.constant dense<0.000000e+00> : vector<224x512xf32>
    %14 = tpu.matmul %11, %13, %cst_10 {dimension_numbers = #tpu.dot_dimension_numbers<[1], [0], [0], [1], [0, 0, 1, 1], [], []>} : vector<224x28xbf16>, vector<28x512xbf16>, vector<224x512xf32> -> vector<224x512xf32>
    %15 = arith.addf %10, %14 : vector<224x512xf32>
    %16 = vector.extract_strided_slice %4 {offsets = [448, 0], sizes = [224, 28], strides = [1, 1]} : vector<1120x28xbf16> to vector<224x28xbf16>
    %c2 = arith.constant 2 : index
    %c0_11 = arith.constant 0 : index
    %c0_12 = arith.constant 0 : index
    %17 = vector.load %arg3[%c2, %c0_11, %c0_12] : memref<5x28x512xbf16, #tpu.memory_space<vmem>>, vector<1x28x512xbf16>
    %18 = vector.shape_cast %17 : vector<1x28x512xbf16> to vector<28x512xbf16>
    %cst_13 = arith.constant dense<0.000000e+00> : vector<224x512xf32>
    %19 = tpu.matmul %16, %18, %cst_13 {dimension_numbers = #tpu.dot_dimension_numbers<[1], [0], [0], [1], [0, 0, 1, 1], [], []>} : vector<224x28xbf16>, vector<28x512xbf16>, vector<224x512xf32> -> vector<224x512xf32>
    %20 = arith.addf %15, %19 : vector<224x512xf32>
    %21 = vector.extract_strided_slice %4 {offsets = [672, 0], sizes = [224, 28], strides = [1, 1]} : vector<1120x28xbf16> to vector<224x28xbf16>
    %c3 = arith.constant 3 : index
    %c0_14 = arith.constant 0 : index
    %c0_15 = arith.constant 0 : index
    %22 = vector.load %arg3[%c3, %c0_14, %c0_15] : memref<5x28x512xbf16, #tpu.memory_space<vmem>>, vector<1x28x512xbf16>
    %23 = vector.shape_cast %22 : vector<1x28x512xbf16> to vector<28x512xbf16>
    %cst_16 = arith.constant dense<0.000000e+00> : vector<224x512xf32>
    %24 = tpu.matmul %21, %23, %cst_16 {dimension_numbers = #tpu.dot_dimension_numbers<[1], [0], [0], [1], [0, 0, 1, 1], [], []>} : vector<224x28xbf16>, vector<28x512xbf16>, vector<224x512xf32> -> vector<224x512xf32>
    %25 = arith.addf %20, %24 : vector<224x512xf32>
    %26 = vector.extract_strided_slice %4 {offsets = [896, 0], sizes = [224, 28], strides = [1, 1]} : vector<1120x28xbf16> to vector<224x28xbf16>
    %c4 = arith.constant 4 : index
    %c0_17 = arith.constant 0 : index
    %c0_18 = arith.constant 0 : index
    %27 = vector.load %arg3[%c4, %c0_17, %c0_18] : memref<5x28x512xbf16, #tpu.memory_space<vmem>>, vector<1x28x512xbf16>
    %28 = vector.shape_cast %27 : vector<1x28x512xbf16> to vector<28x512xbf16>
    %cst_19 = arith.constant dense<0.000000e+00> : vector<224x512xf32>
    %29 = tpu.matmul %26, %28, %cst_19 {dimension_numbers = #tpu.dot_dimension_numbers<[1], [0], [0], [1], [0, 0, 1, 1], [], []>} : vector<224x28xbf16>, vector<28x512xbf16>, vector<224x512xf32> -> vector<224x512xf32>
    %30 = arith.addf %25, %29 : vector<224x512xf32>
    %31 = vector.extract_strided_slice %30 {offsets = [0, 0], sizes = [224, 256], strides = [1, 1]} : vector<224x512xf32> to vector<224x256xf32>
    %32 = vector.extract_strided_slice %30 {offsets = [0, 256], sizes = [224, 256], strides = [1, 1]} : vector<224x512xf32> to vector<224x256xf32>
    %33 = arith.maximumf %31, %32 : vector<224x256xf32>
    %c0_20 = arith.constant 0 : index
    %c0_21 = arith.constant 0 : index
    %34 = vector.load %arg4[%c0_20, %c0_21] : memref<1x256xf32, #tpu.memory_space<vmem>>, vector<1x256xf32>
    %35 = vector.broadcast %34 : vector<1x256xf32> to vector<224x256xf32>
    %36 = arith.addf %33, %35 : vector<224x256xf32>
    %cst_22 = arith.constant 0.000000e+00 : f32
    %37 = vector.broadcast %cst_22 : f32 to vector<224x256xf32>
    %38 = arith.maximumf %36, %37 : vector<224x256xf32>
    %39 = arith.truncf %38 : vector<224x256xf32> to vector<224x256xbf16>
    %c0_23 = arith.constant 0 : index
    %c0_24 = arith.constant 0 : index
    %40 = vector.load %arg5[%c0_23, %c0_24] : memref<112x224xbf16, #tpu.memory_space<vmem>>, vector<112x224xbf16>
    %cst_25 = arith.constant dense<0.000000e+00> : vector<112x256xf32>
    %41 = tpu.matmul %40, %39, %cst_25 {dimension_numbers = #tpu.dot_dimension_numbers<[1], [0], [0], [1], [0, 0, 1, 1], [], []>} : vector<112x224xbf16>, vector<224x256xbf16>, vector<112x256xf32> -> vector<112x256xf32>
    %c0_26 = arith.constant 0 : index
    %c0_27 = arith.constant 0 : index
    %42 = vector.load %arg6[%c0_26, %c0_27] : memref<112x224xbf16, #tpu.memory_space<vmem>>, vector<112x224xbf16>
    %cst_28 = arith.constant dense<0.000000e+00> : vector<112x256xf32>
    %43 = tpu.matmul %42, %39, %cst_28 {dimension_numbers = #tpu.dot_dimension_numbers<[1], [0], [0], [1], [0, 0, 1, 1], [], []>} : vector<112x224xbf16>, vector<224x256xbf16>, vector<112x256xf32> -> vector<112x256xf32>
    %44 = arith.maximumf %41, %43 : vector<112x256xf32>
    %45 = arith.truncf %44 : vector<112x256xf32> to vector<112x256xbf16>
    %c0_29 = arith.constant 0 : index
    %c0_30 = arith.constant 0 : index
    %46 = vector.load %arg7[%c0_29, %c0_30] : memref<560x112xbf16, #tpu.memory_space<vmem>>, vector<560x112xbf16>
    %cst_31 = arith.constant dense<0.000000e+00> : vector<560x256xf32>
    %47 = tpu.matmul %46, %45, %cst_31 {dimension_numbers = #tpu.dot_dimension_numbers<[1], [0], [0], [1], [0, 0, 1, 1], [], []>} : vector<560x112xbf16>, vector<112x256xbf16>, vector<560x256xf32> -> vector<560x256xf32>
    %48 = arith.truncf %47 : vector<560x256xf32> to vector<560x256xbf16>
    %cst_32 = arith.constant 0.000000e+00 : f32
    %49 = vector.broadcast %cst_32 : f32 to vector<112x512xf32>
    %50 = vector.extract_strided_slice %48 {offsets = [0, 0], sizes = [112, 256], strides = [1, 1]} : vector<560x256xbf16> to vector<112x256xbf16>
    %c0_33 = arith.constant 0 : index
    %c0_34 = arith.constant 0 : index
    %c0_35 = arith.constant 0 : index
    %51 = vector.load %arg8[%c0_33, %c0_34, %c0_35] : memref<5x256x512xbf16, #tpu.memory_space<vmem>>, vector<1x256x512xbf16>
    %52 = vector.shape_cast %51 : vector<1x256x512xbf16> to vector<256x512xbf16>
    %cst_36 = arith.constant dense<0.000000e+00> : vector<112x512xf32>
    %53 = tpu.matmul %50, %52, %cst_36 {dimension_numbers = #tpu.dot_dimension_numbers<[1], [0], [0], [1], [0, 0, 1, 1], [], []>} : vector<112x256xbf16>, vector<256x512xbf16>, vector<112x512xf32> -> vector<112x512xf32>
    %54 = arith.addf %49, %53 : vector<112x512xf32>
    %55 = vector.extract_strided_slice %48 {offsets = [112, 0], sizes = [112, 256], strides = [1, 1]} : vector<560x256xbf16> to vector<112x256xbf16>
    %c1_37 = arith.constant 1 : index
    %c0_38 = arith.constant 0 : index
    %c0_39 = arith.constant 0 : index
    %56 = vector.load %arg8[%c1_37, %c0_38, %c0_39] : memref<5x256x512xbf16, #tpu.memory_space<vmem>>, vector<1x256x512xbf16>
    %57 = vector.shape_cast %56 : vector<1x256x512xbf16> to vector<256x512xbf16>
    %cst_40 = arith.constant dense<0.000000e+00> : vector<112x512xf32>
    %58 = tpu.matmul %55, %57, %cst_40 {dimension_numbers = #tpu.dot_dimension_numbers<[1], [0], [0], [1], [0, 0, 1, 1], [], []>} : vector<112x256xbf16>, vector<256x512xbf16>, vector<112x512xf32> -> vector<112x512xf32>
    %59 = arith.addf %54, %58 : vector<112x512xf32>
    %60 = vector.extract_strided_slice %48 {offsets = [224, 0], sizes = [112, 256], strides = [1, 1]} : vector<560x256xbf16> to vector<112x256xbf16>
    %c2_41 = arith.constant 2 : index
    %c0_42 = arith.constant 0 : index
    %c0_43 = arith.constant 0 : index
    %61 = vector.load %arg8[%c2_41, %c0_42, %c0_43] : memref<5x256x512xbf16, #tpu.memory_space<vmem>>, vector<1x256x512xbf16>
    %62 = vector.shape_cast %61 : vector<1x256x512xbf16> to vector<256x512xbf16>
    %cst_44 = arith.constant dense<0.000000e+00> : vector<112x512xf32>
    %63 = tpu.matmul %60, %62, %cst_44 {dimension_numbers = #tpu.dot_dimension_numbers<[1], [0], [0], [1], [0, 0, 1, 1], [], []>} : vector<112x256xbf16>, vector<256x512xbf16>, vector<112x512xf32> -> vector<112x512xf32>
    %64 = arith.addf %59, %63 : vector<112x512xf32>
    %65 = vector.extract_strided_slice %48 {offsets = [336, 0], sizes = [112, 256], strides = [1, 1]} : vector<560x256xbf16> to vector<112x256xbf16>
    %c3_45 = arith.constant 3 : index
    %c0_46 = arith.constant 0 : index
    %c0_47 = arith.constant 0 : index
    %66 = vector.load %arg8[%c3_45, %c0_46, %c0_47] : memref<5x256x512xbf16, #tpu.memory_space<vmem>>, vector<1x256x512xbf16>
    %67 = vector.shape_cast %66 : vector<1x256x512xbf16> to vector<256x512xbf16>
    %cst_48 = arith.constant dense<0.000000e+00> : vector<112x512xf32>
    %68 = tpu.matmul %65, %67, %cst_48 {dimension_numbers = #tpu.dot_dimension_numbers<[1], [0], [0], [1], [0, 0, 1, 1], [], []>} : vector<112x256xbf16>, vector<256x512xbf16>, vector<112x512xf32> -> vector<112x512xf32>
    %69 = arith.addf %64, %68 : vector<112x512xf32>
    %70 = vector.extract_strided_slice %48 {offsets = [448, 0], sizes = [112, 256], strides = [1, 1]} : vector<560x256xbf16> to vector<112x256xbf16>
    %c4_49 = arith.constant 4 : index
    %c0_50 = arith.constant 0 : index
    %c0_51 = arith.constant 0 : index
    %71 = vector.load %arg8[%c4_49, %c0_50, %c0_51] : memref<5x256x512xbf16, #tpu.memory_space<vmem>>, vector<1x256x512xbf16>
    %72 = vector.shape_cast %71 : vector<1x256x512xbf16> to vector<256x512xbf16>
    %cst_52 = arith.constant dense<0.000000e+00> : vector<112x512xf32>
    %73 = tpu.matmul %70, %72, %cst_52 {dimension_numbers = #tpu.dot_dimension_numbers<[1], [0], [0], [1], [0, 0, 1, 1], [], []>} : vector<112x256xbf16>, vector<256x512xbf16>, vector<112x512xf32> -> vector<112x512xf32>
    %74 = arith.addf %69, %73 : vector<112x512xf32>
    %75 = vector.extract_strided_slice %74 {offsets = [0, 0], sizes = [112, 256], strides = [1, 1]} : vector<112x512xf32> to vector<112x256xf32>
    %76 = vector.extract_strided_slice %74 {offsets = [0, 256], sizes = [112, 256], strides = [1, 1]} : vector<112x512xf32> to vector<112x256xf32>
    %77 = arith.maximumf %75, %76 : vector<112x256xf32>
    %c0_53 = arith.constant 0 : index
    %c0_54 = arith.constant 0 : index
    %78 = vector.load %arg9[%c0_53, %c0_54] : memref<1x256xf32, #tpu.memory_space<vmem>>, vector<1x256xf32>
    %79 = vector.broadcast %78 : vector<1x256xf32> to vector<112x256xf32>
    %80 = arith.addf %77, %79 : vector<112x256xf32>
    %cst_55 = arith.constant 0.000000e+00 : f32
    %81 = vector.broadcast %cst_55 : f32 to vector<112x256xf32>
    %82 = arith.maximumf %80, %81 : vector<112x256xf32>
    %83 = vector.extract_strided_slice %82 {offsets = [0, 0], sizes = [8, 256], strides = [1, 1]} : vector<112x256xf32> to vector<8x256xf32>
    %84 = vector.extract_strided_slice %82 {offsets = [8, 0], sizes = [8, 256], strides = [1, 1]} : vector<112x256xf32> to vector<8x256xf32>
    %85 = arith.maximumf %83, %84 : vector<8x256xf32>
    %86 = vector.extract_strided_slice %82 {offsets = [16, 0], sizes = [8, 256], strides = [1, 1]} : vector<112x256xf32> to vector<8x256xf32>
    %87 = vector.extract_strided_slice %82 {offsets = [24, 0], sizes = [8, 256], strides = [1, 1]} : vector<112x256xf32> to vector<8x256xf32>
    %88 = arith.maximumf %86, %87 : vector<8x256xf32>
    %89 = vector.extract_strided_slice %82 {offsets = [32, 0], sizes = [8, 256], strides = [1, 1]} : vector<112x256xf32> to vector<8x256xf32>
    %90 = vector.extract_strided_slice %82 {offsets = [40, 0], sizes = [8, 256], strides = [1, 1]} : vector<112x256xf32> to vector<8x256xf32>
    %91 = arith.maximumf %89, %90 : vector<8x256xf32>
    %92 = vector.extract_strided_slice %82 {offsets = [48, 0], sizes = [8, 256], strides = [1, 1]} : vector<112x256xf32> to vector<8x256xf32>
    %93 = vector.extract_strided_slice %82 {offsets = [56, 0], sizes = [8, 256], strides = [1, 1]} : vector<112x256xf32> to vector<8x256xf32>
    %94 = arith.maximumf %92, %93 : vector<8x256xf32>
    %95 = vector.extract_strided_slice %82 {offsets = [64, 0], sizes = [8, 256], strides = [1, 1]} : vector<112x256xf32> to vector<8x256xf32>
    %96 = vector.extract_strided_slice %82 {offsets = [72, 0], sizes = [8, 256], strides = [1, 1]} : vector<112x256xf32> to vector<8x256xf32>
    %97 = arith.maximumf %95, %96 : vector<8x256xf32>
    %98 = vector.extract_strided_slice %82 {offsets = [80, 0], sizes = [8, 256], strides = [1, 1]} : vector<112x256xf32> to vector<8x256xf32>
    %99 = vector.extract_strided_slice %82 {offsets = [88, 0], sizes = [8, 256], strides = [1, 1]} : vector<112x256xf32> to vector<8x256xf32>
    %100 = arith.maximumf %98, %99 : vector<8x256xf32>
    %101 = vector.extract_strided_slice %82 {offsets = [96, 0], sizes = [8, 256], strides = [1, 1]} : vector<112x256xf32> to vector<8x256xf32>
    %102 = vector.extract_strided_slice %82 {offsets = [104, 0], sizes = [8, 256], strides = [1, 1]} : vector<112x256xf32> to vector<8x256xf32>
    %103 = arith.maximumf %101, %102 : vector<8x256xf32>
    %104 = tpu.concatenate %85, %88, %91, %94, %97, %100, %103 in 1 : vector<8x256xf32>, vector<8x256xf32>, vector<8x256xf32>, vector<8x256xf32>, vector<8x256xf32>, vector<8x256xf32>, vector<8x256xf32> -> vector<8x1792xf32>
    %105 = arith.truncf %104 : vector<8x1792xf32> to vector<8x1792xbf16>
    %c0_56 = arith.constant 0 : index
    %c0_57 = arith.constant 0 : index
    %106 = vector.load %arg10[%c0_56, %c0_57] : memref<1792x128xbf16, #tpu.memory_space<vmem>>, vector<1792x128xbf16>
    %cst_58 = arith.constant dense<0.000000e+00> : vector<8x128xf32>
    %107 = tpu.matmul %105, %106, %cst_58 {dimension_numbers = #tpu.dot_dimension_numbers<[1], [0], [0], [1], [0, 0, 1, 1], [], []>} : vector<8x1792xbf16>, vector<1792x128xbf16>, vector<8x128xf32> -> vector<8x128xf32>
    %c0_59 = arith.constant 0 : index
    %c0_60 = arith.constant 0 : index
    %108 = vector.load %arg11[%c0_59, %c0_60] : memref<1x128xf32, #tpu.memory_space<vmem>>, vector<1x128xf32>
    %109 = vector.broadcast %108 : vector<1x128xf32> to vector<8x128xf32>
    %110 = arith.addf %107, %109 : vector<8x128xf32>
    %c0_61 = arith.constant 0 : index
    %c0_62 = arith.constant 0 : index
    %111 = vector.load %arg12[%c0_61, %c0_62] : memref<8x128xf32, #tpu.memory_space<vmem>>, vector<8x128xf32>
    tpu.vector_store %arg12[%c0_61, %c0_62], %110 {strides = array<i32>} : memref<8x128xf32, #tpu.memory_space<vmem>>, vector<8x128xf32>,
    return
  }
  func.func @transform_0(%arg0: i32) -> (i32, i32) {
    %c0_i32 = arith.constant 0 : i32
    %c0_i32_0 = arith.constant 0 : i32
    return %arg0, %c0_i32 : i32, i32
  }
  func.func @transform_1(%arg0: i32) -> (i32, i32) {
    %c0_i32 = arith.constant 0 : i32
    %c0_i32_0 = arith.constant 0 : i32
    %c0_i32_1 = arith.constant 0 : i32
    return %c0_i32, %c0_i32_0 : i32, i32
  }
  func.func @transform_2(%arg0: i32) -> (i32, i32, i32) {
    %c0_i32 = arith.constant 0 : i32
    %c0_i32_0 = arith.constant 0 : i32
    %c0_i32_1 = arith.constant 0 : i32
    %c0_i32_2 = arith.constant 0 : i32
    return %c0_i32, %c0_i32_0, %c0_i32_1 : i32, i32, i32
  }
  func.func @transform_3(%arg0: i32) -> (i32, i32) {
    %c0_i32 = arith.constant 0 : i32
    %c0_i32_0 = arith.constant 0 : i32
    %c0_i32_1 = arith.constant 0 : i32
    return %c0_i32, %c0_i32_0 : i32, i32
  }
  func.func @transform_4(%arg0: i32) -> (i32, i32) {
    %c0_i32 = arith.constant 0 : i32
    %c0_i32_0 = arith.constant 0 : i32
    %c0_i32_1 = arith.constant 0 : i32
    return %c0_i32, %c0_i32_0 : i32, i32
  }
  func.func @transform_5(%arg0: i32) -> (i32, i32) {
    %c0_i32 = arith.constant 0 : i32
    %c0_i32_0 = arith.constant 0 : i32
    %c0_i32_1 = arith.constant 0 : i32
    return %c0_i32, %c0_i32_0 : i32, i32
  }
  func.func @transform_6(%arg0: i32) -> (i32, i32) {
    %c0_i32 = arith.constant 0 : i32
    %c0_i32_0 = arith.constant 0 : i32
    %c0_i32_1 = arith.constant 0 : i32
    return %c0_i32, %c0_i32_0 : i32, i32
  }
  func.func @transform_7(%arg0: i32) -> (i32, i32, i32) {
    %c0_i32 = arith.constant 0 : i32
    %c0_i32_0 = arith.constant 0 : i32
    %c0_i32_1 = arith.constant 0 : i32
    %c0_i32_2 = arith.constant 0 : i32
    return %c0_i32, %c0_i32_0, %c0_i32_1 : i32, i32, i32
  }
  func.func @transform_8(%arg0: i32) -> (i32, i32) {
    %c0_i32 = arith.constant 0 : i32
    %c0_i32_0 = arith.constant 0 : i32
    %c0_i32_1 = arith.constant 0 : i32
    return %c0_i32, %c0_i32_0 : i32, i32
  }
  func.func @transform_9(%arg0: i32) -> (i32, i32) {
    %c0_i32 = arith.constant 0 : i32
    %c0_i32_0 = arith.constant 0 : i32
    %c0_i32_1 = arith.constant 0 : i32
    return %c0_i32, %c0_i32_0 : i32, i32
  }
  func.func @transform_10(%arg0: i32) -> (i32, i32) {
    %c0_i32 = arith.constant 0 : i32
    %c0_i32_0 = arith.constant 0 : i32
    %c0_i32_1 = arith.constant 0 : i32
    return %c0_i32, %c0_i32_0 : i32, i32
  }
  func.func @transform_11(%arg0: i32) -> (i32, i32) {
    %c0_i32 = arith.constant 0 : i32
    %c0_i32_0 = arith.constant 0 : i32
    return %arg0, %c0_i32 : i32, i32
  }
}

</mosaic_0001>

<llo_original>
// kernel: my_dnn_forward.1
$region0: #{my_dnn_forward.1}
  #allocation0 [shape = 'u32[]', space=smem, size = 0x4, offset = 0x4, fixed_abs, tag = 'smem constant byte address 0x4 - core index']
  #allocation1 [shape = 'u32[72,128]{1,0:T(1,128)}', space=vmem, size = 0x9000, scoped, tag = 'internal scratch']
  %s0 = inlined_call_operand.vmem [shape: f32[896,28], index: 0, kind: input, shape index: {}]
  %s1 = inlined_call_operand.vmem [shape: bf16[1120,224], index: 1, kind: input, shape index: {}]
  %s2 = inlined_call_operand.vmem [shape: bf16[5,28,512], index: 2, kind: input, shape index: {}]
  %s3 = inlined_call_operand.vmem [shape: f32[1,256], index: 3, kind: input, shape index: {}]
  %s4 = inlined_call_operand.vmem [shape: bf16[112,224], index: 4, kind: input, shape index: {}]
  %s5 = inlined_call_operand.vmem [shape: bf16[112,224], index: 5, kind: input, shape index: {}]
  %s6 = inlined_call_operand.vmem [shape: bf16[560,112], index: 6, kind: input, shape index: {}]
  %s7 = inlined_call_operand.vmem [shape: bf16[5,256,512], index: 7, kind: input, shape index: {}]
  %s8 = inlined_call_operand.vmem [shape: f32[1,256], index: 8, kind: input, shape index: {}]
  %s9 = inlined_call_operand.vmem [shape: bf16[1792,128], index: 9, kind: input, shape index: {}]
  %s10 = inlined_call_operand.vmem [shape: f32[1,128], index: 10, kind: input, shape index: {}]
  %s11 = inlined_call_operand.vmem [shape: f32[32,128], index: 11, kind: output, shape index: {}]
  %s12 = sld [smem:[#allocation0]]
  $region77: #{my_dnn_forward.1} parent=0
    _
  %s14 = ssub.s32 1, %s12
  %s15 = scalar_select 0, %s14, %s12
  loop: start=0, step=1, limit=6
  $region2: #{my_dnn_forward.1} parent=0 // loop_pre_header
    _
  $region3: #{my_dnn_forward.1} parent=0 // loop_header
    %s17 = sphi 0, %s21
    %p18 = scmp.ge.s32.totalorder %s17, 6
    %s27 = sphi 0, %s29
    %s30 = sphi 0, %s27
    %s31 = sphi 0, %s30
    %s47 = sphi 0, %s31
    %s51 = sphi 0, %s51
    %s53 = sphi 0, %s51
    %s54 = sphi 0, %s53
    %s68 = sphi 0, %s54
    %s72 = sphi 0, %s72
    %s74 = sphi 0, %s72
    %s75 = sphi 0, %s74
    %s89 = sphi 0, %s75
    %s93 = sphi 0, %s93
    %s95 = sphi 0, %s93
    %s96 = sphi 0, %s95
    %s110 = sphi 0, %s96
    %s114 = sphi 0, %s114
    %s116 = sphi 0, %s114
    %s117 = sphi 0, %s116
    %s131 = sphi 0, %s117
    %s135 = sphi 0, %s135
    %s137 = sphi 0, %s135
    %s138 = sphi 0, %s137
    %s152 = sphi 0, %s138
    %s156 = sphi 0, %s156
    %s158 = sphi 0, %s156
    %s159 = sphi 0, %s158
    %s173 = sphi 0, %s159
    %s177 = sphi 0, %s177
    %s179 = sphi 0, %s177
    %s180 = sphi 0, %s179
    %s194 = sphi 0, %s180
    %s198 = sphi 0, %s198
    %s200 = sphi 0, %s198
    %s201 = sphi 0, %s200
    %s215 = sphi 0, %s201
    %s219 = sphi 0, %s219
    %s221 = sphi 0, %s219
    %s222 = sphi 0, %s221
    %s236 = sphi 0, %s222
    %s240 = sphi 0, %s240
    %s242 = sphi 0, %s240
    %s243 = sphi 0, %s242
    %s257 = sphi 0, %s243
    %s263 = sphi 0, %s265
    %s266 = sphi 0, %s263
    %s267 = sphi 0, %s266
    %s283 = sphi 0, %s267
  $region4: #{my_dnn_forward.1} parent=0 // loop_header_branch
    %20 = sbr.rel (%p18) target = $region8
  $region5: #{my_dnn_forward.1} parent=0 // loop_body
    %s22 = ssub.s32 %s17, 1
    %s23 = ssub.s32 %s17, 2
    %s24 = sadd.s32 %s17, 1
    %s25 = ssub.s32 %s17, %s24
    %p26 = scmp.eq.s32.totalorder %s25, 0
    %s28 = sadd.s32 %s27, 1
    %s29 = scalar_select %p26, %s27, %s28
    %p32 = pneg %p26
    %p33 = scmp.eq.s32.totalorder %s17, 3
    %p34 = por %p32, %p33
    %p35 = scmp.ne.s32.totalorder %s27, %s30
    %p36 = scmp.eq.s32.totalorder %s17, 0
    %p37 = por %p35, %p36
    %p38 = scmp.ne.s32.totalorder %s27, %s30
    %p39 = scmp.eq.s32.totalorder %s22, 3
    %p40 = por %p38, %p39
    %p41 = scmp.ne.s32.totalorder %s30, %s31
    %p42 = scmp.eq.s32.totalorder %s22, 0
    %p43 = por %p41, %p42
    %p44 = scmp.ne.s32.totalorder %s30, %s31
    %p45 = scmp.eq.s32.totalorder %s23, 3
    %p46 = por %p44, %p45
    %p48 = scmp.ne.s32.totalorder %s31, %s47
    %p49 = scmp.eq.s32.totalorder %s23, 0
    %p50 = por %p48, %p49
    %s52 = sadd.s32 %s51, 1
    %p55 = scmp.eq.s32.totalorder %s17, 3
    %p56 = scmp.ne.s32.totalorder %s51, %s53
    %p57 = scmp.eq.s32.totalorder %s17, 0
    %p58 = por %p56, %p57
    %p59 = scmp.ne.s32.totalorder %s51, %s53
    %p60 = scmp.eq.s32.totalorder %s22, 3
    %p61 = por %p59, %p60
    %p62 = scmp.ne.s32.totalorder %s53, %s54
    %p63 = scmp.eq.s32.totalorder %s22, 0
    %p64 = por %p62, %p63
    %p65 = scmp.ne.s32.totalorder %s53, %s54
    %p66 = scmp.eq.s32.totalorder %s23, 3
    %p67 = por %p65, %p66
    %p69 = scmp.ne.s32.totalorder %s54, %s68
    %p70 = scmp.eq.s32.totalorder %s23, 0
    %p71 = por %p69, %p70
    %s73 = sadd.s32 %s72, 1
    %p76 = scmp.eq.s32.totalorder %s17, 3
    %p77 = scmp.ne.s32.totalorder %s72, %s74
    %p78 = scmp.eq.s32.totalorder %s17, 0
    %p79 = por %p77, %p78
    %p80 = scmp.ne.s32.totalorder %s72, %s74
    %p81 = scmp.eq.s32.totalorder %s22, 3
    %p82 = por %p80, %p81
    %p83 = scmp.ne.s32.totalorder %s74, %s75
    %p84 = scmp.eq.s32.totalorder %s22, 0
    %p85 = por %p83, %p84
    %p86 = scmp.ne.s32.totalorder %s74, %s75
    %p87 = scmp.eq.s32.totalorder %s23, 3
    %p88 = por %p86, %p87
    %p90 = scmp.ne.s32.totalorder %s75, %s89
    %p91 = scmp.eq.s32.totalorder %s23, 0
    %p92 = por %p90, %p91
    %s94 = sadd.s32 %s93, 1
    %p97 = scmp.eq.s32.totalorder %s17, 3
    %p98 = scmp.ne.s32.totalorder %s93, %s95
    %p99 = scmp.eq.s32.totalorder %s17, 0
    %p100 = por %p98, %p99
    %p101 = scmp.ne.s32.totalorder %s93, %s95
    %p102 = scmp.eq.s32.totalorder %s22, 3
    %p103 = por %p101, %p102
    %p104 = scmp.ne.s32.totalorder %s95, %s96
    %p105 = scmp.eq.s32.totalorder %s22, 0
    %p106 = por %p104, %p105
    %p107 = scmp.ne.s32.totalorder %s95, %s96
    %p108 = scmp.eq.s32.totalorder %s23, 3
    %p109 = por %p107, %p108
    %p111 = scmp.ne.s32.totalorder %s96, %s110
    %p112 = scmp.eq.s32.totalorder %s23, 0
    %p113 = por %p111, %p112
    %s115 = sadd.s32 %s114, 1
    %p118 = scmp.eq.s32.totalorder %s17, 3
    %p119 = scmp.ne.s32.totalorder %s114, %s116
    %p120 = scmp.eq.s32.totalorder %s17, 0
    %p121 = por %p119, %p120
    %p122 = scmp.ne.s32.totalorder %s114, %s116
    %p123 = scmp.eq.s32.totalorder %s22, 3
    %p124 = por %p122, %p123
    %p125 = scmp.ne.s32.totalorder %s116, %s117
    %p126 = scmp.eq.s32.totalorder %s22, 0
    %p127 = por %p125, %p126
    %p128 = scmp.ne.s32.totalorder %s116, %s117
    %p129 = scmp.eq.s32.totalorder %s23, 3
    %p130 = por %p128, %p129
    %p132 = scmp.ne.s32.totalorder %s117, %s131
    %p133 = scmp.eq.s32.totalorder %s23, 0
    %p134 = por %p132, %p133
    %s136 = sadd.s32 %s135, 1
    %p139 = scmp.eq.s32.totalorder %s17, 3
    %p140 = scmp.ne.s32.totalorder %s135, %s137
    %p141 = scmp.eq.s32.totalorder %s17, 0
    %p142 = por %p140, %p141
    %p143 = scmp.ne.s32.totalorder %s135, %s137
    %p144 = scmp.eq.s32.totalorder %s22, 3
    %p145 = por %p143, %p144
    %p146 = scmp.ne.s32.totalorder %s137, %s138
    %p147 = scmp.eq.s32.totalorder %s22, 0
    %p148 = por %p146, %p147
    %p149 = scmp.ne.s32.totalorder %s137, %s138
    %p150 = scmp.eq.s32.totalorder %s23, 3
    %p151 = por %p149, %p150
    %p153 = scmp.ne.s32.totalorder %s138, %s152
    %p154 = scmp.eq.s32.totalorder %s23, 0
    %p155 = por %p153, %p154
    %s157 = sadd.s32 %s156, 1
    %p160 = scmp.eq.s32.totalorder %s17, 3
    %p161 = scmp.ne.s32.totalorder %s156, %s158
    %p162 = scmp.eq.s32.totalorder %s17, 0
    %p163 = por %p161, %p162
    %p164 = scmp.ne.s32.totalorder %s156, %s158
    %p165 = scmp.eq.s32.totalorder %s22, 3
    %p166 = por %p164, %p165
    %p167 = scmp.ne.s32.totalorder %s158, %s159
    %p168 = scmp.eq.s32.totalorder %s22, 0
    %p169 = por %p167, %p168
    %p170 = scmp.ne.s32.totalorder %s158, %s159
    %p171 = scmp.eq.s32.totalorder %s23, 3
    %p172 = por %p170, %p171
    %p174 = scmp.ne.s32.totalorder %s159, %s173
    %p175 = scmp.eq.s32.totalorder %s23, 0
    %p176 = por %p174, %p175
    %s178 = sadd.s32 %s177, 1
    %p181 = scmp.eq.s32.totalorder %s17, 3
    %p182 = scmp.ne.s32.totalorder %s177, %s179
    %p183 = scmp.eq.s32.totalorder %s17, 0
    %p184 = por %p182, %p183
    %p185 = scmp.ne.s32.totalorder %s177, %s179
    %p186 = scmp.eq.s32.totalorder %s22, 3
    %p187 = por %p185, %p186
    %p188 = scmp.ne.s32.totalorder %s179, %s180
    %p189 = scmp.eq.s32.totalorder %s22, 0
    %p190 = por %p188, %p189
    %p191 = scmp.ne.s32.totalorder %s179, %s180
    %p192 = scmp.eq.s32.totalorder %s23, 3
    %p193 = por %p191, %p192
    %p195 = scmp.ne.s32.totalorder %s180, %s194
    %p196 = scmp.eq.s32.totalorder %s23, 0
    %p197 = por %p195, %p196
    %s199 = sadd.s32 %s198, 1
    %p202 = scmp.eq.s32.totalorder %s17, 3
    %p203 = scmp.ne.s32.totalorder %s198, %s200
    %p204 = scmp.eq.s32.totalorder %s17, 0
    %p205 = por %p203, %p204
    %p206 = scmp.ne.s32.totalorder %s198, %s200
    %p207 = scmp.eq.s32.totalorder %s22, 3
    %p208 = por %p206, %p207
    %p209 = scmp.ne.s32.totalorder %s200, %s201
    %p210 = scmp.eq.s32.totalorder %s22, 0
    %p211 = por %p209, %p210
    %p212 = scmp.ne.s32.totalorder %s200, %s201
    %p213 = scmp.eq.s32.totalorder %s23, 3
    %p214 = por %p212, %p213
    %p216 = scmp.ne.s32.totalorder %s201, %s215
    %p217 = scmp.eq.s32.totalorder %s23, 0
    %p218 = por %p216, %p217
    %s220 = sadd.s32 %s219, 1
    %p223 = scmp.eq.s32.totalorder %s17, 3
    %p224 = scmp.ne.s32.totalorder %s219, %s221
    %p225 = scmp.eq.s32.totalorder %s17, 0
    %p226 = por %p224, %p225
    %p227 = scmp.ne.s32.totalorder %s219, %s221
    %p228 = scmp.eq.s32.totalorder %s22, 3
    %p229 = por %p227, %p228
    %p230 = scmp.ne.s32.totalorder %s221, %s222
    %p231 = scmp.eq.s32.totalorder %s22, 0
    %p232 = por %p230, %p231
    %p233 = scmp.ne.s32.totalorder %s221, %s222
    %p234 = scmp.eq.s32.totalorder %s23, 3
    %p235 = por %p233, %p234
    %p237 = scmp.ne.s32.totalorder %s222, %s236
    %p238 = scmp.eq.s32.totalorder %s23, 0
    %p239 = por %p237, %p238
    %s241 = sadd.s32 %s240, 1
    %p244 = scmp.eq.s32.totalorder %s17, 3
    %p245 = scmp.ne.s32.totalorder %s240, %s242
    %p246 = scmp.eq.s32.totalorder %s17, 0
    %p247 = por %p245, %p246
    %p248 = scmp.ne.s32.totalorder %s240, %s242
    %p249 = scmp.eq.s32.totalorder %s22, 3
    %p250 = por %p248, %p249
    %p251 = scmp.ne.s32.totalorder %s242, %s243
    %p252 = scmp.eq.s32.totalorder %s22, 0
    %p253 = por %p251, %p252
    %p254 = scmp.ne.s32.totalorder %s242, %s243
    %p255 = scmp.eq.s32.totalorder %s23, 3
    %p256 = por %p254, %p255
    %p258 = scmp.ne.s32.totalorder %s243, %s257
    %p259 = scmp.eq.s32.totalorder %s23, 0
    %p260 = por %p258, %p259
    %s261 = ssub.s32 %s17, %s24
    %p262 = scmp.eq.s32.totalorder %s261, 0
    %s264 = sadd.s32 %s263, 1
    %s265 = scalar_select %p262, %s263, %s264
    %p268 = pneg %p262
    %p269 = scmp.eq.s32.totalorder %s17, 3
    %p270 = por %p268, %p269
    %p271 = scmp.ne.s32.totalorder %s263, %s266
    %p272 = scmp.eq.s32.totalorder %s17, 0
    %p273 = por %p271, %p272
    %p274 = scmp.ne.s32.totalorder %s263, %s266
    %p275 = scmp.eq.s32.totalorder %s22, 3
    %p276 = por %p274, %p275
    %p277 = scmp.ne.s32.totalorder %s266, %s267
    %p278 = scmp.eq.s32.totalorder %s22, 0
    %p279 = por %p277, %p278
    %p280 = scmp.ne.s32.totalorder %s266, %s267
    %p281 = scmp.eq.s32.totalorder %s23, 3
    %p282 = por %p280, %p281
    %p284 = scmp.ne.s32.totalorder %s267, %s283
    %p285 = scmp.eq.s32.totalorder %s23, 0
    %p286 = por %p284, %p285
    %p287 = scmp.le.s32.totalorder 1, %s17
    %p288 = scmp.lt.s32.totalorder %s17, 5
    %p289 = pnand %p287, %p288
    %p290 = pneg %p289
    // Predicated region
    $region9: #{my_dnn_forward.1} parent=5 // pred_check
      _
    $region10: #{my_dnn_forward.1} parent=5 // pred_check_branch
      %292 = sbr.rel (%p289) target = $region12
    $region11: #{my_dnn_forward.1} parent=5 // pred_region
      %s293 = ssub.s32 %s17, 1
      // Predicated region
      $region13: #{my_dnn_forward.1} parent=11 // pred_check
        %p294 = pneg %p64
      $region14: #{my_dnn_forward.1} parent=11 // pred_check_branch
        %296 = sbr.rel (%p294) target = $region16
      $region15: #{my_dnn_forward.1} parent=11 // pred_region
        _
      $region16: #{my_dnn_forward.1} parent=11 // pred_fallthru
        _
      // Predicated region
      $region17: #{my_dnn_forward.1} parent=11 // pred_check
        %p297 = pneg %p85
      $region18: #{my_dnn_forward.1} parent=11 // pred_check_branch
        %299 = sbr.rel (%p297) target = $region20
      $region19: #{my_dnn_forward.1} parent=11 // pred_region
        _
      $region20: #{my_dnn_forward.1} parent=11 // pred_fallthru
        _
      // Predicated region
      $region21: #{my_dnn_forward.1} parent=11 // pred_check
        %p300 = pneg %p106
      $region22: #{my_dnn_forward.1} parent=11 // pred_check_branch
        %302 = sbr.rel (%p300) target = $region24
      $region23: #{my_dnn_forward.1} parent=11 // pred_region
        _
      $region24: #{my_dnn_forward.1} parent=11 // pred_fallthru
        _
      // Predicated region
      $region25: #{my_dnn_forward.1} parent=11 // pred_check
        %p303 = pneg %p127
      $region26: #{my_dnn_forward.1} parent=11 // pred_check_branch
        %305 = sbr.rel (%p303) target = $region28
      $region27: #{my_dnn_forward.1} parent=11 // pred_region
        _
      $region28: #{my_dnn_forward.1} parent=11 // pred_fallthru
        _
      // Predicated region
      $region29: #{my_dnn_forward.1} parent=11 // pred_check
        %p306 = pneg %p148
      $region30: #{my_dnn_forward.1} parent=11 // pred_check_branch
        %308 = sbr.rel (%p306) target = $region32
      $region31: #{my_dnn_forward.1} parent=11 // pred_region
        _
      $region32: #{my_dnn_forward.1} parent=11 // pred_fallthru
        _
      // Predicated region
      $region33: #{my_dnn_forward.1} parent=11 // pred_check
        %p309 = pneg %p169
      $region34: #{my_dnn_forward.1} parent=11 // pred_check_branch
        %311 = sbr.rel (%p309) target = $region36
      $region35: #{my_dnn_forward.1} parent=11 // pred_region
        _
      $region36: #{my_dnn_forward.1} parent=11 // pred_fallthru
        _
      // Predicated region
      $region37: #{my_dnn_forward.1} parent=11 // pred_check
        %p312 = pneg %p190
      $region38: #{my_dnn_forward.1} parent=11 // pred_check_branch
        %314 = sbr.rel (%p312) target = $region40
      $region39: #{my_dnn_forward.1} parent=11 // pred_region
        _
      $region40: #{my_dnn_forward.1} parent=11 // pred_fallthru
        _
      // Predicated region
      $region41: #{my_dnn_forward.1} parent=11 // pred_check
        %p315 = pneg %p211
      $region42: #{my_dnn_forward.1} parent=11 // pred_check_branch
        %317 = sbr.rel (%p315) target = $region44
      $region43: #{my_dnn_forward.1} parent=11 // pred_region
        _
      $region44: #{my_dnn_forward.1} parent=11 // pred_fallthru
        _
      // Predicated region
      $region45: #{my_dnn_forward.1} parent=11 // pred_check
        %p318 = pneg %p232
      $region46: #{my_dnn_forward.1} parent=11 // pred_check_branch
        %320 = sbr.rel (%p318) target = $region48
      $region47: #{my_dnn_forward.1} parent=11 // pred_region
        _
      $region48: #{my_dnn_forward.1} parent=11 // pred_fallthru
        _
      // Predicated region
      $region49: #{my_dnn_forward.1} parent=11 // pred_check
        %p321 = pneg %p253
      $region50: #{my_dnn_forward.1} parent=11 // pred_check_branch
        %323 = sbr.rel (%p321) target = $region52
      $region51: #{my_dnn_forward.1} parent=11 // pred_region
        _
      $region52: #{my_dnn_forward.1} parent=11 // pred_fallthru
        _
    $region12: #{my_dnn_forward.1} parent=5 // pred_fallthru
      _
    %p324 = scmp.lt.s32.totalorder %s17, 4
    // Predicated region
    $region53: #{my_dnn_forward.1} parent=5 // pred_check
      %p325 = pneg %p324
    $region54: #{my_dnn_forward.1} parent=5 // pred_check_branch
      %327 = sbr.rel (%p325) target = $region56
    $region55: #{my_dnn_forward.1} parent=5 // pred_region
      // Predicated region
      $region57: #{my_dnn_forward.1} parent=55 // pred_check
        %p328 = pneg %p37
      $region58: #{my_dnn_forward.1} parent=55 // pred_check_branch
        %330 = sbr.rel (%p328) target = $region60
      $region59: #{my_dnn_forward.1} parent=55 // pred_region
        %s331 = smul.u32 28, %s17
        %p332 = scmp.lt.s32.totalorder %s331, 111
        %s333 = scalar_select %p332, %s331, 111
        %s334 = smul.addr %s333, 8
        %s335 = scalar_lea.vmem %s0, %s334
        %s336 = smul.u32 28, %s17
      $region60: #{my_dnn_forward.1} parent=55 // pred_fallthru
        _
    $region56: #{my_dnn_forward.1} parent=5 // pred_fallthru
      _
    %p337 = scmp.le.s32.totalorder 1, %s17
    %p338 = scmp.lt.s32.totalorder %s17, 5
    %p339 = pnand %p337, %p338
    %p340 = pneg %p339
    // Predicated region
    $region61: #{my_dnn_forward.1} parent=5 // pred_check
      _
    $region62: #{my_dnn_forward.1} parent=5 // pred_check_branch
      %342 = sbr.rel (%p339) target = $region64
    $region63: #{my_dnn_forward.1} parent=5 // pred_region
      %s343 = ssub.s32 %s17, 1
      %s344 = smul.u32 28, %s22
      %p345 = scmp.lt.s32.totalorder %s344, 111
      %s346 = scalar_select %p345, %s344, 111
      %s347 = smul.addr %s346, 8
      %s348 = scalar_lea.vmem %s0, %s347
      %p349 = pneg %p43
      %p350 = pneg %p40
      %p351 = pneg %p64
      %p352 = pneg %p61
      %p353 = pneg %p85
      %p354 = pneg %p82
      %p355 = pneg %p106
      %p356 = pneg %p103
      %p357 = pneg %p127
      %p358 = pneg %p124
      %p359 = pneg %p148
      %p360 = pneg %p145
      %p361 = pneg %p169
      %p362 = pneg %p166
      %p363 = pneg %p190
      %p364 = pneg %p187
      %p365 = pneg %p211
      %p366 = pneg %p208
      %p367 = pneg %p232
      %p368 = pneg %p229
      %p369 = pneg %p253
      %p370 = pneg %p250
      %p371 = pneg %p279
      %p372 = pneg %p276
      %p373 = scmp.lt.s32.totalorder %s22, 3
      %s374 = scalar_select %p373, %s22, 3
      %s375 = smul.addr %s374, 8
      %s376 = scalar_lea.vmem %s11, %s375
      %s377 = smul.u32 28, %s22
      %p378 = scmp.lt.s32.totalorder %s377, 111
      %s379 = scalar_select %p378, %s377, 111
      %s380 = smul.addr %s379, 8
      %s381 = scalar_lea.vmem %s0, %s380
      %s382 = smul.u32 28, %s22
      %p383 = scmp.lt.s32.totalorder %s22, 3
      %s384 = scalar_select %p383, %s22, 3
      %s385 = smul.addr %s384, 8
      %s386 = scalar_lea.vmem %s11, %s385
      %v388 = vld [vmem:[%s381] sm:$0xff]
      %v389 = vld [vmem:[%s381 + $0x8] sm:$0xff]
      %v390 = vld [vmem:[%s381 + $0x10] sm:$0xff]
      %v391 = vld [vmem:[%s381 + $0x18] sm:$0xff]
      %v392 = vld [vmem:[%s381 + $0x20] sm:$0xff]
      %v393 = vld [vmem:[%s381 + $0x28] sm:$0xff]
      %v394 = vld [vmem:[%s381 + $0x30] sm:$0xff]
      %v395 = vld [vmem:[%s381 + $0x38] sm:$0xff]
      %v396 = vld [vmem:[%s381 + $0x40] sm:$0xff]
      %v397 = vld [vmem:[%s381 + $0x48] sm:$0xff]
      %v398 = vld [vmem:[%s381 + $0x50] sm:$0xff]
      %v399 = vld [vmem:[%s381 + $0x58] sm:$0xff]
      %v400 = vld [vmem:[%s381 + $0x60] sm:$0xff]
      %v401 = vld [vmem:[%s381 + $0x68] sm:$0xff]
      %v402 = vld [vmem:[%s381 + $0x70] sm:$0xff]
      %v403 = vld [vmem:[%s381 + $0x78] sm:$0xff]
      %v404 = vld [vmem:[%s381 + $0x80] sm:$0xff]
      %v405 = vld [vmem:[%s381 + $0x88] sm:$0xff]
      %v406 = vld [vmem:[%s381 + $0x90] sm:$0xff]
      %v407 = vld [vmem:[%s381 + $0x98] sm:$0xff]
      %v408 = vld [vmem:[%s381 + $0xa0] sm:$0xff]
      %v409 = vld [vmem:[%s381 + $0xa8] sm:$0xff]
      %v410 = vld [vmem:[%s381 + $0xb0] sm:$0xff]
      %v411 = vld [vmem:[%s381 + $0xb8] sm:$0xff]
      %v412 = vld [vmem:[%s381 + $0xc0] sm:$0xff]
      %v413 = vld [vmem:[%s381 + $0xc8] sm:$0xff]
      %v414 = vld [vmem:[%s381 + $0xd0] sm:$0xff]
      %v415 = vld [vmem:[%s381 + $0xd8] sm:$0xff]
      %v416 = vpack.c.bf16 %v389, %v388
      %v417 = vpack.c.bf16 %v391, %v390
      %v418 = vpack.c.bf16 %v393, %v392
      %v419 = vpack.c.bf16 %v395, %v394
      %v420 = vpack.c.bf16 %v397, %v396
      %v421 = vpack.c.bf16 %v399, %v398
      %v422 = vpack.c.bf16 %v401, %v400
      %v423 = vpack.c.bf16 %v403, %v402
      %v424 = vpack.c.bf16 %v405, %v404
      %v425 = vpack.c.bf16 %v407, %v406
      %v426 = vpack.c.bf16 %v409, %v408
      %v427 = vpack.c.bf16 %v411, %v410
      %v428 = vpack.c.bf16 %v413, %v412
      %v429 = vpack.c.bf16 %v415, %v414
      %v430 = vld [vmem:[%s1] sm:$0xff]
      %v431 = vld [vmem:[%s1 + $0x8] sm:$0xff]
      %v432 = vld [vmem:[%s1 + $0x10] sm:$0xff]
      %v433 = vld [vmem:[%s1 + $0x18] sm:$0xff]
      %v434 = vld [vmem:[%s1 + $0x20] sm:$0xff]
      %v435 = vld [vmem:[%s1 + $0x28] sm:$0xff]
      %v436 = vld [vmem:[%s1 + $0x30] sm:$0xff]
      %v437 = vld [vmem:[%s1 + $0x38] sm:$0xff]
      %v438 = vld [vmem:[%s1 + $0x40] sm:$0xff]
      %v439 = vld [vmem:[%s1 + $0x48] sm:$0xff]
      %v440 = vld [vmem:[%s1 + $0x50] sm:$0xff]
      %v441 = vld [vmem:[%s1 + $0x58] sm:$0xff]
      %v442 = vld [vmem:[%s1 + $0x60] sm:$0xff]
      %v443 = vld [vmem:[%s1 + $0x68] sm:$0xff]
      %v444 = vld [vmem:[%s1 + $0x70] sm:$0xff]
      %v445 = vld [vmem:[%s1 + $0x78] sm:$0xff]
      %v446 = vld [vmem:[%s1 + $0x80] sm:$0xff]
      %v447 = vld [vmem:[%s1 + $0x88] sm:$0xff]
      %v448 = vld [vmem:[%s1 + $0x90] sm:$0xff]
      %v449 = vld [vmem:[%s1 + $0x98] sm:$0xff]
      %v450 = vld [vmem:[%s1 + $0xa0] sm:$0xff]
      %v451 = vld [vmem:[%s1 + $0xa8] sm:$0xff]
      %v452 = vld [vmem:[%s1 + $0xb0] sm:$0xff]
      %v453 = vld [vmem:[%s1 + $0xb8] sm:$0xff]
      %v454 = vld [vmem:[%s1 + $0xc0] sm:$0xff]
      %v455 = vld [vmem:[%s1 + $0xc8] sm:$0xff]
      %v456 = vld [vmem:[%s1 + $0xd0] sm:$0xff]
      %v457 = vld [vmem:[%s1 + $0xd8] sm:$0xff]
      %v458 = vld [vmem:[%s1 + $0xe0] sm:$0xff]
      %v459 = vld [vmem:[%s1 + $0xe8] sm:$0xff]
      %v460 = vld [vmem:[%s1 + $0xf0] sm:$0xff]
      %v461 = vld [vmem:[%s1 + $0xf8] sm:$0xff]
      %v462 = vld [vmem:[%s1 + $0x100] sm:$0xff]
      %v463 = vld [vmem:[%s1 + $0x108] sm:$0xff]
      %v464 = vld [vmem:[%s1 + $0x110] sm:$0xff]
      %v465 = vld [vmem:[%s1 + $0x118] sm:$0xff]
      %v466 = vld [vmem:[%s1 + $0x120] sm:$0xff]
      %v467 = vld [vmem:[%s1 + $0x128] sm:$0xff]
      %v468 = vld [vmem:[%s1 + $0x130] sm:$0xff]
      %v469 = vld [vmem:[%s1 + $0x138] sm:$0xff]
      %v470 = vld [vmem:[%s1 + $0x140] sm:$0xff]
      %v471 = vld [vmem:[%s1 + $0x148] sm:$0xff]
      %v472 = vld [vmem:[%s1 + $0x150] sm:$0xff]
      %v473 = vld [vmem:[%s1 + $0x158] sm:$0xff]
      %v474 = vld [vmem:[%s1 + $0x160] sm:$0xff]
      %v475 = vld [vmem:[%s1 + $0x168] sm:$0xff]
      %v476 = vld [vmem:[%s1 + $0x170] sm:$0xff]
      %v477 = vld [vmem:[%s1 + $0x178] sm:$0xff]
      %v478 = vld [vmem:[%s1 + $0x180] sm:$0xff]
      %v479 = vld [vmem:[%s1 + $0x188] sm:$0xff]
      %v480 = vld [vmem:[%s1 + $0x190] sm:$0xff]
      %v481 = vld [vmem:[%s1 + $0x198] sm:$0xff]
      %v482 = vld [vmem:[%s1 + $0x1a0] sm:$0xff]
      %v483 = vld [vmem:[%s1 + $0x1a8] sm:$0xff]
      %v484 = vld [vmem:[%s1 + $0x1b0] sm:$0xff]
      %v485 = vld [vmem:[%s1 + $0x1b8] sm:$0xff]
      %v486 = vld [vmem:[%s1 + $0x1c0] sm:$0xff]
      %v487 = vld [vmem:[%s1 + $0x1c8] sm:$0xff]
      %v488 = vld [vmem:[%s1 + $0x1d0] sm:$0xff]
      %v489 = vld [vmem:[%s1 + $0x1d8] sm:$0xff]
      %v490 = vld [vmem:[%s1 + $0x1e0] sm:$0xff]
      %v491 = vld [vmem:[%s1 + $0x1e8] sm:$0xff]
      %v492 = vld [vmem:[%s1 + $0x1f0] sm:$0xff]
      %v493 = vld [vmem:[%s1 + $0x1f8] sm:$0xff]
      %v494 = vld [vmem:[%s1 + $0x200] sm:$0xff]
      %v495 = vld [vmem:[%s1 + $0x208] sm:$0xff]
      %v496 = vld [vmem:[%s1 + $0x210] sm:$0xff]
      %v497 = vld [vmem:[%s1 + $0x218] sm:$0xff]
      %v498 = vld [vmem:[%s1 + $0x220] sm:$0xff]
      %v499 = vld [vmem:[%s1 + $0x228] sm:$0xff]
      %v500 = vld [vmem:[%s1 + $0x230] sm:$0xff]
      %v501 = vld [vmem:[%s1 + $0x238] sm:$0xff]
      %v502 = vld [vmem:[%s1 + $0x240] sm:$0xff]
      %v503 = vld [vmem:[%s1 + $0x248] sm:$0xff]
      %v504 = vld [vmem:[%s1 + $0x250] sm:$0xff]
      %v505 = vld [vmem:[%s1 + $0x258] sm:$0xff]
      %v506 = vld [vmem:[%s1 + $0x260] sm:$0xff]
      %v507 = vld [vmem:[%s1 + $0x268] sm:$0xff]
      %v508 = vld [vmem:[%s1 + $0x270] sm:$0xff]
      %v509 = vld [vmem:[%s1 + $0x278] sm:$0xff]
      %v510 = vld [vmem:[%s1 + $0x280] sm:$0xff]
      %v511 = vld [vmem:[%s1 + $0x288] sm:$0xff]
      %v512 = vld [vmem:[%s1 + $0x290] sm:$0xff]
      %v513 = vld [vmem:[%s1 + $0x298] sm:$0xff]
      %v514 = vld [vmem:[%s1 + $0x2a0] sm:$0xff]
      %v515 = vld [vmem:[%s1 + $0x2a8] sm:$0xff]
      %v516 = vld [vmem:[%s1 + $0x2b0] sm:$0xff]
      %v517 = vld [vmem:[%s1 + $0x2b8] sm:$0xff]
      %v518 = vld [vmem:[%s1 + $0x2c0] sm:$0xff]
      %v519 = vld [vmem:[%s1 + $0x2c8] sm:$0xff]
      %v520 = vld [vmem:[%s1 + $0x2d0] sm:$0xff]
      %v521 = vld [vmem:[%s1 + $0x2d8] sm:$0xff]
      %v522 = vld [vmem:[%s1 + $0x2e0] sm:$0xff]
      %v523 = vld [vmem:[%s1 + $0x2e8] sm:$0xff]
      %v524 = vld [vmem:[%s1 + $0x2f0] sm:$0xff]
      %v525 = vld [vmem:[%s1 + $0x2f8] sm:$0xff]
      %v526 = vld [vmem:[%s1 + $0x300] sm:$0xff]
      %v527 = vld [vmem:[%s1 + $0x308] sm:$0xff]
      %v528 = vld [vmem:[%s1 + $0x310] sm:$0xff]
      %v529 = vld [vmem:[%s1 + $0x318] sm:$0xff]
      %v530 = vld [vmem:[%s1 + $0x320] sm:$0xff]
      %v531 = vld [vmem:[%s1 + $0x328] sm:$0xff]
      %v532 = vld [vmem:[%s1 + $0x330] sm:$0xff]
      %v533 = vld [vmem:[%s1 + $0x338] sm:$0xff]
      %v534 = vld [vmem:[%s1 + $0x340] sm:$0xff]
      %v535 = vld [vmem:[%s1 + $0x348] sm:$0xff]
      %v536 = vld [vmem:[%s1 + $0x350] sm:$0xff]
      %v537 = vld [vmem:[%s1 + $0x358] sm:$0xff]
      %v538 = vld [vmem:[%s1 + $0x360] sm:$0xff]
      %v539 = vld [vmem:[%s1 + $0x368] sm:$0xff]
      %v540 = vld [vmem:[%s1 + $0x370] sm:$0xff]
      %v541 = vld [vmem:[%s1 + $0x378] sm:$0xff]
      %v542 = vld [vmem:[%s1 + $0x380] sm:$0xff]
      %v543 = vld [vmem:[%s1 + $0x388] sm:$0xff]
      %v544 = vld [vmem:[%s1 + $0x390] sm:$0xff]
      %v545 = vld [vmem:[%s1 + $0x398] sm:$0xff]
      %v546 = vld [vmem:[%s1 + $0x3a0] sm:$0xff]
      %v547 = vld [vmem:[%s1 + $0x3a8] sm:$0xff]
      %v548 = vld [vmem:[%s1 + $0x3b0] sm:$0xff]
      %v549 = vld [vmem:[%s1 + $0x3b8] sm:$0xff]
      %v550 = vld [vmem:[%s1 + $0x3c0] sm:$0xff]
      %v551 = vld [vmem:[%s1 + $0x3c8] sm:$0xff]
      %v552 = vld [vmem:[%s1 + $0x3d0] sm:$0xff]
      %v553 = vld [vmem:[%s1 + $0x3d8] sm:$0xff]
      %v554 = vld [vmem:[%s1 + $0x3e0] sm:$0xff]
      %v555 = vld [vmem:[%s1 + $0x3e8] sm:$0xff]
      %v556 = vld [vmem:[%s1 + $0x3f0] sm:$0xff]
      %v557 = vld [vmem:[%s1 + $0x3f8] sm:$0xff]
      %v558 = vld [vmem:[%s1 + $0x400] sm:$0xff]
      %v559 = vld [vmem:[%s1 + $0x408] sm:$0xff]
      %v560 = vld [vmem:[%s1 + $0x410] sm:$0xff]
      %v561 = vld [vmem:[%s1 + $0x418] sm:$0xff]
      %v562 = vld [vmem:[%s1 + $0x420] sm:$0xff]
      %v563 = vld [vmem:[%s1 + $0x428] sm:$0xff]
      %v564 = vld [vmem:[%s1 + $0x430] sm:$0xff]
      %v565 = vld [vmem:[%s1 + $0x438] sm:$0xff]
      %v566 = vld [vmem:[%s1 + $0x440] sm:$0xff]
      %v567 = vld [vmem:[%s1 + $0x448] sm:$0xff]
      %v568 = vld [vmem:[%s1 + $0x450] sm:$0xff]
      %v569 = vld [vmem:[%s1 + $0x458] sm:$0xff]
      %v710 = vunpack.c.l.b16 %v430
      %v711 = vunpack.c.h.b16 %v430
      %v712 = vunpack.c.l.b16 %v431
      %v713 = vunpack.c.h.b16 %v431
      %v714 = vunpack.c.l.b16 %v432
      %v715 = vunpack.c.h.b16 %v432
      %v716 = vunpack.c.l.b16 %v433
      %v717 = vunpack.c.h.b16 %v433
      %v718 = vunpack.c.l.b16 %v434
      %v719 = vunpack.c.h.b16 %v434
      %v720 = vunpack.c.l.b16 %v435
      %v721 = vunpack.c.h.b16 %v435
      %v722 = vunpack.c.l.b16 %v436
      %v723 = vunpack.c.h.b16 %v436
      %v724 = vunpack.c.l.b16 %v437
      %v725 = vunpack.c.h.b16 %v437
      %v726 = vunpack.c.l.b16 %v438
      %v727 = vunpack.c.h.b16 %v438
      %v728 = vunpack.c.l.b16 %v439
      %v729 = vunpack.c.h.b16 %v439
      %v730 = vunpack.c.l.b16 %v440
      %v731 = vunpack.c.h.b16 %v440
      %v732 = vunpack.c.l.b16 %v441
      %v733 = vunpack.c.h.b16 %v441
      %v734 = vunpack.c.l.b16 %v442
      %v735 = vunpack.c.h.b16 %v442
      %v736 = vunpack.c.l.b16 %v443
      %v737 = vunpack.c.h.b16 %v443
      %v738 = vunpack.c.l.b16 %v444
      %v739 = vunpack.c.h.b16 %v444
      %v740 = vunpack.c.l.b16 %v445
      %v741 = vunpack.c.h.b16 %v445
      %v742 = vunpack.c.l.b16 %v446
      %v743 = vunpack.c.h.b16 %v446
      %v744 = vunpack.c.l.b16 %v447
      %v745 = vunpack.c.h.b16 %v447
      %v746 = vunpack.c.l.b16 %v448
      %v747 = vunpack.c.h.b16 %v448
      %v748 = vunpack.c.l.b16 %v449
      %v749 = vunpack.c.h.b16 %v449
      %v750 = vunpack.c.l.b16 %v450
      %v751 = vunpack.c.h.b16 %v450
      %v752 = vunpack.c.l.b16 %v451
      %v753 = vunpack.c.h.b16 %v451
      %v754 = vunpack.c.l.b16 %v452
      %v755 = vunpack.c.h.b16 %v452
      %v756 = vunpack.c.l.b16 %v453
      %v757 = vunpack.c.h.b16 %v453
      %v758 = vunpack.c.l.b16 %v454
      %v759 = vunpack.c.h.b16 %v454
      %v760 = vunpack.c.l.b16 %v455
      %v761 = vunpack.c.h.b16 %v455
      %v762 = vunpack.c.l.b16 %v456
      %v763 = vunpack.c.h.b16 %v456
      %v764 = vunpack.c.l.b16 %v457
      %v765 = vunpack.c.h.b16 %v457
      %v766 = vunpack.c.l.b16 %v458
      %v767 = vunpack.c.h.b16 %v458
      %v768 = vunpack.c.l.b16 %v459
      %v769 = vunpack.c.h.b16 %v459
      %v770 = vunpack.c.l.b16 %v460
      %v771 = vunpack.c.h.b16 %v460
      %v772 = vunpack.c.l.b16 %v461
      %v773 = vunpack.c.h.b16 %v461
      %v774 = vunpack.c.l.b16 %v462
      %v775 = vunpack.c.h.b16 %v462
      %v776 = vunpack.c.l.b16 %v463
      %v777 = vunpack.c.h.b16 %v463
      %v778 = vunpack.c.l.b16 %v464
      %v779 = vunpack.c.h.b16 %v464
      %v780 = vunpack.c.l.b16 %v465
      %v781 = vunpack.c.h.b16 %v465
      %v782 = vunpack.c.l.b16 %v466
      %v783 = vunpack.c.h.b16 %v466
      %v784 = vunpack.c.l.b16 %v467
      %v785 = vunpack.c.h.b16 %v467
      %v786 = vunpack.c.l.b16 %v468
      %v787 = vunpack.c.h.b16 %v468
      %v788 = vunpack.c.l.b16 %v469
      %v789 = vunpack.c.h.b16 %v469
      %v790 = vunpack.c.l.b16 %v470
      %v791 = vunpack.c.h.b16 %v470
      %v792 = vunpack.c.l.b16 %v471
      %v793 = vunpack.c.h.b16 %v471
      %v794 = vunpack.c.l.b16 %v472
      %v795 = vunpack.c.h.b16 %v472
      %v796 = vunpack.c.l.b16 %v473
      %v797 = vunpack.c.h.b16 %v473
      %v798 = vunpack.c.l.b16 %v474
      %v799 = vunpack.c.h.b16 %v474
      %v800 = vunpack.c.l.b16 %v475
      %v801 = vunpack.c.h.b16 %v475
      %v802 = vunpack.c.l.b16 %v476
      %v803 = vunpack.c.h.b16 %v476
      %v804 = vunpack.c.l.b16 %v477
      %v805 = vunpack.c.h.b16 %v477
      %v806 = vunpack.c.l.b16 %v478
      %v807 = vunpack.c.h.b16 %v478
      %v808 = vunpack.c.l.b16 %v479
      %v809 = vunpack.c.h.b16 %v479
      %v810 = vunpack.c.l.b16 %v480
      %v811 = vunpack.c.h.b16 %v480
      %v812 = vunpack.c.l.b16 %v481
      %v813 = vunpack.c.h.b16 %v481
      %v814 = vunpack.c.l.b16 %v482
      %v815 = vunpack.c.h.b16 %v482
      %v816 = vunpack.c.l.b16 %v483
      %v817 = vunpack.c.h.b16 %v483
      %v818 = vunpack.c.l.b16 %v484
      %v819 = vunpack.c.h.b16 %v484
      %v820 = vunpack.c.l.b16 %v485
      %v821 = vunpack.c.h.b16 %v485
      %v822 = vunpack.c.l.b16 %v486
      %v823 = vunpack.c.h.b16 %v486
      %v824 = vunpack.c.l.b16 %v487
      %v825 = vunpack.c.h.b16 %v487
      %v826 = vunpack.c.l.b16 %v488
      %v827 = vunpack.c.h.b16 %v488
      %v828 = vunpack.c.l.b16 %v489
      %v829 = vunpack.c.h.b16 %v489
      %v830 = vunpack.c.l.b16 %v490
      %v831 = vunpack.c.h.b16 %v490
      %v832 = vunpack.c.l.b16 %v491
      %v833 = vunpack.c.h.b16 %v491
      %v834 = vunpack.c.l.b16 %v492
      %v835 = vunpack.c.h.b16 %v492
      %v836 = vunpack.c.l.b16 %v493
      %v837 = vunpack.c.h.b16 %v493
      %v838 = vunpack.c.l.b16 %v494
      %v839 = vunpack.c.h.b16 %v494
      %v840 = vunpack.c.l.b16 %v495
      %v841 = vunpack.c.h.b16 %v495
      %v842 = vunpack.c.l.b16 %v496
      %v843 = vunpack.c.h.b16 %v496
      %v844 = vunpack.c.l.b16 %v497
      %v845 = vunpack.c.h.b16 %v497
      %v846 = vunpack.c.l.b16 %v498
      %v847 = vunpack.c.h.b16 %v498
      %v848 = vunpack.c.l.b16 %v499
      %v849 = vunpack.c.h.b16 %v499
      %v850 = vunpack.c.l.b16 %v500
      %v851 = vunpack.c.h.b16 %v500
      %v852 = vunpack.c.l.b16 %v501
      %v853 = vunpack.c.h.b16 %v501
      %v854 = vunpack.c.l.b16 %v502
      %v855 = vunpack.c.h.b16 %v502
      %v856 = vunpack.c.l.b16 %v503
      %v857 = vunpack.c.h.b16 %v503
      %v858 = vunpack.c.l.b16 %v504
      %v859 = vunpack.c.h.b16 %v504
      %v860 = vunpack.c.l.b16 %v505
      %v861 = vunpack.c.h.b16 %v505
      %v862 = vunpack.c.l.b16 %v506
      %v863 = vunpack.c.h.b16 %v506
      %v864 = vunpack.c.l.b16 %v507
      %v865 = vunpack.c.h.b16 %v507
      %v866 = vunpack.c.l.b16 %v508
      %v867 = vunpack.c.h.b16 %v508
      %v868 = vunpack.c.l.b16 %v509
      %v869 = vunpack.c.h.b16 %v509
      %v870 = vunpack.c.l.b16 %v510
      %v871 = vunpack.c.h.b16 %v510
      %v872 = vunpack.c.l.b16 %v511
      %v873 = vunpack.c.h.b16 %v511
      %v874 = vunpack.c.l.b16 %v512
      %v875 = vunpack.c.h.b16 %v512
      %v876 = vunpack.c.l.b16 %v513
      %v877 = vunpack.c.h.b16 %v513
      %v878 = vunpack.c.l.b16 %v514
      %v879 = vunpack.c.h.b16 %v514
      %v880 = vunpack.c.l.b16 %v515
      %v881 = vunpack.c.h.b16 %v515
      %v882 = vunpack.c.l.b16 %v516
      %v883 = vunpack.c.h.b16 %v516
      %v884 = vunpack.c.l.b16 %v517
      %v885 = vunpack.c.h.b16 %v517
      %v886 = vunpack.c.l.b16 %v518
      %v887 = vunpack.c.h.b16 %v518
      %v888 = vunpack.c.l.b16 %v519
      %v889 = vunpack.c.h.b16 %v519
      %v890 = vunpack.c.l.b16 %v520
      %v891 = vunpack.c.h.b16 %v520
      %v892 = vunpack.c.l.b16 %v521
      %v893 = vunpack.c.h.b16 %v521
      %v894 = vunpack.c.l.b16 %v522
      %v895 = vunpack.c.h.b16 %v522
      %v896 = vunpack.c.l.b16 %v523
      %v897 = vunpack.c.h.b16 %v523
      %v898 = vunpack.c.l.b16 %v524
      %v899 = vunpack.c.h.b16 %v524
      %v900 = vunpack.c.l.b16 %v525
      %v901 = vunpack.c.h.b16 %v525
      %v902 = vunpack.c.l.b16 %v526
      %v903 = vunpack.c.h.b16 %v526
      %v904 = vunpack.c.l.b16 %v527
      %v905 = vunpack.c.h.b16 %v527
      %v906 = vunpack.c.l.b16 %v528
      %v907 = vunpack.c.h.b16 %v528
      %v908 = vunpack.c.l.b16 %v529
      %v909 = vunpack.c.h.b16 %v529
      %v910 = vunpack.c.l.b16 %v530
      %v911 = vunpack.c.h.b16 %v530
      %v912 = vunpack.c.l.b16 %v531
      %v913 = vunpack.c.h.b16 %v531
      %v914 = vunpack.c.l.b16 %v532
      %v915 = vunpack.c.h.b16 %v532
      %v916 = vunpack.c.l.b16 %v533
      %v917 = vunpack.c.h.b16 %v533
      %v918 = vunpack.c.l.b16 %v534
      %v919 = vunpack.c.h.b16 %v534
      %v920 = vunpack.c.l.b16 %v535
      %v921 = vunpack.c.h.b16 %v535
      %v922 = vunpack.c.l.b16 %v536
      %v923 = vunpack.c.h.b16 %v536
      %v924 = vunpack.c.l.b16 %v537
      %v925 = vunpack.c.h.b16 %v537
      %v926 = vunpack.c.l.b16 %v538
      %v927 = vunpack.c.h.b16 %v538
      %v928 = vunpack.c.l.b16 %v539
      %v929 = vunpack.c.h.b16 %v539
      %v930 = vunpack.c.l.b16 %v540
      %v931 = vunpack.c.h.b16 %v540
      %v932 = vunpack.c.l.b16 %v541
      %v933 = vunpack.c.h.b16 %v541
      %v934 = vunpack.c.l.b16 %v542
      %v935 = vunpack.c.h.b16 %v542
      %v936 = vunpack.c.l.b16 %v543
      %v937 = vunpack.c.h.b16 %v543
      %v938 = vunpack.c.l.b16 %v544
      %v939 = vunpack.c.h.b16 %v544
      %v940 = vunpack.c.l.b16 %v545
      %v941 = vunpack.c.h.b16 %v545
      %v942 = vunpack.c.l.b16 %v546
      %v943 = vunpack.c.h.b16 %v546
      %v944 = vunpack.c.l.b16 %v547
      %v945 = vunpack.c.h.b16 %v547
      %v946 = vunpack.c.l.b16 %v548
      %v947 = vunpack.c.h.b16 %v548
      %v948 = vunpack.c.l.b16 %v549
      %v949 = vunpack.c.h.b16 %v549
      %v950 = vunpack.c.l.b16 %v550
      %v951 = vunpack.c.h.b16 %v550
      %v952 = vunpack.c.l.b16 %v551
      %v953 = vunpack.c.h.b16 %v551
      %v954 = vunpack.c.l.b16 %v552
      %v955 = vunpack.c.h.b16 %v552
      %v956 = vunpack.c.l.b16 %v553
      %v957 = vunpack.c.h.b16 %v553
      %v958 = vunpack.c.l.b16 %v554
      %v959 = vunpack.c.h.b16 %v554
      %v960 = vunpack.c.l.b16 %v555
      %v961 = vunpack.c.h.b16 %v555
      %v962 = vunpack.c.l.b16 %v556
      %v963 = vunpack.c.h.b16 %v556
      %v964 = vunpack.c.l.b16 %v557
      %v965 = vunpack.c.h.b16 %v557
      %v966 = vunpack.c.l.b16 %v558
      %v967 = vunpack.c.h.b16 %v558
      %v968 = vunpack.c.l.b16 %v559
      %v969 = vunpack.c.h.b16 %v559
      %v970 = vunpack.c.l.b16 %v560
      %v971 = vunpack.c.h.b16 %v560
      %v972 = vunpack.c.l.b16 %v561
      %v973 = vunpack.c.h.b16 %v561
      %v974 = vunpack.c.l.b16 %v562
      %v975 = vunpack.c.h.b16 %v562
      %v976 = vunpack.c.l.b16 %v563
      %v977 = vunpack.c.h.b16 %v563
      %v978 = vunpack.c.l.b16 %v564
      %v979 = vunpack.c.h.b16 %v564
      %v980 = vunpack.c.l.b16 %v565
      %v981 = vunpack.c.h.b16 %v565
      %v982 = vunpack.c.l.b16 %v566
      %v983 = vunpack.c.h.b16 %v566
      %v984 = vunpack.c.l.b16 %v567
      %v985 = vunpack.c.h.b16 %v567
      %v986 = vunpack.c.l.b16 %v568
      %v987 = vunpack.c.h.b16 %v568
      %v988 = vunpack.c.l.b16 %v569
      %v989 = vunpack.c.h.b16 %v569
      %v990 = vpack.c.b16 %v712, %v710
      %v991 = vpack.c.b16 %v713, %v711
      %v992 = vpack.c.b16 %v716, %v714
      %v993 = vpack.c.b16 %v717, %v715
      %v994 = vpack.c.b16 %v720, %v718
      %v995 = vpack.c.b16 %v721, %v719
      %v996 = vpack.c.b16 %v724, %v722
      %v997 = vpack.c.b16 %v725, %v723
      %v998 = vpack.c.b16 %v728, %v726
      %v999 = vpack.c.b16 %v729, %v727
      %v1000 = vpack.c.b16 %v732, %v730
      %v1001 = vpack.c.b16 %v733, %v731
      %v1002 = vpack.c.b16 %v736, %v734
      %v1003 = vpack.c.b16 %v737, %v735
      %v1004 = vpack.c.b16 %v740, %v738
      %v1005 = vpack.c.b16 %v741, %v739
      %v1006 = vpack.c.b16 %v744, %v742
      %v1007 = vpack.c.b16 %v745, %v743
      %v1008 = vpack.c.b16 %v748, %v746
      %v1009 = vpack.c.b16 %v749, %v747
      %v1010 = vpack.c.b16 %v752, %v750
      %v1011 = vpack.c.b16 %v753, %v751
      %v1012 = vpack.c.b16 %v756, %v754
      %v1013 = vpack.c.b16 %v757, %v755
      %v1014 = vpack.c.b16 %v760, %v758
      %v1015 = vpack.c.b16 %v761, %v759
      %v1016 = vpack.c.b16 %v764, %v762
      %v1017 = vpack.c.b16 %v765, %v763
      %v1018 = vpack.c.b16 %v768, %v766
      %v1019 = vpack.c.b16 %v769, %v767
      %v1020 = vpack.c.b16 %v772, %v770
      %v1021 = vpack.c.b16 %v773, %v771
      %v1022 = vpack.c.b16 %v776, %v774
      %v1023 = vpack.c.b16 %v777, %v775
      %v1024 = vpack.c.b16 %v780, %v778
      %v1025 = vpack.c.b16 %v781, %v779
      %v1026 = vpack.c.b16 %v784, %v782
      %v1027 = vpack.c.b16 %v785, %v783
      %v1028 = vpack.c.b16 %v788, %v786
      %v1029 = vpack.c.b16 %v789, %v787
      %v1030 = vpack.c.b16 %v792, %v790
      %v1031 = vpack.c.b16 %v793, %v791
      %v1032 = vpack.c.b16 %v796, %v794
      %v1033 = vpack.c.b16 %v797, %v795
      %v1034 = vpack.c.b16 %v800, %v798
      %v1035 = vpack.c.b16 %v801, %v799
      %v1036 = vpack.c.b16 %v804, %v802
      %v1037 = vpack.c.b16 %v805, %v803
      %v1038 = vpack.c.b16 %v808, %v806
      %v1039 = vpack.c.b16 %v809, %v807
      %v1040 = vpack.c.b16 %v812, %v810
      %v1041 = vpack.c.b16 %v813, %v811
      %v1042 = vpack.c.b16 %v816, %v814
      %v1043 = vpack.c.b16 %v817, %v815
      %v1044 = vpack.c.b16 %v820, %v818
      %v1045 = vpack.c.b16 %v821, %v819
      %v1046 = vpack.c.b16 %v824, %v822
      %v1047 = vpack.c.b16 %v825, %v823
      %v1048 = vpack.c.b16 %v828, %v826
      %v1049 = vpack.c.b16 %v829, %v827
      %v1050 = vpack.c.b16 %v832, %v830
      %v1051 = vpack.c.b16 %v833, %v831
      %v1052 = vpack.c.b16 %v836, %v834
      %v1053 = vpack.c.b16 %v837, %v835
      %v1054 = vpack.c.b16 %v840, %v838
      %v1055 = vpack.c.b16 %v841, %v839
      %v1056 = vpack.c.b16 %v844, %v842
      %v1057 = vpack.c.b16 %v845, %v843
      %v1058 = vpack.c.b16 %v848, %v846
      %v1059 = vpack.c.b16 %v849, %v847
      %v1060 = vpack.c.b16 %v852, %v850
      %v1061 = vpack.c.b16 %v853, %v851
      %v1062 = vpack.c.b16 %v856, %v854
      %v1063 = vpack.c.b16 %v857, %v855
      %v1064 = vpack.c.b16 %v860, %v858
      %v1065 = vpack.c.b16 %v861, %v859
      %v1066 = vpack.c.b16 %v864, %v862
      %v1067 = vpack.c.b16 %v865, %v863
      %v1068 = vpack.c.b16 %v868, %v866
      %v1069 = vpack.c.b16 %v869, %v867
      %v1070 = vpack.c.b16 %v872, %v870
      %v1071 = vpack.c.b16 %v873, %v871
      %v1072 = vpack.c.b16 %v876, %v874
      %v1073 = vpack.c.b16 %v877, %v875
      %v1074 = vpack.c.b16 %v880, %v878
      %v1075 = vpack.c.b16 %v881, %v879
      %v1076 = vpack.c.b16 %v884, %v882
      %v1077 = vpack.c.b16 %v885, %v883
      %v1078 = vpack.c.b16 %v888, %v886
      %v1079 = vpack.c.b16 %v889, %v887
      %v1080 = vpack.c.b16 %v892, %v890
      %v1081 = vpack.c.b16 %v893, %v891
      %v1082 = vpack.c.b16 %v896, %v894
      %v1083 = vpack.c.b16 %v897, %v895
      %v1084 = vpack.c.b16 %v900, %v898
      %v1085 = vpack.c.b16 %v901, %v899
      %v1086 = vpack.c.b16 %v904, %v902
      %v1087 = vpack.c.b16 %v905, %v903
      %v1088 = vpack.c.b16 %v908, %v906
      %v1089 = vpack.c.b16 %v909, %v907
      %v1090 = vpack.c.b16 %v912, %v910
      %v1091 = vpack.c.b16 %v913, %v911
      %v1092 = vpack.c.b16 %v916, %v914
      %v1093 = vpack.c.b16 %v917, %v915
      %v1094 = vpack.c.b16 %v920, %v918
      %v1095 = vpack.c.b16 %v921, %v919
      %v1096 = vpack.c.b16 %v924, %v922
      %v1097 = vpack.c.b16 %v925, %v923
      %v1098 = vpack.c.b16 %v928, %v926
      %v1099 = vpack.c.b16 %v929, %v927
      %v1100 = vpack.c.b16 %v932, %v930
      %v1101 = vpack.c.b16 %v933, %v931
      %v1102 = vpack.c.b16 %v936, %v934
      %v1103 = vpack.c.b16 %v937, %v935
      %v1104 = vpack.c.b16 %v940, %v938
      %v1105 = vpack.c.b16 %v941, %v939
      %v1106 = vpack.c.b16 %v944, %v942
      %v1107 = vpack.c.b16 %v945, %v943
      %v1108 = vpack.c.b16 %v948, %v946
      %v1109 = vpack.c.b16 %v949, %v947
      %v1110 = vpack.c.b16 %v952, %v950
      %v1111 = vpack.c.b16 %v953, %v951
      %v1112 = vpack.c.b16 %v956, %v954
      %v1113 = vpack.c.b16 %v957, %v955
      %v1114 = vpack.c.b16 %v960, %v958
      %v1115 = vpack.c.b16 %v961, %v959
      %v1116 = vpack.c.b16 %v964, %v962
      %v1117 = vpack.c.b16 %v965, %v963
      %v1118 = vpack.c.b16 %v968, %v966
      %v1119 = vpack.c.b16 %v969, %v967
      %v1120 = vpack.c.b16 %v972, %v970
      %v1121 = vpack.c.b16 %v973, %v971
      %v1122 = vpack.c.b16 %v976, %v974
      %v1123 = vpack.c.b16 %v977, %v975
      %v1124 = vpack.c.b16 %v980, %v978
      %v1125 = vpack.c.b16 %v981, %v979
      %v1126 = vpack.c.b16 %v984, %v982
      %v1127 = vpack.c.b16 %v985, %v983
      %v1128 = vpack.c.b16 %v988, %v986
      %v1129 = vpack.c.b16 %v989, %v987
      %vm1200 = vcmask 785408
      %v1202 = vsel %vm1200, %v991, 0
      %v1205 = vsel %vm1200, %v993, 0
      %v1208 = vsel %vm1200, %v995, 0
      %v1211 = vsel %vm1200, %v997, 0
      %v1214 = vsel %vm1200, %v999, 0
      %v1217 = vsel %vm1200, %v1001, 0
      %v1220 = vsel %vm1200, %v1003, 0
      %v1223 = vsel %vm1200, %v1005, 0
      %v1226 = vsel %vm1200, %v1007, 0
      %v1229 = vsel %vm1200, %v1009, 0
      %v1232 = vsel %vm1200, %v1011, 0
      %v1235 = vsel %vm1200, %v1013, 0
      %v1238 = vsel %vm1200, %v1015, 0
      %v1241 = vsel %vm1200, %v1017, 0
      %v1244 = vsel %vm1200, %v1019, 0
      %v1247 = vsel %vm1200, %v1021, 0
      %v1250 = vsel %vm1200, %v1023, 0
      %v1253 = vsel %vm1200, %v1025, 0
      %v1256 = vsel %vm1200, %v1027, 0
      %v1259 = vsel %vm1200, %v1029, 0
      %v1262 = vsel %vm1200, %v1031, 0
      %v1265 = vsel %vm1200, %v1033, 0
      %v1268 = vsel %vm1200, %v1035, 0
      %v1271 = vsel %vm1200, %v1037, 0
      %v1274 = vsel %vm1200, %v1039, 0
      %v1277 = vsel %vm1200, %v1041, 0
      %v1280 = vsel %vm1200, %v1043, 0
      %v1283 = vsel %vm1200, %v1045, 0
      %v1286 = vsel %vm1200, %v1047, 0
      %v1289 = vsel %vm1200, %v1049, 0
      %v1292 = vsel %vm1200, %v1051, 0
      %v1295 = vsel %vm1200, %v1053, 0
      %v1298 = vsel %vm1200, %v1055, 0
      %v1301 = vsel %vm1200, %v1057, 0
      %v1304 = vsel %vm1200, %v1059, 0
      %v1307 = vsel %vm1200, %v1061, 0
      %v1310 = vsel %vm1200, %v1063, 0
      %v1313 = vsel %vm1200, %v1065, 0
      %v1316 = vsel %vm1200, %v1067, 0
      %v1319 = vsel %vm1200, %v1069, 0
      %v1322 = vsel %vm1200, %v1071, 0
      %v1325 = vsel %vm1200, %v1073, 0
      %v1328 = vsel %vm1200, %v1075, 0
      %v1331 = vsel %vm1200, %v1077, 0
      %v1334 = vsel %vm1200, %v1079, 0
      %v1337 = vsel %vm1200, %v1081, 0
      %v1340 = vsel %vm1200, %v1083, 0
      %v1343 = vsel %vm1200, %v1085, 0
      %v1346 = vsel %vm1200, %v1087, 0
      %v1349 = vsel %vm1200, %v1089, 0
      %v1352 = vsel %vm1200, %v1091, 0
      %v1355 = vsel %vm1200, %v1093, 0
      %v1358 = vsel %vm1200, %v1095, 0
      %v1361 = vsel %vm1200, %v1097, 0
      %v1364 = vsel %vm1200, %v1099, 0
      %v1367 = vsel %vm1200, %v1101, 0
      %v1370 = vsel %vm1200, %v1103, 0
      %v1373 = vsel %vm1200, %v1105, 0
      %v1376 = vsel %vm1200, %v1107, 0
      %v1379 = vsel %vm1200, %v1109, 0
      %v1382 = vsel %vm1200, %v1111, 0
      %v1385 = vsel %vm1200, %v1113, 0
      %v1388 = vsel %vm1200, %v1115, 0
      %v1391 = vsel %vm1200, %v1117, 0
      %v1394 = vsel %vm1200, %v1119, 0
      %v1397 = vsel %vm1200, %v1121, 0
      %v1400 = vsel %vm1200, %v1123, 0
      %v1403 = vsel %vm1200, %v1125, 0
      %v1406 = vsel %vm1200, %v1127, 0
      %v1409 = vsel %vm1200, %v1129, 0
      %1411 = vmatpush.bf16.msra.mxu0 %v423
      %1412 = vmatpush.bf16.msra.mxu0 %v422
      %1413 = vmatpush.bf16.msra.mxu0 %v421
      %1414 = vmatpush.bf16.msra.mxu0 %v420
      %1415 = vmatpush.bf16.msra.mxu0 %v419
      %1416 = vmatpush.bf16.msra.mxu0 %v418
      %1417 = vmatpush.bf16.msra.mxu0 %v417
      %1418 = vmatpush.bf16.msra.mxu0 %v416
      %1419 = vmatmul.bf16.gmra.mxu0 %v990
      %v1420 = vpop.f32.mrf.mxu0
      %v1421 = vadd.f32 0.0, %v1420
      %v1422 = vpop.f32.mrf.mxu0
      %v1423 = vadd.f32 0.0, %v1422
      %1424 = vmatmul.bf16.gmra.mxu0 %v992
      %v1425 = vpop.f32.mrf.mxu0
      %v1426 = vadd.f32 0.0, %v1425
      %v1427 = vpop.f32.mrf.mxu0
      %v1428 = vadd.f32 0.0, %v1427
      %1429 = vmatmul.bf16.gmra.mxu0 %v994
      %v1430 = vpop.f32.mrf.mxu0
      %v1431 = vadd.f32 0.0, %v1430
      %v1432 = vpop.f32.mrf.mxu0
      %v1433 = vadd.f32 0.0, %v1432
      %1434 = vmatmul.bf16.gmra.mxu0 %v996
      %v1435 = vpop.f32.mrf.mxu0
      %v1436 = vadd.f32 0.0, %v1435
      %v1437 = vpop.f32.mrf.mxu0
      %v1438 = vadd.f32 0.0, %v1437
      %1439 = vmatmul.bf16.gmra.mxu0 %v998
      %v1440 = vpop.f32.mrf.mxu0
      %v1441 = vadd.f32 0.0, %v1440
      %v1442 = vpop.f32.mrf.mxu0
      %v1443 = vadd.f32 0.0, %v1442
      %1444 = vmatmul.bf16.gmra.mxu0 %v1000
      %v1445 = vpop.f32.mrf.mxu0
      %v1446 = vadd.f32 0.0, %v1445
      %v1447 = vpop.f32.mrf.mxu0
      %v1448 = vadd.f32 0.0, %v1447
      %1449 = vmatmul.bf16.gmra.mxu0 %v1002
      %v1450 = vpop.f32.mrf.mxu0
      %v1451 = vadd.f32 0.0, %v1450
      %v1452 = vpop.f32.mrf.mxu0
      %v1453 = vadd.f32 0.0, %v1452
      %1454 = vmatmul.bf16.gmra.mxu0 %v1004
      %v1455 = vpop.f32.mrf.mxu0
      %v1456 = vadd.f32 0.0, %v1455
      %v1457 = vpop.f32.mrf.mxu0
      %v1458 = vadd.f32 0.0, %v1457
      %1459 = vmatmul.bf16.gmra.mxu0 %v1006
      %v1460 = vpop.f32.mrf.mxu0
      %v1461 = vadd.f32 0.0, %v1460
      %v1462 = vpop.f32.mrf.mxu0
      %v1463 = vadd.f32 0.0, %v1462
      %1464 = vmatmul.bf16.gmra.mxu0 %v1008
      %v1465 = vpop.f32.mrf.mxu0
      %v1466 = vadd.f32 0.0, %v1465
      %v1467 = vpop.f32.mrf.mxu0
      %v1468 = vadd.f32 0.0, %v1467
      %1469 = vmatmul.bf16.gmra.mxu0 %v1010
      %v1470 = vpop.f32.mrf.mxu0
      %v1471 = vadd.f32 0.0, %v1470
      %v1472 = vpop.f32.mrf.mxu0
      %v1473 = vadd.f32 0.0, %v1472
      %1474 = vmatmul.bf16.gmra.mxu0 %v1012
      %v1475 = vpop.f32.mrf.mxu0
      %v1476 = vadd.f32 0.0, %v1475
      %v1477 = vpop.f32.mrf.mxu0
      %v1478 = vadd.f32 0.0, %v1477
      %1479 = vmatmul.bf16.gmra.mxu0 %v1014
      %v1480 = vpop.f32.mrf.mxu0
      %v1481 = vadd.f32 0.0, %v1480
      %v1482 = vpop.f32.mrf.mxu0
      %v1483 = vadd.f32 0.0, %v1482
      %1484 = vmatmul.bf16.gmra.mxu0 %v1016
      %v1485 = vpop.f32.mrf.mxu0
      %v1486 = vadd.f32 0.0, %v1485
      %v1487 = vpop.f32.mrf.mxu0
      %v1488 = vadd.f32 0.0, %v1487
      %1489 = vmatmul.bf16.gmra.mxu0 %v1018
      %v1490 = vpop.f32.mrf.mxu0
      %v1491 = vadd.f32 0.0, %v1490
      %v1492 = vpop.f32.mrf.mxu0
      %v1493 = vadd.f32 0.0, %v1492
      %1494 = vmatmul.bf16.gmra.mxu0 %v1020
      %v1495 = vpop.f32.mrf.mxu0
      %v1496 = vadd.f32 0.0, %v1495
      %v1497 = vpop.f32.mrf.mxu0
      %v1498 = vadd.f32 0.0, %v1497
      %1499 = vmatmul.bf16.gmra.mxu0 %v1022
      %v1500 = vpop.f32.mrf.mxu0
      %v1501 = vadd.f32 0.0, %v1500
      %v1502 = vpop.f32.mrf.mxu0
      %v1503 = vadd.f32 0.0, %v1502
      %1504 = vmatmul.bf16.gmra.mxu0 %v1024
      %v1505 = vpop.f32.mrf.mxu0
      %v1506 = vadd.f32 0.0, %v1505
      %v1507 = vpop.f32.mrf.mxu0
      %v1508 = vadd.f32 0.0, %v1507
      %1509 = vmatmul.bf16.gmra.mxu0 %v1026
      %v1510 = vpop.f32.mrf.mxu0
      %v1511 = vadd.f32 0.0, %v1510
      %v1512 = vpop.f32.mrf.mxu0
      %v1513 = vadd.f32 0.0, %v1512
      %1514 = vmatmul.bf16.gmra.mxu0 %v1028
      %v1515 = vpop.f32.mrf.mxu0
      %v1516 = vadd.f32 0.0, %v1515
      %v1517 = vpop.f32.mrf.mxu0
      %v1518 = vadd.f32 0.0, %v1517
      %1519 = vmatmul.bf16.gmra.mxu0 %v1030
      %v1520 = vpop.f32.mrf.mxu0
      %v1521 = vadd.f32 0.0, %v1520
      %v1522 = vpop.f32.mrf.mxu0
      %v1523 = vadd.f32 0.0, %v1522
      %1524 = vmatmul.bf16.gmra.mxu0 %v1032
      %v1525 = vpop.f32.mrf.mxu0
      %v1526 = vadd.f32 0.0, %v1525
      %v1527 = vpop.f32.mrf.mxu0
      %v1528 = vadd.f32 0.0, %v1527
      %1529 = vmatmul.bf16.gmra.mxu0 %v1034
      %v1530 = vpop.f32.mrf.mxu0
      %v1531 = vadd.f32 0.0, %v1530
      %v1532 = vpop.f32.mrf.mxu0
      %v1533 = vadd.f32 0.0, %v1532
      %1534 = vmatmul.bf16.gmra.mxu0 %v1036
      %v1535 = vpop.f32.mrf.mxu0
      %v1536 = vadd.f32 0.0, %v1535
      %v1537 = vpop.f32.mrf.mxu0
      %v1538 = vadd.f32 0.0, %v1537
      %1539 = vmatmul.bf16.gmra.mxu0 %v1038
      %v1540 = vpop.f32.mrf.mxu0
      %v1541 = vadd.f32 0.0, %v1540
      %v1542 = vpop.f32.mrf.mxu0
      %v1543 = vadd.f32 0.0, %v1542
      %1544 = vmatmul.bf16.gmra.mxu0 %v1040
      %v1545 = vpop.f32.mrf.mxu0
      %v1546 = vadd.f32 0.0, %v1545
      %v1547 = vpop.f32.mrf.mxu0
      %v1548 = vadd.f32 0.0, %v1547
      %1549 = vmatmul.bf16.gmra.mxu0 %v1042
      %v1550 = vpop.f32.mrf.mxu0
      %v1551 = vadd.f32 0.0, %v1550
      %v1552 = vpop.f32.mrf.mxu0
      %v1553 = vadd.f32 0.0, %v1552
      %1554 = vmatmul.bf16.gmra.mxu0 %v1044
      %v1555 = vpop.f32.mrf.mxu0
      %v1556 = vadd.f32 0.0, %v1555
      %v1557 = vpop.f32.mrf.mxu0
      %v1558 = vadd.f32 0.0, %v1557
      %1559 = vmatmul.bf16.gmra.mxu0 %v1046
      %v1560 = vpop.f32.mrf.mxu0
      %v1561 = vadd.f32 0.0, %v1560
      %v1562 = vpop.f32.mrf.mxu0
      %v1563 = vadd.f32 0.0, %v1562
      %1564 = vmatmul.bf16.gmra.mxu0 %v1048
      %v1565 = vpop.f32.mrf.mxu0
      %v1566 = vadd.f32 0.0, %v1565
      %v1567 = vpop.f32.mrf.mxu0
      %v1568 = vadd.f32 0.0, %v1567
      %1569 = vmatmul.bf16.gmra.mxu0 %v1050
      %v1570 = vpop.f32.mrf.mxu0
      %v1571 = vadd.f32 0.0, %v1570
      %v1572 = vpop.f32.mrf.mxu0
      %v1573 = vadd.f32 0.0, %v1572
      %1574 = vmatmul.bf16.gmra.mxu0 %v1052
      %v1575 = vpop.f32.mrf.mxu0
      %v1576 = vadd.f32 0.0, %v1575
      %v1577 = vpop.f32.mrf.mxu0
      %v1578 = vadd.f32 0.0, %v1577
      %1579 = vmatmul.bf16.gmra.mxu0 %v1054
      %v1580 = vpop.f32.mrf.mxu0
      %v1581 = vadd.f32 0.0, %v1580
      %v1582 = vpop.f32.mrf.mxu0
      %v1583 = vadd.f32 0.0, %v1582
      %1584 = vmatmul.bf16.gmra.mxu0 %v1056
      %v1585 = vpop.f32.mrf.mxu0
      %v1586 = vadd.f32 0.0, %v1585
      %v1587 = vpop.f32.mrf.mxu0
      %v1588 = vadd.f32 0.0, %v1587
      %1589 = vmatmul.bf16.gmra.mxu0 %v1058
      %v1590 = vpop.f32.mrf.mxu0
      %v1591 = vadd.f32 0.0, %v1590
      %v1592 = vpop.f32.mrf.mxu0
      %v1593 = vadd.f32 0.0, %v1592
      %1594 = vmatmul.bf16.gmra.mxu0 %v1060
      %v1595 = vpop.f32.mrf.mxu0
      %v1596 = vadd.f32 0.0, %v1595
      %v1597 = vpop.f32.mrf.mxu0
      %v1598 = vadd.f32 0.0, %v1597
      %1599 = vmatmul.bf16.gmra.mxu0 %v1062
      %v1600 = vpop.f32.mrf.mxu0
      %v1601 = vadd.f32 0.0, %v1600
      %v1602 = vpop.f32.mrf.mxu0
      %v1603 = vadd.f32 0.0, %v1602
      %1604 = vmatmul.bf16.gmra.mxu0 %v1064
      %v1605 = vpop.f32.mrf.mxu0
      %v1606 = vadd.f32 0.0, %v1605
      %v1607 = vpop.f32.mrf.mxu0
      %v1608 = vadd.f32 0.0, %v1607
      %1609 = vmatmul.bf16.gmra.mxu0 %v1066
      %v1610 = vpop.f32.mrf.mxu0
      %v1611 = vadd.f32 0.0, %v1610
      %v1612 = vpop.f32.mrf.mxu0
      %v1613 = vadd.f32 0.0, %v1612
      %1614 = vmatmul.bf16.gmra.mxu0 %v1068
      %v1615 = vpop.f32.mrf.mxu0
      %v1616 = vadd.f32 0.0, %v1615
      %v1617 = vpop.f32.mrf.mxu0
      %v1618 = vadd.f32 0.0, %v1617
      %1619 = vmatmul.bf16.gmra.mxu0 %v1070
      %v1620 = vpop.f32.mrf.mxu0
      %v1621 = vadd.f32 0.0, %v1620
      %v1622 = vpop.f32.mrf.mxu0
      %v1623 = vadd.f32 0.0, %v1622
      %1624 = vmatmul.bf16.gmra.mxu0 %v1072
      %v1625 = vpop.f32.mrf.mxu0
      %v1626 = vadd.f32 0.0, %v1625
      %v1627 = vpop.f32.mrf.mxu0
      %v1628 = vadd.f32 0.0, %v1627
      %1629 = vmatmul.bf16.gmra.mxu0 %v1074
      %v1630 = vpop.f32.mrf.mxu0
      %v1631 = vadd.f32 0.0, %v1630
      %v1632 = vpop.f32.mrf.mxu0
      %v1633 = vadd.f32 0.0, %v1632
      %1634 = vmatmul.bf16.gmra.mxu0 %v1076
      %v1635 = vpop.f32.mrf.mxu0
      %v1636 = vadd.f32 0.0, %v1635
      %v1637 = vpop.f32.mrf.mxu0
      %v1638 = vadd.f32 0.0, %v1637
      %1639 = vmatmul.bf16.gmra.mxu0 %v1078
      %v1640 = vpop.f32.mrf.mxu0
      %v1641 = vadd.f32 0.0, %v1640
      %v1642 = vpop.f32.mrf.mxu0
      %v1643 = vadd.f32 0.0, %v1642
      %1644 = vmatmul.bf16.gmra.mxu0 %v1080
      %v1645 = vpop.f32.mrf.mxu0
      %v1646 = vadd.f32 0.0, %v1645
      %v1647 = vpop.f32.mrf.mxu0
      %v1648 = vadd.f32 0.0, %v1647
      %1649 = vmatmul.bf16.gmra.mxu0 %v1082
      %v1650 = vpop.f32.mrf.mxu0
      %v1651 = vadd.f32 0.0, %v1650
      %v1652 = vpop.f32.mrf.mxu0
      %v1653 = vadd.f32 0.0, %v1652
      %1654 = vmatmul.bf16.gmra.mxu0 %v1084
      %v1655 = vpop.f32.mrf.mxu0
      %v1656 = vadd.f32 0.0, %v1655
      %v1657 = vpop.f32.mrf.mxu0
      %v1658 = vadd.f32 0.0, %v1657
      %1659 = vmatmul.bf16.gmra.mxu0 %v1086
      %v1660 = vpop.f32.mrf.mxu0
      %v1661 = vadd.f32 0.0, %v1660
      %v1662 = vpop.f32.mrf.mxu0
      %v1663 = vadd.f32 0.0, %v1662
      %1664 = vmatmul.bf16.gmra.mxu0 %v1088
      %v1665 = vpop.f32.mrf.mxu0
      %v1666 = vadd.f32 0.0, %v1665
      %v1667 = vpop.f32.mrf.mxu0
      %v1668 = vadd.f32 0.0, %v1667
      %1669 = vmatmul.bf16.gmra.mxu0 %v1090
      %v1670 = vpop.f32.mrf.mxu0
      %v1671 = vadd.f32 0.0, %v1670
      %v1672 = vpop.f32.mrf.mxu0
      %v1673 = vadd.f32 0.0, %v1672
      %1674 = vmatmul.bf16.gmra.mxu0 %v1092
      %v1675 = vpop.f32.mrf.mxu0
      %v1676 = vadd.f32 0.0, %v1675
      %v1677 = vpop.f32.mrf.mxu0
      %v1678 = vadd.f32 0.0, %v1677
      %1679 = vmatmul.bf16.gmra.mxu0 %v1094
      %v1680 = vpop.f32.mrf.mxu0
      %v1681 = vadd.f32 0.0, %v1680
      %v1682 = vpop.f32.mrf.mxu0
      %v1683 = vadd.f32 0.0, %v1682
      %1684 = vmatmul.bf16.gmra.mxu0 %v1096
      %v1685 = vpop.f32.mrf.mxu0
      %v1686 = vadd.f32 0.0, %v1685
      %v1687 = vpop.f32.mrf.mxu0
      %v1688 = vadd.f32 0.0, %v1687
      %1689 = vmatmul.bf16.gmra.mxu0 %v1098
      %v1690 = vpop.f32.mrf.mxu0
      %v1691 = vadd.f32 0.0, %v1690
      %v1692 = vpop.f32.mrf.mxu0
      %v1693 = vadd.f32 0.0, %v1692
      %1694 = vmatmul.bf16.gmra.mxu0 %v1100
      %v1695 = vpop.f32.mrf.mxu0
      %v1696 = vadd.f32 0.0, %v1695
      %v1697 = vpop.f32.mrf.mxu0
      %v1698 = vadd.f32 0.0, %v1697
      %1699 = vmatmul.bf16.gmra.mxu0 %v1102
      %v1700 = vpop.f32.mrf.mxu0
      %v1701 = vadd.f32 0.0, %v1700
      %v1702 = vpop.f32.mrf.mxu0
      %v1703 = vadd.f32 0.0, %v1702
      %1704 = vmatmul.bf16.gmra.mxu0 %v1104
      %v1705 = vpop.f32.mrf.mxu0
      %v1706 = vadd.f32 0.0, %v1705
      %v1707 = vpop.f32.mrf.mxu0
      %v1708 = vadd.f32 0.0, %v1707
      %1709 = vmatmul.bf16.gmra.mxu0 %v1106
      %v1710 = vpop.f32.mrf.mxu0
      %v1711 = vadd.f32 0.0, %v1710
      %v1712 = vpop.f32.mrf.mxu0
      %v1713 = vadd.f32 0.0, %v1712
      %1714 = vmatmul.bf16.gmra.mxu0 %v1108
      %v1715 = vpop.f32.mrf.mxu0
      %v1716 = vadd.f32 0.0, %v1715
      %v1717 = vpop.f32.mrf.mxu0
      %v1718 = vadd.f32 0.0, %v1717
      %1719 = vmatmul.bf16.gmra.mxu0 %v1110
      %v1720 = vpop.f32.mrf.mxu0
      %v1721 = vadd.f32 0.0, %v1720
      %v1722 = vpop.f32.mrf.mxu0
      %v1723 = vadd.f32 0.0, %v1722
      %1724 = vmatmul.bf16.gmra.mxu0 %v1112
      %v1725 = vpop.f32.mrf.mxu0
      %v1726 = vadd.f32 0.0, %v1725
      %v1727 = vpop.f32.mrf.mxu0
      %v1728 = vadd.f32 0.0, %v1727
      %1729 = vmatmul.bf16.gmra.mxu0 %v1114
      %v1730 = vpop.f32.mrf.mxu0
      %v1731 = vadd.f32 0.0, %v1730
      %v1732 = vpop.f32.mrf.mxu0
      %v1733 = vadd.f32 0.0, %v1732
      %1734 = vmatmul.bf16.gmra.mxu0 %v1116
      %v1735 = vpop.f32.mrf.mxu0
      %v1736 = vadd.f32 0.0, %v1735
      %v1737 = vpop.f32.mrf.mxu0
      %v1738 = vadd.f32 0.0, %v1737
      %1739 = vmatmul.bf16.gmra.mxu0 %v1118
      %v1740 = vpop.f32.mrf.mxu0
      %v1741 = vadd.f32 0.0, %v1740
      %v1742 = vpop.f32.mrf.mxu0
      %v1743 = vadd.f32 0.0, %v1742
      %1744 = vmatmul.bf16.gmra.mxu0 %v1120
      %v1745 = vpop.f32.mrf.mxu0
      %v1746 = vadd.f32 0.0, %v1745
      %v1747 = vpop.f32.mrf.mxu0
      %v1748 = vadd.f32 0.0, %v1747
      %1749 = vmatmul.bf16.gmra.mxu0 %v1122
      %v1750 = vpop.f32.mrf.mxu0
      %v1751 = vadd.f32 0.0, %v1750
      %v1752 = vpop.f32.mrf.mxu0
      %v1753 = vadd.f32 0.0, %v1752
      %1754 = vmatmul.bf16.gmra.mxu0 %v1124
      %v1755 = vpop.f32.mrf.mxu0
      %v1756 = vadd.f32 0.0, %v1755
      %v1757 = vpop.f32.mrf.mxu0
      %v1758 = vadd.f32 0.0, %v1757
      %1759 = vmatmul.bf16.gmra.mxu0 %v1126
      %v1760 = vpop.f32.mrf.mxu0
      %v1761 = vadd.f32 0.0, %v1760
      %v1762 = vpop.f32.mrf.mxu0
      %v1763 = vadd.f32 0.0, %v1762
      %1764 = vmatmul.bf16.gmra.mxu0 %v1128
      %v1765 = vpop.f32.mrf.mxu0
      %v1766 = vadd.f32 0.0, %v1765
      %v1767 = vpop.f32.mrf.mxu0
      %v1768 = vadd.f32 0.0, %v1767
      %1769 = vdwg.mxu0
      %1770 = vmatpush.bf16.msra.mxu0 0
      %1771 = vmatpush.bf16.msra.mxu0 0
      %1772 = vmatpush.bf16.msra.mxu0 %v429
      %1773 = vmatpush.bf16.msra.mxu0 %v428
      %1774 = vmatpush.bf16.msra.mxu0 %v427
      %1775 = vmatpush.bf16.msra.mxu0 %v426
      %1776 = vmatpush.bf16.msra.mxu0 %v425
      %1777 = vmatpush.bf16.msra.mxu0 %v424
      %1778 = vmatmul.bf16.gmra.mxu0 %v1202
      %v1779 = vpop.f32.mrf.mxu0
      %v1780 = vadd.f32 %v1421, %v1779
      %v1781 = vpop.f32.mrf.mxu0
      %v1782 = vadd.f32 %v1423, %v1781
      %1783 = vmatmul.bf16.gmra.mxu0 %v1205
      %v1784 = vpop.f32.mrf.mxu0
      %v1785 = vadd.f32 %v1426, %v1784
      %v1786 = vpop.f32.mrf.mxu0
      %v1787 = vadd.f32 %v1428, %v1786
      %1788 = vmatmul.bf16.gmra.mxu0 %v1208
      %v1789 = vpop.f32.mrf.mxu0
      %v1790 = vadd.f32 %v1431, %v1789
      %v1791 = vpop.f32.mrf.mxu0
      %v1792 = vadd.f32 %v1433, %v1791
      %1793 = vmatmul.bf16.gmra.mxu0 %v1211
      %v1794 = vpop.f32.mrf.mxu0
      %v1795 = vadd.f32 %v1436, %v1794
      %v1796 = vpop.f32.mrf.mxu0
      %v1797 = vadd.f32 %v1438, %v1796
      %1798 = vmatmul.bf16.gmra.mxu0 %v1214
      %v1799 = vpop.f32.mrf.mxu0
      %v1800 = vadd.f32 %v1441, %v1799
      %v1801 = vpop.f32.mrf.mxu0
      %v1802 = vadd.f32 %v1443, %v1801
      %1803 = vmatmul.bf16.gmra.mxu0 %v1217
      %v1804 = vpop.f32.mrf.mxu0
      %v1805 = vadd.f32 %v1446, %v1804
      %v1806 = vpop.f32.mrf.mxu0
      %v1807 = vadd.f32 %v1448, %v1806
      %1808 = vmatmul.bf16.gmra.mxu0 %v1220
      %v1809 = vpop.f32.mrf.mxu0
      %v1810 = vadd.f32 %v1451, %v1809
      %v1811 = vpop.f32.mrf.mxu0
      %v1812 = vadd.f32 %v1453, %v1811
      %1813 = vmatmul.bf16.gmra.mxu0 %v1223
      %v1814 = vpop.f32.mrf.mxu0
      %v1815 = vadd.f32 %v1456, %v1814
      %v1816 = vpop.f32.mrf.mxu0
      %v1817 = vadd.f32 %v1458, %v1816
      %1818 = vmatmul.bf16.gmra.mxu0 %v1226
      %v1819 = vpop.f32.mrf.mxu0
      %v1820 = vadd.f32 %v1461, %v1819
      %v1821 = vpop.f32.mrf.mxu0
      %v1822 = vadd.f32 %v1463, %v1821
      %1823 = vmatmul.bf16.gmra.mxu0 %v1229
      %v1824 = vpop.f32.mrf.mxu0
      %v1825 = vadd.f32 %v1466, %v1824
      %v1826 = vpop.f32.mrf.mxu0
      %v1827 = vadd.f32 %v1468, %v1826
      %1828 = vmatmul.bf16.gmra.mxu0 %v1232
      %v1829 = vpop.f32.mrf.mxu0
      %v1830 = vadd.f32 %v1471, %v1829
      %v1831 = vpop.f32.mrf.mxu0
      %v1832 = vadd.f32 %v1473, %v1831
      %1833 = vmatmul.bf16.gmra.mxu0 %v1235
      %v1834 = vpop.f32.mrf.mxu0
      %v1835 = vadd.f32 %v1476, %v1834
      %v1836 = vpop.f32.mrf.mxu0
      %v1837 = vadd.f32 %v1478, %v1836
      %1838 = vmatmul.bf16.gmra.mxu0 %v1238
      %v1839 = vpop.f32.mrf.mxu0
      %v1840 = vadd.f32 %v1481, %v1839
      %v1841 = vpop.f32.mrf.mxu0
      %v1842 = vadd.f32 %v1483, %v1841
      %1843 = vmatmul.bf16.gmra.mxu0 %v1241
      %v1844 = vpop.f32.mrf.mxu0
      %v1845 = vadd.f32 %v1486, %v1844
      %v1846 = vpop.f32.mrf.mxu0
      %v1847 = vadd.f32 %v1488, %v1846
      %1848 = vmatmul.bf16.gmra.mxu0 %v1244
      %v1849 = vpop.f32.mrf.mxu0
      %v1850 = vadd.f32 %v1491, %v1849
      %v1851 = vpop.f32.mrf.mxu0
      %v1852 = vadd.f32 %v1493, %v1851
      %1853 = vmatmul.bf16.gmra.mxu0 %v1247
      %v1854 = vpop.f32.mrf.mxu0
      %v1855 = vadd.f32 %v1496, %v1854
      %v1856 = vpop.f32.mrf.mxu0
      %v1857 = vadd.f32 %v1498, %v1856
      %1858 = vmatmul.bf16.gmra.mxu0 %v1250
      %v1859 = vpop.f32.mrf.mxu0
      %v1860 = vadd.f32 %v1501, %v1859
      %v1861 = vpop.f32.mrf.mxu0
      %v1862 = vadd.f32 %v1503, %v1861
      %1863 = vmatmul.bf16.gmra.mxu0 %v1253
      %v1864 = vpop.f32.mrf.mxu0
      %v1865 = vadd.f32 %v1506, %v1864
      %v1866 = vpop.f32.mrf.mxu0
      %v1867 = vadd.f32 %v1508, %v1866
      %1868 = vmatmul.bf16.gmra.mxu0 %v1256
      %v1869 = vpop.f32.mrf.mxu0
      %v1870 = vadd.f32 %v1511, %v1869
      %v1871 = vpop.f32.mrf.mxu0
      %v1872 = vadd.f32 %v1513, %v1871
      %1873 = vmatmul.bf16.gmra.mxu0 %v1259
      %v1874 = vpop.f32.mrf.mxu0
      %v1875 = vadd.f32 %v1516, %v1874
      %v1876 = vpop.f32.mrf.mxu0
      %v1877 = vadd.f32 %v1518, %v1876
      %1878 = vmatmul.bf16.gmra.mxu0 %v1262
      %v1879 = vpop.f32.mrf.mxu0
      %v1880 = vadd.f32 %v1521, %v1879
      %v1881 = vpop.f32.mrf.mxu0
      %v1882 = vadd.f32 %v1523, %v1881
      %1883 = vmatmul.bf16.gmra.mxu0 %v1265
      %v1884 = vpop.f32.mrf.mxu0
      %v1885 = vadd.f32 %v1526, %v1884
      %v1886 = vpop.f32.mrf.mxu0
      %v1887 = vadd.f32 %v1528, %v1886
      %1888 = vmatmul.bf16.gmra.mxu0 %v1268
      %v1889 = vpop.f32.mrf.mxu0
      %v1890 = vadd.f32 %v1531, %v1889
      %v1891 = vpop.f32.mrf.mxu0
      %v1892 = vadd.f32 %v1533, %v1891
      %1893 = vmatmul.bf16.gmra.mxu0 %v1271
      %v1894 = vpop.f32.mrf.mxu0
      %v1895 = vadd.f32 %v1536, %v1894
      %v1896 = vpop.f32.mrf.mxu0
      %v1897 = vadd.f32 %v1538, %v1896
      %1898 = vmatmul.bf16.gmra.mxu0 %v1274
      %v1899 = vpop.f32.mrf.mxu0
      %v1900 = vadd.f32 %v1541, %v1899
      %v1901 = vpop.f32.mrf.mxu0
      %v1902 = vadd.f32 %v1543, %v1901
      %1903 = vmatmul.bf16.gmra.mxu0 %v1277
      %v1904 = vpop.f32.mrf.mxu0
      %v1905 = vadd.f32 %v1546, %v1904
      %v1906 = vpop.f32.mrf.mxu0
      %v1907 = vadd.f32 %v1548, %v1906
      %1908 = vmatmul.bf16.gmra.mxu0 %v1280
      %v1909 = vpop.f32.mrf.mxu0
      %v1910 = vadd.f32 %v1551, %v1909
      %v1911 = vpop.f32.mrf.mxu0
      %v1912 = vadd.f32 %v1553, %v1911
      %1913 = vmatmul.bf16.gmra.mxu0 %v1283
      %v1914 = vpop.f32.mrf.mxu0
      %v1915 = vadd.f32 %v1556, %v1914
      %v1916 = vpop.f32.mrf.mxu0
      %v1917 = vadd.f32 %v1558, %v1916
      %1918 = vmatmul.bf16.gmra.mxu0 %v1286
      %v1919 = vpop.f32.mrf.mxu0
      %v1920 = vadd.f32 %v1561, %v1919
      %v1921 = vpop.f32.mrf.mxu0
      %v1922 = vadd.f32 %v1563, %v1921
      %1923 = vmatmul.bf16.gmra.mxu0 %v1289
      %v1924 = vpop.f32.mrf.mxu0
      %v1925 = vadd.f32 %v1566, %v1924
      %v1926 = vpop.f32.mrf.mxu0
      %v1927 = vadd.f32 %v1568, %v1926
      %1928 = vmatmul.bf16.gmra.mxu0 %v1292
      %v1929 = vpop.f32.mrf.mxu0
      %v1930 = vadd.f32 %v1571, %v1929
      %v1931 = vpop.f32.mrf.mxu0
      %v1932 = vadd.f32 %v1573, %v1931
      %1933 = vmatmul.bf16.gmra.mxu0 %v1295
      %v1934 = vpop.f32.mrf.mxu0
      %v1935 = vadd.f32 %v1576, %v1934
      %v1936 = vpop.f32.mrf.mxu0
      %v1937 = vadd.f32 %v1578, %v1936
      %1938 = vmatmul.bf16.gmra.mxu0 %v1298
      %v1939 = vpop.f32.mrf.mxu0
      %v1940 = vadd.f32 %v1581, %v1939
      %v1941 = vpop.f32.mrf.mxu0
      %v1942 = vadd.f32 %v1583, %v1941
      %1943 = vmatmul.bf16.gmra.mxu0 %v1301
      %v1944 = vpop.f32.mrf.mxu0
      %v1945 = vadd.f32 %v1586, %v1944
      %v1946 = vpop.f32.mrf.mxu0
      %v1947 = vadd.f32 %v1588, %v1946
      %1948 = vmatmul.bf16.gmra.mxu0 %v1304
      %v1949 = vpop.f32.mrf.mxu0
      %v1950 = vadd.f32 %v1591, %v1949
      %v1951 = vpop.f32.mrf.mxu0
      %v1952 = vadd.f32 %v1593, %v1951
      %1953 = vmatmul.bf16.gmra.mxu0 %v1307
      %v1954 = vpop.f32.mrf.mxu0
      %v1955 = vadd.f32 %v1596, %v1954
      %v1956 = vpop.f32.mrf.mxu0
      %v1957 = vadd.f32 %v1598, %v1956
      %1958 = vmatmul.bf16.gmra.mxu0 %v1310
      %v1959 = vpop.f32.mrf.mxu0
      %v1960 = vadd.f32 %v1601, %v1959
      %v1961 = vpop.f32.mrf.mxu0
      %v1962 = vadd.f32 %v1603, %v1961
      %1963 = vmatmul.bf16.gmra.mxu0 %v1313
      %v1964 = vpop.f32.mrf.mxu0
      %v1965 = vadd.f32 %v1606, %v1964
      %v1966 = vpop.f32.mrf.mxu0
      %v1967 = vadd.f32 %v1608, %v1966
      %1968 = vmatmul.bf16.gmra.mxu0 %v1316
      %v1969 = vpop.f32.mrf.mxu0
      %v1970 = vadd.f32 %v1611, %v1969
      %v1971 = vpop.f32.mrf.mxu0
      %v1972 = vadd.f32 %v1613, %v1971
      %1973 = vmatmul.bf16.gmra.mxu0 %v1319
      %v1974 = vpop.f32.mrf.mxu0
      %v1975 = vadd.f32 %v1616, %v1974
      %v1976 = vpop.f32.mrf.mxu0
      %v1977 = vadd.f32 %v1618, %v1976
      %1978 = vmatmul.bf16.gmra.mxu0 %v1322
      %v1979 = vpop.f32.mrf.mxu0
      %v1980 = vadd.f32 %v1621, %v1979
      %v1981 = vpop.f32.mrf.mxu0
      %v1982 = vadd.f32 %v1623, %v1981
      %1983 = vmatmul.bf16.gmra.mxu0 %v1325
      %v1984 = vpop.f32.mrf.mxu0
      %v1985 = vadd.f32 %v1626, %v1984
      %v1986 = vpop.f32.mrf.mxu0
      %v1987 = vadd.f32 %v1628, %v1986
      %1988 = vmatmul.bf16.gmra.mxu0 %v1328
      %v1989 = vpop.f32.mrf.mxu0
      %v1990 = vadd.f32 %v1631, %v1989
      %v1991 = vpop.f32.mrf.mxu0
      %v1992 = vadd.f32 %v1633, %v1991
      %1993 = vmatmul.bf16.gmra.mxu0 %v1331
      %v1994 = vpop.f32.mrf.mxu0
      %v1995 = vadd.f32 %v1636, %v1994
      %v1996 = vpop.f32.mrf.mxu0
      %v1997 = vadd.f32 %v1638, %v1996
      %1998 = vmatmul.bf16.gmra.mxu0 %v1334
      %v1999 = vpop.f32.mrf.mxu0
      %v2000 = vadd.f32 %v1641, %v1999
      %v2001 = vpop.f32.mrf.mxu0
      %v2002 = vadd.f32 %v1643, %v2001
      %2003 = vmatmul.bf16.gmra.mxu0 %v1337
      %v2004 = vpop.f32.mrf.mxu0
      %v2005 = vadd.f32 %v1646, %v2004
      %v2006 = vpop.f32.mrf.mxu0
      %v2007 = vadd.f32 %v1648, %v2006
      %2008 = vmatmul.bf16.gmra.mxu0 %v1340
      %v2009 = vpop.f32.mrf.mxu0
      %v2010 = vadd.f32 %v1651, %v2009
      %v2011 = vpop.f32.mrf.mxu0
      %v2012 = vadd.f32 %v1653, %v2011
      %2013 = vmatmul.bf16.gmra.mxu0 %v1343
      %v2014 = vpop.f32.mrf.mxu0
      %v2015 = vadd.f32 %v1656, %v2014
      %v2016 = vpop.f32.mrf.mxu0
      %v2017 = vadd.f32 %v1658, %v2016
      %2018 = vmatmul.bf16.gmra.mxu0 %v1346
      %v2019 = vpop.f32.mrf.mxu0
      %v2020 = vadd.f32 %v1661, %v2019
      %v2021 = vpop.f32.mrf.mxu0
      %v2022 = vadd.f32 %v1663, %v2021
      %2023 = vmatmul.bf16.gmra.mxu0 %v1349
      %v2024 = vpop.f32.mrf.mxu0
      %v2025 = vadd.f32 %v1666, %v2024
      %v2026 = vpop.f32.mrf.mxu0
      %v2027 = vadd.f32 %v1668, %v2026
      %2028 = vmatmul.bf16.gmra.mxu0 %v1352
      %v2029 = vpop.f32.mrf.mxu0
      %v2030 = vadd.f32 %v1671, %v2029
      %v2031 = vpop.f32.mrf.mxu0
      %v2032 = vadd.f32 %v1673, %v2031
      %2033 = vmatmul.bf16.gmra.mxu0 %v1355
      %v2034 = vpop.f32.mrf.mxu0
      %v2035 = vadd.f32 %v1676, %v2034
      %v2036 = vpop.f32.mrf.mxu0
      %v2037 = vadd.f32 %v1678, %v2036
      %2038 = vmatmul.bf16.gmra.mxu0 %v1358
      %v2039 = vpop.f32.mrf.mxu0
      %v2040 = vadd.f32 %v1681, %v2039
      %v2041 = vpop.f32.mrf.mxu0
      %v2042 = vadd.f32 %v1683, %v2041
      %2043 = vmatmul.bf16.gmra.mxu0 %v1361
      %v2044 = vpop.f32.mrf.mxu0
      %v2045 = vadd.f32 %v1686, %v2044
      %v2046 = vpop.f32.mrf.mxu0
      %v2047 = vadd.f32 %v1688, %v2046
      %2048 = vmatmul.bf16.gmra.mxu0 %v1364
      %v2049 = vpop.f32.mrf.mxu0
      %v2050 = vadd.f32 %v1691, %v2049
      %v2051 = vpop.f32.mrf.mxu0
      %v2052 = vadd.f32 %v1693, %v2051
      %2053 = vmatmul.bf16.gmra.mxu0 %v1367
      %v2054 = vpop.f32.mrf.mxu0
      %v2055 = vadd.f32 %v1696, %v2054
      %v2056 = vpop.f32.mrf.mxu0
      %v2057 = vadd.f32 %v1698, %v2056
      %2058 = vmatmul.bf16.gmra.mxu0 %v1370
      %v2059 = vpop.f32.mrf.mxu0
      %v2060 = vadd.f32 %v1701, %v2059
      %v2061 = vpop.f32.mrf.mxu0
      %v2062 = vadd.f32 %v1703, %v2061
      %2063 = vmatmul.bf16.gmra.mxu0 %v1373
      %v2064 = vpop.f32.mrf.mxu0
      %v2065 = vadd.f32 %v1706, %v2064
      %v2066 = vpop.f32.mrf.mxu0
      %v2067 = vadd.f32 %v1708, %v2066
      %2068 = vmatmul.bf16.gmra.mxu0 %v1376
      %v2069 = vpop.f32.mrf.mxu0
      %v2070 = vadd.f32 %v1711, %v2069
      %v2071 = vpop.f32.mrf.mxu0
      %v2072 = vadd.f32 %v1713, %v2071
      %2073 = vmatmul.bf16.gmra.mxu0 %v1379
      %v2074 = vpop.f32.mrf.mxu0
      %v2075 = vadd.f32 %v1716, %v2074
      %v2076 = vpop.f32.mrf.mxu0
      %v2077 = vadd.f32 %v1718, %v2076
      %2078 = vmatmul.bf16.gmra.mxu0 %v1382
      %v2079 = vpop.f32.mrf.mxu0
      %v2080 = vadd.f32 %v1721, %v2079
      %v2081 = vpop.f32.mrf.mxu0
      %v2082 = vadd.f32 %v1723, %v2081
      %2083 = vmatmul.bf16.gmra.mxu0 %v1385
      %v2084 = vpop.f32.mrf.mxu0
      %v2085 = vadd.f32 %v1726, %v2084
      %v2086 = vpop.f32.mrf.mxu0
      %v2087 = vadd.f32 %v1728, %v2086
      %2088 = vmatmul.bf16.gmra.mxu0 %v1388
      %v2089 = vpop.f32.mrf.mxu0
      %v2090 = vadd.f32 %v1731, %v2089
      %v2091 = vpop.f32.mrf.mxu0
      %v2092 = vadd.f32 %v1733, %v2091
      %2093 = vmatmul.bf16.gmra.mxu0 %v1391
      %v2094 = vpop.f32.mrf.mxu0
      %v2095 = vadd.f32 %v1736, %v2094
      %v2096 = vpop.f32.mrf.mxu0
      %v2097 = vadd.f32 %v1738, %v2096
      %2098 = vmatmul.bf16.gmra.mxu0 %v1394
      %v2099 = vpop.f32.mrf.mxu0
      %v2100 = vadd.f32 %v1741, %v2099
      %v2101 = vpop.f32.mrf.mxu0
      %v2102 = vadd.f32 %v1743, %v2101
      %2103 = vmatmul.bf16.gmra.mxu0 %v1397
      %v2104 = vpop.f32.mrf.mxu0
      %v2105 = vadd.f32 %v1746, %v2104
      %v2106 = vpop.f32.mrf.mxu0
      %v2107 = vadd.f32 %v1748, %v2106
      %2108 = vmatmul.bf16.gmra.mxu0 %v1400
      %v2109 = vpop.f32.mrf.mxu0
      %v2110 = vadd.f32 %v1751, %v2109
      %v2111 = vpop.f32.mrf.mxu0
      %v2112 = vadd.f32 %v1753, %v2111
      %2113 = vmatmul.bf16.gmra.mxu0 %v1403
      %v2114 = vpop.f32.mrf.mxu0
      %v2115 = vadd.f32 %v1756, %v2114
      %v2116 = vpop.f32.mrf.mxu0
      %v2117 = vadd.f32 %v1758, %v2116
      %2118 = vmatmul.bf16.gmra.mxu0 %v1406
      %v2119 = vpop.f32.mrf.mxu0
      %v2120 = vadd.f32 %v1761, %v2119
      %v2121 = vpop.f32.mrf.mxu0
      %v2122 = vadd.f32 %v1763, %v2121
      %2123 = vmatmul.bf16.gmra.mxu0 %v1409
      %v2124 = vpop.f32.mrf.mxu0
      %v2125 = vadd.f32 %v1766, %v2124
      %v2126 = vpop.f32.mrf.mxu0
      %v2127 = vadd.f32 %v1768, %v2126
      %2128 = vdwg.mxu0
      %v2129 = vpack.c.bf16 %v1780, %v1780
      %v2130 = vpack.c.bf16 %v1782, %v1782
      %v2131 = vpack.c.bf16 %v1785, %v1785
      %v2132 = vpack.c.bf16 %v1787, %v1787
      %v2133 = vpack.c.bf16 %v1790, %v1790
      %v2134 = vpack.c.bf16 %v1792, %v1792
      %v2135 = vpack.c.bf16 %v1795, %v1795
      %v2136 = vpack.c.bf16 %v1797, %v1797
      %v2137 = vpack.c.bf16 %v1800, %v1800
      %v2138 = vpack.c.bf16 %v1802, %v1802
      %v2139 = vpack.c.bf16 %v1805, %v1805
      %v2140 = vpack.c.bf16 %v1807, %v1807
      %v2141 = vpack.c.bf16 %v1810, %v1810
      %v2142 = vpack.c.bf16 %v1812, %v1812
      %v2143 = vpack.c.bf16 %v1815, %v1815
      %v2144 = vpack.c.bf16 %v1817, %v1817
      %v2145 = vpack.c.bf16 %v1820, %v1820
      %v2146 = vpack.c.bf16 %v1822, %v1822
      %v2147 = vpack.c.bf16 %v1825, %v1825
      %v2148 = vpack.c.bf16 %v1827, %v1827
      %v2149 = vpack.c.bf16 %v1830, %v1830
      %v2150 = vpack.c.bf16 %v1832, %v1832
      %v2151 = vpack.c.bf16 %v1835, %v1835
      %v2152 = vpack.c.bf16 %v1837, %v1837
      %v2153 = vpack.c.bf16 %v1840, %v1840
      %v2154 = vpack.c.bf16 %v1842, %v1842
      %v2155 = vpack.c.bf16 %v1845, %v1845
      %v2156 = vpack.c.bf16 %v1847, %v1847
      %v2157 = vpack.c.bf16 %v1850, %v1850
      %v2158 = vpack.c.bf16 %v1852, %v1852
      %v2159 = vpack.c.bf16 %v1855, %v1855
      %v2160 = vpack.c.bf16 %v1857, %v1857
      %v2161 = vpack.c.bf16 %v1860, %v1860
      %v2162 = vpack.c.bf16 %v1862, %v1862
      %v2163 = vpack.c.bf16 %v1865, %v1865
      %v2164 = vpack.c.bf16 %v1867, %v1867
      %v2165 = vpack.c.bf16 %v1870, %v1870
      %v2166 = vpack.c.bf16 %v1872, %v1872
      %v2167 = vpack.c.bf16 %v1875, %v1875
      %v2168 = vpack.c.bf16 %v1877, %v1877
      %v2169 = vpack.c.bf16 %v1880, %v1880
      %v2170 = vpack.c.bf16 %v1882, %v1882
      %v2171 = vpack.c.bf16 %v1885, %v1885
      %v2172 = vpack.c.bf16 %v1887, %v1887
      %v2173 = vpack.c.bf16 %v1890, %v1890
      %v2174 = vpack.c.bf16 %v1892, %v1892
      %v2175 = vpack.c.bf16 %v1895, %v1895
      %v2176 = vpack.c.bf16 %v1897, %v1897
      %v2177 = vpack.c.bf16 %v1900, %v1900
      %v2178 = vpack.c.bf16 %v1902, %v1902
      %v2179 = vpack.c.bf16 %v1905, %v1905
      %v2180 = vpack.c.bf16 %v1907, %v1907
      %v2181 = vpack.c.bf16 %v1910, %v1910
      %v2182 = vpack.c.bf16 %v1912, %v1912
      %v2183 = vpack.c.bf16 %v1915, %v1915
      %v2184 = vpack.c.bf16 %v1917, %v1917
      %v2185 = vpack.c.bf16 %v1920, %v1920
      %v2186 = vpack.c.bf16 %v1922, %v1922
      %v2187 = vpack.c.bf16 %v1925, %v1925
      %v2188 = vpack.c.bf16 %v1927, %v1927
      %v2189 = vpack.c.bf16 %v1930, %v1930
      %v2190 = vpack.c.bf16 %v1932, %v1932
      %v2191 = vpack.c.bf16 %v1935, %v1935
      %v2192 = vpack.c.bf16 %v1937, %v1937
      %v2193 = vpack.c.bf16 %v1940, %v1940
      %v2194 = vpack.c.bf16 %v1942, %v1942
      %v2195 = vpack.c.bf16 %v1945, %v1945
      %v2196 = vpack.c.bf16 %v1947, %v1947
      %v2197 = vpack.c.bf16 %v1950, %v1950
      %v2198 = vpack.c.bf16 %v1952, %v1952
      %v2199 = vpack.c.bf16 %v1955, %v1955
      %v2200 = vpack.c.bf16 %v1957, %v1957
      %v2201 = vpack.c.bf16 %v1960, %v1960
      %v2202 = vpack.c.bf16 %v1962, %v1962
      %v2203 = vpack.c.bf16 %v1965, %v1965
      %v2204 = vpack.c.bf16 %v1967, %v1967
      %v2205 = vpack.c.bf16 %v1970, %v1970
      %v2206 = vpack.c.bf16 %v1972, %v1972
      %v2207 = vpack.c.bf16 %v1975, %v1975
      %v2208 = vpack.c.bf16 %v1977, %v1977
      %v2209 = vpack.c.bf16 %v1980, %v1980
      %v2210 = vpack.c.bf16 %v1982, %v1982
      %v2211 = vpack.c.bf16 %v1985, %v1985
      %v2212 = vpack.c.bf16 %v1987, %v1987
      %v2213 = vpack.c.bf16 %v1990, %v1990
      %v2214 = vpack.c.bf16 %v1992, %v1992
      %v2215 = vpack.c.bf16 %v1995, %v1995
      %v2216 = vpack.c.bf16 %v1997, %v1997
      %v2217 = vpack.c.bf16 %v2000, %v2000
      %v2218 = vpack.c.bf16 %v2002, %v2002
      %v2219 = vpack.c.bf16 %v2005, %v2005
      %v2220 = vpack.c.bf16 %v2007, %v2007
      %v2221 = vpack.c.bf16 %v2010, %v2010
      %v2222 = vpack.c.bf16 %v2012, %v2012
      %v2223 = vpack.c.bf16 %v2015, %v2015
      %v2224 = vpack.c.bf16 %v2017, %v2017
      %v2225 = vpack.c.bf16 %v2020, %v2020
      %v2226 = vpack.c.bf16 %v2022, %v2022
      %v2227 = vpack.c.bf16 %v2025, %v2025
      %v2228 = vpack.c.bf16 %v2027, %v2027
      %v2229 = vpack.c.bf16 %v2030, %v2030
      %v2230 = vpack.c.bf16 %v2032, %v2032
      %v2231 = vpack.c.bf16 %v2035, %v2035
      %v2232 = vpack.c.bf16 %v2037, %v2037
      %v2233 = vpack.c.bf16 %v2040, %v2040
      %v2234 = vpack.c.bf16 %v2042, %v2042
      %v2235 = vpack.c.bf16 %v2045, %v2045
      %v2236 = vpack.c.bf16 %v2047, %v2047
      %v2237 = vpack.c.bf16 %v2050, %v2050
      %v2238 = vpack.c.bf16 %v2052, %v2052
      %v2239 = vpack.c.bf16 %v2055, %v2055
      %v2240 = vpack.c.bf16 %v2057, %v2057
      %v2241 = vpack.c.bf16 %v2060, %v2060
      %v2242 = vpack.c.bf16 %v2062, %v2062
      %v2243 = vpack.c.bf16 %v2065, %v2065
      %v2244 = vpack.c.bf16 %v2067, %v2067
      %v2245 = vpack.c.bf16 %v2070, %v2070
      %v2246 = vpack.c.bf16 %v2072, %v2072
      %v2247 = vpack.c.bf16 %v2075, %v2075
      %v2248 = vpack.c.bf16 %v2077, %v2077
      %v2249 = vpack.c.bf16 %v2080, %v2080
      %v2250 = vpack.c.bf16 %v2082, %v2082
      %v2251 = vpack.c.bf16 %v2085, %v2085
      %v2252 = vpack.c.bf16 %v2087, %v2087
      %v2253 = vpack.c.bf16 %v2090, %v2090
      %v2254 = vpack.c.bf16 %v2092, %v2092
      %v2255 = vpack.c.bf16 %v2095, %v2095
      %v2256 = vpack.c.bf16 %v2097, %v2097
      %v2257 = vpack.c.bf16 %v2100, %v2100
      %v2258 = vpack.c.bf16 %v2102, %v2102
      %v2259 = vpack.c.bf16 %v2105, %v2105
      %v2260 = vpack.c.bf16 %v2107, %v2107
      %v2261 = vpack.c.bf16 %v2110, %v2110
      %v2262 = vpack.c.bf16 %v2112, %v2112
      %v2263 = vpack.c.bf16 %v2115, %v2115
      %v2264 = vpack.c.bf16 %v2117, %v2117
      %v2265 = vpack.c.bf16 %v2120, %v2120
      %v2266 = vpack.c.bf16 %v2122, %v2122
      %v2267 = vpack.c.bf16 %v2125, %v2125
      %v2268 = vpack.c.bf16 %v2127, %v2127
      %v2269 = vld [vmem:[%s2] sm:$0xff]
      %v2270 = vld [vmem:[%s2 + $0x8] sm:$0xff]
      %v2271 = vld [vmem:[%s2 + $0x10] sm:$0xff]
      %v2272 = vld [vmem:[%s2 + $0x18] sm:$0xff]
      %v2273 = vld [vmem:[%s2 + $0x20] sm:$0xff]
      %v2274 = vld [vmem:[%s2 + $0x28] sm:$0xff]
      %v2275 = vld [vmem:[%s2 + $0x30] sm:$0x33]
      %v2276 = vld [vmem:[%s2 + $0x38] sm:$0x33]
      %s2277 = scalar_lea.vmem %s2, 64
      %v2278 = vld [vmem:[%s2277] sm:$0xff]
      %v2279 = vld [vmem:[%s2277 + $0x8] sm:$0xff]
      %v2280 = vld [vmem:[%s2277 + $0x10] sm:$0xff]
      %v2281 = vld [vmem:[%s2277 + $0x18] sm:$0xff]
      %v2282 = vld [vmem:[%s2277 + $0x20] sm:$0xff]
      %v2283 = vld [vmem:[%s2277 + $0x28] sm:$0xff]
      %v2284 = vld [vmem:[%s2277 + $0x30] sm:$0x33]
      %v2285 = vld [vmem:[%s2277 + $0x38] sm:$0x33]
      %v2314 = vunpack.c.l.b16 %v2157
      %v2315 = vunpack.c.l.b16 %v2158
      %v2316 = vunpack.c.l.b16 %v2159
      %v2317 = vunpack.c.l.b16 %v2160
      %v2318 = vunpack.c.l.b16 %v2161
      %v2319 = vunpack.c.l.b16 %v2162
      %v2320 = vunpack.c.l.b16 %v2163
      %v2321 = vunpack.c.l.b16 %v2164
      %v2322 = vunpack.c.l.b16 %v2165
      %v2323 = vunpack.c.l.b16 %v2166
      %v2324 = vunpack.c.l.b16 %v2167
      %v2325 = vunpack.c.l.b16 %v2168
      %v2326 = vunpack.c.l.b16 %v2169
      %v2327 = vunpack.c.l.b16 %v2170
      %v2328 = vunpack.c.l.b16 %v2171
      %v2329 = vunpack.c.l.b16 %v2172
      %v2330 = vunpack.c.l.b16 %v2173
      %v2331 = vunpack.c.l.b16 %v2174
      %v2332 = vunpack.c.l.b16 %v2175
      %v2333 = vunpack.c.l.b16 %v2176
      %v2334 = vunpack.c.l.b16 %v2177
      %v2335 = vunpack.c.l.b16 %v2178
      %v2336 = vunpack.c.l.b16 %v2179
      %v2337 = vunpack.c.l.b16 %v2180
      %v2338 = vunpack.c.l.b16 %v2181
      %v2339 = vunpack.c.l.b16 %v2182
      %v2340 = vunpack.c.l.b16 %v2183
      %v2341 = vunpack.c.l.b16 %v2184
      %v2342 = vpack.c.b16 %v2315, %v2314
      %v2343 = vpack.c.b16 %v2317, %v2316
      %v2344 = vpack.c.b16 %v2319, %v2318
      %v2345 = vpack.c.b16 %v2321, %v2320
      %v2346 = vpack.c.b16 %v2323, %v2322
      %v2347 = vpack.c.b16 %v2325, %v2324
      %v2348 = vpack.c.b16 %v2327, %v2326
      %v2349 = vpack.c.b16 %v2329, %v2328
      %v2350 = vpack.c.b16 %v2331, %v2330
      %v2351 = vpack.c.b16 %v2333, %v2332
      %v2352 = vpack.c.b16 %v2335, %v2334
      %v2353 = vpack.c.b16 %v2337, %v2336
      %v2354 = vpack.c.b16 %v2339, %v2338
      %v2355 = vpack.c.b16 %v2341, %v2340
      %v2364 = vunpack.c.l.b16 %v2278
      %v2365 = vunpack.c.h.b16 %v2278
      %v2366 = vunpack.c.l.b16 %v2279
      %v2367 = vunpack.c.h.b16 %v2279
      %v2368 = vunpack.c.l.b16 %v2280
      %v2369 = vunpack.c.h.b16 %v2280
      %v2370 = vunpack.c.l.b16 %v2281
      %v2371 = vunpack.c.h.b16 %v2281
      %v2372 = vunpack.c.l.b16 %v2282
      %v2373 = vunpack.c.h.b16 %v2282
      %v2374 = vunpack.c.l.b16 %v2283
      %v2375 = vunpack.c.h.b16 %v2283
      %v2376 = vunpack.c.l.b16 %v2284
      %v2377 = vunpack.c.h.b16 %v2284
      %v2378 = vunpack.c.l.b16 %v2285
      %v2379 = vunpack.c.h.b16 %v2285
      %v2380 = vpack.c.b16 %v2368, %v2364
      %v2381 = vpack.c.b16 %v2369, %v2365
      %v2382 = vpack.c.b16 %v2370, %v2366
      %v2383 = vpack.c.b16 %v2371, %v2367
      %v2384 = vpack.c.b16 %v2376, %v2372
      %v2385 = vpack.c.b16 %v2377, %v2373
      %v2386 = vpack.c.b16 %v2378, %v2374
      %v2387 = vpack.c.b16 %v2379, %v2375
      %vm2392 = vcmask 228352
      %v2394 = vsel %vm2392, %v2342, 0
      %v2397 = vsel %vm2392, %v2343, 0
      %v2400 = vsel %vm2392, %v2344, 0
      %v2403 = vsel %vm2392, %v2345, 0
      %v2406 = vsel %vm2392, %v2346, 0
      %v2409 = vsel %vm2392, %v2347, 0
      %v2412 = vsel %vm2392, %v2348, 0
      %v2415 = vsel %vm2392, %v2349, 0
      %v2418 = vsel %vm2392, %v2350, 0
      %v2421 = vsel %vm2392, %v2351, 0
      %v2424 = vsel %vm2392, %v2352, 0
      %v2427 = vsel %vm2392, %v2353, 0
      %v2430 = vsel %vm2392, %v2354, 0
      %v2433 = vsel %vm2392, %v2355, 0
      %vm2435 = vcmask 1045504
      %v2437 = vsel %vm2435, %v2384, 0
      %v2440 = vsel %vm2435, %v2385, 0
      %v2443 = vsel %vm2435, %v2386, 0
      %v2446 = vsel %vm2435, %v2387, 0
      %2448 = vmatpush.bf16.msra.mxu0 0
      %2449 = vmatpush.bf16.msra.mxu0 0
      %2450 = vmatpush.bf16.msra.mxu0 0
      %2451 = vmatpush.bf16.msra.mxu0 0
      %2452 = vmatpush.bf16.msra.mxu0 0
      %2453 = vmatpush.bf16.msra.mxu0 0
      %2454 = vmatpush.bf16.msra.mxu0 %v2437
      %2455 = vmatpush.bf16.msra.mxu0 %v2380
      %2456 = vmatmul.bf16.gmra.mxu0 %v2394
      %v2457 = vpop.f32.mrf.mxu0
      %v2458 = vadd.f32 0.0, %v2457
      %v2459 = vpop.f32.mrf.mxu0
      %v2460 = vadd.f32 0.0, %v2459
      %2461 = vmatmul.bf16.gmra.mxu0 %v2397
      %v2462 = vpop.f32.mrf.mxu0
      %v2463 = vadd.f32 0.0, %v2462
      %v2464 = vpop.f32.mrf.mxu0
      %v2465 = vadd.f32 0.0, %v2464
      %2466 = vmatmul.bf16.gmra.mxu0 %v2400
      %v2467 = vpop.f32.mrf.mxu0
      %v2468 = vadd.f32 0.0, %v2467
      %v2469 = vpop.f32.mrf.mxu0
      %v2470 = vadd.f32 0.0, %v2469
      %2471 = vmatmul.bf16.gmra.mxu0 %v2403
      %v2472 = vpop.f32.mrf.mxu0
      %v2473 = vadd.f32 0.0, %v2472
      %v2474 = vpop.f32.mrf.mxu0
      %v2475 = vadd.f32 0.0, %v2474
      %2476 = vmatmul.bf16.gmra.mxu0 %v2406
      %v2477 = vpop.f32.mrf.mxu0
      %v2478 = vadd.f32 0.0, %v2477
      %v2479 = vpop.f32.mrf.mxu0
      %v2480 = vadd.f32 0.0, %v2479
      %2481 = vmatmul.bf16.gmra.mxu0 %v2409
      %v2482 = vpop.f32.mrf.mxu0
      %v2483 = vadd.f32 0.0, %v2482
      %v2484 = vpop.f32.mrf.mxu0
      %v2485 = vadd.f32 0.0, %v2484
      %2486 = vmatmul.bf16.gmra.mxu0 %v2412
      %v2487 = vpop.f32.mrf.mxu0
      %v2488 = vadd.f32 0.0, %v2487
      %v2489 = vpop.f32.mrf.mxu0
      %v2490 = vadd.f32 0.0, %v2489
      %2491 = vmatmul.bf16.gmra.mxu0 %v2415
      %v2492 = vpop.f32.mrf.mxu0
      %v2493 = vadd.f32 0.0, %v2492
      %v2494 = vpop.f32.mrf.mxu0
      %v2495 = vadd.f32 0.0, %v2494
      %2496 = vmatmul.bf16.gmra.mxu0 %v2418
      %v2497 = vpop.f32.mrf.mxu0
      %v2498 = vadd.f32 0.0, %v2497
      %v2499 = vpop.f32.mrf.mxu0
      %v2500 = vadd.f32 0.0, %v2499
      %2501 = vmatmul.bf16.gmra.mxu0 %v2421
      %v2502 = vpop.f32.mrf.mxu0
      %v2503 = vadd.f32 0.0, %v2502
      %v2504 = vpop.f32.mrf.mxu0
      %v2505 = vadd.f32 0.0, %v2504
      %2506 = vmatmul.bf16.gmra.mxu0 %v2424
      %v2507 = vpop.f32.mrf.mxu0
      %v2508 = vadd.f32 0.0, %v2507
      %v2509 = vpop.f32.mrf.mxu0
      %v2510 = vadd.f32 0.0, %v2509
      %2511 = vmatmul.bf16.gmra.mxu0 %v2427
      %v2512 = vpop.f32.mrf.mxu0
      %v2513 = vadd.f32 0.0, %v2512
      %v2514 = vpop.f32.mrf.mxu0
      %v2515 = vadd.f32 0.0, %v2514
      %2516 = vmatmul.bf16.gmra.mxu0 %v2430
      %v2517 = vpop.f32.mrf.mxu0
      %v2518 = vadd.f32 0.0, %v2517
      %v2519 = vpop.f32.mrf.mxu0
      %v2520 = vadd.f32 0.0, %v2519
      %2521 = vmatmul.bf16.gmra.mxu0 %v2433
      %v2522 = vpop.f32.mrf.mxu0
      %v2523 = vadd.f32 0.0, %v2522
      %v2524 = vpop.f32.mrf.mxu0
      %v2525 = vadd.f32 0.0, %v2524
      %2526 = vdwg.mxu0
      %2527 = vmatpush.bf16.msra.mxu0 0
      %2528 = vmatpush.bf16.msra.mxu0 0
      %2529 = vmatpush.bf16.msra.mxu0 0
      %2530 = vmatpush.bf16.msra.mxu0 0
      %2531 = vmatpush.bf16.msra.mxu0 0
      %2532 = vmatpush.bf16.msra.mxu0 0
      %2533 = vmatpush.bf16.msra.mxu0 %v2440
      %2534 = vmatpush.bf16.msra.mxu0 %v2381
      %2535 = vmatmul.bf16.gmra.mxu0 %v2394
      %v2536 = vpop.f32.mrf.mxu0
      %v2537 = vadd.f32 0.0, %v2536
      %v2538 = vpop.f32.mrf.mxu0
      %v2539 = vadd.f32 0.0, %v2538
      %2540 = vmatmul.bf16.gmra.mxu0 %v2397
      %v2541 = vpop.f32.mrf.mxu0
      %v2542 = vadd.f32 0.0, %v2541
      %v2543 = vpop.f32.mrf.mxu0
      %v2544 = vadd.f32 0.0, %v2543
      %2545 = vmatmul.bf16.gmra.mxu0 %v2400
      %v2546 = vpop.f32.mrf.mxu0
      %v2547 = vadd.f32 0.0, %v2546
      %v2548 = vpop.f32.mrf.mxu0
      %v2549 = vadd.f32 0.0, %v2548
      %2550 = vmatmul.bf16.gmra.mxu0 %v2403
      %v2551 = vpop.f32.mrf.mxu0
      %v2552 = vadd.f32 0.0, %v2551
      %v2553 = vpop.f32.mrf.mxu0
      %v2554 = vadd.f32 0.0, %v2553
      %2555 = vmatmul.bf16.gmra.mxu0 %v2406
      %v2556 = vpop.f32.mrf.mxu0
      %v2557 = vadd.f32 0.0, %v2556
      %v2558 = vpop.f32.mrf.mxu0
      %v2559 = vadd.f32 0.0, %v2558
      %2560 = vmatmul.bf16.gmra.mxu0 %v2409
      %v2561 = vpop.f32.mrf.mxu0
      %v2562 = vadd.f32 0.0, %v2561
      %v2563 = vpop.f32.mrf.mxu0
      %v2564 = vadd.f32 0.0, %v2563
      %2565 = vmatmul.bf16.gmra.mxu0 %v2412
      %v2566 = vpop.f32.mrf.mxu0
      %v2567 = vadd.f32 0.0, %v2566
      %v2568 = vpop.f32.mrf.mxu0
      %v2569 = vadd.f32 0.0, %v2568
      %2570 = vmatmul.bf16.gmra.mxu0 %v2415
      %v2571 = vpop.f32.mrf.mxu0
      %v2572 = vadd.f32 0.0, %v2571
      %v2573 = vpop.f32.mrf.mxu0
      %v2574 = vadd.f32 0.0, %v2573
      %2575 = vmatmul.bf16.gmra.mxu0 %v2418
      %v2576 = vpop.f32.mrf.mxu0
      %v2577 = vadd.f32 0.0, %v2576
      %v2578 = vpop.f32.mrf.mxu0
      %v2579 = vadd.f32 0.0, %v2578
      %2580 = vmatmul.bf16.gmra.mxu0 %v2421
      %v2581 = vpop.f32.mrf.mxu0
      %v2582 = vadd.f32 0.0, %v2581
      %v2583 = vpop.f32.mrf.mxu0
      %v2584 = vadd.f32 0.0, %v2583
      %2585 = vmatmul.bf16.gmra.mxu0 %v2424
      %v2586 = vpop.f32.mrf.mxu0
      %v2587 = vadd.f32 0.0, %v2586
      %v2588 = vpop.f32.mrf.mxu0
      %v2589 = vadd.f32 0.0, %v2588
      %2590 = vmatmul.bf16.gmra.mxu0 %v2427
      %v2591 = vpop.f32.mrf.mxu0
      %v2592 = vadd.f32 0.0, %v2591
      %v2593 = vpop.f32.mrf.mxu0
      %v2594 = vadd.f32 0.0, %v2593
      %2595 = vmatmul.bf16.gmra.mxu0 %v2430
      %v2596 = vpop.f32.mrf.mxu0
      %v2597 = vadd.f32 0.0, %v2596
      %v2598 = vpop.f32.mrf.mxu0
      %v2599 = vadd.f32 0.0, %v2598
      %2600 = vmatmul.bf16.gmra.mxu0 %v2433
      %v2601 = vpop.f32.mrf.mxu0
      %v2602 = vadd.f32 0.0, %v2601
      %v2603 = vpop.f32.mrf.mxu0
      %v2604 = vadd.f32 0.0, %v2603
      %2605 = vdwg.mxu0
      %2606 = vmatpush.bf16.msra.mxu0 0
      %2607 = vmatpush.bf16.msra.mxu0 0
      %2608 = vmatpush.bf16.msra.mxu0 0
      %2609 = vmatpush.bf16.msra.mxu0 0
      %2610 = vmatpush.bf16.msra.mxu0 0
      %2611 = vmatpush.bf16.msra.mxu0 0
      %2612 = vmatpush.bf16.msra.mxu0 %v2443
      %2613 = vmatpush.bf16.msra.mxu0 %v2382
      %2614 = vmatmul.bf16.gmra.mxu0 %v2394
      %v2615 = vpop.f32.mrf.mxu0
      %v2616 = vadd.f32 0.0, %v2615
      %v2617 = vpop.f32.mrf.mxu0
      %v2618 = vadd.f32 0.0, %v2617
      %2619 = vmatmul.bf16.gmra.mxu0 %v2397
      %v2620 = vpop.f32.mrf.mxu0
      %v2621 = vadd.f32 0.0, %v2620
      %v2622 = vpop.f32.mrf.mxu0
      %v2623 = vadd.f32 0.0, %v2622
      %2624 = vmatmul.bf16.gmra.mxu0 %v2400
      %v2625 = vpop.f32.mrf.mxu0
      %v2626 = vadd.f32 0.0, %v2625
      %v2627 = vpop.f32.mrf.mxu0
      %v2628 = vadd.f32 0.0, %v2627
      %2629 = vmatmul.bf16.gmra.mxu0 %v2403
      %v2630 = vpop.f32.mrf.mxu0
      %v2631 = vadd.f32 0.0, %v2630
      %v2632 = vpop.f32.mrf.mxu0
      %v2633 = vadd.f32 0.0, %v2632
      %2634 = vmatmul.bf16.gmra.mxu0 %v2406
      %v2635 = vpop.f32.mrf.mxu0
      %v2636 = vadd.f32 0.0, %v2635
      %v2637 = vpop.f32.mrf.mxu0
      %v2638 = vadd.f32 0.0, %v2637
      %2639 = vmatmul.bf16.gmra.mxu0 %v2409
      %v2640 = vpop.f32.mrf.mxu0
      %v2641 = vadd.f32 0.0, %v2640
      %v2642 = vpop.f32.mrf.mxu0
      %v2643 = vadd.f32 0.0, %v2642
      %2644 = vmatmul.bf16.gmra.mxu0 %v2412
      %v2645 = vpop.f32.mrf.mxu0
      %v2646 = vadd.f32 0.0, %v2645
      %v2647 = vpop.f32.mrf.mxu0
      %v2648 = vadd.f32 0.0, %v2647
      %2649 = vmatmul.bf16.gmra.mxu0 %v2415
      %v2650 = vpop.f32.mrf.mxu0
      %v2651 = vadd.f32 0.0, %v2650
      %v2652 = vpop.f32.mrf.mxu0
      %v2653 = vadd.f32 0.0, %v2652
      %2654 = vmatmul.bf16.gmra.mxu0 %v2418
      %v2655 = vpop.f32.mrf.mxu0
      %v2656 = vadd.f32 0.0, %v2655
      %v2657 = vpop.f32.mrf.mxu0
      %v2658 = vadd.f32 0.0, %v2657
      %2659 = vmatmul.bf16.gmra.mxu0 %v2421
      %v2660 = vpop.f32.mrf.mxu0
      %v2661 = vadd.f32 0.0, %v2660
      %v2662 = vpop.f32.mrf.mxu0
      %v2663 = vadd.f32 0.0, %v2662
      %2664 = vmatmul.bf16.gmra.mxu0 %v2424
      %v2665 = vpop.f32.mrf.mxu0
      %v2666 = vadd.f32 0.0, %v2665
      %v2667 = vpop.f32.mrf.mxu0
      %v2668 = vadd.f32 0.0, %v2667
      %2669 = vmatmul.bf16.gmra.mxu0 %v2427
      %v2670 = vpop.f32.mrf.mxu0
      %v2671 = vadd.f32 0.0, %v2670
      %v2672 = vpop.f32.mrf.mxu0
      %v2673 = vadd.f32 0.0, %v2672
      %2674 = vmatmul.bf16.gmra.mxu0 %v2430
      %v2675 = vpop.f32.mrf.mxu0
      %v2676 = vadd.f32 0.0, %v2675
      %v2677 = vpop.f32.mrf.mxu0
      %v2678 = vadd.f32 0.0, %v2677
      %2679 = vmatmul.bf16.gmra.mxu0 %v2433
      %v2680 = vpop.f32.mrf.mxu0
      %v2681 = vadd.f32 0.0, %v2680
      %v2682 = vpop.f32.mrf.mxu0
      %v2683 = vadd.f32 0.0, %v2682
      %2684 = vdwg.mxu0
      %2685 = vmatpush.bf16.msra.mxu0 0
      %2686 = vmatpush.bf16.msra.mxu0 0
      %2687 = vmatpush.bf16.msra.mxu0 0
      %2688 = vmatpush.bf16.msra.mxu0 0
      %2689 = vmatpush.bf16.msra.mxu0 0
      %2690 = vmatpush.bf16.msra.mxu0 0
      %2691 = vmatpush.bf16.msra.mxu0 %v2446
      %2692 = vmatpush.bf16.msra.mxu0 %v2383
      %2693 = vmatmul.bf16.gmra.mxu0 %v2394
      %v2694 = vpop.f32.mrf.mxu0
      %v2695 = vadd.f32 0.0, %v2694
      %v2696 = vpop.f32.mrf.mxu0
      %v2697 = vadd.f32 0.0, %v2696
      %2698 = vmatmul.bf16.gmra.mxu0 %v2397
      %v2699 = vpop.f32.mrf.mxu0
      %v2700 = vadd.f32 0.0, %v2699
      %v2701 = vpop.f32.mrf.mxu0
      %v2702 = vadd.f32 0.0, %v2701
      %2703 = vmatmul.bf16.gmra.mxu0 %v2400
      %v2704 = vpop.f32.mrf.mxu0
      %v2705 = vadd.f32 0.0, %v2704
      %v2706 = vpop.f32.mrf.mxu0
      %v2707 = vadd.f32 0.0, %v2706
      %2708 = vmatmul.bf16.gmra.mxu0 %v2403
      %v2709 = vpop.f32.mrf.mxu0
      %v2710 = vadd.f32 0.0, %v2709
      %v2711 = vpop.f32.mrf.mxu0
      %v2712 = vadd.f32 0.0, %v2711
      %2713 = vmatmul.bf16.gmra.mxu0 %v2406
      %v2714 = vpop.f32.mrf.mxu0
      %v2715 = vadd.f32 0.0, %v2714
      %v2716 = vpop.f32.mrf.mxu0
      %v2717 = vadd.f32 0.0, %v2716
      %2718 = vmatmul.bf16.gmra.mxu0 %v2409
      %v2719 = vpop.f32.mrf.mxu0
      %v2720 = vadd.f32 0.0, %v2719
      %v2721 = vpop.f32.mrf.mxu0
      %v2722 = vadd.f32 0.0, %v2721
      %2723 = vmatmul.bf16.gmra.mxu0 %v2412
      %v2724 = vpop.f32.mrf.mxu0
      %v2725 = vadd.f32 0.0, %v2724
      %v2726 = vpop.f32.mrf.mxu0
      %v2727 = vadd.f32 0.0, %v2726
      %2728 = vmatmul.bf16.gmra.mxu0 %v2415
      %v2729 = vpop.f32.mrf.mxu0
      %v2730 = vadd.f32 0.0, %v2729
      %v2731 = vpop.f32.mrf.mxu0
      %v2732 = vadd.f32 0.0, %v2731
      %2733 = vmatmul.bf16.gmra.mxu0 %v2418
      %v2734 = vpop.f32.mrf.mxu0
      %v2735 = vadd.f32 0.0, %v2734
      %v2736 = vpop.f32.mrf.mxu0
      %v2737 = vadd.f32 0.0, %v2736
      %2738 = vmatmul.bf16.gmra.mxu0 %v2421
      %v2739 = vpop.f32.mrf.mxu0
      %v2740 = vadd.f32 0.0, %v2739
      %v2741 = vpop.f32.mrf.mxu0
      %v2742 = vadd.f32 0.0, %v2741
      %2743 = vmatmul.bf16.gmra.mxu0 %v2424
      %v2744 = vpop.f32.mrf.mxu0
      %v2745 = vadd.f32 0.0, %v2744
      %v2746 = vpop.f32.mrf.mxu0
      %v2747 = vadd.f32 0.0, %v2746
      %2748 = vmatmul.bf16.gmra.mxu0 %v2427
      %v2749 = vpop.f32.mrf.mxu0
      %v2750 = vadd.f32 0.0, %v2749
      %v2751 = vpop.f32.mrf.mxu0
      %v2752 = vadd.f32 0.0, %v2751
      %2753 = vmatmul.bf16.gmra.mxu0 %v2430
      %v2754 = vpop.f32.mrf.mxu0
      %v2755 = vadd.f32 0.0, %v2754
      %v2756 = vpop.f32.mrf.mxu0
      %v2757 = vadd.f32 0.0, %v2756
      %2758 = vmatmul.bf16.gmra.mxu0 %v2433
      %v2759 = vpop.f32.mrf.mxu0
      %v2760 = vadd.f32 0.0, %v2759
      %v2761 = vpop.f32.mrf.mxu0
      %v2762 = vadd.f32 0.0, %v2761
      %2763 = vdwg.mxu0
      %v2792 = vunpack.c.l.b16 %v2129
      %v2793 = vunpack.c.l.b16 %v2130
      %v2794 = vunpack.c.l.b16 %v2131
      %v2795 = vunpack.c.l.b16 %v2132
      %v2796 = vunpack.c.l.b16 %v2133
      %v2797 = vunpack.c.l.b16 %v2134
      %v2798 = vunpack.c.l.b16 %v2135
      %v2799 = vunpack.c.l.b16 %v2136
      %v2800 = vunpack.c.l.b16 %v2137
      %v2801 = vunpack.c.l.b16 %v2138
      %v2802 = vunpack.c.l.b16 %v2139
      %v2803 = vunpack.c.l.b16 %v2140
      %v2804 = vunpack.c.l.b16 %v2141
      %v2805 = vunpack.c.l.b16 %v2142
      %v2806 = vunpack.c.l.b16 %v2143
      %v2807 = vunpack.c.l.b16 %v2144
      %v2808 = vunpack.c.l.b16 %v2145
      %v2809 = vunpack.c.l.b16 %v2146
      %v2810 = vunpack.c.l.b16 %v2147
      %v2811 = vunpack.c.l.b16 %v2148
      %v2812 = vunpack.c.l.b16 %v2149
      %v2813 = vunpack.c.l.b16 %v2150
      %v2814 = vunpack.c.l.b16 %v2151
      %v2815 = vunpack.c.l.b16 %v2152
      %v2816 = vunpack.c.l.b16 %v2153
      %v2817 = vunpack.c.l.b16 %v2154
      %v2818 = vunpack.c.l.b16 %v2155
      %v2819 = vunpack.c.l.b16 %v2156
      %v2820 = vpack.c.b16 %v2793, %v2792
      %v2821 = vpack.c.b16 %v2795, %v2794
      %v2822 = vpack.c.b16 %v2797, %v2796
      %v2823 = vpack.c.b16 %v2799, %v2798
      %v2824 = vpack.c.b16 %v2801, %v2800
      %v2825 = vpack.c.b16 %v2803, %v2802
      %v2826 = vpack.c.b16 %v2805, %v2804
      %v2827 = vpack.c.b16 %v2807, %v2806
      %v2828 = vpack.c.b16 %v2809, %v2808
      %v2829 = vpack.c.b16 %v2811, %v2810
      %v2830 = vpack.c.b16 %v2813, %v2812
      %v2831 = vpack.c.b16 %v2815, %v2814
      %v2832 = vpack.c.b16 %v2817, %v2816
      %v2833 = vpack.c.b16 %v2819, %v2818
      %v2842 = vunpack.c.l.b16 %v2269
      %v2843 = vunpack.c.h.b16 %v2269
      %v2844 = vunpack.c.l.b16 %v2270
      %v2845 = vunpack.c.h.b16 %v2270
      %v2846 = vunpack.c.l.b16 %v2271
      %v2847 = vunpack.c.h.b16 %v2271
      %v2848 = vunpack.c.l.b16 %v2272
      %v2849 = vunpack.c.h.b16 %v2272
      %v2850 = vunpack.c.l.b16 %v2273
      %v2851 = vunpack.c.h.b16 %v2273
      %v2852 = vunpack.c.l.b16 %v2274
      %v2853 = vunpack.c.h.b16 %v2274
      %v2854 = vunpack.c.l.b16 %v2275
      %v2855 = vunpack.c.h.b16 %v2275
      %v2856 = vunpack.c.l.b16 %v2276
      %v2857 = vunpack.c.h.b16 %v2276
      %v2858 = vpack.c.b16 %v2846, %v2842
      %v2859 = vpack.c.b16 %v2847, %v2843
      %v2860 = vpack.c.b16 %v2848, %v2844
      %v2861 = vpack.c.b16 %v2849, %v2845
      %v2862 = vpack.c.b16 %v2854, %v2850
      %v2863 = vpack.c.b16 %v2855, %v2851
      %v2864 = vpack.c.b16 %v2856, %v2852
      %v2865 = vpack.c.b16 %v2857, %v2853
      %v2871 = vsel %vm2392, %v2820, 0
      %v2874 = vsel %vm2392, %v2821, 0
      %v2877 = vsel %vm2392, %v2822, 0
      %v2880 = vsel %vm2392, %v2823, 0
      %v2883 = vsel %vm2392, %v2824, 0
      %v2886 = vsel %vm2392, %v2825, 0
      %v2889 = vsel %vm2392, %v2826, 0
      %v2892 = vsel %vm2392, %v2827, 0
      %v2895 = vsel %vm2392, %v2828, 0
      %v2898 = vsel %vm2392, %v2829, 0
      %v2901 = vsel %vm2392, %v2830, 0
      %v2904 = vsel %vm2392, %v2831, 0
      %v2907 = vsel %vm2392, %v2832, 0
      %v2910 = vsel %vm2392, %v2833, 0
      %v2913 = vsel %vm2435, %v2862, 0
      %v2916 = vsel %vm2435, %v2863, 0
      %v2919 = vsel %vm2435, %v2864, 0
      %v2922 = vsel %vm2435, %v2865, 0
      %2924 = vmatpush.bf16.msra.mxu0 0
      %2925 = vmatpush.bf16.msra.mxu0 0
      %2926 = vmatpush.bf16.msra.mxu0 0
      %2927 = vmatpush.bf16.msra.mxu0 0
      %2928 = vmatpush.bf16.msra.mxu0 0
      %2929 = vmatpush.bf16.msra.mxu0 0
      %2930 = vmatpush.bf16.msra.mxu0 %v2913
      %2931 = vmatpush.bf16.msra.mxu0 %v2858
      %2932 = vmatmul.bf16.gmra.mxu0 %v2871
      %v2933 = vpop.f32.mrf.mxu0
      %v2934 = vadd.f32 %v2458, %v2933
      %v2935 = vpop.f32.mrf.mxu0
      %v2936 = vadd.f32 %v2460, %v2935
      %2937 = vmatmul.bf16.gmra.mxu0 %v2874
      %v2938 = vpop.f32.mrf.mxu0
      %v2939 = vadd.f32 %v2463, %v2938
      %v2940 = vpop.f32.mrf.mxu0
      %v2941 = vadd.f32 %v2465, %v2940
      %2942 = vmatmul.bf16.gmra.mxu0 %v2877
      %v2943 = vpop.f32.mrf.mxu0
      %v2944 = vadd.f32 %v2468, %v2943
      %v2945 = vpop.f32.mrf.mxu0
      %v2946 = vadd.f32 %v2470, %v2945
      %2947 = vmatmul.bf16.gmra.mxu0 %v2880
      %v2948 = vpop.f32.mrf.mxu0
      %v2949 = vadd.f32 %v2473, %v2948
      %v2950 = vpop.f32.mrf.mxu0
      %v2951 = vadd.f32 %v2475, %v2950
      %2952 = vmatmul.bf16.gmra.mxu0 %v2883
      %v2953 = vpop.f32.mrf.mxu0
      %v2954 = vadd.f32 %v2478, %v2953
      %v2955 = vpop.f32.mrf.mxu0
      %v2956 = vadd.f32 %v2480, %v2955
      %2957 = vmatmul.bf16.gmra.mxu0 %v2886
      %v2958 = vpop.f32.mrf.mxu0
      %v2959 = vadd.f32 %v2483, %v2958
      %v2960 = vpop.f32.mrf.mxu0
      %v2961 = vadd.f32 %v2485, %v2960
      %2962 = vmatmul.bf16.gmra.mxu0 %v2889
      %v2963 = vpop.f32.mrf.mxu0
      %v2964 = vadd.f32 %v2488, %v2963
      %v2965 = vpop.f32.mrf.mxu0
      %v2966 = vadd.f32 %v2490, %v2965
      %2967 = vmatmul.bf16.gmra.mxu0 %v2892
      %v2968 = vpop.f32.mrf.mxu0
      %v2969 = vadd.f32 %v2493, %v2968
      %v2970 = vpop.f32.mrf.mxu0
      %v2971 = vadd.f32 %v2495, %v2970
      %2972 = vmatmul.bf16.gmra.mxu0 %v2895
      %v2973 = vpop.f32.mrf.mxu0
      %v2974 = vadd.f32 %v2498, %v2973
      %v2975 = vpop.f32.mrf.mxu0
      %v2976 = vadd.f32 %v2500, %v2975
      %2977 = vmatmul.bf16.gmra.mxu0 %v2898
      %v2978 = vpop.f32.mrf.mxu0
      %v2979 = vadd.f32 %v2503, %v2978
      %v2980 = vpop.f32.mrf.mxu0
      %v2981 = vadd.f32 %v2505, %v2980
      %2982 = vmatmul.bf16.gmra.mxu0 %v2901
      %v2983 = vpop.f32.mrf.mxu0
      %v2984 = vadd.f32 %v2508, %v2983
      %v2985 = vpop.f32.mrf.mxu0
      %v2986 = vadd.f32 %v2510, %v2985
      %2987 = vmatmul.bf16.gmra.mxu0 %v2904
      %v2988 = vpop.f32.mrf.mxu0
      %v2989 = vadd.f32 %v2513, %v2988
      %v2990 = vpop.f32.mrf.mxu0
      %v2991 = vadd.f32 %v2515, %v2990
      %2992 = vmatmul.bf16.gmra.mxu0 %v2907
      %v2993 = vpop.f32.mrf.mxu0
      %v2994 = vadd.f32 %v2518, %v2993
      %v2995 = vpop.f32.mrf.mxu0
      %v2996 = vadd.f32 %v2520, %v2995
      %2997 = vmatmul.bf16.gmra.mxu0 %v2910
      %v2998 = vpop.f32.mrf.mxu0
      %v2999 = vadd.f32 %v2523, %v2998
      %v3000 = vpop.f32.mrf.mxu0
      %v3001 = vadd.f32 %v2525, %v3000
      %3002 = vdwg.mxu0
      %3003 = vmatpush.bf16.msra.mxu0 0
      %3004 = vmatpush.bf16.msra.mxu0 0
      %3005 = vmatpush.bf16.msra.mxu0 0
      %3006 = vmatpush.bf16.msra.mxu0 0
      %3007 = vmatpush.bf16.msra.mxu0 0
      %3008 = vmatpush.bf16.msra.mxu0 0
      %3009 = vmatpush.bf16.msra.mxu0 %v2916
      %3010 = vmatpush.bf16.msra.mxu0 %v2859
      %3011 = vmatmul.bf16.gmra.mxu0 %v2871
      %v3012 = vpop.f32.mrf.mxu0
      %v3013 = vadd.f32 %v2537, %v3012
      %v3014 = vpop.f32.mrf.mxu0
      %v3015 = vadd.f32 %v2539, %v3014
      %3016 = vmatmul.bf16.gmra.mxu0 %v2874
      %v3017 = vpop.f32.mrf.mxu0
      %v3018 = vadd.f32 %v2542, %v3017
      %v3019 = vpop.f32.mrf.mxu0
      %v3020 = vadd.f32 %v2544, %v3019
      %3021 = vmatmul.bf16.gmra.mxu0 %v2877
      %v3022 = vpop.f32.mrf.mxu0
      %v3023 = vadd.f32 %v2547, %v3022
      %v3024 = vpop.f32.mrf.mxu0
      %v3025 = vadd.f32 %v2549, %v3024
      %3026 = vmatmul.bf16.gmra.mxu0 %v2880
      %v3027 = vpop.f32.mrf.mxu0
      %v3028 = vadd.f32 %v2552, %v3027
      %v3029 = vpop.f32.mrf.mxu0
      %v3030 = vadd.f32 %v2554, %v3029
      %3031 = vmatmul.bf16.gmra.mxu0 %v2883
      %v3032 = vpop.f32.mrf.mxu0
      %v3033 = vadd.f32 %v2557, %v3032
      %v3034 = vpop.f32.mrf.mxu0
      %v3035 = vadd.f32 %v2559, %v3034
      %3036 = vmatmul.bf16.gmra.mxu0 %v2886
      %v3037 = vpop.f32.mrf.mxu0
      %v3038 = vadd.f32 %v2562, %v3037
      %v3039 = vpop.f32.mrf.mxu0
      %v3040 = vadd.f32 %v2564, %v3039
      %3041 = vmatmul.bf16.gmra.mxu0 %v2889
      %v3042 = vpop.f32.mrf.mxu0
      %v3043 = vadd.f32 %v2567, %v3042
      %v3044 = vpop.f32.mrf.mxu0
      %v3045 = vadd.f32 %v2569, %v3044
      %3046 = vmatmul.bf16.gmra.mxu0 %v2892
      %v3047 = vpop.f32.mrf.mxu0
      %v3048 = vadd.f32 %v2572, %v3047
      %v3049 = vpop.f32.mrf.mxu0
      %v3050 = vadd.f32 %v2574, %v3049
      %3051 = vmatmul.bf16.gmra.mxu0 %v2895
      %v3052 = vpop.f32.mrf.mxu0
      %v3053 = vadd.f32 %v2577, %v3052
      %v3054 = vpop.f32.mrf.mxu0
      %v3055 = vadd.f32 %v2579, %v3054
      %3056 = vmatmul.bf16.gmra.mxu0 %v2898
      %v3057 = vpop.f32.mrf.mxu0
      %v3058 = vadd.f32 %v2582, %v3057
      %v3059 = vpop.f32.mrf.mxu0
      %v3060 = vadd.f32 %v2584, %v3059
      %3061 = vmatmul.bf16.gmra.mxu0 %v2901
      %v3062 = vpop.f32.mrf.mxu0
      %v3063 = vadd.f32 %v2587, %v3062
      %v3064 = vpop.f32.mrf.mxu0
      %v3065 = vadd.f32 %v2589, %v3064
      %3066 = vmatmul.bf16.gmra.mxu0 %v2904
      %v3067 = vpop.f32.mrf.mxu0
      %v3068 = vadd.f32 %v2592, %v3067
      %v3069 = vpop.f32.mrf.mxu0
      %v3070 = vadd.f32 %v2594, %v3069
      %3071 = vmatmul.bf16.gmra.mxu0 %v2907
      %v3072 = vpop.f32.mrf.mxu0
      %v3073 = vadd.f32 %v2597, %v3072
      %v3074 = vpop.f32.mrf.mxu0
      %v3075 = vadd.f32 %v2599, %v3074
      %3076 = vmatmul.bf16.gmra.mxu0 %v2910
      %v3077 = vpop.f32.mrf.mxu0
      %v3078 = vadd.f32 %v2602, %v3077
      %v3079 = vpop.f32.mrf.mxu0
      %v3080 = vadd.f32 %v2604, %v3079
      %3081 = vdwg.mxu0
      %3082 = vmatpush.bf16.msra.mxu0 0
      %3083 = vmatpush.bf16.msra.mxu0 0
      %3084 = vmatpush.bf16.msra.mxu0 0
      %3085 = vmatpush.bf16.msra.mxu0 0
      %3086 = vmatpush.bf16.msra.mxu0 0
      %3087 = vmatpush.bf16.msra.mxu0 0
      %3088 = vmatpush.bf16.msra.mxu0 %v2919
      %3089 = vmatpush.bf16.msra.mxu0 %v2860
      %3090 = vmatmul.bf16.gmra.mxu0 %v2871
      %v3091 = vpop.f32.mrf.mxu0
      %v3092 = vadd.f32 %v2616, %v3091
      %v3093 = vpop.f32.mrf.mxu0
      %v3094 = vadd.f32 %v2618, %v3093
      %3095 = vmatmul.bf16.gmra.mxu0 %v2874
      %v3096 = vpop.f32.mrf.mxu0
      %v3097 = vadd.f32 %v2621, %v3096
      %v3098 = vpop.f32.mrf.mxu0
      %v3099 = vadd.f32 %v2623, %v3098
      %3100 = vmatmul.bf16.gmra.mxu0 %v2877
      %v3101 = vpop.f32.mrf.mxu0
      %v3102 = vadd.f32 %v2626, %v3101
      %v3103 = vpop.f32.mrf.mxu0
      %v3104 = vadd.f32 %v2628, %v3103
      %3105 = vmatmul.bf16.gmra.mxu0 %v2880
      %v3106 = vpop.f32.mrf.mxu0
      %v3107 = vadd.f32 %v2631, %v3106
      %v3108 = vpop.f32.mrf.mxu0
      %v3109 = vadd.f32 %v2633, %v3108
      %3110 = vmatmul.bf16.gmra.mxu0 %v2883
      %v3111 = vpop.f32.mrf.mxu0
      %v3112 = vadd.f32 %v2636, %v3111
      %v3113 = vpop.f32.mrf.mxu0
      %v3114 = vadd.f32 %v2638, %v3113
      %3115 = vmatmul.bf16.gmra.mxu0 %v2886
      %v3116 = vpop.f32.mrf.mxu0
      %v3117 = vadd.f32 %v2641, %v3116
      %v3118 = vpop.f32.mrf.mxu0
      %v3119 = vadd.f32 %v2643, %v3118
      %3120 = vmatmul.bf16.gmra.mxu0 %v2889
      %v3121 = vpop.f32.mrf.mxu0
      %v3122 = vadd.f32 %v2646, %v3121
      %v3123 = vpop.f32.mrf.mxu0
      %v3124 = vadd.f32 %v2648, %v3123
      %3125 = vmatmul.bf16.gmra.mxu0 %v2892
      %v3126 = vpop.f32.mrf.mxu0
      %v3127 = vadd.f32 %v2651, %v3126
      %v3128 = vpop.f32.mrf.mxu0
      %v3129 = vadd.f32 %v2653, %v3128
      %3130 = vmatmul.bf16.gmra.mxu0 %v2895
      %v3131 = vpop.f32.mrf.mxu0
      %v3132 = vadd.f32 %v2656, %v3131
      %v3133 = vpop.f32.mrf.mxu0
      %v3134 = vadd.f32 %v2658, %v3133
      %3135 = vmatmul.bf16.gmra.mxu0 %v2898
      %v3136 = vpop.f32.mrf.mxu0
      %v3137 = vadd.f32 %v2661, %v3136
      %v3138 = vpop.f32.mrf.mxu0
      %v3139 = vadd.f32 %v2663, %v3138
      %3140 = vmatmul.bf16.gmra.mxu0 %v2901
      %v3141 = vpop.f32.mrf.mxu0
      %v3142 = vadd.f32 %v2666, %v3141
      %v3143 = vpop.f32.mrf.mxu0
      %v3144 = vadd.f32 %v2668, %v3143
      %3145 = vmatmul.bf16.gmra.mxu0 %v2904
      %v3146 = vpop.f32.mrf.mxu0
      %v3147 = vadd.f32 %v2671, %v3146
      %v3148 = vpop.f32.mrf.mxu0
      %v3149 = vadd.f32 %v2673, %v3148
      %3150 = vmatmul.bf16.gmra.mxu0 %v2907
      %v3151 = vpop.f32.mrf.mxu0
      %v3152 = vadd.f32 %v2676, %v3151
      %v3153 = vpop.f32.mrf.mxu0
      %v3154 = vadd.f32 %v2678, %v3153
      %3155 = vmatmul.bf16.gmra.mxu0 %v2910
      %v3156 = vpop.f32.mrf.mxu0
      %v3157 = vadd.f32 %v2681, %v3156
      %v3158 = vpop.f32.mrf.mxu0
      %v3159 = vadd.f32 %v2683, %v3158
      %3160 = vdwg.mxu0
      %3161 = vmatpush.bf16.msra.mxu0 0
      %3162 = vmatpush.bf16.msra.mxu0 0
      %3163 = vmatpush.bf16.msra.mxu0 0
      %3164 = vmatpush.bf16.msra.mxu0 0
      %3165 = vmatpush.bf16.msra.mxu0 0
      %3166 = vmatpush.bf16.msra.mxu0 0
      %3167 = vmatpush.bf16.msra.mxu0 %v2922
      %3168 = vmatpush.bf16.msra.mxu0 %v2861
      %3169 = vmatmul.bf16.gmra.mxu0 %v2871
      %v3170 = vpop.f32.mrf.mxu0
      %v3171 = vadd.f32 %v2695, %v3170
      %v3172 = vpop.f32.mrf.mxu0
      %v3173 = vadd.f32 %v2697, %v3172
      %3174 = vmatmul.bf16.gmra.mxu0 %v2874
      %v3175 = vpop.f32.mrf.mxu0
      %v3176 = vadd.f32 %v2700, %v3175
      %v3177 = vpop.f32.mrf.mxu0
      %v3178 = vadd.f32 %v2702, %v3177
      %3179 = vmatmul.bf16.gmra.mxu0 %v2877
      %v3180 = vpop.f32.mrf.mxu0
      %v3181 = vadd.f32 %v2705, %v3180
      %v3182 = vpop.f32.mrf.mxu0
      %v3183 = vadd.f32 %v2707, %v3182
      %3184 = vmatmul.bf16.gmra.mxu0 %v2880
      %v3185 = vpop.f32.mrf.mxu0
      %v3186 = vadd.f32 %v2710, %v3185
      %v3187 = vpop.f32.mrf.mxu0
      %v3188 = vadd.f32 %v2712, %v3187
      %3189 = vmatmul.bf16.gmra.mxu0 %v2883
      %v3190 = vpop.f32.mrf.mxu0
      %v3191 = vadd.f32 %v2715, %v3190
      %v3192 = vpop.f32.mrf.mxu0
      %v3193 = vadd.f32 %v2717, %v3192
      %3194 = vmatmul.bf16.gmra.mxu0 %v2886
      %v3195 = vpop.f32.mrf.mxu0
      %v3196 = vadd.f32 %v2720, %v3195
      %v3197 = vpop.f32.mrf.mxu0
      %v3198 = vadd.f32 %v2722, %v3197
      %3199 = vmatmul.bf16.gmra.mxu0 %v2889
      %v3200 = vpop.f32.mrf.mxu0
      %v3201 = vadd.f32 %v2725, %v3200
      %v3202 = vpop.f32.mrf.mxu0
      %v3203 = vadd.f32 %v2727, %v3202
      %3204 = vmatmul.bf16.gmra.mxu0 %v2892
      %v3205 = vpop.f32.mrf.mxu0
      %v3206 = vadd.f32 %v2730, %v3205
      %v3207 = vpop.f32.mrf.mxu0
      %v3208 = vadd.f32 %v2732, %v3207
      %3209 = vmatmul.bf16.gmra.mxu0 %v2895
      %v3210 = vpop.f32.mrf.mxu0
      %v3211 = vadd.f32 %v2735, %v3210
      %v3212 = vpop.f32.mrf.mxu0
      %v3213 = vadd.f32 %v2737, %v3212
      %3214 = vmatmul.bf16.gmra.mxu0 %v2898
      %v3215 = vpop.f32.mrf.mxu0
      %v3216 = vadd.f32 %v2740, %v3215
      %v3217 = vpop.f32.mrf.mxu0
      %v3218 = vadd.f32 %v2742, %v3217
      %3219 = vmatmul.bf16.gmra.mxu0 %v2901
      %v3220 = vpop.f32.mrf.mxu0
      %v3221 = vadd.f32 %v2745, %v3220
      %v3222 = vpop.f32.mrf.mxu0
      %v3223 = vadd.f32 %v2747, %v3222
      %3224 = vmatmul.bf16.gmra.mxu0 %v2904
      %v3225 = vpop.f32.mrf.mxu0
      %v3226 = vadd.f32 %v2750, %v3225
      %v3227 = vpop.f32.mrf.mxu0
      %v3228 = vadd.f32 %v2752, %v3227
      %3229 = vmatmul.bf16.gmra.mxu0 %v2907
      %v3230 = vpop.f32.mrf.mxu0
      %v3231 = vadd.f32 %v2755, %v3230
      %v3232 = vpop.f32.mrf.mxu0
      %v3233 = vadd.f32 %v2757, %v3232
      %3234 = vmatmul.bf16.gmra.mxu0 %v2910
      %v3235 = vpop.f32.mrf.mxu0
      %v3236 = vadd.f32 %v2760, %v3235
      %v3237 = vpop.f32.mrf.mxu0
      %v3238 = vadd.f32 %v2762, %v3237
      %3239 = vdwg.mxu0
      %s3240 = scalar_lea.vmem %s2, 128
      %v3241 = vld [vmem:[%s3240] sm:$0xff]
      %v3242 = vld [vmem:[%s3240 + $0x8] sm:$0xff]
      %v3243 = vld [vmem:[%s3240 + $0x10] sm:$0xff]
      %v3244 = vld [vmem:[%s3240 + $0x18] sm:$0xff]
      %v3245 = vld [vmem:[%s3240 + $0x20] sm:$0xff]
      %v3246 = vld [vmem:[%s3240 + $0x28] sm:$0xff]
      %v3247 = vld [vmem:[%s3240 + $0x30] sm:$0x33]
      %v3248 = vld [vmem:[%s3240 + $0x38] sm:$0x33]
      %v3277 = vunpack.c.l.b16 %v2185
      %v3278 = vunpack.c.l.b16 %v2186
      %v3279 = vunpack.c.l.b16 %v2187
      %v3280 = vunpack.c.l.b16 %v2188
      %v3281 = vunpack.c.l.b16 %v2189
      %v3282 = vunpack.c.l.b16 %v2190
      %v3283 = vunpack.c.l.b16 %v2191
      %v3284 = vunpack.c.l.b16 %v2192
      %v3285 = vunpack.c.l.b16 %v2193
      %v3286 = vunpack.c.l.b16 %v2194
      %v3287 = vunpack.c.l.b16 %v2195
      %v3288 = vunpack.c.l.b16 %v2196
      %v3289 = vunpack.c.l.b16 %v2197
      %v3290 = vunpack.c.l.b16 %v2198
      %v3291 = vunpack.c.l.b16 %v2199
      %v3292 = vunpack.c.l.b16 %v2200
      %v3293 = vunpack.c.l.b16 %v2201
      %v3294 = vunpack.c.l.b16 %v2202
      %v3295 = vunpack.c.l.b16 %v2203
      %v3296 = vunpack.c.l.b16 %v2204
      %v3297 = vunpack.c.l.b16 %v2205
      %v3298 = vunpack.c.l.b16 %v2206
      %v3299 = vunpack.c.l.b16 %v2207
      %v3300 = vunpack.c.l.b16 %v2208
      %v3301 = vunpack.c.l.b16 %v2209
      %v3302 = vunpack.c.l.b16 %v2210
      %v3303 = vunpack.c.l.b16 %v2211
      %v3304 = vunpack.c.l.b16 %v2212
      %v3305 = vpack.c.b16 %v3278, %v3277
      %v3306 = vpack.c.b16 %v3280, %v3279
      %v3307 = vpack.c.b16 %v3282, %v3281
      %v3308 = vpack.c.b16 %v3284, %v3283
      %v3309 = vpack.c.b16 %v3286, %v3285
      %v3310 = vpack.c.b16 %v3288, %v3287
      %v3311 = vpack.c.b16 %v3290, %v3289
      %v3312 = vpack.c.b16 %v3292, %v3291
      %v3313 = vpack.c.b16 %v3294, %v3293
      %v3314 = vpack.c.b16 %v3296, %v3295
      %v3315 = vpack.c.b16 %v3298, %v3297
      %v3316 = vpack.c.b16 %v3300, %v3299
      %v3317 = vpack.c.b16 %v3302, %v3301
      %v3318 = vpack.c.b16 %v3304, %v3303
      %v3327 = vunpack.c.l.b16 %v3241
      %v3328 = vunpack.c.h.b16 %v3241
      %v3329 = vunpack.c.l.b16 %v3242
      %v3330 = vunpack.c.h.b16 %v3242
      %v3331 = vunpack.c.l.b16 %v3243
      %v3332 = vunpack.c.h.b16 %v3243
      %v3333 = vunpack.c.l.b16 %v3244
      %v3334 = vunpack.c.h.b16 %v3244
      %v3335 = vunpack.c.l.b16 %v3245
      %v3336 = vunpack.c.h.b16 %v3245
      %v3337 = vunpack.c.l.b16 %v3246
      %v3338 = vunpack.c.h.b16 %v3246
      %v3339 = vunpack.c.l.b16 %v3247
      %v3340 = vunpack.c.h.b16 %v3247
      %v3341 = vunpack.c.l.b16 %v3248
      %v3342 = vunpack.c.h.b16 %v3248
      %v3343 = vpack.c.b16 %v3331, %v3327
      %v3344 = vpack.c.b16 %v3332, %v3328
      %v3345 = vpack.c.b16 %v3333, %v3329
      %v3346 = vpack.c.b16 %v3334, %v3330
      %v3347 = vpack.c.b16 %v3339, %v3335
      %v3348 = vpack.c.b16 %v3340, %v3336
      %v3349 = vpack.c.b16 %v3341, %v3337
      %v3350 = vpack.c.b16 %v3342, %v3338
      %v3356 = vsel %vm2392, %v3305, 0
      %v3359 = vsel %vm2392, %v3306, 0
      %v3362 = vsel %vm2392, %v3307, 0
      %v3365 = vsel %vm2392, %v3308, 0
      %v3368 = vsel %vm2392, %v3309, 0
      %v3371 = vsel %vm2392, %v3310, 0
      %v3374 = vsel %vm2392, %v3311, 0
      %v3377 = vsel %vm2392, %v3312, 0
      %v3380 = vsel %vm2392, %v3313, 0
      %v3383 = vsel %vm2392, %v3314, 0
      %v3386 = vsel %vm2392, %v3315, 0
      %v3389 = vsel %vm2392, %v3316, 0
      %v3392 = vsel %vm2392, %v3317, 0
      %v3395 = vsel %vm2392, %v3318, 0
      %v3398 = vsel %vm2435, %v3347, 0
      %v3401 = vsel %vm2435, %v3348, 0
      %v3404 = vsel %vm2435, %v3349, 0
      %v3407 = vsel %vm2435, %v3350, 0
      %3409 = vmatpush.bf16.msra.mxu0 0
      %3410 = vmatpush.bf16.msra.mxu0 0
      %3411 = vmatpush.bf16.msra.mxu0 0
      %3412 = vmatpush.bf16.msra.mxu0 0
      %3413 = vmatpush.bf16.msra.mxu0 0
      %3414 = vmatpush.bf16.msra.mxu0 0
      %3415 = vmatpush.bf16.msra.mxu0 %v3398
      %3416 = vmatpush.bf16.msra.mxu0 %v3343
      %3417 = vmatmul.bf16.gmra.mxu0 %v3356
      %v3418 = vpop.f32.mrf.mxu0
      %v3419 = vadd.f32 0.0, %v3418
      %v3420 = vpop.f32.mrf.mxu0
      %v3421 = vadd.f32 0.0, %v3420
      %3422 = vmatmul.bf16.gmra.mxu0 %v3359
      %v3423 = vpop.f32.mrf.mxu0
      %v3424 = vadd.f32 0.0, %v3423
      %v3425 = vpop.f32.mrf.mxu0
      %v3426 = vadd.f32 0.0, %v3425
      %3427 = vmatmul.bf16.gmra.mxu0 %v3362
      %v3428 = vpop.f32.mrf.mxu0
      %v3429 = vadd.f32 0.0, %v3428
      %v3430 = vpop.f32.mrf.mxu0
      %v3431 = vadd.f32 0.0, %v3430
      %3432 = vmatmul.bf16.gmra.mxu0 %v3365
      %v3433 = vpop.f32.mrf.mxu0
      %v3434 = vadd.f32 0.0, %v3433
      %v3435 = vpop.f32.mrf.mxu0
      %v3436 = vadd.f32 0.0, %v3435
      %3437 = vmatmul.bf16.gmra.mxu0 %v3368
      %v3438 = vpop.f32.mrf.mxu0
      %v3439 = vadd.f32 0.0, %v3438
      %v3440 = vpop.f32.mrf.mxu0
      %v3441 = vadd.f32 0.0, %v3440
      %3442 = vmatmul.bf16.gmra.mxu0 %v3371
      %v3443 = vpop.f32.mrf.mxu0
      %v3444 = vadd.f32 0.0, %v3443
      %v3445 = vpop.f32.mrf.mxu0
      %v3446 = vadd.f32 0.0, %v3445
      %3447 = vmatmul.bf16.gmra.mxu0 %v3374
      %v3448 = vpop.f32.mrf.mxu0
      %v3449 = vadd.f32 0.0, %v3448
      %v3450 = vpop.f32.mrf.mxu0
      %v3451 = vadd.f32 0.0, %v3450
      %3452 = vmatmul.bf16.gmra.mxu0 %v3377
      %v3453 = vpop.f32.mrf.mxu0
      %v3454 = vadd.f32 0.0, %v3453
      %v3455 = vpop.f32.mrf.mxu0
      %v3456 = vadd.f32 0.0, %v3455
      %3457 = vmatmul.bf16.gmra.mxu0 %v3380
      %v3458 = vpop.f32.mrf.mxu0
      %v3459 = vadd.f32 0.0, %v3458
      %v3460 = vpop.f32.mrf.mxu0
      %v3461 = vadd.f32 0.0, %v3460
      %3462 = vmatmul.bf16.gmra.mxu0 %v3383
      %v3463 = vpop.f32.mrf.mxu0
      %v3464 = vadd.f32 0.0, %v3463
      %v3465 = vpop.f32.mrf.mxu0
      %v3466 = vadd.f32 0.0, %v3465
      %3467 = vmatmul.bf16.gmra.mxu0 %v3386
      %v3468 = vpop.f32.mrf.mxu0
      %v3469 = vadd.f32 0.0, %v3468
      %v3470 = vpop.f32.mrf.mxu0
      %v3471 = vadd.f32 0.0, %v3470
      %3472 = vmatmul.bf16.gmra.mxu0 %v3389
      %v3473 = vpop.f32.mrf.mxu0
      %v3474 = vadd.f32 0.0, %v3473
      %v3475 = vpop.f32.mrf.mxu0
      %v3476 = vadd.f32 0.0, %v3475
      %3477 = vmatmul.bf16.gmra.mxu0 %v3392
      %v3478 = vpop.f32.mrf.mxu0
      %v3479 = vadd.f32 0.0, %v3478
      %v3480 = vpop.f32.mrf.mxu0
      %v3481 = vadd.f32 0.0, %v3480
      %3482 = vmatmul.bf16.gmra.mxu0 %v3395
      %v3483 = vpop.f32.mrf.mxu0
      %v3484 = vadd.f32 0.0, %v3483
      %v3485 = vpop.f32.mrf.mxu0
      %v3486 = vadd.f32 0.0, %v3485
      %3487 = vdwg.mxu0
      %3488 = vmatpush.bf16.msra.mxu0 0
      %3489 = vmatpush.bf16.msra.mxu0 0
      %3490 = vmatpush.bf16.msra.mxu0 0
      %3491 = vmatpush.bf16.msra.mxu0 0
      %3492 = vmatpush.bf16.msra.mxu0 0
      %3493 = vmatpush.bf16.msra.mxu0 0
      %3494 = vmatpush.bf16.msra.mxu0 %v3401
      %3495 = vmatpush.bf16.msra.mxu0 %v3344
      %3496 = vmatmul.bf16.gmra.mxu0 %v3356
      %v3497 = vpop.f32.mrf.mxu0
      %v3498 = vadd.f32 0.0, %v3497
      %v3499 = vpop.f32.mrf.mxu0
      %v3500 = vadd.f32 0.0, %v3499
      %3501 = vmatmul.bf16.gmra.mxu0 %v3359
      %v3502 = vpop.f32.mrf.mxu0
      %v3503 = vadd.f32 0.0, %v3502
      %v3504 = vpop.f32.mrf.mxu0
      %v3505 = vadd.f32 0.0, %v3504
      %3506 = vmatmul.bf16.gmra.mxu0 %v3362
      %v3507 = vpop.f32.mrf.mxu0
      %v3508 = vadd.f32 0.0, %v3507
      %v3509 = vpop.f32.mrf.mxu0
      %v3510 = vadd.f32 0.0, %v3509
      %3511 = vmatmul.bf16.gmra.mxu0 %v3365
      %v3512 = vpop.f32.mrf.mxu0
      %v3513 = vadd.f32 0.0, %v3512
      %v3514 = vpop.f32.mrf.mxu0
      %v3515 = vadd.f32 0.0, %v3514
      %3516 = vmatmul.bf16.gmra.mxu0 %v3368
      %v3517 = vpop.f32.mrf.mxu0
      %v3518 = vadd.f32 0.0, %v3517
      %v3519 = vpop.f32.mrf.mxu0
      %v3520 = vadd.f32 0.0, %v3519
      %3521 = vmatmul.bf16.gmra.mxu0 %v3371
      %v3522 = vpop.f32.mrf.mxu0
      %v3523 = vadd.f32 0.0, %v3522
      %v3524 = vpop.f32.mrf.mxu0
      %v3525 = vadd.f32 0.0, %v3524
      %3526 = vmatmul.bf16.gmra.mxu0 %v3374
      %v3527 = vpop.f32.mrf.mxu0
      %v3528 = vadd.f32 0.0, %v3527
      %v3529 = vpop.f32.mrf.mxu0
      %v3530 = vadd.f32 0.0, %v3529
      %3531 = vmatmul.bf16.gmra.mxu0 %v3377
      %v3532 = vpop.f32.mrf.mxu0
      %v3533 = vadd.f32 0.0, %v3532
      %v3534 = vpop.f32.mrf.mxu0
      %v3535 = vadd.f32 0.0, %v3534
      %3536 = vmatmul.bf16.gmra.mxu0 %v3380
      %v3537 = vpop.f32.mrf.mxu0
      %v3538 = vadd.f32 0.0, %v3537
      %v3539 = vpop.f32.mrf.mxu0
      %v3540 = vadd.f32 0.0, %v3539
      %3541 = vmatmul.bf16.gmra.mxu0 %v3383
      %v3542 = vpop.f32.mrf.mxu0
      %v3543 = vadd.f32 0.0, %v3542
      %v3544 = vpop.f32.mrf.mxu0
      %v3545 = vadd.f32 0.0, %v3544
      %3546 = vmatmul.bf16.gmra.mxu0 %v3386
      %v3547 = vpop.f32.mrf.mxu0
      %v3548 = vadd.f32 0.0, %v3547
      %v3549 = vpop.f32.mrf.mxu0
      %v3550 = vadd.f32 0.0, %v3549
      %3551 = vmatmul.bf16.gmra.mxu0 %v3389
      %v3552 = vpop.f32.mrf.mxu0
      %v3553 = vadd.f32 0.0, %v3552
      %v3554 = vpop.f32.mrf.mxu0
      %v3555 = vadd.f32 0.0, %v3554
      %3556 = vmatmul.bf16.gmra.mxu0 %v3392
      %v3557 = vpop.f32.mrf.mxu0
      %v3558 = vadd.f32 0.0, %v3557
      %v3559 = vpop.f32.mrf.mxu0
      %v3560 = vadd.f32 0.0, %v3559
      %3561 = vmatmul.bf16.gmra.mxu0 %v3395
      %v3562 = vpop.f32.mrf.mxu0
      %v3563 = vadd.f32 0.0, %v3562
      %v3564 = vpop.f32.mrf.mxu0
      %v3565 = vadd.f32 0.0, %v3564
      %3566 = vdwg.mxu0
      %3567 = vmatpush.bf16.msra.mxu0 0
      %3568 = vmatpush.bf16.msra.mxu0 0
      %3569 = vmatpush.bf16.msra.mxu0 0
      %3570 = vmatpush.bf16.msra.mxu0 0
      %3571 = vmatpush.bf16.msra.mxu0 0
      %3572 = vmatpush.bf16.msra.mxu0 0
      %3573 = vmatpush.bf16.msra.mxu0 %v3404
      %3574 = vmatpush.bf16.msra.mxu0 %v3345
      %3575 = vmatmul.bf16.gmra.mxu0 %v3356
      %v3576 = vpop.f32.mrf.mxu0
      %v3577 = vadd.f32 0.0, %v3576
      %v3578 = vpop.f32.mrf.mxu0
      %v3579 = vadd.f32 0.0, %v3578
      %3580 = vmatmul.bf16.gmra.mxu0 %v3359
      %v3581 = vpop.f32.mrf.mxu0
      %v3582 = vadd.f32 0.0, %v3581
      %v3583 = vpop.f32.mrf.mxu0
      %v3584 = vadd.f32 0.0, %v3583
      %3585 = vmatmul.bf16.gmra.mxu0 %v3362
      %v3586 = vpop.f32.mrf.mxu0
      %v3587 = vadd.f32 0.0, %v3586
      %v3588 = vpop.f32.mrf.mxu0
      %v3589 = vadd.f32 0.0, %v3588
      %3590 = vmatmul.bf16.gmra.mxu0 %v3365
      %v3591 = vpop.f32.mrf.mxu0
      %v3592 = vadd.f32 0.0, %v3591
      %v3593 = vpop.f32.mrf.mxu0
      %v3594 = vadd.f32 0.0, %v3593
      %3595 = vmatmul.bf16.gmra.mxu0 %v3368
      %v3596 = vpop.f32.mrf.mxu0
      %v3597 = vadd.f32 0.0, %v3596
      %v3598 = vpop.f32.mrf.mxu0
      %v3599 = vadd.f32 0.0, %v3598
      %3600 = vmatmul.bf16.gmra.mxu0 %v3371
      %v3601 = vpop.f32.mrf.mxu0
      %v3602 = vadd.f32 0.0, %v3601
      %v3603 = vpop.f32.mrf.mxu0
      %v3604 = vadd.f32 0.0, %v3603
      %3605 = vmatmul.bf16.gmra.mxu0 %v3374
      %v3606 = vpop.f32.mrf.mxu0
      %v3607 = vadd.f32 0.0, %v3606
      %v3608 = vpop.f32.mrf.mxu0
      %v3609 = vadd.f32 0.0, %v3608
      %3610 = vmatmul.bf16.gmra.mxu0 %v3377
      %v3611 = vpop.f32.mrf.mxu0
      %v3612 = vadd.f32 0.0, %v3611
      %v3613 = vpop.f32.mrf.mxu0
      %v3614 = vadd.f32 0.0, %v3613
      %3615 = vmatmul.bf16.gmra.mxu0 %v3380
      %v3616 = vpop.f32.mrf.mxu0
      %v3617 = vadd.f32 0.0, %v3616
      %v3618 = vpop.f32.mrf.mxu0
      %v3619 = vadd.f32 0.0, %v3618
      %3620 = vmatmul.bf16.gmra.mxu0 %v3383
      %v3621 = vpop.f32.mrf.mxu0
      %v3622 = vadd.f32 0.0, %v3621
      %v3623 = vpop.f32.mrf.mxu0
      %v3624 = vadd.f32 0.0, %v3623
      %3625 = vmatmul.bf16.gmra.mxu0 %v3386
      %v3626 = vpop.f32.mrf.mxu0
      %v3627 = vadd.f32 0.0, %v3626
      %v3628 = vpop.f32.mrf.mxu0
      %v3629 = vadd.f32 0.0, %v3628
      %3630 = vmatmul.bf16.gmra.mxu0 %v3389
      %v3631 = vpop.f32.mrf.mxu0
      %v3632 = vadd.f32 0.0, %v3631
      %v3633 = vpop.f32.mrf.mxu0
      %v3634 = vadd.f32 0.0, %v3633
      %3635 = vmatmul.bf16.gmra.mxu0 %v3392
      %v3636 = vpop.f32.mrf.mxu0
      %v3637 = vadd.f32 0.0, %v3636
      %v3638 = vpop.f32.mrf.mxu0
      %v3639 = vadd.f32 0.0, %v3638
      %3640 = vmatmul.bf16.gmra.mxu0 %v3395
      %v3641 = vpop.f32.mrf.mxu0
      %v3642 = vadd.f32 0.0, %v3641
      %v3643 = vpop.f32.mrf.mxu0
      %v3644 = vadd.f32 0.0, %v3643
      %3645 = vdwg.mxu0
      %3646 = vmatpush.bf16.msra.mxu0 0
      %3647 = vmatpush.bf16.msra.mxu0 0
      %3648 = vmatpush.bf16.msra.mxu0 0
      %3649 = vmatpush.bf16.msra.mxu0 0
      %3650 = vmatpush.bf16.msra.mxu0 0
      %3651 = vmatpush.bf16.msra.mxu0 0
      %3652 = vmatpush.bf16.msra.mxu0 %v3407
      %3653 = vmatpush.bf16.msra.mxu0 %v3346
      %3654 = vmatmul.bf16.gmra.mxu0 %v3356
      %v3655 = vpop.f32.mrf.mxu0
      %v3656 = vadd.f32 0.0, %v3655
      %v3657 = vpop.f32.mrf.mxu0
      %v3658 = vadd.f32 0.0, %v3657
      %3659 = vmatmul.bf16.gmra.mxu0 %v3359
      %v3660 = vpop.f32.mrf.mxu0
      %v3661 = vadd.f32 0.0, %v3660
      %v3662 = vpop.f32.mrf.mxu0
      %v3663 = vadd.f32 0.0, %v3662
      %3664 = vmatmul.bf16.gmra.mxu0 %v3362
      %v3665 = vpop.f32.mrf.mxu0
      %v3666 = vadd.f32 0.0, %v3665
      %v3667 = vpop.f32.mrf.mxu0
      %v3668 = vadd.f32 0.0, %v3667
      %3669 = vmatmul.bf16.gmra.mxu0 %v3365
      %v3670 = vpop.f32.mrf.mxu0
      %v3671 = vadd.f32 0.0, %v3670
      %v3672 = vpop.f32.mrf.mxu0
      %v3673 = vadd.f32 0.0, %v3672
      %3674 = vmatmul.bf16.gmra.mxu0 %v3368
      %v3675 = vpop.f32.mrf.mxu0
      %v3676 = vadd.f32 0.0, %v3675
      %v3677 = vpop.f32.mrf.mxu0
      %v3678 = vadd.f32 0.0, %v3677
      %3679 = vmatmul.bf16.gmra.mxu0 %v3371
      %v3680 = vpop.f32.mrf.mxu0
      %v3681 = vadd.f32 0.0, %v3680
      %v3682 = vpop.f32.mrf.mxu0
      %v3683 = vadd.f32 0.0, %v3682
      %3684 = vmatmul.bf16.gmra.mxu0 %v3374
      %v3685 = vpop.f32.mrf.mxu0
      %v3686 = vadd.f32 0.0, %v3685
      %v3687 = vpop.f32.mrf.mxu0
      %v3688 = vadd.f32 0.0, %v3687
      %3689 = vmatmul.bf16.gmra.mxu0 %v3377
      %v3690 = vpop.f32.mrf.mxu0
      %v3691 = vadd.f32 0.0, %v3690
      %v3692 = vpop.f32.mrf.mxu0
      %v3693 = vadd.f32 0.0, %v3692
      %3694 = vmatmul.bf16.gmra.mxu0 %v3380
      %v3695 = vpop.f32.mrf.mxu0
      %v3696 = vadd.f32 0.0, %v3695
      %v3697 = vpop.f32.mrf.mxu0
      %v3698 = vadd.f32 0.0, %v3697
      %3699 = vmatmul.bf16.gmra.mxu0 %v3383
      %v3700 = vpop.f32.mrf.mxu0
      %v3701 = vadd.f32 0.0, %v3700
      %v3702 = vpop.f32.mrf.mxu0
      %v3703 = vadd.f32 0.0, %v3702
      %3704 = vmatmul.bf16.gmra.mxu0 %v3386
      %v3705 = vpop.f32.mrf.mxu0
      %v3706 = vadd.f32 0.0, %v3705
      %v3707 = vpop.f32.mrf.mxu0
      %v3708 = vadd.f32 0.0, %v3707
      %3709 = vmatmul.bf16.gmra.mxu0 %v3389
      %v3710 = vpop.f32.mrf.mxu0
      %v3711 = vadd.f32 0.0, %v3710
      %v3712 = vpop.f32.mrf.mxu0
      %v3713 = vadd.f32 0.0, %v3712
      %3714 = vmatmul.bf16.gmra.mxu0 %v3392
      %v3715 = vpop.f32.mrf.mxu0
      %v3716 = vadd.f32 0.0, %v3715
      %v3717 = vpop.f32.mrf.mxu0
      %v3718 = vadd.f32 0.0, %v3717
      %3719 = vmatmul.bf16.gmra.mxu0 %v3395
      %v3720 = vpop.f32.mrf.mxu0
      %v3721 = vadd.f32 0.0, %v3720
      %v3722 = vpop.f32.mrf.mxu0
      %v3723 = vadd.f32 0.0, %v3722
      %3724 = vdwg.mxu0
      %v3725 = vadd.f32 %v2934, %v3419
      %v3726 = vadd.f32 %v3013, %v3498
      %v3727 = vadd.f32 %v3092, %v3577
      %v3728 = vadd.f32 %v3171, %v3656
      %v3729 = vadd.f32 %v2936, %v3421
      %v3730 = vadd.f32 %v3015, %v3500
      %v3731 = vadd.f32 %v3094, %v3579
      %v3732 = vadd.f32 %v3173, %v3658
      %v3733 = vadd.f32 %v2939, %v3424
      %v3734 = vadd.f32 %v3018, %v3503
      %v3735 = vadd.f32 %v3097, %v3582
      %v3736 = vadd.f32 %v3176, %v3661
      %v3737 = vadd.f32 %v2941, %v3426
      %v3738 = vadd.f32 %v3020, %v3505
      %v3739 = vadd.f32 %v3099, %v3584
      %v3740 = vadd.f32 %v3178, %v3663
      %v3741 = vadd.f32 %v2944, %v3429
      %v3742 = vadd.f32 %v3023, %v3508
      %v3743 = vadd.f32 %v3102, %v3587
      %v3744 = vadd.f32 %v3181, %v3666
      %v3745 = vadd.f32 %v2946, %v3431
      %v3746 = vadd.f32 %v3025, %v3510
      %v3747 = vadd.f32 %v3104, %v3589
      %v3748 = vadd.f32 %v3183, %v3668
      %v3749 = vadd.f32 %v2949, %v3434
      %v3750 = vadd.f32 %v3028, %v3513
      %v3751 = vadd.f32 %v3107, %v3592
      %v3752 = vadd.f32 %v3186, %v3671
      %v3753 = vadd.f32 %v2951, %v3436
      %v3754 = vadd.f32 %v3030, %v3515
      %v3755 = vadd.f32 %v3109, %v3594
      %v3756 = vadd.f32 %v3188, %v3673
      %v3757 = vadd.f32 %v2954, %v3439
      %v3758 = vadd.f32 %v3033, %v3518
      %v3759 = vadd.f32 %v3112, %v3597
      %v3760 = vadd.f32 %v3191, %v3676
      %v3761 = vadd.f32 %v2956, %v3441
      %v3762 = vadd.f32 %v3035, %v3520
      %v3763 = vadd.f32 %v3114, %v3599
      %v3764 = vadd.f32 %v3193, %v3678
      %v3765 = vadd.f32 %v2959, %v3444
      %v3766 = vadd.f32 %v3038, %v3523
      %v3767 = vadd.f32 %v3117, %v3602
      %v3768 = vadd.f32 %v3196, %v3681
      %v3769 = vadd.f32 %v2961, %v3446
      %v3770 = vadd.f32 %v3040, %v3525
      %v3771 = vadd.f32 %v3119, %v3604
      %v3772 = vadd.f32 %v3198, %v3683
      %v3773 = vadd.f32 %v2964, %v3449
      %v3774 = vadd.f32 %v3043, %v3528
      %v3775 = vadd.f32 %v3122, %v3607
      %v3776 = vadd.f32 %v3201, %v3686
      %v3777 = vadd.f32 %v2966, %v3451
      %v3778 = vadd.f32 %v3045, %v3530
      %v3779 = vadd.f32 %v3124, %v3609
      %v3780 = vadd.f32 %v3203, %v3688
      %v3781 = vadd.f32 %v2969, %v3454
      %v3782 = vadd.f32 %v3048, %v3533
      %v3783 = vadd.f32 %v3127, %v3612
      %v3784 = vadd.f32 %v3206, %v3691
      %v3785 = vadd.f32 %v2971, %v3456
      %v3786 = vadd.f32 %v3050, %v3535
      %v3787 = vadd.f32 %v3129, %v3614
      %v3788 = vadd.f32 %v3208, %v3693
      %v3789 = vadd.f32 %v2974, %v3459
      %v3790 = vadd.f32 %v3053, %v3538
      %v3791 = vadd.f32 %v3132, %v3617
      %v3792 = vadd.f32 %v3211, %v3696
      %v3793 = vadd.f32 %v2976, %v3461
      %v3794 = vadd.f32 %v3055, %v3540
      %v3795 = vadd.f32 %v3134, %v3619
      %v3796 = vadd.f32 %v3213, %v3698
      %v3797 = vadd.f32 %v2979, %v3464
      %v3798 = vadd.f32 %v3058, %v3543
      %v3799 = vadd.f32 %v3137, %v3622
      %v3800 = vadd.f32 %v3216, %v3701
      %v3801 = vadd.f32 %v2981, %v3466
      %v3802 = vadd.f32 %v3060, %v3545
      %v3803 = vadd.f32 %v3139, %v3624
      %v3804 = vadd.f32 %v3218, %v3703
      %v3805 = vadd.f32 %v2984, %v3469
      %v3806 = vadd.f32 %v3063, %v3548
      %v3807 = vadd.f32 %v3142, %v3627
      %v3808 = vadd.f32 %v3221, %v3706
      %v3809 = vadd.f32 %v2986, %v3471
      %v3810 = vadd.f32 %v3065, %v3550
      %v3811 = vadd.f32 %v3144, %v3629
      %v3812 = vadd.f32 %v3223, %v3708
      %v3813 = vadd.f32 %v2989, %v3474
      %v3814 = vadd.f32 %v3068, %v3553
      %v3815 = vadd.f32 %v3147, %v3632
      %v3816 = vadd.f32 %v3226, %v3711
      %v3817 = vadd.f32 %v2991, %v3476
      %v3818 = vadd.f32 %v3070, %v3555
      %v3819 = vadd.f32 %v3149, %v3634
      %v3820 = vadd.f32 %v3228, %v3713
      %v3821 = vadd.f32 %v2994, %v3479
      %v3822 = vadd.f32 %v3073, %v3558
      %v3823 = vadd.f32 %v3152, %v3637
      %v3824 = vadd.f32 %v3231, %v3716
      %v3825 = vadd.f32 %v2996, %v3481
      %v3826 = vadd.f32 %v3075, %v3560
      %v3827 = vadd.f32 %v3154, %v3639
      %v3828 = vadd.f32 %v3233, %v3718
      %v3829 = vadd.f32 %v2999, %v3484
      %v3830 = vadd.f32 %v3078, %v3563
      %v3831 = vadd.f32 %v3157, %v3642
      %v3832 = vadd.f32 %v3236, %v3721
      %v3833 = vadd.f32 %v3001, %v3486
      %v3834 = vadd.f32 %v3080, %v3565
      %v3835 = vadd.f32 %v3159, %v3644
      %v3836 = vadd.f32 %v3238, %v3723
      %s3837 = scalar_lea.vmem %s2, 192
      %v3838 = vld [vmem:[%s3837] sm:$0xff]
      %v3839 = vld [vmem:[%s3837 + $0x8] sm:$0xff]
      %v3840 = vld [vmem:[%s3837 + $0x10] sm:$0xff]
      %v3841 = vld [vmem:[%s3837 + $0x18] sm:$0xff]
      %v3842 = vld [vmem:[%s3837 + $0x20] sm:$0xff]
      %v3843 = vld [vmem:[%s3837 + $0x28] sm:$0xff]
      %v3844 = vld [vmem:[%s3837 + $0x30] sm:$0x33]
      %v3845 = vld [vmem:[%s3837 + $0x38] sm:$0x33]
      %v3874 = vunpack.c.l.b16 %v2213
      %v3875 = vunpack.c.l.b16 %v2214
      %v3876 = vunpack.c.l.b16 %v2215
      %v3877 = vunpack.c.l.b16 %v2216
      %v3878 = vunpack.c.l.b16 %v2217
      %v3879 = vunpack.c.l.b16 %v2218
      %v3880 = vunpack.c.l.b16 %v2219
      %v3881 = vunpack.c.l.b16 %v2220
      %v3882 = vunpack.c.l.b16 %v2221
      %v3883 = vunpack.c.l.b16 %v2222
      %v3884 = vunpack.c.l.b16 %v2223
      %v3885 = vunpack.c.l.b16 %v2224
      %v3886 = vunpack.c.l.b16 %v2225
      %v3887 = vunpack.c.l.b16 %v2226
      %v3888 = vunpack.c.l.b16 %v2227
      %v3889 = vunpack.c.l.b16 %v2228
      %v3890 = vunpack.c.l.b16 %v2229
      %v3891 = vunpack.c.l.b16 %v2230
      %v3892 = vunpack.c.l.b16 %v2231
      %v3893 = vunpack.c.l.b16 %v2232
      %v3894 = vunpack.c.l.b16 %v2233
      %v3895 = vunpack.c.l.b16 %v2234
      %v3896 = vunpack.c.l.b16 %v2235
      %v3897 = vunpack.c.l.b16 %v2236
      %v3898 = vunpack.c.l.b16 %v2237
      %v3899 = vunpack.c.l.b16 %v2238
      %v3900 = vunpack.c.l.b16 %v2239
      %v3901 = vunpack.c.l.b16 %v2240
      %v3902 = vpack.c.b16 %v3875, %v3874
      %v3903 = vpack.c.b16 %v3877, %v3876
      %v3904 = vpack.c.b16 %v3879, %v3878
      %v3905 = vpack.c.b16 %v3881, %v3880
      %v3906 = vpack.c.b16 %v3883, %v3882
      %v3907 = vpack.c.b16 %v3885, %v3884
      %v3908 = vpack.c.b16 %v3887, %v3886
      %v3909 = vpack.c.b16 %v3889, %v3888
      %v3910 = vpack.c.b16 %v3891, %v3890
      %v3911 = vpack.c.b16 %v3893, %v3892
      %v3912 = vpack.c.b16 %v3895, %v3894
      %v3913 = vpack.c.b16 %v3897, %v3896
      %v3914 = vpack.c.b16 %v3899, %v3898
      %v3915 = vpack.c.b16 %v3901, %v3900
      %v3924 = vunpack.c.l.b16 %v3838
      %v3925 = vunpack.c.h.b16 %v3838
      %v3926 = vunpack.c.l.b16 %v3839
      %v3927 = vunpack.c.h.b16 %v3839
      %v3928 = vunpack.c.l.b16 %v3840
      %v3929 = vunpack.c.h.b16 %v3840
      %v3930 = vunpack.c.l.b16 %v3841
      %v3931 = vunpack.c.h.b16 %v3841
      %v3932 = vunpack.c.l.b16 %v3842
      %v3933 = vunpack.c.h.b16 %v3842
      %v3934 = vunpack.c.l.b16 %v3843
      %v3935 = vunpack.c.h.b16 %v3843
      %v3936 = vunpack.c.l.b16 %v3844
      %v3937 = vunpack.c.h.b16 %v3844
      %v3938 = vunpack.c.l.b16 %v3845
      %v3939 = vunpack.c.h.b16 %v3845
      %v3940 = vpack.c.b16 %v3928, %v3924
      %v3941 = vpack.c.b16 %v3929, %v3925
      %v3942 = vpack.c.b16 %v3930, %v3926
      %v3943 = vpack.c.b16 %v3931, %v3927
      %v3944 = vpack.c.b16 %v3936, %v3932
      %v3945 = vpack.c.b16 %v3937, %v3933
      %v3946 = vpack.c.b16 %v3938, %v3934
      %v3947 = vpack.c.b16 %v3939, %v3935
      %v3953 = vsel %vm2392, %v3902, 0
      %v3956 = vsel %vm2392, %v3903, 0
      %v3959 = vsel %vm2392, %v3904, 0
      %v3962 = vsel %vm2392, %v3905, 0
      %v3965 = vsel %vm2392, %v3906, 0
      %v3968 = vsel %vm2392, %v3907, 0
      %v3971 = vsel %vm2392, %v3908, 0
      %v3974 = vsel %vm2392, %v3909, 0
      %v3977 = vsel %vm2392, %v3910, 0
      %v3980 = vsel %vm2392, %v3911, 0
      %v3983 = vsel %vm2392, %v3912, 0
      %v3986 = vsel %vm2392, %v3913, 0
      %v3989 = vsel %vm2392, %v3914, 0
      %v3992 = vsel %vm2392, %v3915, 0
      %v3995 = vsel %vm2435, %v3944, 0
      %v3998 = vsel %vm2435, %v3945, 0
      %v4001 = vsel %vm2435, %v3946, 0
      %v4004 = vsel %vm2435, %v3947, 0
      %4006 = vmatpush.bf16.msra.mxu0 0
      %4007 = vmatpush.bf16.msra.mxu0 0
      %4008 = vmatpush.bf16.msra.mxu0 0
      %4009 = vmatpush.bf16.msra.mxu0 0
      %4010 = vmatpush.bf16.msra.mxu0 0
      %4011 = vmatpush.bf16.msra.mxu0 0
      %4012 = vmatpush.bf16.msra.mxu0 %v3995
      %4013 = vmatpush.bf16.msra.mxu0 %v3940
      %4014 = vmatmul.bf16.gmra.mxu0 %v3953
      %v4015 = vpop.f32.mrf.mxu0
      %v4016 = vadd.f32 0.0, %v4015
      %v4017 = vpop.f32.mrf.mxu0
      %v4018 = vadd.f32 0.0, %v4017
      %4019 = vmatmul.bf16.gmra.mxu0 %v3956
      %v4020 = vpop.f32.mrf.mxu0
      %v4021 = vadd.f32 0.0, %v4020
      %v4022 = vpop.f32.mrf.mxu0
      %v4023 = vadd.f32 0.0, %v4022
      %4024 = vmatmul.bf16.gmra.mxu0 %v3959
      %v4025 = vpop.f32.mrf.mxu0
      %v4026 = vadd.f32 0.0, %v4025
      %v4027 = vpop.f32.mrf.mxu0
      %v4028 = vadd.f32 0.0, %v4027
      %4029 = vmatmul.bf16.gmra.mxu0 %v3962
      %v4030 = vpop.f32.mrf.mxu0
      %v4031 = vadd.f32 0.0, %v4030
      %v4032 = vpop.f32.mrf.mxu0
      %v4033 = vadd.f32 0.0, %v4032
      %4034 = vmatmul.bf16.gmra.mxu0 %v3965
      %v4035 = vpop.f32.mrf.mxu0
      %v4036 = vadd.f32 0.0, %v4035
      %v4037 = vpop.f32.mrf.mxu0
      %v4038 = vadd.f32 0.0, %v4037
      %4039 = vmatmul.bf16.gmra.mxu0 %v3968
      %v4040 = vpop.f32.mrf.mxu0
      %v4041 = vadd.f32 0.0, %v4040
      %v4042 = vpop.f32.mrf.mxu0
      %v4043 = vadd.f32 0.0, %v4042
      %4044 = vmatmul.bf16.gmra.mxu0 %v3971
      %v4045 = vpop.f32.mrf.mxu0
      %v4046 = vadd.f32 0.0, %v4045
      %v4047 = vpop.f32.mrf.mxu0
      %v4048 = vadd.f32 0.0, %v4047
      %4049 = vmatmul.bf16.gmra.mxu0 %v3974
      %v4050 = vpop.f32.mrf.mxu0
      %v4051 = vadd.f32 0.0, %v4050
      %v4052 = vpop.f32.mrf.mxu0
      %v4053 = vadd.f32 0.0, %v4052
      %4054 = vmatmul.bf16.gmra.mxu0 %v3977
      %v4055 = vpop.f32.mrf.mxu0
      %v4056 = vadd.f32 0.0, %v4055
      %v4057 = vpop.f32.mrf.mxu0
      %v4058 = vadd.f32 0.0, %v4057
      %4059 = vmatmul.bf16.gmra.mxu0 %v3980
      %v4060 = vpop.f32.mrf.mxu0
      %v4061 = vadd.f32 0.0, %v4060
      %v4062 = vpop.f32.mrf.mxu0
      %v4063 = vadd.f32 0.0, %v4062
      %4064 = vmatmul.bf16.gmra.mxu0 %v3983
      %v4065 = vpop.f32.mrf.mxu0
      %v4066 = vadd.f32 0.0, %v4065
      %v4067 = vpop.f32.mrf.mxu0
      %v4068 = vadd.f32 0.0, %v4067
      %4069 = vmatmul.bf16.gmra.mxu0 %v3986
      %v4070 = vpop.f32.mrf.mxu0
      %v4071 = vadd.f32 0.0, %v4070
      %v4072 = vpop.f32.mrf.mxu0
      %v4073 = vadd.f32 0.0, %v4072
      %4074 = vmatmul.bf16.gmra.mxu0 %v3989
      %v4075 = vpop.f32.mrf.mxu0
      %v4076 = vadd.f32 0.0, %v4075
      %v4077 = vpop.f32.mrf.mxu0
      %v4078 = vadd.f32 0.0, %v4077
      %4079 = vmatmul.bf16.gmra.mxu0 %v3992
      %v4080 = vpop.f32.mrf.mxu0
      %v4081 = vadd.f32 0.0, %v4080
      %v4082 = vpop.f32.mrf.mxu0
      %v4083 = vadd.f32 0.0, %v4082
      %4084 = vdwg.mxu0
      %4085 = vmatpush.bf16.msra.mxu0 0
      %4086 = vmatpush.bf16.msra.mxu0 0
      %4087 = vmatpush.bf16.msra.mxu0 0
      %4088 = vmatpush.bf16.msra.mxu0 0
      %4089 = vmatpush.bf16.msra.mxu0 0
      %4090 = vmatpush.bf16.msra.mxu0 0
      %4091 = vmatpush.bf16.msra.mxu0 %v3998
      %4092 = vmatpush.bf16.msra.mxu0 %v3941
      %4093 = vmatmul.bf16.gmra.mxu0 %v3953
      %v4094 = vpop.f32.mrf.mxu0
      %v4095 = vadd.f32 0.0, %v4094
      %v4096 = vpop.f32.mrf.mxu0
      %v4097 = vadd.f32 0.0, %v4096
      %4098 = vmatmul.bf16.gmra.mxu0 %v3956
      %v4099 = vpop.f32.mrf.mxu0
      %v4100 = vadd.f32 0.0, %v4099
      %v4101 = vpop.f32.mrf.mxu0
      %v4102 = vadd.f32 0.0, %v4101
      %4103 = vmatmul.bf16.gmra.mxu0 %v3959
      %v4104 = vpop.f32.mrf.mxu0
      %v4105 = vadd.f32 0.0, %v4104
      %v4106 = vpop.f32.mrf.mxu0
      %v4107 = vadd.f32 0.0, %v4106
      %4108 = vmatmul.bf16.gmra.mxu0 %v3962
      %v4109 = vpop.f32.mrf.mxu0
      %v4110 = vadd.f32 0.0, %v4109
      %v4111 = vpop.f32.mrf.mxu0
      %v4112 = vadd.f32 0.0, %v4111
      %4113 = vmatmul.bf16.gmra.mxu0 %v3965
      %v4114 = vpop.f32.mrf.mxu0
      %v4115 = vadd.f32 0.0, %v4114
      %v4116 = vpop.f32.mrf.mxu0
      %v4117 = vadd.f32 0.0, %v4116
      %4118 = vmatmul.bf16.gmra.mxu0 %v3968
      %v4119 = vpop.f32.mrf.mxu0
      %v4120 = vadd.f32 0.0, %v4119
      %v4121 = vpop.f32.mrf.mxu0
      %v4122 = vadd.f32 0.0, %v4121
      %4123 = vmatmul.bf16.gmra.mxu0 %v3971
      %v4124 = vpop.f32.mrf.mxu0
      %v4125 = vadd.f32 0.0, %v4124
      %v4126 = vpop.f32.mrf.mxu0
      %v4127 = vadd.f32 0.0, %v4126
      %4128 = vmatmul.bf16.gmra.mxu0 %v3974
      %v4129 = vpop.f32.mrf.mxu0
      %v4130 = vadd.f32 0.0, %v4129
      %v4131 = vpop.f32.mrf.mxu0
      %v4132 = vadd.f32 0.0, %v4131
      %4133 = vmatmul.bf16.gmra.mxu0 %v3977
      %v4134 = vpop.f32.mrf.mxu0
      %v4135 = vadd.f32 0.0, %v4134
      %v4136 = vpop.f32.mrf.mxu0
      %v4137 = vadd.f32 0.0, %v4136
      %4138 = vmatmul.bf16.gmra.mxu0 %v3980
      %v4139 = vpop.f32.mrf.mxu0
      %v4140 = vadd.f32 0.0, %v4139
      %v4141 = vpop.f32.mrf.mxu0
      %v4142 = vadd.f32 0.0, %v4141
      %4143 = vmatmul.bf16.gmra.mxu0 %v3983
      %v4144 = vpop.f32.mrf.mxu0
      %v4145 = vadd.f32 0.0, %v4144
      %v4146 = vpop.f32.mrf.mxu0
      %v4147 = vadd.f32 0.0, %v4146
      %4148 = vmatmul.bf16.gmra.mxu0 %v3986
      %v4149 = vpop.f32.mrf.mxu0
      %v4150 = vadd.f32 0.0, %v4149
      %v4151 = vpop.f32.mrf.mxu0
      %v4152 = vadd.f32 0.0, %v4151
      %4153 = vmatmul.bf16.gmra.mxu0 %v3989
      %v4154 = vpop.f32.mrf.mxu0
      %v4155 = vadd.f32 0.0, %v4154
      %v4156 = vpop.f32.mrf.mxu0
      %v4157 = vadd.f32 0.0, %v4156
      %4158 = vmatmul.bf16.gmra.mxu0 %v3992
      %v4159 = vpop.f32.mrf.mxu0
      %v4160 = vadd.f32 0.0, %v4159
      %v4161 = vpop.f32.mrf.mxu0
      %v4162 = vadd.f32 0.0, %v4161
      %4163 = vdwg.mxu0
      %4164 = vmatpush.bf16.msra.mxu0 0
      %4165 = vmatpush.bf16.msra.mxu0 0
      %4166 = vmatpush.bf16.msra.mxu0 0
      %4167 = vmatpush.bf16.msra.mxu0 0
      %4168 = vmatpush.bf16.msra.mxu0 0
      %4169 = vmatpush.bf16.msra.mxu0 0
      %4170 = vmatpush.bf16.msra.mxu0 %v4001
      %4171 = vmatpush.bf16.msra.mxu0 %v3942
      %4172 = vmatmul.bf16.gmra.mxu0 %v3953
      %v4173 = vpop.f32.mrf.mxu0
      %v4174 = vadd.f32 0.0, %v4173
      %v4175 = vpop.f32.mrf.mxu0
      %v4176 = vadd.f32 0.0, %v4175
      %4177 = vmatmul.bf16.gmra.mxu0 %v3956
      %v4178 = vpop.f32.mrf.mxu0
      %v4179 = vadd.f32 0.0, %v4178
      %v4180 = vpop.f32.mrf.mxu0
      %v4181 = vadd.f32 0.0, %v4180
      %4182 = vmatmul.bf16.gmra.mxu0 %v3959
      %v4183 = vpop.f32.mrf.mxu0
      %v4184 = vadd.f32 0.0, %v4183
      %v4185 = vpop.f32.mrf.mxu0
      %v4186 = vadd.f32 0.0, %v4185
      %4187 = vmatmul.bf16.gmra.mxu0 %v3962
      %v4188 = vpop.f32.mrf.mxu0
      %v4189 = vadd.f32 0.0, %v4188
      %v4190 = vpop.f32.mrf.mxu0
      %v4191 = vadd.f32 0.0, %v4190
      %4192 = vmatmul.bf16.gmra.mxu0 %v3965
      %v4193 = vpop.f32.mrf.mxu0
      %v4194 = vadd.f32 0.0, %v4193
      %v4195 = vpop.f32.mrf.mxu0
      %v4196 = vadd.f32 0.0, %v4195
      %4197 = vmatmul.bf16.gmra.mxu0 %v3968
      %v4198 = vpop.f32.mrf.mxu0
      %v4199 = vadd.f32 0.0, %v4198
      %v4200 = vpop.f32.mrf.mxu0
      %v4201 = vadd.f32 0.0, %v4200
      %4202 = vmatmul.bf16.gmra.mxu0 %v3971
      %v4203 = vpop.f32.mrf.mxu0
      %v4204 = vadd.f32 0.0, %v4203
      %v4205 = vpop.f32.mrf.mxu0
      %v4206 = vadd.f32 0.0, %v4205
      %4207 = vmatmul.bf16.gmra.mxu0 %v3974
      %v4208 = vpop.f32.mrf.mxu0
      %v4209 = vadd.f32 0.0, %v4208
      %v4210 = vpop.f32.mrf.mxu0
      %v4211 = vadd.f32 0.0, %v4210
      %4212 = vmatmul.bf16.gmra.mxu0 %v3977
      %v4213 = vpop.f32.mrf.mxu0
      %v4214 = vadd.f32 0.0, %v4213
      %v4215 = vpop.f32.mrf.mxu0
      %v4216 = vadd.f32 0.0, %v4215
      %4217 = vmatmul.bf16.gmra.mxu0 %v3980
      %v4218 = vpop.f32.mrf.mxu0
      %v4219 = vadd.f32 0.0, %v4218
      %v4220 = vpop.f32.mrf.mxu0
      %v4221 = vadd.f32 0.0, %v4220
      %4222 = vmatmul.bf16.gmra.mxu0 %v3983
      %v4223 = vpop.f32.mrf.mxu0
      %v4224 = vadd.f32 0.0, %v4223
      %v4225 = vpop.f32.mrf.mxu0
      %v4226 = vadd.f32 0.0, %v4225
      %4227 = vmatmul.bf16.gmra.mxu0 %v3986
      %v4228 = vpop.f32.mrf.mxu0
      %v4229 = vadd.f32 0.0, %v4228
      %v4230 = vpop.f32.mrf.mxu0
      %v4231 = vadd.f32 0.0, %v4230
      %4232 = vmatmul.bf16.gmra.mxu0 %v3989
      %v4233 = vpop.f32.mrf.mxu0
      %v4234 = vadd.f32 0.0, %v4233
      %v4235 = vpop.f32.mrf.mxu0
      %v4236 = vadd.f32 0.0, %v4235
      %4237 = vmatmul.bf16.gmra.mxu0 %v3992
      %v4238 = vpop.f32.mrf.mxu0
      %v4239 = vadd.f32 0.0, %v4238
      %v4240 = vpop.f32.mrf.mxu0
      %v4241 = vadd.f32 0.0, %v4240
      %4242 = vdwg.mxu0
      %4243 = vmatpush.bf16.msra.mxu0 0
      %4244 = vmatpush.bf16.msra.mxu0 0
      %4245 = vmatpush.bf16.msra.mxu0 0
      %4246 = vmatpush.bf16.msra.mxu0 0
      %4247 = vmatpush.bf16.msra.mxu0 0
      %4248 = vmatpush.bf16.msra.mxu0 0
      %4249 = vmatpush.bf16.msra.mxu0 %v4004
      %4250 = vmatpush.bf16.msra.mxu0 %v3943
      %4251 = vmatmul.bf16.gmra.mxu0 %v3953
      %v4252 = vpop.f32.mrf.mxu0
      %v4253 = vadd.f32 0.0, %v4252
      %v4254 = vpop.f32.mrf.mxu0
      %v4255 = vadd.f32 0.0, %v4254
      %4256 = vmatmul.bf16.gmra.mxu0 %v3956
      %v4257 = vpop.f32.mrf.mxu0
      %v4258 = vadd.f32 0.0, %v4257
      %v4259 = vpop.f32.mrf.mxu0
      %v4260 = vadd.f32 0.0, %v4259
      %4261 = vmatmul.bf16.gmra.mxu0 %v3959
      %v4262 = vpop.f32.mrf.mxu0
      %v4263 = vadd.f32 0.0, %v4262
      %v4264 = vpop.f32.mrf.mxu0
      %v4265 = vadd.f32 0.0, %v4264
      %4266 = vmatmul.bf16.gmra.mxu0 %v3962
      %v4267 = vpop.f32.mrf.mxu0
      %v4268 = vadd.f32 0.0, %v4267
      %v4269 = vpop.f32.mrf.mxu0
      %v4270 = vadd.f32 0.0, %v4269
      %4271 = vmatmul.bf16.gmra.mxu0 %v3965
      %v4272 = vpop.f32.mrf.mxu0
      %v4273 = vadd.f32 0.0, %v4272
      %v4274 = vpop.f32.mrf.mxu0
      %v4275 = vadd.f32 0.0, %v4274
      %4276 = vmatmul.bf16.gmra.mxu0 %v3968
      %v4277 = vpop.f32.mrf.mxu0
      %v4278 = vadd.f32 0.0, %v4277
      %v4279 = vpop.f32.mrf.mxu0
      %v4280 = vadd.f32 0.0, %v4279
      %4281 = vmatmul.bf16.gmra.mxu0 %v3971
      %v4282 = vpop.f32.mrf.mxu0
      %v4283 = vadd.f32 0.0, %v4282
      %v4284 = vpop.f32.mrf.mxu0
      %v4285 = vadd.f32 0.0, %v4284
      %4286 = vmatmul.bf16.gmra.mxu0 %v3974
      %v4287 = vpop.f32.mrf.mxu0
      %v4288 = vadd.f32 0.0, %v4287
      %v4289 = vpop.f32.mrf.mxu0
      %v4290 = vadd.f32 0.0, %v4289
      %4291 = vmatmul.bf16.gmra.mxu0 %v3977
      %v4292 = vpop.f32.mrf.mxu0
      %v4293 = vadd.f32 0.0, %v4292
      %v4294 = vpop.f32.mrf.mxu0
      %v4295 = vadd.f32 0.0, %v4294
      %4296 = vmatmul.bf16.gmra.mxu0 %v3980
      %v4297 = vpop.f32.mrf.mxu0
      %v4298 = vadd.f32 0.0, %v4297
      %v4299 = vpop.f32.mrf.mxu0
      %v4300 = vadd.f32 0.0, %v4299
      %4301 = vmatmul.bf16.gmra.mxu0 %v3983
      %v4302 = vpop.f32.mrf.mxu0
      %v4303 = vadd.f32 0.0, %v4302
      %v4304 = vpop.f32.mrf.mxu0
      %v4305 = vadd.f32 0.0, %v4304
      %4306 = vmatmul.bf16.gmra.mxu0 %v3986
      %v4307 = vpop.f32.mrf.mxu0
      %v4308 = vadd.f32 0.0, %v4307
      %v4309 = vpop.f32.mrf.mxu0
      %v4310 = vadd.f32 0.0, %v4309
      %4311 = vmatmul.bf16.gmra.mxu0 %v3989
      %v4312 = vpop.f32.mrf.mxu0
      %v4313 = vadd.f32 0.0, %v4312
      %v4314 = vpop.f32.mrf.mxu0
      %v4315 = vadd.f32 0.0, %v4314
      %4316 = vmatmul.bf16.gmra.mxu0 %v3992
      %v4317 = vpop.f32.mrf.mxu0
      %v4318 = vadd.f32 0.0, %v4317
      %v4319 = vpop.f32.mrf.mxu0
      %v4320 = vadd.f32 0.0, %v4319
      %4321 = vdwg.mxu0
      %v4322 = vadd.f32 %v3725, %v4016
      %v4323 = vadd.f32 %v3726, %v4095
      %v4324 = vadd.f32 %v3727, %v4174
      %v4325 = vadd.f32 %v3728, %v4253
      %v4326 = vadd.f32 %v3729, %v4018
      %v4327 = vadd.f32 %v3730, %v4097
      %v4328 = vadd.f32 %v3731, %v4176
      %v4329 = vadd.f32 %v3732, %v4255
      %v4330 = vadd.f32 %v3733, %v4021
      %v4331 = vadd.f32 %v3734, %v4100
      %v4332 = vadd.f32 %v3735, %v4179
      %v4333 = vadd.f32 %v3736, %v4258
      %v4334 = vadd.f32 %v3737, %v4023
      %v4335 = vadd.f32 %v3738, %v4102
      %v4336 = vadd.f32 %v3739, %v4181
      %v4337 = vadd.f32 %v3740, %v4260
      %v4338 = vadd.f32 %v3741, %v4026
      %v4339 = vadd.f32 %v3742, %v4105
      %v4340 = vadd.f32 %v3743, %v4184
      %v4341 = vadd.f32 %v3744, %v4263
      %v4342 = vadd.f32 %v3745, %v4028
      %v4343 = vadd.f32 %v3746, %v4107
      %v4344 = vadd.f32 %v3747, %v4186
      %v4345 = vadd.f32 %v3748, %v4265
      %v4346 = vadd.f32 %v3749, %v4031
      %v4347 = vadd.f32 %v3750, %v4110
      %v4348 = vadd.f32 %v3751, %v4189
      %v4349 = vadd.f32 %v3752, %v4268
      %v4350 = vadd.f32 %v3753, %v4033
      %v4351 = vadd.f32 %v3754, %v4112
      %v4352 = vadd.f32 %v3755, %v4191
      %v4353 = vadd.f32 %v3756, %v4270
      %v4354 = vadd.f32 %v3757, %v4036
      %v4355 = vadd.f32 %v3758, %v4115
      %v4356 = vadd.f32 %v3759, %v4194
      %v4357 = vadd.f32 %v3760, %v4273
      %v4358 = vadd.f32 %v3761, %v4038
      %v4359 = vadd.f32 %v3762, %v4117
      %v4360 = vadd.f32 %v3763, %v4196
      %v4361 = vadd.f32 %v3764, %v4275
      %v4362 = vadd.f32 %v3765, %v4041
      %v4363 = vadd.f32 %v3766, %v4120
      %v4364 = vadd.f32 %v3767, %v4199
      %v4365 = vadd.f32 %v3768, %v4278
      %v4366 = vadd.f32 %v3769, %v4043
      %v4367 = vadd.f32 %v3770, %v4122
      %v4368 = vadd.f32 %v3771, %v4201
      %v4369 = vadd.f32 %v3772, %v4280
      %v4370 = vadd.f32 %v3773, %v4046
      %v4371 = vadd.f32 %v3774, %v4125
      %v4372 = vadd.f32 %v3775, %v4204
      %v4373 = vadd.f32 %v3776, %v4283
      %v4374 = vadd.f32 %v3777, %v4048
      %v4375 = vadd.f32 %v3778, %v4127
      %v4376 = vadd.f32 %v3779, %v4206
      %v4377 = vadd.f32 %v3780, %v4285
      %v4378 = vadd.f32 %v3781, %v4051
      %v4379 = vadd.f32 %v3782, %v4130
      %v4380 = vadd.f32 %v3783, %v4209
      %v4381 = vadd.f32 %v3784, %v4288
      %v4382 = vadd.f32 %v3785, %v4053
      %v4383 = vadd.f32 %v3786, %v4132
      %v4384 = vadd.f32 %v3787, %v4211
      %v4385 = vadd.f32 %v3788, %v4290
      %v4386 = vadd.f32 %v3789, %v4056
      %v4387 = vadd.f32 %v3790, %v4135
      %v4388 = vadd.f32 %v3791, %v4214
      %v4389 = vadd.f32 %v3792, %v4293
      %v4390 = vadd.f32 %v3793, %v4058
      %v4391 = vadd.f32 %v3794, %v4137
      %v4392 = vadd.f32 %v3795, %v4216
      %v4393 = vadd.f32 %v3796, %v4295
      %v4394 = vadd.f32 %v3797, %v4061
      %v4395 = vadd.f32 %v3798, %v4140
      %v4396 = vadd.f32 %v3799, %v4219
      %v4397 = vadd.f32 %v3800, %v4298
      %v4398 = vadd.f32 %v3801, %v4063
      %v4399 = vadd.f32 %v3802, %v4142
      %v4400 = vadd.f32 %v3803, %v4221
      %v4401 = vadd.f32 %v3804, %v4300
      %v4402 = vadd.f32 %v3805, %v4066
      %v4403 = vadd.f32 %v3806, %v4145
      %v4404 = vadd.f32 %v3807, %v4224
      %v4405 = vadd.f32 %v3808, %v4303
      %v4406 = vadd.f32 %v3809, %v4068
      %v4407 = vadd.f32 %v3810, %v4147
      %v4408 = vadd.f32 %v3811, %v4226
      %v4409 = vadd.f32 %v3812, %v4305
      %v4410 = vadd.f32 %v3813, %v4071
      %v4411 = vadd.f32 %v3814, %v4150
      %v4412 = vadd.f32 %v3815, %v4229
      %v4413 = vadd.f32 %v3816, %v4308
      %v4414 = vadd.f32 %v3817, %v4073
      %v4415 = vadd.f32 %v3818, %v4152
      %v4416 = vadd.f32 %v3819, %v4231
      %v4417 = vadd.f32 %v3820, %v4310
      %v4418 = vadd.f32 %v3821, %v4076
      %v4419 = vadd.f32 %v3822, %v4155
      %v4420 = vadd.f32 %v3823, %v4234
      %v4421 = vadd.f32 %v3824, %v4313
      %v4422 = vadd.f32 %v3825, %v4078
      %v4423 = vadd.f32 %v3826, %v4157
      %v4424 = vadd.f32 %v3827, %v4236
      %v4425 = vadd.f32 %v3828, %v4315
      %v4426 = vadd.f32 %v3829, %v4081
      %v4427 = vadd.f32 %v3830, %v4160
      %v4428 = vadd.f32 %v3831, %v4239
      %v4429 = vadd.f32 %v3832, %v4318
      %v4430 = vadd.f32 %v3833, %v4083
      %v4431 = vadd.f32 %v3834, %v4162
      %v4432 = vadd.f32 %v3835, %v4241
      %v4433 = vadd.f32 %v3836, %v4320
      %s4434 = scalar_lea.vmem %s2, 256
      %v4435 = vld [vmem:[%s4434] sm:$0xff]
      %v4436 = vld [vmem:[%s4434 + $0x8] sm:$0xff]
      %v4437 = vld [vmem:[%s4434 + $0x10] sm:$0xff]
      %v4438 = vld [vmem:[%s4434 + $0x18] sm:$0xff]
      %v4439 = vld [vmem:[%s4434 + $0x20] sm:$0xff]
      %v4440 = vld [vmem:[%s4434 + $0x28] sm:$0xff]
      %v4441 = vld [vmem:[%s4434 + $0x30] sm:$0x33]
      %v4442 = vld [vmem:[%s4434 + $0x38] sm:$0x33]
      %v4471 = vunpack.c.l.b16 %v2241
      %v4472 = vunpack.c.l.b16 %v2242
      %v4473 = vunpack.c.l.b16 %v2243
      %v4474 = vunpack.c.l.b16 %v2244
      %v4475 = vunpack.c.l.b16 %v2245
      %v4476 = vunpack.c.l.b16 %v2246
      %v4477 = vunpack.c.l.b16 %v2247
      %v4478 = vunpack.c.l.b16 %v2248
      %v4479 = vunpack.c.l.b16 %v2249
      %v4480 = vunpack.c.l.b16 %v2250
      %v4481 = vunpack.c.l.b16 %v2251
      %v4482 = vunpack.c.l.b16 %v2252
      %v4483 = vunpack.c.l.b16 %v2253
      %v4484 = vunpack.c.l.b16 %v2254
      %v4485 = vunpack.c.l.b16 %v2255
      %v4486 = vunpack.c.l.b16 %v2256
      %v4487 = vunpack.c.l.b16 %v2257
      %v4488 = vunpack.c.l.b16 %v2258
      %v4489 = vunpack.c.l.b16 %v2259
      %v4490 = vunpack.c.l.b16 %v2260
      %v4491 = vunpack.c.l.b16 %v2261
      %v4492 = vunpack.c.l.b16 %v2262
      %v4493 = vunpack.c.l.b16 %v2263
      %v4494 = vunpack.c.l.b16 %v2264
      %v4495 = vunpack.c.l.b16 %v2265
      %v4496 = vunpack.c.l.b16 %v2266
      %v4497 = vunpack.c.l.b16 %v2267
      %v4498 = vunpack.c.l.b16 %v2268
      %v4499 = vpack.c.b16 %v4472, %v4471
      %v4500 = vpack.c.b16 %v4474, %v4473
      %v4501 = vpack.c.b16 %v4476, %v4475
      %v4502 = vpack.c.b16 %v4478, %v4477
      %v4503 = vpack.c.b16 %v4480, %v4479
      %v4504 = vpack.c.b16 %v4482, %v4481
      %v4505 = vpack.c.b16 %v4484, %v4483
      %v4506 = vpack.c.b16 %v4486, %v4485
      %v4507 = vpack.c.b16 %v4488, %v4487
      %v4508 = vpack.c.b16 %v4490, %v4489
      %v4509 = vpack.c.b16 %v4492, %v4491
      %v4510 = vpack.c.b16 %v4494, %v4493
      %v4511 = vpack.c.b16 %v4496, %v4495
      %v4512 = vpack.c.b16 %v4498, %v4497
      %v4521 = vunpack.c.l.b16 %v4435
      %v4522 = vunpack.c.h.b16 %v4435
      %v4523 = vunpack.c.l.b16 %v4436
      %v4524 = vunpack.c.h.b16 %v4436
      %v4525 = vunpack.c.l.b16 %v4437
      %v4526 = vunpack.c.h.b16 %v4437
      %v4527 = vunpack.c.l.b16 %v4438
      %v4528 = vunpack.c.h.b16 %v4438
      %v4529 = vunpack.c.l.b16 %v4439
      %v4530 = vunpack.c.h.b16 %v4439
      %v4531 = vunpack.c.l.b16 %v4440
      %v4532 = vunpack.c.h.b16 %v4440
      %v4533 = vunpack.c.l.b16 %v4441
      %v4534 = vunpack.c.h.b16 %v4441
      %v4535 = vunpack.c.l.b16 %v4442
      %v4536 = vunpack.c.h.b16 %v4442
      %v4537 = vpack.c.b16 %v4525, %v4521
      %v4538 = vpack.c.b16 %v4526, %v4522
      %v4539 = vpack.c.b16 %v4527, %v4523
      %v4540 = vpack.c.b16 %v4528, %v4524
      %v4541 = vpack.c.b16 %v4533, %v4529
      %v4542 = vpack.c.b16 %v4534, %v4530
      %v4543 = vpack.c.b16 %v4535, %v4531
      %v4544 = vpack.c.b16 %v4536, %v4532
      %v4550 = vsel %vm2392, %v4499, 0
      %v4553 = vsel %vm2392, %v4500, 0
      %v4556 = vsel %vm2392, %v4501, 0
      %v4559 = vsel %vm2392, %v4502, 0
      %v4562 = vsel %vm2392, %v4503, 0
      %v4565 = vsel %vm2392, %v4504, 0
      %v4568 = vsel %vm2392, %v4505, 0
      %v4571 = vsel %vm2392, %v4506, 0
      %v4574 = vsel %vm2392, %v4507, 0
      %v4577 = vsel %vm2392, %v4508, 0
      %v4580 = vsel %vm2392, %v4509, 0
      %v4583 = vsel %vm2392, %v4510, 0
      %v4586 = vsel %vm2392, %v4511, 0
      %v4589 = vsel %vm2392, %v4512, 0
      %v4592 = vsel %vm2435, %v4541, 0
      %v4595 = vsel %vm2435, %v4542, 0
      %v4598 = vsel %vm2435, %v4543, 0
      %v4601 = vsel %vm2435, %v4544, 0
      %4603 = vmatpush.bf16.msra.mxu0 0
      %4604 = vmatpush.bf16.msra.mxu0 0
      %4605 = vmatpush.bf16.msra.mxu0 0
      %4606 = vmatpush.bf16.msra.mxu0 0
      %4607 = vmatpush.bf16.msra.mxu0 0
      %4608 = vmatpush.bf16.msra.mxu0 0
      %4609 = vmatpush.bf16.msra.mxu0 %v4592
      %4610 = vmatpush.bf16.msra.mxu0 %v4537
      %4611 = vmatmul.bf16.gmra.mxu0 %v4550
      %v4612 = vpop.f32.mrf.mxu0
      %v4613 = vadd.f32 0.0, %v4612
      %v4614 = vpop.f32.mrf.mxu0
      %v4615 = vadd.f32 0.0, %v4614
      %4616 = vmatmul.bf16.gmra.mxu0 %v4553
      %v4617 = vpop.f32.mrf.mxu0
      %v4618 = vadd.f32 0.0, %v4617
      %v4619 = vpop.f32.mrf.mxu0
      %v4620 = vadd.f32 0.0, %v4619
      %4621 = vmatmul.bf16.gmra.mxu0 %v4556
      %v4622 = vpop.f32.mrf.mxu0
      %v4623 = vadd.f32 0.0, %v4622
      %v4624 = vpop.f32.mrf.mxu0
      %v4625 = vadd.f32 0.0, %v4624
      %4626 = vmatmul.bf16.gmra.mxu0 %v4559
      %v4627 = vpop.f32.mrf.mxu0
      %v4628 = vadd.f32 0.0, %v4627
      %v4629 = vpop.f32.mrf.mxu0
      %v4630 = vadd.f32 0.0, %v4629
      %4631 = vmatmul.bf16.gmra.mxu0 %v4562
      %v4632 = vpop.f32.mrf.mxu0
      %v4633 = vadd.f32 0.0, %v4632
      %v4634 = vpop.f32.mrf.mxu0
      %v4635 = vadd.f32 0.0, %v4634
      %4636 = vmatmul.bf16.gmra.mxu0 %v4565
      %v4637 = vpop.f32.mrf.mxu0
      %v4638 = vadd.f32 0.0, %v4637
      %v4639 = vpop.f32.mrf.mxu0
      %v4640 = vadd.f32 0.0, %v4639
      %4641 = vmatmul.bf16.gmra.mxu0 %v4568
      %v4642 = vpop.f32.mrf.mxu0
      %v4643 = vadd.f32 0.0, %v4642
      %v4644 = vpop.f32.mrf.mxu0
      %v4645 = vadd.f32 0.0, %v4644
      %4646 = vmatmul.bf16.gmra.mxu0 %v4571
      %v4647 = vpop.f32.mrf.mxu0
      %v4648 = vadd.f32 0.0, %v4647
      %v4649 = vpop.f32.mrf.mxu0
      %v4650 = vadd.f32 0.0, %v4649
      %4651 = vmatmul.bf16.gmra.mxu0 %v4574
      %v4652 = vpop.f32.mrf.mxu0
      %v4653 = vadd.f32 0.0, %v4652
      %v4654 = vpop.f32.mrf.mxu0
      %v4655 = vadd.f32 0.0, %v4654
      %4656 = vmatmul.bf16.gmra.mxu0 %v4577
      %v4657 = vpop.f32.mrf.mxu0
      %v4658 = vadd.f32 0.0, %v4657
      %v4659 = vpop.f32.mrf.mxu0
      %v4660 = vadd.f32 0.0, %v4659
      %4661 = vmatmul.bf16.gmra.mxu0 %v4580
      %v4662 = vpop.f32.mrf.mxu0
      %v4663 = vadd.f32 0.0, %v4662
      %v4664 = vpop.f32.mrf.mxu0
      %v4665 = vadd.f32 0.0, %v4664
      %4666 = vmatmul.bf16.gmra.mxu0 %v4583
      %v4667 = vpop.f32.mrf.mxu0
      %v4668 = vadd.f32 0.0, %v4667
      %v4669 = vpop.f32.mrf.mxu0
      %v4670 = vadd.f32 0.0, %v4669
      %4671 = vmatmul.bf16.gmra.mxu0 %v4586
      %v4672 = vpop.f32.mrf.mxu0
      %v4673 = vadd.f32 0.0, %v4672
      %v4674 = vpop.f32.mrf.mxu0
      %v4675 = vadd.f32 0.0, %v4674
      %4676 = vmatmul.bf16.gmra.mxu0 %v4589
      %v4677 = vpop.f32.mrf.mxu0
      %v4678 = vadd.f32 0.0, %v4677
      %v4679 = vpop.f32.mrf.mxu0
      %v4680 = vadd.f32 0.0, %v4679
      %4681 = vdwg.mxu0
      %4682 = vmatpush.bf16.msra.mxu0 0
      %4683 = vmatpush.bf16.msra.mxu0 0
      %4684 = vmatpush.bf16.msra.mxu0 0
      %4685 = vmatpush.bf16.msra.mxu0 0
      %4686 = vmatpush.bf16.msra.mxu0 0
      %4687 = vmatpush.bf16.msra.mxu0 0
      %4688 = vmatpush.bf16.msra.mxu0 %v4595
      %4689 = vmatpush.bf16.msra.mxu0 %v4538
      %4690 = vmatmul.bf16.gmra.mxu0 %v4550
      %v4691 = vpop.f32.mrf.mxu0
      %v4692 = vadd.f32 0.0, %v4691
      %v4693 = vpop.f32.mrf.mxu0
      %v4694 = vadd.f32 0.0, %v4693
      %4695 = vmatmul.bf16.gmra.mxu0 %v4553
      %v4696 = vpop.f32.mrf.mxu0
      %v4697 = vadd.f32 0.0, %v4696
      %v4698 = vpop.f32.mrf.mxu0
      %v4699 = vadd.f32 0.0, %v4698
      %4700 = vmatmul.bf16.gmra.mxu0 %v4556
      %v4701 = vpop.f32.mrf.mxu0
      %v4702 = vadd.f32 0.0, %v4701
      %v4703 = vpop.f32.mrf.mxu0
      %v4704 = vadd.f32 0.0, %v4703
      %4705 = vmatmul.bf16.gmra.mxu0 %v4559
      %v4706 = vpop.f32.mrf.mxu0
      %v4707 = vadd.f32 0.0, %v4706
      %v4708 = vpop.f32.mrf.mxu0
      %v4709 = vadd.f32 0.0, %v4708
      %4710 = vmatmul.bf16.gmra.mxu0 %v4562
      %v4711 = vpop.f32.mrf.mxu0
      %v4712 = vadd.f32 0.0, %v4711
      %v4713 = vpop.f32.mrf.mxu0
      %v4714 = vadd.f32 0.0, %v4713
      %4715 = vmatmul.bf16.gmra.mxu0 %v4565
      %v4716 = vpop.f32.mrf.mxu0
      %v4717 = vadd.f32 0.0, %v4716
      %v4718 = vpop.f32.mrf.mxu0
      %v4719 = vadd.f32 0.0, %v4718
      %4720 = vmatmul.bf16.gmra.mxu0 %v4568
      %v4721 = vpop.f32.mrf.mxu0
      %v4722 = vadd.f32 0.0, %v4721
      %v4723 = vpop.f32.mrf.mxu0
      %v4724 = vadd.f32 0.0, %v4723
      %4725 = vmatmul.bf16.gmra.mxu0 %v4571
      %v4726 = vpop.f32.mrf.mxu0
      %v4727 = vadd.f32 0.0, %v4726
      %v4728 = vpop.f32.mrf.mxu0
      %v4729 = vadd.f32 0.0, %v4728
      %4730 = vmatmul.bf16.gmra.mxu0 %v4574
      %v4731 = vpop.f32.mrf.mxu0
      %v4732 = vadd.f32 0.0, %v4731
      %v4733 = vpop.f32.mrf.mxu0
      %v4734 = vadd.f32 0.0, %v4733
      %4735 = vmatmul.bf16.gmra.mxu0 %v4577
      %v4736 = vpop.f32.mrf.mxu0
      %v4737 = vadd.f32 0.0, %v4736
      %v4738 = vpop.f32.mrf.mxu0
      %v4739 = vadd.f32 0.0, %v4738
      %4740 = vmatmul.bf16.gmra.mxu0 %v4580
      %v4741 = vpop.f32.mrf.mxu0
      %v4742 = vadd.f32 0.0, %v4741
      %v4743 = vpop.f32.mrf.mxu0
      %v4744 = vadd.f32 0.0, %v4743
      %4745 = vmatmul.bf16.gmra.mxu0 %v4583
      %v4746 = vpop.f32.mrf.mxu0
      %v4747 = vadd.f32 0.0, %v4746
      %v4748 = vpop.f32.mrf.mxu0
      %v4749 = vadd.f32 0.0, %v4748
      %4750 = vmatmul.bf16.gmra.mxu0 %v4586
      %v4751 = vpop.f32.mrf.mxu0
      %v4752 = vadd.f32 0.0, %v4751
      %v4753 = vpop.f32.mrf.mxu0
      %v4754 = vadd.f32 0.0, %v4753
      %4755 = vmatmul.bf16.gmra.mxu0 %v4589
      %v4756 = vpop.f32.mrf.mxu0
      %v4757 = vadd.f32 0.0, %v4756
      %v4758 = vpop.f32.mrf.mxu0
      %v4759 = vadd.f32 0.0, %v4758
      %4760 = vdwg.mxu0
      %4761 = vmatpush.bf16.msra.mxu0 0
      %4762 = vmatpush.bf16.msra.mxu0 0
      %4763 = vmatpush.bf16.msra.mxu0 0
      %4764 = vmatpush.bf16.msra.mxu0 0
      %4765 = vmatpush.bf16.msra.mxu0 0
      %4766 = vmatpush.bf16.msra.mxu0 0
      %4767 = vmatpush.bf16.msra.mxu0 %v4598
      %4768 = vmatpush.bf16.msra.mxu0 %v4539
      %4769 = vmatmul.bf16.gmra.mxu0 %v4550
      %v4770 = vpop.f32.mrf.mxu0
      %v4771 = vadd.f32 0.0, %v4770
      %v4772 = vpop.f32.mrf.mxu0
      %v4773 = vadd.f32 0.0, %v4772
      %4774 = vmatmul.bf16.gmra.mxu0 %v4553
      %v4775 = vpop.f32.mrf.mxu0
      %v4776 = vadd.f32 0.0, %v4775
      %v4777 = vpop.f32.mrf.mxu0
      %v4778 = vadd.f32 0.0, %v4777
      %4779 = vmatmul.bf16.gmra.mxu0 %v4556
      %v4780 = vpop.f32.mrf.mxu0
      %v4781 = vadd.f32 0.0, %v4780
      %v4782 = vpop.f32.mrf.mxu0
      %v4783 = vadd.f32 0.0, %v4782
      %4784 = vmatmul.bf16.gmra.mxu0 %v4559
      %v4785 = vpop.f32.mrf.mxu0
      %v4786 = vadd.f32 0.0, %v4785
      %v4787 = vpop.f32.mrf.mxu0
      %v4788 = vadd.f32 0.0, %v4787
      %4789 = vmatmul.bf16.gmra.mxu0 %v4562
      %v4790 = vpop.f32.mrf.mxu0
      %v4791 = vadd.f32 0.0, %v4790
      %v4792 = vpop.f32.mrf.mxu0
      %v4793 = vadd.f32 0.0, %v4792
      %4794 = vmatmul.bf16.gmra.mxu0 %v4565
      %v4795 = vpop.f32.mrf.mxu0
      %v4796 = vadd.f32 0.0, %v4795
      %v4797 = vpop.f32.mrf.mxu0
      %v4798 = vadd.f32 0.0, %v4797
      %4799 = vmatmul.bf16.gmra.mxu0 %v4568
      %v4800 = vpop.f32.mrf.mxu0
      %v4801 = vadd.f32 0.0, %v4800
      %v4802 = vpop.f32.mrf.mxu0
      %v4803 = vadd.f32 0.0, %v4802
      %4804 = vmatmul.bf16.gmra.mxu0 %v4571
      %v4805 = vpop.f32.mrf.mxu0
      %v4806 = vadd.f32 0.0, %v4805
      %v4807 = vpop.f32.mrf.mxu0
      %v4808 = vadd.f32 0.0, %v4807
      %4809 = vmatmul.bf16.gmra.mxu0 %v4574
      %v4810 = vpop.f32.mrf.mxu0
      %v4811 = vadd.f32 0.0, %v4810
      %v4812 = vpop.f32.mrf.mxu0
      %v4813 = vadd.f32 0.0, %v4812
      %4814 = vmatmul.bf16.gmra.mxu0 %v4577
      %v4815 = vpop.f32.mrf.mxu0
      %v4816 = vadd.f32 0.0, %v4815
      %v4817 = vpop.f32.mrf.mxu0
      %v4818 = vadd.f32 0.0, %v4817
      %4819 = vmatmul.bf16.gmra.mxu0 %v4580
      %v4820 = vpop.f32.mrf.mxu0
      %v4821 = vadd.f32 0.0, %v4820
      %v4822 = vpop.f32.mrf.mxu0
      %v4823 = vadd.f32 0.0, %v4822
      %4824 = vmatmul.bf16.gmra.mxu0 %v4583
      %v4825 = vpop.f32.mrf.mxu0
      %v4826 = vadd.f32 0.0, %v4825
      %v4827 = vpop.f32.mrf.mxu0
      %v4828 = vadd.f32 0.0, %v4827
      %4829 = vmatmul.bf16.gmra.mxu0 %v4586
      %v4830 = vpop.f32.mrf.mxu0
      %v4831 = vadd.f32 0.0, %v4830
      %v4832 = vpop.f32.mrf.mxu0
      %v4833 = vadd.f32 0.0, %v4832
      %4834 = vmatmul.bf16.gmra.mxu0 %v4589
      %v4835 = vpop.f32.mrf.mxu0
      %v4836 = vadd.f32 0.0, %v4835
      %v4837 = vpop.f32.mrf.mxu0
      %v4838 = vadd.f32 0.0, %v4837
      %4839 = vdwg.mxu0
      %4840 = vmatpush.bf16.msra.mxu0 0
      %4841 = vmatpush.bf16.msra.mxu0 0
      %4842 = vmatpush.bf16.msra.mxu0 0
      %4843 = vmatpush.bf16.msra.mxu0 0
      %4844 = vmatpush.bf16.msra.mxu0 0
      %4845 = vmatpush.bf16.msra.mxu0 0
      %4846 = vmatpush.bf16.msra.mxu0 %v4601
      %4847 = vmatpush.bf16.msra.mxu0 %v4540
      %4848 = vmatmul.bf16.gmra.mxu0 %v4550
      %v4849 = vpop.f32.mrf.mxu0
      %v4850 = vadd.f32 0.0, %v4849
      %v4851 = vpop.f32.mrf.mxu0
      %v4852 = vadd.f32 0.0, %v4851
      %4853 = vmatmul.bf16.gmra.mxu0 %v4553
      %v4854 = vpop.f32.mrf.mxu0
      %v4855 = vadd.f32 0.0, %v4854
      %v4856 = vpop.f32.mrf.mxu0
      %v4857 = vadd.f32 0.0, %v4856
      %4858 = vmatmul.bf16.gmra.mxu0 %v4556
      %v4859 = vpop.f32.mrf.mxu0
      %v4860 = vadd.f32 0.0, %v4859
      %v4861 = vpop.f32.mrf.mxu0
      %v4862 = vadd.f32 0.0, %v4861
      %4863 = vmatmul.bf16.gmra.mxu0 %v4559
      %v4864 = vpop.f32.mrf.mxu0
      %v4865 = vadd.f32 0.0, %v4864
      %v4866 = vpop.f32.mrf.mxu0
      %v4867 = vadd.f32 0.0, %v4866
      %4868 = vmatmul.bf16.gmra.mxu0 %v4562
      %v4869 = vpop.f32.mrf.mxu0
      %v4870 = vadd.f32 0.0, %v4869
      %v4871 = vpop.f32.mrf.mxu0
      %v4872 = vadd.f32 0.0, %v4871
      %4873 = vmatmul.bf16.gmra.mxu0 %v4565
      %v4874 = vpop.f32.mrf.mxu0
      %v4875 = vadd.f32 0.0, %v4874
      %v4876 = vpop.f32.mrf.mxu0
      %v4877 = vadd.f32 0.0, %v4876
      %4878 = vmatmul.bf16.gmra.mxu0 %v4568
      %v4879 = vpop.f32.mrf.mxu0
      %v4880 = vadd.f32 0.0, %v4879
      %v4881 = vpop.f32.mrf.mxu0
      %v4882 = vadd.f32 0.0, %v4881
      %4883 = vmatmul.bf16.gmra.mxu0 %v4571
      %v4884 = vpop.f32.mrf.mxu0
      %v4885 = vadd.f32 0.0, %v4884
      %v4886 = vpop.f32.mrf.mxu0
      %v4887 = vadd.f32 0.0, %v4886
      %4888 = vmatmul.bf16.gmra.mxu0 %v4574
      %v4889 = vpop.f32.mrf.mxu0
      %v4890 = vadd.f32 0.0, %v4889
      %v4891 = vpop.f32.mrf.mxu0
      %v4892 = vadd.f32 0.0, %v4891
      %4893 = vmatmul.bf16.gmra.mxu0 %v4577
      %v4894 = vpop.f32.mrf.mxu0
      %v4895 = vadd.f32 0.0, %v4894
      %v4896 = vpop.f32.mrf.mxu0
      %v4897 = vadd.f32 0.0, %v4896
      %4898 = vmatmul.bf16.gmra.mxu0 %v4580
      %v4899 = vpop.f32.mrf.mxu0
      %v4900 = vadd.f32 0.0, %v4899
      %v4901 = vpop.f32.mrf.mxu0
      %v4902 = vadd.f32 0.0, %v4901
      %4903 = vmatmul.bf16.gmra.mxu0 %v4583
      %v4904 = vpop.f32.mrf.mxu0
      %v4905 = vadd.f32 0.0, %v4904
      %v4906 = vpop.f32.mrf.mxu0
      %v4907 = vadd.f32 0.0, %v4906
      %4908 = vmatmul.bf16.gmra.mxu0 %v4586
      %v4909 = vpop.f32.mrf.mxu0
      %v4910 = vadd.f32 0.0, %v4909
      %v4911 = vpop.f32.mrf.mxu0
      %v4912 = vadd.f32 0.0, %v4911
      %4913 = vmatmul.bf16.gmra.mxu0 %v4589
      %v4914 = vpop.f32.mrf.mxu0
      %v4915 = vadd.f32 0.0, %v4914
      %v4916 = vpop.f32.mrf.mxu0
      %v4917 = vadd.f32 0.0, %v4916
      %4918 = vdwg.mxu0
      %v4919 = vadd.f32 %v4322, %v4613
      %v4920 = vadd.f32 %v4323, %v4692
      %v4921 = vadd.f32 %v4324, %v4771
      %v4922 = vadd.f32 %v4325, %v4850
      %v4923 = vadd.f32 %v4326, %v4615
      %v4924 = vadd.f32 %v4327, %v4694
      %v4925 = vadd.f32 %v4328, %v4773
      %v4926 = vadd.f32 %v4329, %v4852
      %v4927 = vadd.f32 %v4330, %v4618
      %v4928 = vadd.f32 %v4331, %v4697
      %v4929 = vadd.f32 %v4332, %v4776
      %v4930 = vadd.f32 %v4333, %v4855
      %v4931 = vadd.f32 %v4334, %v4620
      %v4932 = vadd.f32 %v4335, %v4699
      %v4933 = vadd.f32 %v4336, %v4778
      %v4934 = vadd.f32 %v4337, %v4857
      %v4935 = vadd.f32 %v4338, %v4623
      %v4936 = vadd.f32 %v4339, %v4702
      %v4937 = vadd.f32 %v4340, %v4781
      %v4938 = vadd.f32 %v4341, %v4860
      %v4939 = vadd.f32 %v4342, %v4625
      %v4940 = vadd.f32 %v4343, %v4704
      %v4941 = vadd.f32 %v4344, %v4783
      %v4942 = vadd.f32 %v4345, %v4862
      %v4943 = vadd.f32 %v4346, %v4628
      %v4944 = vadd.f32 %v4347, %v4707
      %v4945 = vadd.f32 %v4348, %v4786
      %v4946 = vadd.f32 %v4349, %v4865
      %v4947 = vadd.f32 %v4350, %v4630
      %v4948 = vadd.f32 %v4351, %v4709
      %v4949 = vadd.f32 %v4352, %v4788
      %v4950 = vadd.f32 %v4353, %v4867
      %v4951 = vadd.f32 %v4354, %v4633
      %v4952 = vadd.f32 %v4355, %v4712
      %v4953 = vadd.f32 %v4356, %v4791
      %v4954 = vadd.f32 %v4357, %v4870
      %v4955 = vadd.f32 %v4358, %v4635
      %v4956 = vadd.f32 %v4359, %v4714
      %v4957 = vadd.f32 %v4360, %v4793
      %v4958 = vadd.f32 %v4361, %v4872
      %v4959 = vadd.f32 %v4362, %v4638
      %v4960 = vadd.f32 %v4363, %v4717
      %v4961 = vadd.f32 %v4364, %v4796
      %v4962 = vadd.f32 %v4365, %v4875
      %v4963 = vadd.f32 %v4366, %v4640
      %v4964 = vadd.f32 %v4367, %v4719
      %v4965 = vadd.f32 %v4368, %v4798
      %v4966 = vadd.f32 %v4369, %v4877
      %v4967 = vadd.f32 %v4370, %v4643
      %v4968 = vadd.f32 %v4371, %v4722
      %v4969 = vadd.f32 %v4372, %v4801
      %v4970 = vadd.f32 %v4373, %v4880
      %v4971 = vadd.f32 %v4374, %v4645
      %v4972 = vadd.f32 %v4375, %v4724
      %v4973 = vadd.f32 %v4376, %v4803
      %v4974 = vadd.f32 %v4377, %v4882
      %v4975 = vadd.f32 %v4378, %v4648
      %v4976 = vadd.f32 %v4379, %v4727
      %v4977 = vadd.f32 %v4380, %v4806
      %v4978 = vadd.f32 %v4381, %v4885
      %v4979 = vadd.f32 %v4382, %v4650
      %v4980 = vadd.f32 %v4383, %v4729
      %v4981 = vadd.f32 %v4384, %v4808
      %v4982 = vadd.f32 %v4385, %v4887
      %v4983 = vadd.f32 %v4386, %v4653
      %v4984 = vadd.f32 %v4387, %v4732
      %v4985 = vadd.f32 %v4388, %v4811
      %v4986 = vadd.f32 %v4389, %v4890
      %v4987 = vadd.f32 %v4390, %v4655
      %v4988 = vadd.f32 %v4391, %v4734
      %v4989 = vadd.f32 %v4392, %v4813
      %v4990 = vadd.f32 %v4393, %v4892
      %v4991 = vadd.f32 %v4394, %v4658
      %v4992 = vadd.f32 %v4395, %v4737
      %v4993 = vadd.f32 %v4396, %v4816
      %v4994 = vadd.f32 %v4397, %v4895
      %v4995 = vadd.f32 %v4398, %v4660
      %v4996 = vadd.f32 %v4399, %v4739
      %v4997 = vadd.f32 %v4400, %v4818
      %v4998 = vadd.f32 %v4401, %v4897
      %v4999 = vadd.f32 %v4402, %v4663
      %v5000 = vadd.f32 %v4403, %v4742
      %v5001 = vadd.f32 %v4404, %v4821
      %v5002 = vadd.f32 %v4405, %v4900
      %v5003 = vadd.f32 %v4406, %v4665
      %v5004 = vadd.f32 %v4407, %v4744
      %v5005 = vadd.f32 %v4408, %v4823
      %v5006 = vadd.f32 %v4409, %v4902
      %v5007 = vadd.f32 %v4410, %v4668
      %v5008 = vadd.f32 %v4411, %v4747
      %v5009 = vadd.f32 %v4412, %v4826
      %v5010 = vadd.f32 %v4413, %v4905
      %v5011 = vadd.f32 %v4414, %v4670
      %v5012 = vadd.f32 %v4415, %v4749
      %v5013 = vadd.f32 %v4416, %v4828
      %v5014 = vadd.f32 %v4417, %v4907
      %v5015 = vadd.f32 %v4418, %v4673
      %v5016 = vadd.f32 %v4419, %v4752
      %v5017 = vadd.f32 %v4420, %v4831
      %v5018 = vadd.f32 %v4421, %v4910
      %v5019 = vadd.f32 %v4422, %v4675
      %v5020 = vadd.f32 %v4423, %v4754
      %v5021 = vadd.f32 %v4424, %v4833
      %v5022 = vadd.f32 %v4425, %v4912
      %v5023 = vadd.f32 %v4426, %v4678
      %v5024 = vadd.f32 %v4427, %v4757
      %v5025 = vadd.f32 %v4428, %v4836
      %v5026 = vadd.f32 %v4429, %v4915
      %v5027 = vadd.f32 %v4430, %v4680
      %v5028 = vadd.f32 %v4431, %v4759
      %v5029 = vadd.f32 %v4432, %v4838
      %v5030 = vadd.f32 %v4433, %v4917
      %v5031 = vmax.f32 %v4919, %v4921
      %v5032 = vmax.f32 %v4920, %v4922
      %v5033 = vmax.f32 %v4923, %v4925
      %v5034 = vmax.f32 %v4924, %v4926
      %v5035 = vmax.f32 %v4927, %v4929
      %v5036 = vmax.f32 %v4928, %v4930
      %v5037 = vmax.f32 %v4931, %v4933
      %v5038 = vmax.f32 %v4932, %v4934
      %v5039 = vmax.f32 %v4935, %v4937
      %v5040 = vmax.f32 %v4936, %v4938
      %v5041 = vmax.f32 %v4939, %v4941
      %v5042 = vmax.f32 %v4940, %v4942
      %v5043 = vmax.f32 %v4943, %v4945
      %v5044 = vmax.f32 %v4944, %v4946
      %v5045 = vmax.f32 %v4947, %v4949
      %v5046 = vmax.f32 %v4948, %v4950
      %v5047 = vmax.f32 %v4951, %v4953
      %v5048 = vmax.f32 %v4952, %v4954
      %v5049 = vmax.f32 %v4955, %v4957
      %v5050 = vmax.f32 %v4956, %v4958
      %v5051 = vmax.f32 %v4959, %v4961
      %v5052 = vmax.f32 %v4960, %v4962
      %v5053 = vmax.f32 %v4963, %v4965
      %v5054 = vmax.f32 %v4964, %v4966
      %v5055 = vmax.f32 %v4967, %v4969
      %v5056 = vmax.f32 %v4968, %v4970
      %v5057 = vmax.f32 %v4971, %v4973
      %v5058 = vmax.f32 %v4972, %v4974
      %v5059 = vmax.f32 %v4975, %v4977
      %v5060 = vmax.f32 %v4976, %v4978
      %v5061 = vmax.f32 %v4979, %v4981
      %v5062 = vmax.f32 %v4980, %v4982
      %v5063 = vmax.f32 %v4983, %v4985
      %v5064 = vmax.f32 %v4984, %v4986
      %v5065 = vmax.f32 %v4987, %v4989
      %v5066 = vmax.f32 %v4988, %v4990
      %v5067 = vmax.f32 %v4991, %v4993
      %v5068 = vmax.f32 %v4992, %v4994
      %v5069 = vmax.f32 %v4995, %v4997
      %v5070 = vmax.f32 %v4996, %v4998
      %v5071 = vmax.f32 %v4999, %v5001
      %v5072 = vmax.f32 %v5000, %v5002
      %v5073 = vmax.f32 %v5003, %v5005
      %v5074 = vmax.f32 %v5004, %v5006
      %v5075 = vmax.f32 %v5007, %v5009
      %v5076 = vmax.f32 %v5008, %v5010
      %v5077 = vmax.f32 %v5011, %v5013
      %v5078 = vmax.f32 %v5012, %v5014
      %v5079 = vmax.f32 %v5015, %v5017
      %v5080 = vmax.f32 %v5016, %v5018
      %v5081 = vmax.f32 %v5019, %v5021
      %v5082 = vmax.f32 %v5020, %v5022
      %v5083 = vmax.f32 %v5023, %v5025
      %v5084 = vmax.f32 %v5024, %v5026
      %v5085 = vmax.f32 %v5027, %v5029
      %v5086 = vmax.f32 %v5028, %v5030
      %v5087 = vld [vmem:[%s3] sm:$0x3]
      %v5089 = vperm.slane %v5087, 0
      %v5090 = vperm.slane %v5087, 1
      %v5093 = vadd.f32 %v5031, %v5089
      %v5094 = vadd.f32 %v5032, %v5090
      %v5095 = vadd.f32 %v5033, %v5089
      %v5096 = vadd.f32 %v5034, %v5090
      %v5097 = vadd.f32 %v5035, %v5089
      %v5098 = vadd.f32 %v5036, %v5090
      %v5099 = vadd.f32 %v5037, %v5089
      %v5100 = vadd.f32 %v5038, %v5090
      %v5101 = vadd.f32 %v5039, %v5089
      %v5102 = vadd.f32 %v5040, %v5090
      %v5103 = vadd.f32 %v5041, %v5089
      %v5104 = vadd.f32 %v5042, %v5090
      %v5105 = vadd.f32 %v5043, %v5089
      %v5106 = vadd.f32 %v5044, %v5090
      %v5107 = vadd.f32 %v5045, %v5089
      %v5108 = vadd.f32 %v5046, %v5090
      %v5109 = vadd.f32 %v5047, %v5089
      %v5110 = vadd.f32 %v5048, %v5090
      %v5111 = vadd.f32 %v5049, %v5089
      %v5112 = vadd.f32 %v5050, %v5090
      %v5113 = vadd.f32 %v5051, %v5089
      %v5114 = vadd.f32 %v5052, %v5090
      %v5115 = vadd.f32 %v5053, %v5089
      %v5116 = vadd.f32 %v5054, %v5090
      %v5117 = vadd.f32 %v5055, %v5089
      %v5118 = vadd.f32 %v5056, %v5090
      %v5119 = vadd.f32 %v5057, %v5089
      %v5120 = vadd.f32 %v5058, %v5090
      %v5121 = vadd.f32 %v5059, %v5089
      %v5122 = vadd.f32 %v5060, %v5090
      %v5123 = vadd.f32 %v5061, %v5089
      %v5124 = vadd.f32 %v5062, %v5090
      %v5125 = vadd.f32 %v5063, %v5089
      %v5126 = vadd.f32 %v5064, %v5090
      %v5127 = vadd.f32 %v5065, %v5089
      %v5128 = vadd.f32 %v5066, %v5090
      %v5129 = vadd.f32 %v5067, %v5089
      %v5130 = vadd.f32 %v5068, %v5090
      %v5131 = vadd.f32 %v5069, %v5089
      %v5132 = vadd.f32 %v5070, %v5090
      %v5133 = vadd.f32 %v5071, %v5089
      %v5134 = vadd.f32 %v5072, %v5090
      %v5135 = vadd.f32 %v5073, %v5089
      %v5136 = vadd.f32 %v5074, %v5090
      %v5137 = vadd.f32 %v5075, %v5089
      %v5138 = vadd.f32 %v5076, %v5090
      %v5139 = vadd.f32 %v5077, %v5089
      %v5140 = vadd.f32 %v5078, %v5090
      %v5141 = vadd.f32 %v5079, %v5089
      %v5142 = vadd.f32 %v5080, %v5090
      %v5143 = vadd.f32 %v5081, %v5089
      %v5144 = vadd.f32 %v5082, %v5090
      %v5145 = vadd.f32 %v5083, %v5089
      %v5146 = vadd.f32 %v5084, %v5090
      %v5147 = vadd.f32 %v5085, %v5089
      %v5148 = vadd.f32 %v5086, %v5090
      %v5149 = vmax.f32 %v5093, 0.0
      %v5150 = vmax.f32 %v5094, 0.0
      %v5151 = vmax.f32 %v5095, 0.0
      %v5152 = vmax.f32 %v5096, 0.0
      %v5153 = vmax.f32 %v5097, 0.0
      %v5154 = vmax.f32 %v5098, 0.0
      %v5155 = vmax.f32 %v5099, 0.0
      %v5156 = vmax.f32 %v5100, 0.0
      %v5157 = vmax.f32 %v5101, 0.0
      %v5158 = vmax.f32 %v5102, 0.0
      %v5159 = vmax.f32 %v5103, 0.0
      %v5160 = vmax.f32 %v5104, 0.0
      %v5161 = vmax.f32 %v5105, 0.0
      %v5162 = vmax.f32 %v5106, 0.0
      %v5163 = vmax.f32 %v5107, 0.0
      %v5164 = vmax.f32 %v5108, 0.0
      %v5165 = vmax.f32 %v5109, 0.0
      %v5166 = vmax.f32 %v5110, 0.0
      %v5167 = vmax.f32 %v5111, 0.0
      %v5168 = vmax.f32 %v5112, 0.0
      %v5169 = vmax.f32 %v5113, 0.0
      %v5170 = vmax.f32 %v5114, 0.0
      %v5171 = vmax.f32 %v5115, 0.0
      %v5172 = vmax.f32 %v5116, 0.0
      %v5173 = vmax.f32 %v5117, 0.0
      %v5174 = vmax.f32 %v5118, 0.0
      %v5175 = vmax.f32 %v5119, 0.0
      %v5176 = vmax.f32 %v5120, 0.0
      %v5177 = vmax.f32 %v5121, 0.0
      %v5178 = vmax.f32 %v5122, 0.0
      %v5179 = vmax.f32 %v5123, 0.0
      %v5180 = vmax.f32 %v5124, 0.0
      %v5181 = vmax.f32 %v5125, 0.0
      %v5182 = vmax.f32 %v5126, 0.0
      %v5183 = vmax.f32 %v5127, 0.0
      %v5184 = vmax.f32 %v5128, 0.0
      %v5185 = vmax.f32 %v5129, 0.0
      %v5186 = vmax.f32 %v5130, 0.0
      %v5187 = vmax.f32 %v5131, 0.0
      %v5188 = vmax.f32 %v5132, 0.0
      %v5189 = vmax.f32 %v5133, 0.0
      %v5190 = vmax.f32 %v5134, 0.0
      %v5191 = vmax.f32 %v5135, 0.0
      %v5192 = vmax.f32 %v5136, 0.0
      %v5193 = vmax.f32 %v5137, 0.0
      %v5194 = vmax.f32 %v5138, 0.0
      %v5195 = vmax.f32 %v5139, 0.0
      %v5196 = vmax.f32 %v5140, 0.0
      %v5197 = vmax.f32 %v5141, 0.0
      %v5198 = vmax.f32 %v5142, 0.0
      %v5199 = vmax.f32 %v5143, 0.0
      %v5200 = vmax.f32 %v5144, 0.0
      %v5201 = vmax.f32 %v5145, 0.0
      %v5202 = vmax.f32 %v5146, 0.0
      %v5203 = vmax.f32 %v5147, 0.0
      %v5204 = vmax.f32 %v5148, 0.0
      %v5205 = vpack.c.bf16 %v5151, %v5149
      %v5206 = vpack.c.bf16 %v5152, %v5150
      %v5207 = vpack.c.bf16 %v5155, %v5153
      %v5208 = vpack.c.bf16 %v5156, %v5154
      %v5209 = vpack.c.bf16 %v5159, %v5157
      %v5210 = vpack.c.bf16 %v5160, %v5158
      %v5211 = vpack.c.bf16 %v5163, %v5161
      %v5212 = vpack.c.bf16 %v5164, %v5162
      %v5213 = vpack.c.bf16 %v5167, %v5165
      %v5214 = vpack.c.bf16 %v5168, %v5166
      %v5215 = vpack.c.bf16 %v5171, %v5169
      %v5216 = vpack.c.bf16 %v5172, %v5170
      %v5217 = vpack.c.bf16 %v5175, %v5173
      %v5218 = vpack.c.bf16 %v5176, %v5174
      %v5219 = vpack.c.bf16 %v5179, %v5177
      %v5220 = vpack.c.bf16 %v5180, %v5178
      %v5221 = vpack.c.bf16 %v5183, %v5181
      %v5222 = vpack.c.bf16 %v5184, %v5182
      %v5223 = vpack.c.bf16 %v5187, %v5185
      %v5224 = vpack.c.bf16 %v5188, %v5186
      %v5225 = vpack.c.bf16 %v5191, %v5189
      %v5226 = vpack.c.bf16 %v5192, %v5190
      %v5227 = vpack.c.bf16 %v5195, %v5193
      %v5228 = vpack.c.bf16 %v5196, %v5194
      %v5229 = vpack.c.bf16 %v5199, %v5197
      %v5230 = vpack.c.bf16 %v5200, %v5198
      %v5231 = vpack.c.bf16 %v5203, %v5201
      %v5232 = vpack.c.bf16 %v5204, %v5202
      %v5233 = vld [vmem:[%s4] sm:$0xff]
      %v5234 = vld [vmem:[%s4 + $0x8] sm:$0xff]
      %v5235 = vld [vmem:[%s4 + $0x10] sm:$0xff]
      %v5236 = vld [vmem:[%s4 + $0x18] sm:$0xff]
      %v5237 = vld [vmem:[%s4 + $0x20] sm:$0xff]
      %v5238 = vld [vmem:[%s4 + $0x28] sm:$0xff]
      %v5239 = vld [vmem:[%s4 + $0x30] sm:$0xff]
      %v5240 = vld [vmem:[%s4 + $0x38] sm:$0xff]
      %v5241 = vld [vmem:[%s4 + $0x40] sm:$0xff]
      %v5242 = vld [vmem:[%s4 + $0x48] sm:$0xff]
      %v5243 = vld [vmem:[%s4 + $0x50] sm:$0xff]
      %v5244 = vld [vmem:[%s4 + $0x58] sm:$0xff]
      %v5245 = vld [vmem:[%s4 + $0x60] sm:$0xff]
      %v5246 = vld [vmem:[%s4 + $0x68] sm:$0xff]
      %v5261 = vunpack.c.l.b16 %v5233
      %v5262 = vunpack.c.h.b16 %v5233
      %v5263 = vunpack.c.l.b16 %v5234
      %v5264 = vunpack.c.h.b16 %v5234
      %v5265 = vunpack.c.l.b16 %v5235
      %v5266 = vunpack.c.h.b16 %v5235
      %v5267 = vunpack.c.l.b16 %v5236
      %v5268 = vunpack.c.h.b16 %v5236
      %v5269 = vunpack.c.l.b16 %v5237
      %v5270 = vunpack.c.h.b16 %v5237
      %v5271 = vunpack.c.l.b16 %v5238
      %v5272 = vunpack.c.h.b16 %v5238
      %v5273 = vunpack.c.l.b16 %v5239
      %v5274 = vunpack.c.h.b16 %v5239
      %v5275 = vunpack.c.l.b16 %v5240
      %v5276 = vunpack.c.h.b16 %v5240
      %v5277 = vunpack.c.l.b16 %v5241
      %v5278 = vunpack.c.h.b16 %v5241
      %v5279 = vunpack.c.l.b16 %v5242
      %v5280 = vunpack.c.h.b16 %v5242
      %v5281 = vunpack.c.l.b16 %v5243
      %v5282 = vunpack.c.h.b16 %v5243
      %v5283 = vunpack.c.l.b16 %v5244
      %v5284 = vunpack.c.h.b16 %v5244
      %v5285 = vunpack.c.l.b16 %v5245
      %v5286 = vunpack.c.h.b16 %v5245
      %v5287 = vunpack.c.l.b16 %v5246
      %v5288 = vunpack.c.h.b16 %v5246
      %v5289 = vpack.c.b16 %v5263, %v5261
      %v5290 = vpack.c.b16 %v5264, %v5262
      %v5291 = vpack.c.b16 %v5267, %v5265
      %v5292 = vpack.c.b16 %v5268, %v5266
      %v5293 = vpack.c.b16 %v5271, %v5269
      %v5294 = vpack.c.b16 %v5272, %v5270
      %v5295 = vpack.c.b16 %v5275, %v5273
      %v5296 = vpack.c.b16 %v5276, %v5274
      %v5297 = vpack.c.b16 %v5279, %v5277
      %v5298 = vpack.c.b16 %v5280, %v5278
      %v5299 = vpack.c.b16 %v5283, %v5281
      %v5300 = vpack.c.b16 %v5284, %v5282
      %v5301 = vpack.c.b16 %v5287, %v5285
      %v5302 = vpack.c.b16 %v5288, %v5286
      %v5311 = vsel %vm1200, %v5290, 0
      %v5314 = vsel %vm1200, %v5292, 0
      %v5317 = vsel %vm1200, %v5294, 0
      %v5320 = vsel %vm1200, %v5296, 0
      %v5323 = vsel %vm1200, %v5298, 0
      %v5326 = vsel %vm1200, %v5300, 0
      %v5329 = vsel %vm1200, %v5302, 0
      %5331 = vmatpush.bf16.msra.mxu0 %v5219
      %5332 = vmatpush.bf16.msra.mxu0 %v5217
      %5333 = vmatpush.bf16.msra.mxu0 %v5215
      %5334 = vmatpush.bf16.msra.mxu0 %v5213
      %5335 = vmatpush.bf16.msra.mxu0 %v5211
      %5336 = vmatpush.bf16.msra.mxu0 %v5209
      %5337 = vmatpush.bf16.msra.mxu0 %v5207
      %5338 = vmatpush.bf16.msra.mxu0 %v5205
      %5339 = vmatmul.bf16.gmra.mxu0 %v5289
      %v5340 = vpop.f32.mrf.mxu0
      %v5341 = vadd.f32 0.0, %v5340
      %v5342 = vpop.f32.mrf.mxu0
      %v5343 = vadd.f32 0.0, %v5342
      %5344 = vmatmul.bf16.gmra.mxu0 %v5291
      %v5345 = vpop.f32.mrf.mxu0
      %v5346 = vadd.f32 0.0, %v5345
      %v5347 = vpop.f32.mrf.mxu0
      %v5348 = vadd.f32 0.0, %v5347
      %5349 = vmatmul.bf16.gmra.mxu0 %v5293
      %v5350 = vpop.f32.mrf.mxu0
      %v5351 = vadd.f32 0.0, %v5350
      %v5352 = vpop.f32.mrf.mxu0
      %v5353 = vadd.f32 0.0, %v5352
      %5354 = vmatmul.bf16.gmra.mxu0 %v5295
      %v5355 = vpop.f32.mrf.mxu0
      %v5356 = vadd.f32 0.0, %v5355
      %v5357 = vpop.f32.mrf.mxu0
      %v5358 = vadd.f32 0.0, %v5357
      %5359 = vmatmul.bf16.gmra.mxu0 %v5297
      %v5360 = vpop.f32.mrf.mxu0
      %v5361 = vadd.f32 0.0, %v5360
      %v5362 = vpop.f32.mrf.mxu0
      %v5363 = vadd.f32 0.0, %v5362
      %5364 = vmatmul.bf16.gmra.mxu0 %v5299
      %v5365 = vpop.f32.mrf.mxu0
      %v5366 = vadd.f32 0.0, %v5365
      %v5367 = vpop.f32.mrf.mxu0
      %v5368 = vadd.f32 0.0, %v5367
      %5369 = vmatmul.bf16.gmra.mxu0 %v5301
      %v5370 = vpop.f32.mrf.mxu0
      %v5371 = vadd.f32 0.0, %v5370
      %v5372 = vpop.f32.mrf.mxu0
      %v5373 = vadd.f32 0.0, %v5372
      %5374 = vdwg.mxu0
      %5375 = vmatpush.bf16.msra.mxu0 0
      %5376 = vmatpush.bf16.msra.mxu0 0
      %5377 = vmatpush.bf16.msra.mxu0 %v5231
      %5378 = vmatpush.bf16.msra.mxu0 %v5229
      %5379 = vmatpush.bf16.msra.mxu0 %v5227
      %5380 = vmatpush.bf16.msra.mxu0 %v5225
      %5381 = vmatpush.bf16.msra.mxu0 %v5223
      %5382 = vmatpush.bf16.msra.mxu0 %v5221
      %5383 = vmatmul.bf16.gmra.mxu0 %v5311
      %v5384 = vpop.f32.mrf.mxu0
      %v5385 = vadd.f32 %v5341, %v5384
      %v5386 = vpop.f32.mrf.mxu0
      %v5387 = vadd.f32 %v5343, %v5386
      %5388 = vmatmul.bf16.gmra.mxu0 %v5314
      %v5389 = vpop.f32.mrf.mxu0
      %v5390 = vadd.f32 %v5346, %v5389
      %v5391 = vpop.f32.mrf.mxu0
      %v5392 = vadd.f32 %v5348, %v5391
      %5393 = vmatmul.bf16.gmra.mxu0 %v5317
      %v5394 = vpop.f32.mrf.mxu0
      %v5395 = vadd.f32 %v5351, %v5394
      %v5396 = vpop.f32.mrf.mxu0
      %v5397 = vadd.f32 %v5353, %v5396
      %5398 = vmatmul.bf16.gmra.mxu0 %v5320
      %v5399 = vpop.f32.mrf.mxu0
      %v5400 = vadd.f32 %v5356, %v5399
      %v5401 = vpop.f32.mrf.mxu0
      %v5402 = vadd.f32 %v5358, %v5401
      %5403 = vmatmul.bf16.gmra.mxu0 %v5323
      %v5404 = vpop.f32.mrf.mxu0
      %v5405 = vadd.f32 %v5361, %v5404
      %v5406 = vpop.f32.mrf.mxu0
      %v5407 = vadd.f32 %v5363, %v5406
      %5408 = vmatmul.bf16.gmra.mxu0 %v5326
      %v5409 = vpop.f32.mrf.mxu0
      %v5410 = vadd.f32 %v5366, %v5409
      %v5411 = vpop.f32.mrf.mxu0
      %v5412 = vadd.f32 %v5368, %v5411
      %5413 = vmatmul.bf16.gmra.mxu0 %v5329
      %v5414 = vpop.f32.mrf.mxu0
      %v5415 = vadd.f32 %v5371, %v5414
      %v5416 = vpop.f32.mrf.mxu0
      %v5417 = vadd.f32 %v5373, %v5416
      %5418 = vdwg.mxu0
      %5419 = vmatpush.bf16.msra.mxu0 %v5220
      %5420 = vmatpush.bf16.msra.mxu0 %v5218
      %5421 = vmatpush.bf16.msra.mxu0 %v5216
      %5422 = vmatpush.bf16.msra.mxu0 %v5214
      %5423 = vmatpush.bf16.msra.mxu0 %v5212
      %5424 = vmatpush.bf16.msra.mxu0 %v5210
      %5425 = vmatpush.bf16.msra.mxu0 %v5208
      %5426 = vmatpush.bf16.msra.mxu0 %v5206
      %5427 = vmatmul.bf16.gmra.mxu0 %v5289
      %v5428 = vpop.f32.mrf.mxu0
      %v5429 = vadd.f32 0.0, %v5428
      %v5430 = vpop.f32.mrf.mxu0
      %v5431 = vadd.f32 0.0, %v5430
      %5432 = vmatmul.bf16.gmra.mxu0 %v5291
      %v5433 = vpop.f32.mrf.mxu0
      %v5434 = vadd.f32 0.0, %v5433
      %v5435 = vpop.f32.mrf.mxu0
      %v5436 = vadd.f32 0.0, %v5435
      %5437 = vmatmul.bf16.gmra.mxu0 %v5293
      %v5438 = vpop.f32.mrf.mxu0
      %v5439 = vadd.f32 0.0, %v5438
      %v5440 = vpop.f32.mrf.mxu0
      %v5441 = vadd.f32 0.0, %v5440
      %5442 = vmatmul.bf16.gmra.mxu0 %v5295
      %v5443 = vpop.f32.mrf.mxu0
      %v5444 = vadd.f32 0.0, %v5443
      %v5445 = vpop.f32.mrf.mxu0
      %v5446 = vadd.f32 0.0, %v5445
      %5447 = vmatmul.bf16.gmra.mxu0 %v5297
      %v5448 = vpop.f32.mrf.mxu0
      %v5449 = vadd.f32 0.0, %v5448
      %v5450 = vpop.f32.mrf.mxu0
      %v5451 = vadd.f32 0.0, %v5450
      %5452 = vmatmul.bf16.gmra.mxu0 %v5299
      %v5453 = vpop.f32.mrf.mxu0
      %v5454 = vadd.f32 0.0, %v5453
      %v5455 = vpop.f32.mrf.mxu0
      %v5456 = vadd.f32 0.0, %v5455
      %5457 = vmatmul.bf16.gmra.mxu0 %v5301
      %v5458 = vpop.f32.mrf.mxu0
      %v5459 = vadd.f32 0.0, %v5458
      %v5460 = vpop.f32.mrf.mxu0
      %v5461 = vadd.f32 0.0, %v5460
      %5462 = vdwg.mxu0
      %5463 = vmatpush.bf16.msra.mxu0 0
      %5464 = vmatpush.bf16.msra.mxu0 0
      %5465 = vmatpush.bf16.msra.mxu0 %v5232
      %5466 = vmatpush.bf16.msra.mxu0 %v5230
      %5467 = vmatpush.bf16.msra.mxu0 %v5228
      %5468 = vmatpush.bf16.msra.mxu0 %v5226
      %5469 = vmatpush.bf16.msra.mxu0 %v5224
      %5470 = vmatpush.bf16.msra.mxu0 %v5222
      %5471 = vmatmul.bf16.gmra.mxu0 %v5311
      %v5472 = vpop.f32.mrf.mxu0
      %v5473 = vadd.f32 %v5429, %v5472
      %v5474 = vpop.f32.mrf.mxu0
      %v5475 = vadd.f32 %v5431, %v5474
      %5476 = vmatmul.bf16.gmra.mxu0 %v5314
      %v5477 = vpop.f32.mrf.mxu0
      %v5478 = vadd.f32 %v5434, %v5477
      %v5479 = vpop.f32.mrf.mxu0
      %v5480 = vadd.f32 %v5436, %v5479
      %5481 = vmatmul.bf16.gmra.mxu0 %v5317
      %v5482 = vpop.f32.mrf.mxu0
      %v5483 = vadd.f32 %v5439, %v5482
      %v5484 = vpop.f32.mrf.mxu0
      %v5485 = vadd.f32 %v5441, %v5484
      %5486 = vmatmul.bf16.gmra.mxu0 %v5320
      %v5487 = vpop.f32.mrf.mxu0
      %v5488 = vadd.f32 %v5444, %v5487
      %v5489 = vpop.f32.mrf.mxu0
      %v5490 = vadd.f32 %v5446, %v5489
      %5491 = vmatmul.bf16.gmra.mxu0 %v5323
      %v5492 = vpop.f32.mrf.mxu0
      %v5493 = vadd.f32 %v5449, %v5492
      %v5494 = vpop.f32.mrf.mxu0
      %v5495 = vadd.f32 %v5451, %v5494
      %5496 = vmatmul.bf16.gmra.mxu0 %v5326
      %v5497 = vpop.f32.mrf.mxu0
      %v5498 = vadd.f32 %v5454, %v5497
      %v5499 = vpop.f32.mrf.mxu0
      %v5500 = vadd.f32 %v5456, %v5499
      %5501 = vmatmul.bf16.gmra.mxu0 %v5329
      %v5502 = vpop.f32.mrf.mxu0
      %v5503 = vadd.f32 %v5459, %v5502
      %v5504 = vpop.f32.mrf.mxu0
      %v5505 = vadd.f32 %v5461, %v5504
      %5506 = vdwg.mxu0
      %v5507 = vld [vmem:[%s5] sm:$0xff]
      %v5508 = vld [vmem:[%s5 + $0x8] sm:$0xff]
      %v5509 = vld [vmem:[%s5 + $0x10] sm:$0xff]
      %v5510 = vld [vmem:[%s5 + $0x18] sm:$0xff]
      %v5511 = vld [vmem:[%s5 + $0x20] sm:$0xff]
      %v5512 = vld [vmem:[%s5 + $0x28] sm:$0xff]
      %v5513 = vld [vmem:[%s5 + $0x30] sm:$0xff]
      %v5514 = vld [vmem:[%s5 + $0x38] sm:$0xff]
      %v5515 = vld [vmem:[%s5 + $0x40] sm:$0xff]
      %v5516 = vld [vmem:[%s5 + $0x48] sm:$0xff]
      %v5517 = vld [vmem:[%s5 + $0x50] sm:$0xff]
      %v5518 = vld [vmem:[%s5 + $0x58] sm:$0xff]
      %v5519 = vld [vmem:[%s5 + $0x60] sm:$0xff]
      %v5520 = vld [vmem:[%s5 + $0x68] sm:$0xff]
      %v5535 = vunpack.c.l.b16 %v5507
      %v5536 = vunpack.c.h.b16 %v5507
      %v5537 = vunpack.c.l.b16 %v5508
      %v5538 = vunpack.c.h.b16 %v5508
      %v5539 = vunpack.c.l.b16 %v5509
      %v5540 = vunpack.c.h.b16 %v5509
      %v5541 = vunpack.c.l.b16 %v5510
      %v5542 = vunpack.c.h.b16 %v5510
      %v5543 = vunpack.c.l.b16 %v5511
      %v5544 = vunpack.c.h.b16 %v5511
      %v5545 = vunpack.c.l.b16 %v5512
      %v5546 = vunpack.c.h.b16 %v5512
      %v5547 = vunpack.c.l.b16 %v5513
      %v5548 = vunpack.c.h.b16 %v5513
      %v5549 = vunpack.c.l.b16 %v5514
      %v5550 = vunpack.c.h.b16 %v5514
      %v5551 = vunpack.c.l.b16 %v5515
      %v5552 = vunpack.c.h.b16 %v5515
      %v5553 = vunpack.c.l.b16 %v5516
      %v5554 = vunpack.c.h.b16 %v5516
      %v5555 = vunpack.c.l.b16 %v5517
      %v5556 = vunpack.c.h.b16 %v5517
      %v5557 = vunpack.c.l.b16 %v5518
      %v5558 = vunpack.c.h.b16 %v5518
      %v5559 = vunpack.c.l.b16 %v5519
      %v5560 = vunpack.c.h.b16 %v5519
      %v5561 = vunpack.c.l.b16 %v5520
      %v5562 = vunpack.c.h.b16 %v5520
      %v5563 = vpack.c.b16 %v5537, %v5535
      %v5564 = vpack.c.b16 %v5538, %v5536
      %v5565 = vpack.c.b16 %v5541, %v5539
      %v5566 = vpack.c.b16 %v5542, %v5540
      %v5567 = vpack.c.b16 %v5545, %v5543
      %v5568 = vpack.c.b16 %v5546, %v5544
      %v5569 = vpack.c.b16 %v5549, %v5547
      %v5570 = vpack.c.b16 %v5550, %v5548
      %v5571 = vpack.c.b16 %v5553, %v5551
      %v5572 = vpack.c.b16 %v5554, %v5552
      %v5573 = vpack.c.b16 %v5557, %v5555
      %v5574 = vpack.c.b16 %v5558, %v5556
      %v5575 = vpack.c.b16 %v5561, %v5559
      %v5576 = vpack.c.b16 %v5562, %v5560
      %v5585 = vsel %vm1200, %v5564, 0
      %v5588 = vsel %vm1200, %v5566, 0
      %v5591 = vsel %vm1200, %v5568, 0
      %v5594 = vsel %vm1200, %v5570, 0
      %v5597 = vsel %vm1200, %v5572, 0
      %v5600 = vsel %vm1200, %v5574, 0
      %v5603 = vsel %vm1200, %v5576, 0
      %5605 = vmatpush.bf16.msra.mxu0 %v5219
      %5606 = vmatpush.bf16.msra.mxu0 %v5217
      %5607 = vmatpush.bf16.msra.mxu0 %v5215
      %5608 = vmatpush.bf16.msra.mxu0 %v5213
      %5609 = vmatpush.bf16.msra.mxu0 %v5211
      %5610 = vmatpush.bf16.msra.mxu0 %v5209
      %5611 = vmatpush.bf16.msra.mxu0 %v5207
      %5612 = vmatpush.bf16.msra.mxu0 %v5205
      %5613 = vmatmul.bf16.gmra.mxu0 %v5563
      %v5614 = vpop.f32.mrf.mxu0
      %v5615 = vadd.f32 0.0, %v5614
      %v5616 = vpop.f32.mrf.mxu0
      %v5617 = vadd.f32 0.0, %v5616
      %5618 = vmatmul.bf16.gmra.mxu0 %v5565
      %v5619 = vpop.f32.mrf.mxu0
      %v5620 = vadd.f32 0.0, %v5619
      %v5621 = vpop.f32.mrf.mxu0
      %v5622 = vadd.f32 0.0, %v5621
      %5623 = vmatmul.bf16.gmra.mxu0 %v5567
      %v5624 = vpop.f32.mrf.mxu0
      %v5625 = vadd.f32 0.0, %v5624
      %v5626 = vpop.f32.mrf.mxu0
      %v5627 = vadd.f32 0.0, %v5626
      %5628 = vmatmul.bf16.gmra.mxu0 %v5569
      %v5629 = vpop.f32.mrf.mxu0
      %v5630 = vadd.f32 0.0, %v5629
      %v5631 = vpop.f32.mrf.mxu0
      %v5632 = vadd.f32 0.0, %v5631
      %5633 = vmatmul.bf16.gmra.mxu0 %v5571
      %v5634 = vpop.f32.mrf.mxu0
      %v5635 = vadd.f32 0.0, %v5634
      %v5636 = vpop.f32.mrf.mxu0
      %v5637 = vadd.f32 0.0, %v5636
      %5638 = vmatmul.bf16.gmra.mxu0 %v5573
      %v5639 = vpop.f32.mrf.mxu0
      %v5640 = vadd.f32 0.0, %v5639
      %v5641 = vpop.f32.mrf.mxu0
      %v5642 = vadd.f32 0.0, %v5641
      %5643 = vmatmul.bf16.gmra.mxu0 %v5575
      %v5644 = vpop.f32.mrf.mxu0
      %v5645 = vadd.f32 0.0, %v5644
      %v5646 = vpop.f32.mrf.mxu0
      %v5647 = vadd.f32 0.0, %v5646
      %5648 = vdwg.mxu0
      %5649 = vmatpush.bf16.msra.mxu0 0
      %5650 = vmatpush.bf16.msra.mxu0 0
      %5651 = vmatpush.bf16.msra.mxu0 %v5231
      %5652 = vmatpush.bf16.msra.mxu0 %v5229
      %5653 = vmatpush.bf16.msra.mxu0 %v5227
      %5654 = vmatpush.bf16.msra.mxu0 %v5225
      %5655 = vmatpush.bf16.msra.mxu0 %v5223
      %5656 = vmatpush.bf16.msra.mxu0 %v5221
      %5657 = vmatmul.bf16.gmra.mxu0 %v5585
      %v5658 = vpop.f32.mrf.mxu0
      %v5659 = vadd.f32 %v5615, %v5658
      %v5660 = vpop.f32.mrf.mxu0
      %v5661 = vadd.f32 %v5617, %v5660
      %5662 = vmatmul.bf16.gmra.mxu0 %v5588
      %v5663 = vpop.f32.mrf.mxu0
      %v5664 = vadd.f32 %v5620, %v5663
      %v5665 = vpop.f32.mrf.mxu0
      %v5666 = vadd.f32 %v5622, %v5665
      %5667 = vmatmul.bf16.gmra.mxu0 %v5591
      %v5668 = vpop.f32.mrf.mxu0
      %v5669 = vadd.f32 %v5625, %v5668
      %v5670 = vpop.f32.mrf.mxu0
      %v5671 = vadd.f32 %v5627, %v5670
      %5672 = vmatmul.bf16.gmra.mxu0 %v5594
      %v5673 = vpop.f32.mrf.mxu0
      %v5674 = vadd.f32 %v5630, %v5673
      %v5675 = vpop.f32.mrf.mxu0
      %v5676 = vadd.f32 %v5632, %v5675
      %5677 = vmatmul.bf16.gmra.mxu0 %v5597
      %v5678 = vpop.f32.mrf.mxu0
      %v5679 = vadd.f32 %v5635, %v5678
      %v5680 = vpop.f32.mrf.mxu0
      %v5681 = vadd.f32 %v5637, %v5680
      %5682 = vmatmul.bf16.gmra.mxu0 %v5600
      %v5683 = vpop.f32.mrf.mxu0
      %v5684 = vadd.f32 %v5640, %v5683
      %v5685 = vpop.f32.mrf.mxu0
      %v5686 = vadd.f32 %v5642, %v5685
      %5687 = vmatmul.bf16.gmra.mxu0 %v5603
      %v5688 = vpop.f32.mrf.mxu0
      %v5689 = vadd.f32 %v5645, %v5688
      %v5690 = vpop.f32.mrf.mxu0
      %v5691 = vadd.f32 %v5647, %v5690
      %5692 = vdwg.mxu0
      %5693 = vmatpush.bf16.msra.mxu0 %v5220
      %5694 = vmatpush.bf16.msra.mxu0 %v5218
      %5695 = vmatpush.bf16.msra.mxu0 %v5216
      %5696 = vmatpush.bf16.msra.mxu0 %v5214
      %5697 = vmatpush.bf16.msra.mxu0 %v5212
      %5698 = vmatpush.bf16.msra.mxu0 %v5210
      %5699 = vmatpush.bf16.msra.mxu0 %v5208
      %5700 = vmatpush.bf16.msra.mxu0 %v5206
      %5701 = vmatmul.bf16.gmra.mxu0 %v5563
      %v5702 = vpop.f32.mrf.mxu0
      %v5703 = vadd.f32 0.0, %v5702
      %v5704 = vpop.f32.mrf.mxu0
      %v5705 = vadd.f32 0.0, %v5704
      %5706 = vmatmul.bf16.gmra.mxu0 %v5565
      %v5707 = vpop.f32.mrf.mxu0
      %v5708 = vadd.f32 0.0, %v5707
      %v5709 = vpop.f32.mrf.mxu0
      %v5710 = vadd.f32 0.0, %v5709
      %5711 = vmatmul.bf16.gmra.mxu0 %v5567
      %v5712 = vpop.f32.mrf.mxu0
      %v5713 = vadd.f32 0.0, %v5712
      %v5714 = vpop.f32.mrf.mxu0
      %v5715 = vadd.f32 0.0, %v5714
      %5716 = vmatmul.bf16.gmra.mxu0 %v5569
      %v5717 = vpop.f32.mrf.mxu0
      %v5718 = vadd.f32 0.0, %v5717
      %v5719 = vpop.f32.mrf.mxu0
      %v5720 = vadd.f32 0.0, %v5719
      %5721 = vmatmul.bf16.gmra.mxu0 %v5571
      %v5722 = vpop.f32.mrf.mxu0
      %v5723 = vadd.f32 0.0, %v5722
      %v5724 = vpop.f32.mrf.mxu0
      %v5725 = vadd.f32 0.0, %v5724
      %5726 = vmatmul.bf16.gmra.mxu0 %v5573
      %v5727 = vpop.f32.mrf.mxu0
      %v5728 = vadd.f32 0.0, %v5727
      %v5729 = vpop.f32.mrf.mxu0
      %v5730 = vadd.f32 0.0, %v5729
      %5731 = vmatmul.bf16.gmra.mxu0 %v5575
      %v5732 = vpop.f32.mrf.mxu0
      %v5733 = vadd.f32 0.0, %v5732
      %v5734 = vpop.f32.mrf.mxu0
      %v5735 = vadd.f32 0.0, %v5734
      %5736 = vdwg.mxu0
      %5737 = vmatpush.bf16.msra.mxu0 0
      %5738 = vmatpush.bf16.msra.mxu0 0
      %5739 = vmatpush.bf16.msra.mxu0 %v5232
      %5740 = vmatpush.bf16.msra.mxu0 %v5230
      %5741 = vmatpush.bf16.msra.mxu0 %v5228
      %5742 = vmatpush.bf16.msra.mxu0 %v5226
      %5743 = vmatpush.bf16.msra.mxu0 %v5224
      %5744 = vmatpush.bf16.msra.mxu0 %v5222
      %5745 = vmatmul.bf16.gmra.mxu0 %v5585
      %v5746 = vpop.f32.mrf.mxu0
      %v5747 = vadd.f32 %v5703, %v5746
      %v5748 = vpop.f32.mrf.mxu0
      %v5749 = vadd.f32 %v5705, %v5748
      %5750 = vmatmul.bf16.gmra.mxu0 %v5588
      %v5751 = vpop.f32.mrf.mxu0
      %v5752 = vadd.f32 %v5708, %v5751
      %v5753 = vpop.f32.mrf.mxu0
      %v5754 = vadd.f32 %v5710, %v5753
      %5755 = vmatmul.bf16.gmra.mxu0 %v5591
      %v5756 = vpop.f32.mrf.mxu0
      %v5757 = vadd.f32 %v5713, %v5756
      %v5758 = vpop.f32.mrf.mxu0
      %v5759 = vadd.f32 %v5715, %v5758
      %5760 = vmatmul.bf16.gmra.mxu0 %v5594
      %v5761 = vpop.f32.mrf.mxu0
      %v5762 = vadd.f32 %v5718, %v5761
      %v5763 = vpop.f32.mrf.mxu0
      %v5764 = vadd.f32 %v5720, %v5763
      %5765 = vmatmul.bf16.gmra.mxu0 %v5597
      %v5766 = vpop.f32.mrf.mxu0
      %v5767 = vadd.f32 %v5723, %v5766
      %v5768 = vpop.f32.mrf.mxu0
      %v5769 = vadd.f32 %v5725, %v5768
      %5770 = vmatmul.bf16.gmra.mxu0 %v5600
      %v5771 = vpop.f32.mrf.mxu0
      %v5772 = vadd.f32 %v5728, %v5771
      %v5773 = vpop.f32.mrf.mxu0
      %v5774 = vadd.f32 %v5730, %v5773
      %5775 = vmatmul.bf16.gmra.mxu0 %v5603
      %v5776 = vpop.f32.mrf.mxu0
      %v5777 = vadd.f32 %v5733, %v5776
      %v5778 = vpop.f32.mrf.mxu0
      %v5779 = vadd.f32 %v5735, %v5778
      %5780 = vdwg.mxu0
      %v5781 = vmax.f32 %v5385, %v5659
      %v5782 = vmax.f32 %v5473, %v5747
      %v5783 = vmax.f32 %v5387, %v5661
      %v5784 = vmax.f32 %v5475, %v5749
      %v5785 = vmax.f32 %v5390, %v5664
      %v5786 = vmax.f32 %v5478, %v5752
      %v5787 = vmax.f32 %v5392, %v5666
      %v5788 = vmax.f32 %v5480, %v5754
      %v5789 = vmax.f32 %v5395, %v5669
      %v5790 = vmax.f32 %v5483, %v5757
      %v5791 = vmax.f32 %v5397, %v5671
      %v5792 = vmax.f32 %v5485, %v5759
      %v5793 = vmax.f32 %v5400, %v5674
      %v5794 = vmax.f32 %v5488, %v5762
      %v5795 = vmax.f32 %v5402, %v5676
      %v5796 = vmax.f32 %v5490, %v5764
      %v5797 = vmax.f32 %v5405, %v5679
      %v5798 = vmax.f32 %v5493, %v5767
      %v5799 = vmax.f32 %v5407, %v5681
      %v5800 = vmax.f32 %v5495, %v5769
      %v5801 = vmax.f32 %v5410, %v5684
      %v5802 = vmax.f32 %v5498, %v5772
      %v5803 = vmax.f32 %v5412, %v5686
      %v5804 = vmax.f32 %v5500, %v5774
      %v5805 = vmax.f32 %v5415, %v5689
      %v5806 = vmax.f32 %v5503, %v5777
      %v5807 = vmax.f32 %v5417, %v5691
      %v5808 = vmax.f32 %v5505, %v5779
      %v5809 = vpack.c.bf16 %v5783, %v5781
      %v5810 = vpack.c.bf16 %v5784, %v5782
      %v5811 = vpack.c.bf16 %v5787, %v5785
      %v5812 = vpack.c.bf16 %v5788, %v5786
      %v5813 = vpack.c.bf16 %v5791, %v5789
      %v5814 = vpack.c.bf16 %v5792, %v5790
      %v5815 = vpack.c.bf16 %v5795, %v5793
      %v5816 = vpack.c.bf16 %v5796, %v5794
      %v5817 = vpack.c.bf16 %v5799, %v5797
      %v5818 = vpack.c.bf16 %v5800, %v5798
      %v5819 = vpack.c.bf16 %v5803, %v5801
      %v5820 = vpack.c.bf16 %v5804, %v5802
      %v5821 = vpack.c.bf16 %v5807, %v5805
      %v5822 = vpack.c.bf16 %v5808, %v5806
      %v5823 = vld [vmem:[%s6] sm:$0xf]
      %v5824 = vld [vmem:[%s6 + $0x4] sm:$0xf]
      %v5825 = vld [vmem:[%s6 + $0x8] sm:$0xf]
      %v5826 = vld [vmem:[%s6 + $0xc] sm:$0xf]
      %v5827 = vld [vmem:[%s6 + $0x10] sm:$0xf]
      %v5828 = vld [vmem:[%s6 + $0x14] sm:$0xf]
      %v5829 = vld [vmem:[%s6 + $0x18] sm:$0xf]
      %v5830 = vld [vmem:[%s6 + $0x1c] sm:$0xf]
      %v5831 = vld [vmem:[%s6 + $0x20] sm:$0xf]
      %v5832 = vld [vmem:[%s6 + $0x24] sm:$0xf]
      %v5833 = vld [vmem:[%s6 + $0x28] sm:$0xf]
      %v5834 = vld [vmem:[%s6 + $0x2c] sm:$0xf]
      %v5835 = vld [vmem:[%s6 + $0x30] sm:$0xf]
      %v5836 = vld [vmem:[%s6 + $0x34] sm:$0xf]
      %v5837 = vld [vmem:[%s6 + $0x38] sm:$0xf]
      %v5838 = vld [vmem:[%s6 + $0x3c] sm:$0xf]
      %v5839 = vld [vmem:[%s6 + $0x40] sm:$0xf]
      %v5840 = vld [vmem:[%s6 + $0x44] sm:$0xf]
      %v5841 = vld [vmem:[%s6 + $0x48] sm:$0xf]
      %v5842 = vld [vmem:[%s6 + $0x4c] sm:$0xf]
      %v5843 = vld [vmem:[%s6 + $0x50] sm:$0xf]
      %v5844 = vld [vmem:[%s6 + $0x54] sm:$0xf]
      %v5845 = vld [vmem:[%s6 + $0x58] sm:$0xf]
      %v5846 = vld [vmem:[%s6 + $0x5c] sm:$0xf]
      %v5847 = vld [vmem:[%s6 + $0x60] sm:$0xf]
      %v5848 = vld [vmem:[%s6 + $0x64] sm:$0xf]
      %v5849 = vld [vmem:[%s6 + $0x68] sm:$0xf]
      %v5850 = vld [vmem:[%s6 + $0x6c] sm:$0xf]
      %v5851 = vld [vmem:[%s6 + $0x70] sm:$0xf]
      %v5852 = vld [vmem:[%s6 + $0x74] sm:$0xf]
      %v5853 = vld [vmem:[%s6 + $0x78] sm:$0xf]
      %v5854 = vld [vmem:[%s6 + $0x7c] sm:$0xf]
      %v5855 = vld [vmem:[%s6 + $0x80] sm:$0xf]
      %v5856 = vld [vmem:[%s6 + $0x84] sm:$0xf]
      %v5857 = vld [vmem:[%s6 + $0x88] sm:$0xf]
      %v5858 = vld [vmem:[%s6 + $0x8c] sm:$0xf]
      %v5859 = vld [vmem:[%s6 + $0x90] sm:$0xf]
      %v5860 = vld [vmem:[%s6 + $0x94] sm:$0xf]
      %v5861 = vld [vmem:[%s6 + $0x98] sm:$0xf]
      %v5862 = vld [vmem:[%s6 + $0x9c] sm:$0xf]
      %v5863 = vld [vmem:[%s6 + $0xa0] sm:$0xf]
      %v5864 = vld [vmem:[%s6 + $0xa4] sm:$0xf]
      %v5865 = vld [vmem:[%s6 + $0xa8] sm:$0xf]
      %v5866 = vld [vmem:[%s6 + $0xac] sm:$0xf]
      %v5867 = vld [vmem:[%s6 + $0xb0] sm:$0xf]
      %v5868 = vld [vmem:[%s6 + $0xb4] sm:$0xf]
      %v5869 = vld [vmem:[%s6 + $0xb8] sm:$0xf]
      %v5870 = vld [vmem:[%s6 + $0xbc] sm:$0xf]
      %v5871 = vld [vmem:[%s6 + $0xc0] sm:$0xf]
      %v5872 = vld [vmem:[%s6 + $0xc4] sm:$0xf]
      %v5873 = vld [vmem:[%s6 + $0xc8] sm:$0xf]
      %v5874 = vld [vmem:[%s6 + $0xcc] sm:$0xf]
      %v5875 = vld [vmem:[%s6 + $0xd0] sm:$0xf]
      %v5876 = vld [vmem:[%s6 + $0xd4] sm:$0xf]
      %v5877 = vld [vmem:[%s6 + $0xd8] sm:$0xf]
      %v5878 = vld [vmem:[%s6 + $0xdc] sm:$0xf]
      %v5879 = vld [vmem:[%s6 + $0xe0] sm:$0xf]
      %v5880 = vld [vmem:[%s6 + $0xe4] sm:$0xf]
      %v5881 = vld [vmem:[%s6 + $0xe8] sm:$0xf]
      %v5882 = vld [vmem:[%s6 + $0xec] sm:$0xf]
      %v5883 = vld [vmem:[%s6 + $0xf0] sm:$0xf]
      %v5884 = vld [vmem:[%s6 + $0xf4] sm:$0xf]
      %v5885 = vld [vmem:[%s6 + $0xf8] sm:$0xf]
      %v5886 = vld [vmem:[%s6 + $0xfc] sm:$0xf]
      %v5887 = vld [vmem:[%s6 + $0x100] sm:$0xf]
      %v5888 = vld [vmem:[%s6 + $0x104] sm:$0xf]
      %v5889 = vld [vmem:[%s6 + $0x108] sm:$0xf]
      %v5890 = vld [vmem:[%s6 + $0x10c] sm:$0xf]
      %v5891 = vld [vmem:[%s6 + $0x110] sm:$0xf]
      %v5892 = vld [vmem:[%s6 + $0x114] sm:$0xf]
      %v5963 = vunpack.c.l.b16 %v5823
      %v5964 = vunpack.c.l.b16 %v5824
      %v5965 = vunpack.c.l.b16 %v5825
      %v5966 = vunpack.c.l.b16 %v5826
      %v5967 = vunpack.c.l.b16 %v5827
      %v5968 = vunpack.c.l.b16 %v5828
      %v5969 = vunpack.c.l.b16 %v5829
      %v5970 = vunpack.c.l.b16 %v5830
      %v5971 = vunpack.c.l.b16 %v5831
      %v5972 = vunpack.c.l.b16 %v5832
      %v5973 = vunpack.c.l.b16 %v5833
      %v5974 = vunpack.c.l.b16 %v5834
      %v5975 = vunpack.c.l.b16 %v5835
      %v5976 = vunpack.c.l.b16 %v5836
      %v5977 = vunpack.c.l.b16 %v5837
      %v5978 = vunpack.c.l.b16 %v5838
      %v5979 = vunpack.c.l.b16 %v5839
      %v5980 = vunpack.c.l.b16 %v5840
      %v5981 = vunpack.c.l.b16 %v5841
      %v5982 = vunpack.c.l.b16 %v5842
      %v5983 = vunpack.c.l.b16 %v5843
      %v5984 = vunpack.c.l.b16 %v5844
      %v5985 = vunpack.c.l.b16 %v5845
      %v5986 = vunpack.c.l.b16 %v5846
      %v5987 = vunpack.c.l.b16 %v5847
      %v5988 = vunpack.c.l.b16 %v5848
      %v5989 = vunpack.c.l.b16 %v5849
      %v5990 = vunpack.c.l.b16 %v5850
      %v5991 = vunpack.c.l.b16 %v5851
      %v5992 = vunpack.c.l.b16 %v5852
      %v5993 = vunpack.c.l.b16 %v5853
      %v5994 = vunpack.c.l.b16 %v5854
      %v5995 = vunpack.c.l.b16 %v5855
      %v5996 = vunpack.c.l.b16 %v5856
      %v5997 = vunpack.c.l.b16 %v5857
      %v5998 = vunpack.c.l.b16 %v5858
      %v5999 = vunpack.c.l.b16 %v5859
      %v6000 = vunpack.c.l.b16 %v5860
      %v6001 = vunpack.c.l.b16 %v5861
      %v6002 = vunpack.c.l.b16 %v5862
      %v6003 = vunpack.c.l.b16 %v5863
      %v6004 = vunpack.c.l.b16 %v5864
      %v6005 = vunpack.c.l.b16 %v5865
      %v6006 = vunpack.c.l.b16 %v5866
      %v6007 = vunpack.c.l.b16 %v5867
      %v6008 = vunpack.c.l.b16 %v5868
      %v6009 = vunpack.c.l.b16 %v5869
      %v6010 = vunpack.c.l.b16 %v5870
      %v6011 = vunpack.c.l.b16 %v5871
      %v6012 = vunpack.c.l.b16 %v5872
      %v6013 = vunpack.c.l.b16 %v5873
      %v6014 = vunpack.c.l.b16 %v5874
      %v6015 = vunpack.c.l.b16 %v5875
      %v6016 = vunpack.c.l.b16 %v5876
      %v6017 = vunpack.c.l.b16 %v5877
      %v6018 = vunpack.c.l.b16 %v5878
      %v6019 = vunpack.c.l.b16 %v5879
      %v6020 = vunpack.c.l.b16 %v5880
      %v6021 = vunpack.c.l.b16 %v5881
      %v6022 = vunpack.c.l.b16 %v5882
      %v6023 = vunpack.c.l.b16 %v5883
      %v6024 = vunpack.c.l.b16 %v5884
      %v6025 = vunpack.c.l.b16 %v5885
      %v6026 = vunpack.c.l.b16 %v5886
      %v6027 = vunpack.c.l.b16 %v5887
      %v6028 = vunpack.c.l.b16 %v5888
      %v6029 = vunpack.c.l.b16 %v5889
      %v6030 = vunpack.c.l.b16 %v5890
      %v6031 = vunpack.c.l.b16 %v5891
      %v6032 = vunpack.c.l.b16 %v5892
      %v6033 = vpack.c.b16 %v5964, %v5963
      %v6034 = vpack.c.b16 %v5966, %v5965
      %v6035 = vpack.c.b16 %v5968, %v5967
      %v6036 = vpack.c.b16 %v5970, %v5969
      %v6037 = vpack.c.b16 %v5972, %v5971
      %v6038 = vpack.c.b16 %v5974, %v5973
      %v6039 = vpack.c.b16 %v5976, %v5975
      %v6040 = vpack.c.b16 %v5978, %v5977
      %v6041 = vpack.c.b16 %v5980, %v5979
      %v6042 = vpack.c.b16 %v5982, %v5981
      %v6043 = vpack.c.b16 %v5984, %v5983
      %v6044 = vpack.c.b16 %v5986, %v5985
      %v6045 = vpack.c.b16 %v5988, %v5987
      %v6046 = vpack.c.b16 %v5990, %v5989
      %v6047 = vpack.c.b16 %v5992, %v5991
      %v6048 = vpack.c.b16 %v5994, %v5993
      %v6049 = vpack.c.b16 %v5996, %v5995
      %v6050 = vpack.c.b16 %v5998, %v5997
      %v6051 = vpack.c.b16 %v6000, %v5999
      %v6052 = vpack.c.b16 %v6002, %v6001
      %v6053 = vpack.c.b16 %v6004, %v6003
      %v6054 = vpack.c.b16 %v6006, %v6005
      %v6055 = vpack.c.b16 %v6008, %v6007
      %v6056 = vpack.c.b16 %v6010, %v6009
      %v6057 = vpack.c.b16 %v6012, %v6011
      %v6058 = vpack.c.b16 %v6014, %v6013
      %v6059 = vpack.c.b16 %v6016, %v6015
      %v6060 = vpack.c.b16 %v6018, %v6017
      %v6061 = vpack.c.b16 %v6020, %v6019
      %v6062 = vpack.c.b16 %v6022, %v6021
      %v6063 = vpack.c.b16 %v6024, %v6023
      %v6064 = vpack.c.b16 %v6026, %v6025
      %v6065 = vpack.c.b16 %v6028, %v6027
      %v6066 = vpack.c.b16 %v6030, %v6029
      %v6067 = vpack.c.b16 %v6032, %v6031
      %vm6068 = vcmask 916480
      %v6070 = vsel %vm6068, %v6033, 0
      %v6073 = vsel %vm6068, %v6034, 0
      %v6076 = vsel %vm6068, %v6035, 0
      %v6079 = vsel %vm6068, %v6036, 0
      %v6082 = vsel %vm6068, %v6037, 0
      %v6085 = vsel %vm6068, %v6038, 0
      %v6088 = vsel %vm6068, %v6039, 0
      %v6091 = vsel %vm6068, %v6040, 0
      %v6094 = vsel %vm6068, %v6041, 0
      %v6097 = vsel %vm6068, %v6042, 0
      %v6100 = vsel %vm6068, %v6043, 0
      %v6103 = vsel %vm6068, %v6044, 0
      %v6106 = vsel %vm6068, %v6045, 0
      %v6109 = vsel %vm6068, %v6046, 0
      %v6112 = vsel %vm6068, %v6047, 0
      %v6115 = vsel %vm6068, %v6048, 0
      %v6118 = vsel %vm6068, %v6049, 0
      %v6121 = vsel %vm6068, %v6050, 0
      %v6124 = vsel %vm6068, %v6051, 0
      %v6127 = vsel %vm6068, %v6052, 0
      %v6130 = vsel %vm6068, %v6053, 0
      %v6133 = vsel %vm6068, %v6054, 0
      %v6136 = vsel %vm6068, %v6055, 0
      %v6139 = vsel %vm6068, %v6056, 0
      %v6142 = vsel %vm6068, %v6057, 0
      %v6145 = vsel %vm6068, %v6058, 0
      %v6148 = vsel %vm6068, %v6059, 0
      %v6151 = vsel %vm6068, %v6060, 0
      %v6154 = vsel %vm6068, %v6061, 0
      %v6157 = vsel %vm6068, %v6062, 0
      %v6160 = vsel %vm6068, %v6063, 0
      %v6163 = vsel %vm6068, %v6064, 0
      %v6166 = vsel %vm6068, %v6065, 0
      %v6169 = vsel %vm6068, %v6066, 0
      %v6172 = vsel %vm6068, %v6067, 0
      %6174 = vmatpush.bf16.msra.mxu0 0
      %6175 = vmatpush.bf16.msra.mxu0 %v5821
      %6176 = vmatpush.bf16.msra.mxu0 %v5819
      %6177 = vmatpush.bf16.msra.mxu0 %v5817
      %6178 = vmatpush.bf16.msra.mxu0 %v5815
      %6179 = vmatpush.bf16.msra.mxu0 %v5813
      %6180 = vmatpush.bf16.msra.mxu0 %v5811
      %6181 = vmatpush.bf16.msra.mxu0 %v5809
      %6182 = vmatmul.bf16.gmra.mxu0 %v6070
      %v6183 = vpop.f32.mrf.mxu0
      %v6184 = vadd.f32 0.0, %v6183
      %v6185 = vpop.f32.mrf.mxu0
      %v6186 = vadd.f32 0.0, %v6185
      %6187 = vmatmul.bf16.gmra.mxu0 %v6073
      %v6188 = vpop.f32.mrf.mxu0
      %v6189 = vadd.f32 0.0, %v6188
      %v6190 = vpop.f32.mrf.mxu0
      %v6191 = vadd.f32 0.0, %v6190
      %6192 = vmatmul.bf16.gmra.mxu0 %v6076
      %v6193 = vpop.f32.mrf.mxu0
      %v6194 = vadd.f32 0.0, %v6193
      %v6195 = vpop.f32.mrf.mxu0
      %v6196 = vadd.f32 0.0, %v6195
      %6197 = vmatmul.bf16.gmra.mxu0 %v6079
      %v6198 = vpop.f32.mrf.mxu0
      %v6199 = vadd.f32 0.0, %v6198
      %v6200 = vpop.f32.mrf.mxu0
      %v6201 = vadd.f32 0.0, %v6200
      %6202 = vmatmul.bf16.gmra.mxu0 %v6082
      %v6203 = vpop.f32.mrf.mxu0
      %v6204 = vadd.f32 0.0, %v6203
      %v6205 = vpop.f32.mrf.mxu0
      %v6206 = vadd.f32 0.0, %v6205
      %6207 = vmatmul.bf16.gmra.mxu0 %v6085
      %v6208 = vpop.f32.mrf.mxu0
      %v6209 = vadd.f32 0.0, %v6208
      %v6210 = vpop.f32.mrf.mxu0
      %v6211 = vadd.f32 0.0, %v6210
      %6212 = vmatmul.bf16.gmra.mxu0 %v6088
      %v6213 = vpop.f32.mrf.mxu0
      %v6214 = vadd.f32 0.0, %v6213
      %v6215 = vpop.f32.mrf.mxu0
      %v6216 = vadd.f32 0.0, %v6215
      %6217 = vmatmul.bf16.gmra.mxu0 %v6091
      %v6218 = vpop.f32.mrf.mxu0
      %v6219 = vadd.f32 0.0, %v6218
      %v6220 = vpop.f32.mrf.mxu0
      %v6221 = vadd.f32 0.0, %v6220
      %6222 = vmatmul.bf16.gmra.mxu0 %v6094
      %v6223 = vpop.f32.mrf.mxu0
      %v6224 = vadd.f32 0.0, %v6223
      %v6225 = vpop.f32.mrf.mxu0
      %v6226 = vadd.f32 0.0, %v6225
      %6227 = vmatmul.bf16.gmra.mxu0 %v6097
      %v6228 = vpop.f32.mrf.mxu0
      %v6229 = vadd.f32 0.0, %v6228
      %v6230 = vpop.f32.mrf.mxu0
      %v6231 = vadd.f32 0.0, %v6230
      %6232 = vmatmul.bf16.gmra.mxu0 %v6100
      %v6233 = vpop.f32.mrf.mxu0
      %v6234 = vadd.f32 0.0, %v6233
      %v6235 = vpop.f32.mrf.mxu0
      %v6236 = vadd.f32 0.0, %v6235
      %6237 = vmatmul.bf16.gmra.mxu0 %v6103
      %v6238 = vpop.f32.mrf.mxu0
      %v6239 = vadd.f32 0.0, %v6238
      %v6240 = vpop.f32.mrf.mxu0
      %v6241 = vadd.f32 0.0, %v6240
      %6242 = vmatmul.bf16.gmra.mxu0 %v6106
      %v6243 = vpop.f32.mrf.mxu0
      %v6244 = vadd.f32 0.0, %v6243
      %v6245 = vpop.f32.mrf.mxu0
      %v6246 = vadd.f32 0.0, %v6245
      %6247 = vmatmul.bf16.gmra.mxu0 %v6109
      %v6248 = vpop.f32.mrf.mxu0
      %v6249 = vadd.f32 0.0, %v6248
      %v6250 = vpop.f32.mrf.mxu0
      %v6251 = vadd.f32 0.0, %v6250
      %6252 = vmatmul.bf16.gmra.mxu0 %v6112
      %v6253 = vpop.f32.mrf.mxu0
      %v6254 = vadd.f32 0.0, %v6253
      %v6255 = vpop.f32.mrf.mxu0
      %v6256 = vadd.f32 0.0, %v6255
      %6257 = vmatmul.bf16.gmra.mxu0 %v6115
      %v6258 = vpop.f32.mrf.mxu0
      %v6259 = vadd.f32 0.0, %v6258
      %v6260 = vpop.f32.mrf.mxu0
      %v6261 = vadd.f32 0.0, %v6260
      %6262 = vmatmul.bf16.gmra.mxu0 %v6118
      %v6263 = vpop.f32.mrf.mxu0
      %v6264 = vadd.f32 0.0, %v6263
      %v6265 = vpop.f32.mrf.mxu0
      %v6266 = vadd.f32 0.0, %v6265
      %6267 = vmatmul.bf16.gmra.mxu0 %v6121
      %v6268 = vpop.f32.mrf.mxu0
      %v6269 = vadd.f32 0.0, %v6268
      %v6270 = vpop.f32.mrf.mxu0
      %v6271 = vadd.f32 0.0, %v6270
      %6272 = vmatmul.bf16.gmra.mxu0 %v6124
      %v6273 = vpop.f32.mrf.mxu0
      %v6274 = vadd.f32 0.0, %v6273
      %v6275 = vpop.f32.mrf.mxu0
      %v6276 = vadd.f32 0.0, %v6275
      %6277 = vmatmul.bf16.gmra.mxu0 %v6127
      %v6278 = vpop.f32.mrf.mxu0
      %v6279 = vadd.f32 0.0, %v6278
      %v6280 = vpop.f32.mrf.mxu0
      %v6281 = vadd.f32 0.0, %v6280
      %6282 = vmatmul.bf16.gmra.mxu0 %v6130
      %v6283 = vpop.f32.mrf.mxu0
      %v6284 = vadd.f32 0.0, %v6283
      %v6285 = vpop.f32.mrf.mxu0
      %v6286 = vadd.f32 0.0, %v6285
      %6287 = vmatmul.bf16.gmra.mxu0 %v6133
      %v6288 = vpop.f32.mrf.mxu0
      %v6289 = vadd.f32 0.0, %v6288
      %v6290 = vpop.f32.mrf.mxu0
      %v6291 = vadd.f32 0.0, %v6290
      %6292 = vmatmul.bf16.gmra.mxu0 %v6136
      %v6293 = vpop.f32.mrf.mxu0
      %v6294 = vadd.f32 0.0, %v6293
      %v6295 = vpop.f32.mrf.mxu0
      %v6296 = vadd.f32 0.0, %v6295
      %6297 = vmatmul.bf16.gmra.mxu0 %v6139
      %v6298 = vpop.f32.mrf.mxu0
      %v6299 = vadd.f32 0.0, %v6298
      %v6300 = vpop.f32.mrf.mxu0
      %v6301 = vadd.f32 0.0, %v6300
      %6302 = vmatmul.bf16.gmra.mxu0 %v6142
      %v6303 = vpop.f32.mrf.mxu0
      %v6304 = vadd.f32 0.0, %v6303
      %v6305 = vpop.f32.mrf.mxu0
      %v6306 = vadd.f32 0.0, %v6305
      %6307 = vmatmul.bf16.gmra.mxu0 %v6145
      %v6308 = vpop.f32.mrf.mxu0
      %v6309 = vadd.f32 0.0, %v6308
      %v6310 = vpop.f32.mrf.mxu0
      %v6311 = vadd.f32 0.0, %v6310
      %6312 = vmatmul.bf16.gmra.mxu0 %v6148
      %v6313 = vpop.f32.mrf.mxu0
      %v6314 = vadd.f32 0.0, %v6313
      %v6315 = vpop.f32.mrf.mxu0
      %v6316 = vadd.f32 0.0, %v6315
      %6317 = vmatmul.bf16.gmra.mxu0 %v6151
      %v6318 = vpop.f32.mrf.mxu0
      %v6319 = vadd.f32 0.0, %v6318
      %v6320 = vpop.f32.mrf.mxu0
      %v6321 = vadd.f32 0.0, %v6320
      %6322 = vmatmul.bf16.gmra.mxu0 %v6154
      %v6323 = vpop.f32.mrf.mxu0
      %v6324 = vadd.f32 0.0, %v6323
      %v6325 = vpop.f32.mrf.mxu0
      %v6326 = vadd.f32 0.0, %v6325
      %6327 = vmatmul.bf16.gmra.mxu0 %v6157
      %v6328 = vpop.f32.mrf.mxu0
      %v6329 = vadd.f32 0.0, %v6328
      %v6330 = vpop.f32.mrf.mxu0
      %v6331 = vadd.f32 0.0, %v6330
      %6332 = vmatmul.bf16.gmra.mxu0 %v6160
      %v6333 = vpop.f32.mrf.mxu0
      %v6334 = vadd.f32 0.0, %v6333
      %v6335 = vpop.f32.mrf.mxu0
      %v6336 = vadd.f32 0.0, %v6335
      %6337 = vmatmul.bf16.gmra.mxu0 %v6163
      %v6338 = vpop.f32.mrf.mxu0
      %v6339 = vadd.f32 0.0, %v6338
      %v6340 = vpop.f32.mrf.mxu0
      %v6341 = vadd.f32 0.0, %v6340
      %6342 = vmatmul.bf16.gmra.mxu0 %v6166
      %v6343 = vpop.f32.mrf.mxu0
      %v6344 = vadd.f32 0.0, %v6343
      %v6345 = vpop.f32.mrf.mxu0
      %v6346 = vadd.f32 0.0, %v6345
      %6347 = vmatmul.bf16.gmra.mxu0 %v6169
      %v6348 = vpop.f32.mrf.mxu0
      %v6349 = vadd.f32 0.0, %v6348
      %v6350 = vpop.f32.mrf.mxu0
      %v6351 = vadd.f32 0.0, %v6350
      %6352 = vmatmul.bf16.gmra.mxu0 %v6172
      %v6353 = vpop.f32.mrf.mxu0
      %v6354 = vadd.f32 0.0, %v6353
      %v6355 = vpop.f32.mrf.mxu0
      %v6356 = vadd.f32 0.0, %v6355
      %6357 = vdwg.mxu0
      %6358 = vmatpush.bf16.msra.mxu0 0
      %6359 = vmatpush.bf16.msra.mxu0 %v5822
      %6360 = vmatpush.bf16.msra.mxu0 %v5820
      %6361 = vmatpush.bf16.msra.mxu0 %v5818
      %6362 = vmatpush.bf16.msra.mxu0 %v5816
      %6363 = vmatpush.bf16.msra.mxu0 %v5814
      %6364 = vmatpush.bf16.msra.mxu0 %v5812
      %6365 = vmatpush.bf16.msra.mxu0 %v5810
      %6366 = vmatmul.bf16.gmra.mxu0 %v6070
      %v6367 = vpop.f32.mrf.mxu0
      %v6368 = vadd.f32 0.0, %v6367
      %v6369 = vpop.f32.mrf.mxu0
      %v6370 = vadd.f32 0.0, %v6369
      %6371 = vmatmul.bf16.gmra.mxu0 %v6073
      %v6372 = vpop.f32.mrf.mxu0
      %v6373 = vadd.f32 0.0, %v6372
      %v6374 = vpop.f32.mrf.mxu0
      %v6375 = vadd.f32 0.0, %v6374
      %6376 = vmatmul.bf16.gmra.mxu0 %v6076
      %v6377 = vpop.f32.mrf.mxu0
      %v6378 = vadd.f32 0.0, %v6377
      %v6379 = vpop.f32.mrf.mxu0
      %v6380 = vadd.f32 0.0, %v6379
      %6381 = vmatmul.bf16.gmra.mxu0 %v6079
      %v6382 = vpop.f32.mrf.mxu0
      %v6383 = vadd.f32 0.0, %v6382
      %v6384 = vpop.f32.mrf.mxu0
      %v6385 = vadd.f32 0.0, %v6384
      %6386 = vmatmul.bf16.gmra.mxu0 %v6082
      %v6387 = vpop.f32.mrf.mxu0
      %v6388 = vadd.f32 0.0, %v6387
      %v6389 = vpop.f32.mrf.mxu0
      %v6390 = vadd.f32 0.0, %v6389
      %6391 = vmatmul.bf16.gmra.mxu0 %v6085
      %v6392 = vpop.f32.mrf.mxu0
      %v6393 = vadd.f32 0.0, %v6392
      %v6394 = vpop.f32.mrf.mxu0
      %v6395 = vadd.f32 0.0, %v6394
      %6396 = vmatmul.bf16.gmra.mxu0 %v6088
      %v6397 = vpop.f32.mrf.mxu0
      %v6398 = vadd.f32 0.0, %v6397
      %v6399 = vpop.f32.mrf.mxu0
      %v6400 = vadd.f32 0.0, %v6399
      %6401 = vmatmul.bf16.gmra.mxu0 %v6091
      %v6402 = vpop.f32.mrf.mxu0
      %v6403 = vadd.f32 0.0, %v6402
      %v6404 = vpop.f32.mrf.mxu0
      %v6405 = vadd.f32 0.0, %v6404
      %6406 = vmatmul.bf16.gmra.mxu0 %v6094
      %v6407 = vpop.f32.mrf.mxu0
      %v6408 = vadd.f32 0.0, %v6407
      %v6409 = vpop.f32.mrf.mxu0
      %v6410 = vadd.f32 0.0, %v6409
      %6411 = vmatmul.bf16.gmra.mxu0 %v6097
      %v6412 = vpop.f32.mrf.mxu0
      %v6413 = vadd.f32 0.0, %v6412
      %v6414 = vpop.f32.mrf.mxu0
      %v6415 = vadd.f32 0.0, %v6414
      %6416 = vmatmul.bf16.gmra.mxu0 %v6100
      %v6417 = vpop.f32.mrf.mxu0
      %v6418 = vadd.f32 0.0, %v6417
      %v6419 = vpop.f32.mrf.mxu0
      %v6420 = vadd.f32 0.0, %v6419
      %6421 = vmatmul.bf16.gmra.mxu0 %v6103
      %v6422 = vpop.f32.mrf.mxu0
      %v6423 = vadd.f32 0.0, %v6422
      %v6424 = vpop.f32.mrf.mxu0
      %v6425 = vadd.f32 0.0, %v6424
      %6426 = vmatmul.bf16.gmra.mxu0 %v6106
      %v6427 = vpop.f32.mrf.mxu0
      %v6428 = vadd.f32 0.0, %v6427
      %v6429 = vpop.f32.mrf.mxu0
      %v6430 = vadd.f32 0.0, %v6429
      %6431 = vmatmul.bf16.gmra.mxu0 %v6109
      %v6432 = vpop.f32.mrf.mxu0
      %v6433 = vadd.f32 0.0, %v6432
      %v6434 = vpop.f32.mrf.mxu0
      %v6435 = vadd.f32 0.0, %v6434
      %6436 = vmatmul.bf16.gmra.mxu0 %v6112
      %v6437 = vpop.f32.mrf.mxu0
      %v6438 = vadd.f32 0.0, %v6437
      %v6439 = vpop.f32.mrf.mxu0
      %v6440 = vadd.f32 0.0, %v6439
      %6441 = vmatmul.bf16.gmra.mxu0 %v6115
      %v6442 = vpop.f32.mrf.mxu0
      %v6443 = vadd.f32 0.0, %v6442
      %v6444 = vpop.f32.mrf.mxu0
      %v6445 = vadd.f32 0.0, %v6444
      %6446 = vmatmul.bf16.gmra.mxu0 %v6118
      %v6447 = vpop.f32.mrf.mxu0
      %v6448 = vadd.f32 0.0, %v6447
      %v6449 = vpop.f32.mrf.mxu0
      %v6450 = vadd.f32 0.0, %v6449
      %6451 = vmatmul.bf16.gmra.mxu0 %v6121
      %v6452 = vpop.f32.mrf.mxu0
      %v6453 = vadd.f32 0.0, %v6452
      %v6454 = vpop.f32.mrf.mxu0
      %v6455 = vadd.f32 0.0, %v6454
      %6456 = vmatmul.bf16.gmra.mxu0 %v6124
      %v6457 = vpop.f32.mrf.mxu0
      %v6458 = vadd.f32 0.0, %v6457
      %v6459 = vpop.f32.mrf.mxu0
      %v6460 = vadd.f32 0.0, %v6459
      %6461 = vmatmul.bf16.gmra.mxu0 %v6127
      %v6462 = vpop.f32.mrf.mxu0
      %v6463 = vadd.f32 0.0, %v6462
      %v6464 = vpop.f32.mrf.mxu0
      %v6465 = vadd.f32 0.0, %v6464
      %6466 = vmatmul.bf16.gmra.mxu0 %v6130
      %v6467 = vpop.f32.mrf.mxu0
      %v6468 = vadd.f32 0.0, %v6467
      %v6469 = vpop.f32.mrf.mxu0
      %v6470 = vadd.f32 0.0, %v6469
      %6471 = vmatmul.bf16.gmra.mxu0 %v6133
      %v6472 = vpop.f32.mrf.mxu0
      %v6473 = vadd.f32 0.0, %v6472
      %v6474 = vpop.f32.mrf.mxu0
      %v6475 = vadd.f32 0.0, %v6474
      %6476 = vmatmul.bf16.gmra.mxu0 %v6136
      %v6477 = vpop.f32.mrf.mxu0
      %v6478 = vadd.f32 0.0, %v6477
      %v6479 = vpop.f32.mrf.mxu0
      %v6480 = vadd.f32 0.0, %v6479
      %6481 = vmatmul.bf16.gmra.mxu0 %v6139
      %v6482 = vpop.f32.mrf.mxu0
      %v6483 = vadd.f32 0.0, %v6482
      %v6484 = vpop.f32.mrf.mxu0
      %v6485 = vadd.f32 0.0, %v6484
      %6486 = vmatmul.bf16.gmra.mxu0 %v6142
      %v6487 = vpop.f32.mrf.mxu0
      %v6488 = vadd.f32 0.0, %v6487
      %v6489 = vpop.f32.mrf.mxu0
      %v6490 = vadd.f32 0.0, %v6489
      %6491 = vmatmul.bf16.gmra.mxu0 %v6145
      %v6492 = vpop.f32.mrf.mxu0
      %v6493 = vadd.f32 0.0, %v6492
      %v6494 = vpop.f32.mrf.mxu0
      %v6495 = vadd.f32 0.0, %v6494
      %6496 = vmatmul.bf16.gmra.mxu0 %v6148
      %v6497 = vpop.f32.mrf.mxu0
      %v6498 = vadd.f32 0.0, %v6497
      %v6499 = vpop.f32.mrf.mxu0
      %v6500 = vadd.f32 0.0, %v6499
      %6501 = vmatmul.bf16.gmra.mxu0 %v6151
      %v6502 = vpop.f32.mrf.mxu0
      %v6503 = vadd.f32 0.0, %v6502
      %v6504 = vpop.f32.mrf.mxu0
      %v6505 = vadd.f32 0.0, %v6504
      %6506 = vmatmul.bf16.gmra.mxu0 %v6154
      %v6507 = vpop.f32.mrf.mxu0
      %v6508 = vadd.f32 0.0, %v6507
      %v6509 = vpop.f32.mrf.mxu0
      %v6510 = vadd.f32 0.0, %v6509
      %6511 = vmatmul.bf16.gmra.mxu0 %v6157
      %v6512 = vpop.f32.mrf.mxu0
      %v6513 = vadd.f32 0.0, %v6512
      %v6514 = vpop.f32.mrf.mxu0
      %v6515 = vadd.f32 0.0, %v6514
      %6516 = vmatmul.bf16.gmra.mxu0 %v6160
      %v6517 = vpop.f32.mrf.mxu0
      %v6518 = vadd.f32 0.0, %v6517
      %v6519 = vpop.f32.mrf.mxu0
      %v6520 = vadd.f32 0.0, %v6519
      %6521 = vmatmul.bf16.gmra.mxu0 %v6163
      %v6522 = vpop.f32.mrf.mxu0
      %v6523 = vadd.f32 0.0, %v6522
      %v6524 = vpop.f32.mrf.mxu0
      %v6525 = vadd.f32 0.0, %v6524
      %6526 = vmatmul.bf16.gmra.mxu0 %v6166
      %v6527 = vpop.f32.mrf.mxu0
      %v6528 = vadd.f32 0.0, %v6527
      %v6529 = vpop.f32.mrf.mxu0
      %v6530 = vadd.f32 0.0, %v6529
      %6531 = vmatmul.bf16.gmra.mxu0 %v6169
      %v6532 = vpop.f32.mrf.mxu0
      %v6533 = vadd.f32 0.0, %v6532
      %v6534 = vpop.f32.mrf.mxu0
      %v6535 = vadd.f32 0.0, %v6534
      %6536 = vmatmul.bf16.gmra.mxu0 %v6172
      %v6537 = vpop.f32.mrf.mxu0
      %v6538 = vadd.f32 0.0, %v6537
      %v6539 = vpop.f32.mrf.mxu0
      %v6540 = vadd.f32 0.0, %v6539
      %6541 = vdwg.mxu0
      %v6542 = vpack.c.bf16 %v6368, %v6184
      %v6543 = vpack.c.bf16 %v6370, %v6186
      %v6544 = vpack.c.bf16 %v6373, %v6189
      %v6545 = vpack.c.bf16 %v6375, %v6191
      %v6546 = vpack.c.bf16 %v6378, %v6194
      %v6547 = vpack.c.bf16 %v6380, %v6196
      %v6548 = vpack.c.bf16 %v6383, %v6199
      %v6549 = vpack.c.bf16 %v6385, %v6201
      %v6550 = vpack.c.bf16 %v6388, %v6204
      %v6551 = vpack.c.bf16 %v6390, %v6206
      %v6552 = vpack.c.bf16 %v6393, %v6209
      %v6553 = vpack.c.bf16 %v6395, %v6211
      %v6554 = vpack.c.bf16 %v6398, %v6214
      %v6555 = vpack.c.bf16 %v6400, %v6216
      %v6556 = vpack.c.bf16 %v6403, %v6219
      %v6557 = vpack.c.bf16 %v6405, %v6221
      %v6558 = vpack.c.bf16 %v6408, %v6224
      %v6559 = vpack.c.bf16 %v6410, %v6226
      %v6560 = vpack.c.bf16 %v6413, %v6229
      %v6561 = vpack.c.bf16 %v6415, %v6231
      %v6562 = vpack.c.bf16 %v6418, %v6234
      %v6563 = vpack.c.bf16 %v6420, %v6236
      %v6564 = vpack.c.bf16 %v6423, %v6239
      %v6565 = vpack.c.bf16 %v6425, %v6241
      %v6566 = vpack.c.bf16 %v6428, %v6244
      %v6567 = vpack.c.bf16 %v6430, %v6246
      %v6568 = vpack.c.bf16 %v6433, %v6249
      %v6569 = vpack.c.bf16 %v6435, %v6251
      %v6570 = vpack.c.bf16 %v6438, %v6254
      %v6571 = vpack.c.bf16 %v6440, %v6256
      %v6572 = vpack.c.bf16 %v6443, %v6259
      %v6573 = vpack.c.bf16 %v6445, %v6261
      %v6574 = vpack.c.bf16 %v6448, %v6264
      %v6575 = vpack.c.bf16 %v6450, %v6266
      %v6576 = vpack.c.bf16 %v6453, %v6269
      %v6577 = vpack.c.bf16 %v6455, %v6271
      %v6578 = vpack.c.bf16 %v6458, %v6274
      %v6579 = vpack.c.bf16 %v6460, %v6276
      %v6580 = vpack.c.bf16 %v6463, %v6279
      %v6581 = vpack.c.bf16 %v6465, %v6281
      %v6582 = vpack.c.bf16 %v6468, %v6284
      %v6583 = vpack.c.bf16 %v6470, %v6286
      %v6584 = vpack.c.bf16 %v6473, %v6289
      %v6585 = vpack.c.bf16 %v6475, %v6291
      %v6586 = vpack.c.bf16 %v6478, %v6294
      %v6587 = vpack.c.bf16 %v6480, %v6296
      %v6588 = vpack.c.bf16 %v6483, %v6299
      %v6589 = vpack.c.bf16 %v6485, %v6301
      %v6590 = vpack.c.bf16 %v6488, %v6304
      %v6591 = vpack.c.bf16 %v6490, %v6306
      %v6592 = vpack.c.bf16 %v6493, %v6309
      %v6593 = vpack.c.bf16 %v6495, %v6311
      %v6594 = vpack.c.bf16 %v6498, %v6314
      %v6595 = vpack.c.bf16 %v6500, %v6316
      %v6596 = vpack.c.bf16 %v6503, %v6319
      %v6597 = vpack.c.bf16 %v6505, %v6321
      %v6598 = vpack.c.bf16 %v6508, %v6324
      %v6599 = vpack.c.bf16 %v6510, %v6326
      %v6600 = vpack.c.bf16 %v6513, %v6329
      %v6601 = vpack.c.bf16 %v6515, %v6331
      %v6602 = vpack.c.bf16 %v6518, %v6334
      %v6603 = vpack.c.bf16 %v6520, %v6336
      %v6604 = vpack.c.bf16 %v6523, %v6339
      %v6605 = vpack.c.bf16 %v6525, %v6341
      %v6606 = vpack.c.bf16 %v6528, %v6344
      %v6607 = vpack.c.bf16 %v6530, %v6346
      %v6608 = vpack.c.bf16 %v6533, %v6349
      %v6609 = vpack.c.bf16 %v6535, %v6351
      %v6610 = vpack.c.bf16 %v6538, %v6354
      %v6611 = vpack.c.bf16 %v6540, %v6356
      %v6612 = vld [vmem:[%s7] sm:$0xff]
      %v6613 = vld [vmem:[%s7 + $0x8] sm:$0xff]
      %v6614 = vld [vmem:[%s7 + $0x10] sm:$0xff]
      %v6615 = vld [vmem:[%s7 + $0x18] sm:$0xff]
      %v6616 = vld [vmem:[%s7 + $0x20] sm:$0xff]
      %v6617 = vld [vmem:[%s7 + $0x28] sm:$0xff]
      %v6618 = vld [vmem:[%s7 + $0x30] sm:$0xff]
      %v6619 = vld [vmem:[%s7 + $0x38] sm:$0xff]
      %v6620 = vld [vmem:[%s7 + $0x40] sm:$0xff]
      %v6621 = vld [vmem:[%s7 + $0x48] sm:$0xff]
      %v6622 = vld [vmem:[%s7 + $0x50] sm:$0xff]
      %v6623 = vld [vmem:[%s7 + $0x58] sm:$0xff]
      %v6624 = vld [vmem:[%s7 + $0x60] sm:$0xff]
      %v6625 = vld [vmem:[%s7 + $0x68] sm:$0xff]
      %v6626 = vld [vmem:[%s7 + $0x70] sm:$0xff]
      %v6627 = vld [vmem:[%s7 + $0x78] sm:$0xff]
      %v6628 = vld [vmem:[%s7 + $0x80] sm:$0xff]
      %v6629 = vld [vmem:[%s7 + $0x88] sm:$0xff]
      %v6630 = vld [vmem:[%s7 + $0x90] sm:$0xff]
      %v6631 = vld [vmem:[%s7 + $0x98] sm:$0xff]
      %v6632 = vld [vmem:[%s7 + $0xa0] sm:$0xff]
      %v6633 = vld [vmem:[%s7 + $0xa8] sm:$0xff]
      %v6634 = vld [vmem:[%s7 + $0xb0] sm:$0xff]
      %v6635 = vld [vmem:[%s7 + $0xb8] sm:$0xff]
      %v6636 = vld [vmem:[%s7 + $0xc0] sm:$0xff]
      %v6637 = vld [vmem:[%s7 + $0xc8] sm:$0xff]
      %v6638 = vld [vmem:[%s7 + $0xd0] sm:$0xff]
      %v6639 = vld [vmem:[%s7 + $0xd8] sm:$0xff]
      %v6640 = vld [vmem:[%s7 + $0xe0] sm:$0xff]
      %v6641 = vld [vmem:[%s7 + $0xe8] sm:$0xff]
      %v6642 = vld [vmem:[%s7 + $0xf0] sm:$0xff]
      %v6643 = vld [vmem:[%s7 + $0xf8] sm:$0xff]
      %v6644 = vld [vmem:[%s7 + $0x100] sm:$0xff]
      %v6645 = vld [vmem:[%s7 + $0x108] sm:$0xff]
      %v6646 = vld [vmem:[%s7 + $0x110] sm:$0xff]
      %v6647 = vld [vmem:[%s7 + $0x118] sm:$0xff]
      %v6648 = vld [vmem:[%s7 + $0x120] sm:$0xff]
      %v6649 = vld [vmem:[%s7 + $0x128] sm:$0xff]
      %v6650 = vld [vmem:[%s7 + $0x130] sm:$0xff]
      %v6651 = vld [vmem:[%s7 + $0x138] sm:$0xff]
      %v6652 = vld [vmem:[%s7 + $0x140] sm:$0xff]
      %v6653 = vld [vmem:[%s7 + $0x148] sm:$0xff]
      %v6654 = vld [vmem:[%s7 + $0x150] sm:$0xff]
      %v6655 = vld [vmem:[%s7 + $0x158] sm:$0xff]
      %v6656 = vld [vmem:[%s7 + $0x160] sm:$0xff]
      %v6657 = vld [vmem:[%s7 + $0x168] sm:$0xff]
      %v6658 = vld [vmem:[%s7 + $0x170] sm:$0xff]
      %v6659 = vld [vmem:[%s7 + $0x178] sm:$0xff]
      %v6660 = vld [vmem:[%s7 + $0x180] sm:$0xff]
      %v6661 = vld [vmem:[%s7 + $0x188] sm:$0xff]
      %v6662 = vld [vmem:[%s7 + $0x190] sm:$0xff]
      %v6663 = vld [vmem:[%s7 + $0x198] sm:$0xff]
      %v6664 = vld [vmem:[%s7 + $0x1a0] sm:$0xff]
      %v6665 = vld [vmem:[%s7 + $0x1a8] sm:$0xff]
      %v6666 = vld [vmem:[%s7 + $0x1b0] sm:$0xff]
      %v6667 = vld [vmem:[%s7 + $0x1b8] sm:$0xff]
      %v6668 = vld [vmem:[%s7 + $0x1c0] sm:$0xff]
      %v6669 = vld [vmem:[%s7 + $0x1c8] sm:$0xff]
      %v6670 = vld [vmem:[%s7 + $0x1d0] sm:$0xff]
      %v6671 = vld [vmem:[%s7 + $0x1d8] sm:$0xff]
      %v6672 = vld [vmem:[%s7 + $0x1e0] sm:$0xff]
      %v6673 = vld [vmem:[%s7 + $0x1e8] sm:$0xff]
      %v6674 = vld [vmem:[%s7 + $0x1f0] sm:$0xff]
      %v6675 = vld [vmem:[%s7 + $0x1f8] sm:$0xff]
      %s6676 = scalar_lea.vmem %s7, 512
      %v6677 = vld [vmem:[%s6676] sm:$0xff]
      %v6678 = vld [vmem:[%s6676 + $0x8] sm:$0xff]
      %v6679 = vld [vmem:[%s6676 + $0x10] sm:$0xff]
      %v6680 = vld [vmem:[%s6676 + $0x18] sm:$0xff]
      %v6681 = vld [vmem:[%s6676 + $0x20] sm:$0xff]
      %v6682 = vld [vmem:[%s6676 + $0x28] sm:$0xff]
      %v6683 = vld [vmem:[%s6676 + $0x30] sm:$0xff]
      %v6684 = vld [vmem:[%s6676 + $0x38] sm:$0xff]
      %v6685 = vld [vmem:[%s6676 + $0x40] sm:$0xff]
      %v6686 = vld [vmem:[%s6676 + $0x48] sm:$0xff]
      %v6687 = vld [vmem:[%s6676 + $0x50] sm:$0xff]
      %v6688 = vld [vmem:[%s6676 + $0x58] sm:$0xff]
      %v6689 = vld [vmem:[%s6676 + $0x60] sm:$0xff]
      %v6690 = vld [vmem:[%s6676 + $0x68] sm:$0xff]
      %v6691 = vld [vmem:[%s6676 + $0x70] sm:$0xff]
      %v6692 = vld [vmem:[%s6676 + $0x78] sm:$0xff]
      %v6693 = vld [vmem:[%s6676 + $0x80] sm:$0xff]
      %v6694 = vld [vmem:[%s6676 + $0x88] sm:$0xff]
      %v6695 = vld [vmem:[%s6676 + $0x90] sm:$0xff]
      %v6696 = vld [vmem:[%s6676 + $0x98] sm:$0xff]
      %v6697 = vld [vmem:[%s6676 + $0xa0] sm:$0xff]
      %v6698 = vld [vmem:[%s6676 + $0xa8] sm:$0xff]
      %v6699 = vld [vmem:[%s6676 + $0xb0] sm:$0xff]
      %v6700 = vld [vmem:[%s6676 + $0xb8] sm:$0xff]
      %v6701 = vld [vmem:[%s6676 + $0xc0] sm:$0xff]
      %v6702 = vld [vmem:[%s6676 + $0xc8] sm:$0xff]
      %v6703 = vld [vmem:[%s6676 + $0xd0] sm:$0xff]
      %v6704 = vld [vmem:[%s6676 + $0xd8] sm:$0xff]
      %v6705 = vld [vmem:[%s6676 + $0xe0] sm:$0xff]
      %v6706 = vld [vmem:[%s6676 + $0xe8] sm:$0xff]
      %v6707 = vld [vmem:[%s6676 + $0xf0] sm:$0xff]
      %v6708 = vld [vmem:[%s6676 + $0xf8] sm:$0xff]
      %v6709 = vld [vmem:[%s6676 + $0x100] sm:$0xff]
      %v6710 = vld [vmem:[%s6676 + $0x108] sm:$0xff]
      %v6711 = vld [vmem:[%s6676 + $0x110] sm:$0xff]
      %v6712 = vld [vmem:[%s6676 + $0x118] sm:$0xff]
      %v6713 = vld [vmem:[%s6676 + $0x120] sm:$0xff]
      %v6714 = vld [vmem:[%s6676 + $0x128] sm:$0xff]
      %v6715 = vld [vmem:[%s6676 + $0x130] sm:$0xff]
      %v6716 = vld [vmem:[%s6676 + $0x138] sm:$0xff]
      %v6717 = vld [vmem:[%s6676 + $0x140] sm:$0xff]
      %v6718 = vld [vmem:[%s6676 + $0x148] sm:$0xff]
      %v6719 = vld [vmem:[%s6676 + $0x150] sm:$0xff]
      %v6720 = vld [vmem:[%s6676 + $0x158] sm:$0xff]
      %v6721 = vld [vmem:[%s6676 + $0x160] sm:$0xff]
      %v6722 = vld [vmem:[%s6676 + $0x168] sm:$0xff]
      %v6723 = vld [vmem:[%s6676 + $0x170] sm:$0xff]
      %v6724 = vld [vmem:[%s6676 + $0x178] sm:$0xff]
      %v6725 = vld [vmem:[%s6676 + $0x180] sm:$0xff]
      %v6726 = vld [vmem:[%s6676 + $0x188] sm:$0xff]
      %v6727 = vld [vmem:[%s6676 + $0x190] sm:$0xff]
      %v6728 = vld [vmem:[%s6676 + $0x198] sm:$0xff]
      %v6729 = vld [vmem:[%s6676 + $0x1a0] sm:$0xff]
      %v6730 = vld [vmem:[%s6676 + $0x1a8] sm:$0xff]
      %v6731 = vld [vmem:[%s6676 + $0x1b0] sm:$0xff]
      %v6732 = vld [vmem:[%s6676 + $0x1b8] sm:$0xff]
      %v6733 = vld [vmem:[%s6676 + $0x1c0] sm:$0xff]
      %v6734 = vld [vmem:[%s6676 + $0x1c8] sm:$0xff]
      %v6735 = vld [vmem:[%s6676 + $0x1d0] sm:$0xff]
      %v6736 = vld [vmem:[%s6676 + $0x1d8] sm:$0xff]
      %v6737 = vld [vmem:[%s6676 + $0x1e0] sm:$0xff]
      %v6738 = vld [vmem:[%s6676 + $0x1e8] sm:$0xff]
      %v6739 = vld [vmem:[%s6676 + $0x1f0] sm:$0xff]
      %v6740 = vld [vmem:[%s6676 + $0x1f8] sm:$0xff]
      %v6755 = vunpack.c.l.b16 %v6556
      %v6756 = vunpack.c.h.b16 %v6556
      %v6757 = vunpack.c.l.b16 %v6557
      %v6758 = vunpack.c.h.b16 %v6557
      %v6759 = vunpack.c.l.b16 %v6558
      %v6760 = vunpack.c.h.b16 %v6558
      %v6761 = vunpack.c.l.b16 %v6559
      %v6762 = vunpack.c.h.b16 %v6559
      %v6763 = vunpack.c.l.b16 %v6560
      %v6764 = vunpack.c.h.b16 %v6560
      %v6765 = vunpack.c.l.b16 %v6561
      %v6766 = vunpack.c.h.b16 %v6561
      %v6767 = vunpack.c.l.b16 %v6562
      %v6768 = vunpack.c.h.b16 %v6562
      %v6769 = vunpack.c.l.b16 %v6563
      %v6770 = vunpack.c.h.b16 %v6563
      %v6771 = vunpack.c.l.b16 %v6564
      %v6772 = vunpack.c.h.b16 %v6564
      %v6773 = vunpack.c.l.b16 %v6565
      %v6774 = vunpack.c.h.b16 %v6565
      %v6775 = vunpack.c.l.b16 %v6566
      %v6776 = vunpack.c.h.b16 %v6566
      %v6777 = vunpack.c.l.b16 %v6567
      %v6778 = vunpack.c.h.b16 %v6567
      %v6779 = vunpack.c.l.b16 %v6568
      %v6780 = vunpack.c.h.b16 %v6568
      %v6781 = vunpack.c.l.b16 %v6569
      %v6782 = vunpack.c.h.b16 %v6569
      %v6783 = vpack.c.b16 %v6757, %v6755
      %v6784 = vpack.c.b16 %v6758, %v6756
      %v6785 = vpack.c.b16 %v6761, %v6759
      %v6786 = vpack.c.b16 %v6762, %v6760
      %v6787 = vpack.c.b16 %v6765, %v6763
      %v6788 = vpack.c.b16 %v6766, %v6764
      %v6789 = vpack.c.b16 %v6769, %v6767
      %v6790 = vpack.c.b16 %v6770, %v6768
      %v6791 = vpack.c.b16 %v6773, %v6771
      %v6792 = vpack.c.b16 %v6774, %v6772
      %v6793 = vpack.c.b16 %v6777, %v6775
      %v6794 = vpack.c.b16 %v6778, %v6776
      %v6795 = vpack.c.b16 %v6781, %v6779
      %v6796 = vpack.c.b16 %v6782, %v6780
      %v6875 = vunpack.c.l.b16 %v6677
      %v6876 = vunpack.c.h.b16 %v6677
      %v6877 = vunpack.c.l.b16 %v6678
      %v6878 = vunpack.c.h.b16 %v6678
      %v6879 = vunpack.c.l.b16 %v6679
      %v6880 = vunpack.c.h.b16 %v6679
      %v6881 = vunpack.c.l.b16 %v6680
      %v6882 = vunpack.c.h.b16 %v6680
      %v6883 = vunpack.c.l.b16 %v6681
      %v6884 = vunpack.c.h.b16 %v6681
      %v6885 = vunpack.c.l.b16 %v6682
      %v6886 = vunpack.c.h.b16 %v6682
      %v6887 = vunpack.c.l.b16 %v6683
      %v6888 = vunpack.c.h.b16 %v6683
      %v6889 = vunpack.c.l.b16 %v6684
      %v6890 = vunpack.c.h.b16 %v6684
      %v6891 = vunpack.c.l.b16 %v6685
      %v6892 = vunpack.c.h.b16 %v6685
      %v6893 = vunpack.c.l.b16 %v6686
      %v6894 = vunpack.c.h.b16 %v6686
      %v6895 = vunpack.c.l.b16 %v6687
      %v6896 = vunpack.c.h.b16 %v6687
      %v6897 = vunpack.c.l.b16 %v6688
      %v6898 = vunpack.c.h.b16 %v6688
      %v6899 = vunpack.c.l.b16 %v6689
      %v6900 = vunpack.c.h.b16 %v6689
      %v6901 = vunpack.c.l.b16 %v6690
      %v6902 = vunpack.c.h.b16 %v6690
      %v6903 = vunpack.c.l.b16 %v6691
      %v6904 = vunpack.c.h.b16 %v6691
      %v6905 = vunpack.c.l.b16 %v6692
      %v6906 = vunpack.c.h.b16 %v6692
      %v6907 = vunpack.c.l.b16 %v6693
      %v6908 = vunpack.c.h.b16 %v6693
      %v6909 = vunpack.c.l.b16 %v6694
      %v6910 = vunpack.c.h.b16 %v6694
      %v6911 = vunpack.c.l.b16 %v6695
      %v6912 = vunpack.c.h.b16 %v6695
      %v6913 = vunpack.c.l.b16 %v6696
      %v6914 = vunpack.c.h.b16 %v6696
      %v6915 = vunpack.c.l.b16 %v6697
      %v6916 = vunpack.c.h.b16 %v6697
      %v6917 = vunpack.c.l.b16 %v6698
      %v6918 = vunpack.c.h.b16 %v6698
      %v6919 = vunpack.c.l.b16 %v6699
      %v6920 = vunpack.c.h.b16 %v6699
      %v6921 = vunpack.c.l.b16 %v6700
      %v6922 = vunpack.c.h.b16 %v6700
      %v6923 = vunpack.c.l.b16 %v6701
      %v6924 = vunpack.c.h.b16 %v6701
      %v6925 = vunpack.c.l.b16 %v6702
      %v6926 = vunpack.c.h.b16 %v6702
      %v6927 = vunpack.c.l.b16 %v6703
      %v6928 = vunpack.c.h.b16 %v6703
      %v6929 = vunpack.c.l.b16 %v6704
      %v6930 = vunpack.c.h.b16 %v6704
      %v6931 = vunpack.c.l.b16 %v6705
      %v6932 = vunpack.c.h.b16 %v6705
      %v6933 = vunpack.c.l.b16 %v6706
      %v6934 = vunpack.c.h.b16 %v6706
      %v6935 = vunpack.c.l.b16 %v6707
      %v6936 = vunpack.c.h.b16 %v6707
      %v6937 = vunpack.c.l.b16 %v6708
      %v6938 = vunpack.c.h.b16 %v6708
      %v6939 = vunpack.c.l.b16 %v6709
      %v6940 = vunpack.c.h.b16 %v6709
      %v6941 = vunpack.c.l.b16 %v6710
      %v6942 = vunpack.c.h.b16 %v6710
      %v6943 = vunpack.c.l.b16 %v6711
      %v6944 = vunpack.c.h.b16 %v6711
      %v6945 = vunpack.c.l.b16 %v6712
      %v6946 = vunpack.c.h.b16 %v6712
      %v6947 = vunpack.c.l.b16 %v6713
      %v6948 = vunpack.c.h.b16 %v6713
      %v6949 = vunpack.c.l.b16 %v6714
      %v6950 = vunpack.c.h.b16 %v6714
      %v6951 = vunpack.c.l.b16 %v6715
      %v6952 = vunpack.c.h.b16 %v6715
      %v6953 = vunpack.c.l.b16 %v6716
      %v6954 = vunpack.c.h.b16 %v6716
      %v6955 = vunpack.c.l.b16 %v6717
      %v6956 = vunpack.c.h.b16 %v6717
      %v6957 = vunpack.c.l.b16 %v6718
      %v6958 = vunpack.c.h.b16 %v6718
      %v6959 = vunpack.c.l.b16 %v6719
      %v6960 = vunpack.c.h.b16 %v6719
      %v6961 = vunpack.c.l.b16 %v6720
      %v6962 = vunpack.c.h.b16 %v6720
      %v6963 = vunpack.c.l.b16 %v6721
      %v6964 = vunpack.c.h.b16 %v6721
      %v6965 = vunpack.c.l.b16 %v6722
      %v6966 = vunpack.c.h.b16 %v6722
      %v6967 = vunpack.c.l.b16 %v6723
      %v6968 = vunpack.c.h.b16 %v6723
      %v6969 = vunpack.c.l.b16 %v6724
      %v6970 = vunpack.c.h.b16 %v6724
      %v6971 = vunpack.c.l.b16 %v6725
      %v6972 = vunpack.c.h.b16 %v6725
      %v6973 = vunpack.c.l.b16 %v6726
      %v6974 = vunpack.c.h.b16 %v6726
      %v6975 = vunpack.c.l.b16 %v6727
      %v6976 = vunpack.c.h.b16 %v6727
      %v6977 = vunpack.c.l.b16 %v6728
      %v6978 = vunpack.c.h.b16 %v6728
      %v6979 = vunpack.c.l.b16 %v6729
      %v6980 = vunpack.c.h.b16 %v6729
      %v6981 = vunpack.c.l.b16 %v6730
      %v6982 = vunpack.c.h.b16 %v6730
      %v6983 = vunpack.c.l.b16 %v6731
      %v6984 = vunpack.c.h.b16 %v6731
      %v6985 = vunpack.c.l.b16 %v6732
      %v6986 = vunpack.c.h.b16 %v6732
      %v6987 = vunpack.c.l.b16 %v6733
      %v6988 = vunpack.c.h.b16 %v6733
      %v6989 = vunpack.c.l.b16 %v6734
      %v6990 = vunpack.c.h.b16 %v6734
      %v6991 = vunpack.c.l.b16 %v6735
      %v6992 = vunpack.c.h.b16 %v6735
      %v6993 = vunpack.c.l.b16 %v6736
      %v6994 = vunpack.c.h.b16 %v6736
      %v6995 = vunpack.c.l.b16 %v6737
      %v6996 = vunpack.c.h.b16 %v6737
      %v6997 = vunpack.c.l.b16 %v6738
      %v6998 = vunpack.c.h.b16 %v6738
      %v6999 = vunpack.c.l.b16 %v6739
      %v7000 = vunpack.c.h.b16 %v6739
      %v7001 = vunpack.c.l.b16 %v6740
      %v7002 = vunpack.c.h.b16 %v6740
      %v7003 = vpack.c.b16 %v6879, %v6875
      %v7004 = vpack.c.b16 %v6880, %v6876
      %v7005 = vpack.c.b16 %v6881, %v6877
      %v7006 = vpack.c.b16 %v6882, %v6878
      %v7007 = vpack.c.b16 %v6887, %v6883
      %v7008 = vpack.c.b16 %v6888, %v6884
      %v7009 = vpack.c.b16 %v6889, %v6885
      %v7010 = vpack.c.b16 %v6890, %v6886
      %v7011 = vpack.c.b16 %v6895, %v6891
      %v7012 = vpack.c.b16 %v6896, %v6892
      %v7013 = vpack.c.b16 %v6897, %v6893
      %v7014 = vpack.c.b16 %v6898, %v6894
      %v7015 = vpack.c.b16 %v6903, %v6899
      %v7016 = vpack.c.b16 %v6904, %v6900
      %v7017 = vpack.c.b16 %v6905, %v6901
      %v7018 = vpack.c.b16 %v6906, %v6902
      %v7019 = vpack.c.b16 %v6911, %v6907
      %v7020 = vpack.c.b16 %v6912, %v6908
      %v7021 = vpack.c.b16 %v6913, %v6909
      %v7022 = vpack.c.b16 %v6914, %v6910
      %v7023 = vpack.c.b16 %v6919, %v6915
      %v7024 = vpack.c.b16 %v6920, %v6916
      %v7025 = vpack.c.b16 %v6921, %v6917
      %v7026 = vpack.c.b16 %v6922, %v6918
      %v7027 = vpack.c.b16 %v6927, %v6923
      %v7028 = vpack.c.b16 %v6928, %v6924
      %v7029 = vpack.c.b16 %v6929, %v6925
      %v7030 = vpack.c.b16 %v6930, %v6926
      %v7031 = vpack.c.b16 %v6935, %v6931
      %v7032 = vpack.c.b16 %v6936, %v6932
      %v7033 = vpack.c.b16 %v6937, %v6933
      %v7034 = vpack.c.b16 %v6938, %v6934
      %v7035 = vpack.c.b16 %v6943, %v6939
      %v7036 = vpack.c.b16 %v6944, %v6940
      %v7037 = vpack.c.b16 %v6945, %v6941
      %v7038 = vpack.c.b16 %v6946, %v6942
      %v7039 = vpack.c.b16 %v6951, %v6947
      %v7040 = vpack.c.b16 %v6952, %v6948
      %v7041 = vpack.c.b16 %v6953, %v6949
      %v7042 = vpack.c.b16 %v6954, %v6950
      %v7043 = vpack.c.b16 %v6959, %v6955
      %v7044 = vpack.c.b16 %v6960, %v6956
      %v7045 = vpack.c.b16 %v6961, %v6957
      %v7046 = vpack.c.b16 %v6962, %v6958
      %v7047 = vpack.c.b16 %v6967, %v6963
      %v7048 = vpack.c.b16 %v6968, %v6964
      %v7049 = vpack.c.b16 %v6969, %v6965
      %v7050 = vpack.c.b16 %v6970, %v6966
      %v7051 = vpack.c.b16 %v6975, %v6971
      %v7052 = vpack.c.b16 %v6976, %v6972
      %v7053 = vpack.c.b16 %v6977, %v6973
      %v7054 = vpack.c.b16 %v6978, %v6974
      %v7055 = vpack.c.b16 %v6983, %v6979
      %v7056 = vpack.c.b16 %v6984, %v6980
      %v7057 = vpack.c.b16 %v6985, %v6981
      %v7058 = vpack.c.b16 %v6986, %v6982
      %v7059 = vpack.c.b16 %v6991, %v6987
      %v7060 = vpack.c.b16 %v6992, %v6988
      %v7061 = vpack.c.b16 %v6993, %v6989
      %v7062 = vpack.c.b16 %v6994, %v6990
      %v7063 = vpack.c.b16 %v6999, %v6995
      %v7064 = vpack.c.b16 %v7000, %v6996
      %v7065 = vpack.c.b16 %v7001, %v6997
      %v7066 = vpack.c.b16 %v7002, %v6998
      %7131 = vmatpush.bf16.msra.mxu0 %v7031
      %7132 = vmatpush.bf16.msra.mxu0 %v7027
      %7133 = vmatpush.bf16.msra.mxu0 %v7023
      %7134 = vmatpush.bf16.msra.mxu0 %v7019
      %7135 = vmatpush.bf16.msra.mxu0 %v7015
      %7136 = vmatpush.bf16.msra.mxu0 %v7011
      %7137 = vmatpush.bf16.msra.mxu0 %v7007
      %7138 = vmatpush.bf16.msra.mxu0 %v7003
      %7139 = vmatmul.bf16.gmra.mxu0 %v6783
      %v7140 = vpop.f32.mrf.mxu0
      %v7141 = vadd.f32 0.0, %v7140
      %v7142 = vpop.f32.mrf.mxu0
      %v7143 = vadd.f32 0.0, %v7142
      %7144 = vmatmul.bf16.gmra.mxu0 %v6785
      %v7145 = vpop.f32.mrf.mxu0
      %v7146 = vadd.f32 0.0, %v7145
      %v7147 = vpop.f32.mrf.mxu0
      %v7148 = vadd.f32 0.0, %v7147
      %7149 = vmatmul.bf16.gmra.mxu0 %v6787
      %v7150 = vpop.f32.mrf.mxu0
      %v7151 = vadd.f32 0.0, %v7150
      %v7152 = vpop.f32.mrf.mxu0
      %v7153 = vadd.f32 0.0, %v7152
      %7154 = vmatmul.bf16.gmra.mxu0 %v6789
      %v7155 = vpop.f32.mrf.mxu0
      %v7156 = vadd.f32 0.0, %v7155
      %v7157 = vpop.f32.mrf.mxu0
      %v7158 = vadd.f32 0.0, %v7157
      %7159 = vmatmul.bf16.gmra.mxu0 %v6791
      %v7160 = vpop.f32.mrf.mxu0
      %v7161 = vadd.f32 0.0, %v7160
      %v7162 = vpop.f32.mrf.mxu0
      %v7163 = vadd.f32 0.0, %v7162
      %7164 = vmatmul.bf16.gmra.mxu0 %v6793
      %v7165 = vpop.f32.mrf.mxu0
      %v7166 = vadd.f32 0.0, %v7165
      %v7167 = vpop.f32.mrf.mxu0
      %v7168 = vadd.f32 0.0, %v7167
      %7169 = vmatmul.bf16.gmra.mxu0 %v6795
      %v7170 = vpop.f32.mrf.mxu0
      %v7171 = vadd.f32 0.0, %v7170
      %v7172 = vpop.f32.mrf.mxu0
      %v7173 = vadd.f32 0.0, %v7172
      %7174 = vdwg.mxu0
      %7175 = vmatpush.bf16.msra.mxu0 %v7063
      %7176 = vmatpush.bf16.msra.mxu0 %v7059
      %7177 = vmatpush.bf16.msra.mxu0 %v7055
      %7178 = vmatpush.bf16.msra.mxu0 %v7051
      %7179 = vmatpush.bf16.msra.mxu0 %v7047
      %7180 = vmatpush.bf16.msra.mxu0 %v7043
      %7181 = vmatpush.bf16.msra.mxu0 %v7039
      %7182 = vmatpush.bf16.msra.mxu0 %v7035
      %7183 = vmatmul.bf16.gmra.mxu0 %v6784
      %v7184 = vpop.f32.mrf.mxu0
      %v7185 = vadd.f32 %v7141, %v7184
      %v7186 = vpop.f32.mrf.mxu0
      %v7187 = vadd.f32 %v7143, %v7186
      %7188 = vmatmul.bf16.gmra.mxu0 %v6786
      %v7189 = vpop.f32.mrf.mxu0
      %v7190 = vadd.f32 %v7146, %v7189
      %v7191 = vpop.f32.mrf.mxu0
      %v7192 = vadd.f32 %v7148, %v7191
      %7193 = vmatmul.bf16.gmra.mxu0 %v6788
      %v7194 = vpop.f32.mrf.mxu0
      %v7195 = vadd.f32 %v7151, %v7194
      %v7196 = vpop.f32.mrf.mxu0
      %v7197 = vadd.f32 %v7153, %v7196
      %7198 = vmatmul.bf16.gmra.mxu0 %v6790
      %v7199 = vpop.f32.mrf.mxu0
      %v7200 = vadd.f32 %v7156, %v7199
      %v7201 = vpop.f32.mrf.mxu0
      %v7202 = vadd.f32 %v7158, %v7201
      %7203 = vmatmul.bf16.gmra.mxu0 %v6792
      %v7204 = vpop.f32.mrf.mxu0
      %v7205 = vadd.f32 %v7161, %v7204
      %v7206 = vpop.f32.mrf.mxu0
      %v7207 = vadd.f32 %v7163, %v7206
      %7208 = vmatmul.bf16.gmra.mxu0 %v6794
      %v7209 = vpop.f32.mrf.mxu0
      %v7210 = vadd.f32 %v7166, %v7209
      %v7211 = vpop.f32.mrf.mxu0
      %v7212 = vadd.f32 %v7168, %v7211
      %7213 = vmatmul.bf16.gmra.mxu0 %v6796
      %v7214 = vpop.f32.mrf.mxu0
      %v7215 = vadd.f32 %v7171, %v7214
      %v7216 = vpop.f32.mrf.mxu0
      %v7217 = vadd.f32 %v7173, %v7216
      %7218 = vdwg.mxu0
      %7219 = vmatpush.bf16.msra.mxu0 %v7032
      %7220 = vmatpush.bf16.msra.mxu0 %v7028
      %7221 = vmatpush.bf16.msra.mxu0 %v7024
      %7222 = vmatpush.bf16.msra.mxu0 %v7020
      %7223 = vmatpush.bf16.msra.mxu0 %v7016
      %7224 = vmatpush.bf16.msra.mxu0 %v7012
      %7225 = vmatpush.bf16.msra.mxu0 %v7008
      %7226 = vmatpush.bf16.msra.mxu0 %v7004
      %7227 = vmatmul.bf16.gmra.mxu0 %v6783
      %v7228 = vpop.f32.mrf.mxu0
      %v7229 = vadd.f32 0.0, %v7228
      %v7230 = vpop.f32.mrf.mxu0
      %v7231 = vadd.f32 0.0, %v7230
      %7232 = vmatmul.bf16.gmra.mxu0 %v6785
      %v7233 = vpop.f32.mrf.mxu0
      %v7234 = vadd.f32 0.0, %v7233
      %v7235 = vpop.f32.mrf.mxu0
      %v7236 = vadd.f32 0.0, %v7235
      %7237 = vmatmul.bf16.gmra.mxu0 %v6787
      %v7238 = vpop.f32.mrf.mxu0
      %v7239 = vadd.f32 0.0, %v7238
      %v7240 = vpop.f32.mrf.mxu0
      %v7241 = vadd.f32 0.0, %v7240
      %7242 = vmatmul.bf16.gmra.mxu0 %v6789
      %v7243 = vpop.f32.mrf.mxu0
      %v7244 = vadd.f32 0.0, %v7243
      %v7245 = vpop.f32.mrf.mxu0
      %v7246 = vadd.f32 0.0, %v7245
      %7247 = vmatmul.bf16.gmra.mxu0 %v6791
      %v7248 = vpop.f32.mrf.mxu0
      %v7249 = vadd.f32 0.0, %v7248
      %v7250 = vpop.f32.mrf.mxu0
      %v7251 = vadd.f32 0.0, %v7250
      %7252 = vmatmul.bf16.gmra.mxu0 %v6793
      %v7253 = vpop.f32.mrf.mxu0
      %v7254 = vadd.f32 0.0, %v7253
      %v7255 = vpop.f32.mrf.mxu0
      %v7256 = vadd.f32 0.0, %v7255
      %7257 = vmatmul.bf16.gmra.mxu0 %v6795
      %v7258 = vpop.f32.mrf.mxu0
      %v7259 = vadd.f32 0.0, %v7258
      %v7260 = vpop.f32.mrf.mxu0
      %v7261 = vadd.f32 0.0, %v7260
      %7262 = vdwg.mxu0
      %7263 = vmatpush.bf16.msra.mxu0 %v7064
      %7264 = vmatpush.bf16.msra.mxu0 %v7060
      %7265 = vmatpush.bf16.msra.mxu0 %v7056
      %7266 = vmatpush.bf16.msra.mxu0 %v7052
      %7267 = vmatpush.bf16.msra.mxu0 %v7048
      %7268 = vmatpush.bf16.msra.mxu0 %v7044
      %7269 = vmatpush.bf16.msra.mxu0 %v7040
      %7270 = vmatpush.bf16.msra.mxu0 %v7036
      %7271 = vmatmul.bf16.gmra.mxu0 %v6784
      %v7272 = vpop.f32.mrf.mxu0
      %v7273 = vadd.f32 %v7229, %v7272
      %v7274 = vpop.f32.mrf.mxu0
      %v7275 = vadd.f32 %v7231, %v7274
      %7276 = vmatmul.bf16.gmra.mxu0 %v6786
      %v7277 = vpop.f32.mrf.mxu0
      %v7278 = vadd.f32 %v7234, %v7277
      %v7279 = vpop.f32.mrf.mxu0
      %v7280 = vadd.f32 %v7236, %v7279
      %7281 = vmatmul.bf16.gmra.mxu0 %v6788
      %v7282 = vpop.f32.mrf.mxu0
      %v7283 = vadd.f32 %v7239, %v7282
      %v7284 = vpop.f32.mrf.mxu0
      %v7285 = vadd.f32 %v7241, %v7284
      %7286 = vmatmul.bf16.gmra.mxu0 %v6790
      %v7287 = vpop.f32.mrf.mxu0
      %v7288 = vadd.f32 %v7244, %v7287
      %v7289 = vpop.f32.mrf.mxu0
      %v7290 = vadd.f32 %v7246, %v7289
      %7291 = vmatmul.bf16.gmra.mxu0 %v6792
      %v7292 = vpop.f32.mrf.mxu0
      %v7293 = vadd.f32 %v7249, %v7292
      %v7294 = vpop.f32.mrf.mxu0
      %v7295 = vadd.f32 %v7251, %v7294
      %7296 = vmatmul.bf16.gmra.mxu0 %v6794
      %v7297 = vpop.f32.mrf.mxu0
      %v7298 = vadd.f32 %v7254, %v7297
      %v7299 = vpop.f32.mrf.mxu0
      %v7300 = vadd.f32 %v7256, %v7299
      %7301 = vmatmul.bf16.gmra.mxu0 %v6796
      %v7302 = vpop.f32.mrf.mxu0
      %v7303 = vadd.f32 %v7259, %v7302
      %v7304 = vpop.f32.mrf.mxu0
      %v7305 = vadd.f32 %v7261, %v7304
      %7306 = vdwg.mxu0
      %7307 = vmatpush.bf16.msra.mxu0 %v7033
      %7308 = vmatpush.bf16.msra.mxu0 %v7029
      %7309 = vmatpush.bf16.msra.mxu0 %v7025
      %7310 = vmatpush.bf16.msra.mxu0 %v7021
      %7311 = vmatpush.bf16.msra.mxu0 %v7017
      %7312 = vmatpush.bf16.msra.mxu0 %v7013
      %7313 = vmatpush.bf16.msra.mxu0 %v7009
      %7314 = vmatpush.bf16.msra.mxu0 %v7005
      %7315 = vmatmul.bf16.gmra.mxu0 %v6783
      %v7316 = vpop.f32.mrf.mxu0
      %v7317 = vadd.f32 0.0, %v7316
      %v7318 = vpop.f32.mrf.mxu0
      %v7319 = vadd.f32 0.0, %v7318
      %7320 = vmatmul.bf16.gmra.mxu0 %v6785
      %v7321 = vpop.f32.mrf.mxu0
      %v7322 = vadd.f32 0.0, %v7321
      %v7323 = vpop.f32.mrf.mxu0
      %v7324 = vadd.f32 0.0, %v7323
      %7325 = vmatmul.bf16.gmra.mxu0 %v6787
      %v7326 = vpop.f32.mrf.mxu0
      %v7327 = vadd.f32 0.0, %v7326
      %v7328 = vpop.f32.mrf.mxu0
      %v7329 = vadd.f32 0.0, %v7328
      %7330 = vmatmul.bf16.gmra.mxu0 %v6789
      %v7331 = vpop.f32.mrf.mxu0
      %v7332 = vadd.f32 0.0, %v7331
      %v7333 = vpop.f32.mrf.mxu0
      %v7334 = vadd.f32 0.0, %v7333
      %7335 = vmatmul.bf16.gmra.mxu0 %v6791
      %v7336 = vpop.f32.mrf.mxu0
      %v7337 = vadd.f32 0.0, %v7336
      %v7338 = vpop.f32.mrf.mxu0
      %v7339 = vadd.f32 0.0, %v7338
      %7340 = vmatmul.bf16.gmra.mxu0 %v6793
      %v7341 = vpop.f32.mrf.mxu0
      %v7342 = vadd.f32 0.0, %v7341
      %v7343 = vpop.f32.mrf.mxu0
      %v7344 = vadd.f32 0.0, %v7343
      %7345 = vmatmul.bf16.gmra.mxu0 %v6795
      %v7346 = vpop.f32.mrf.mxu0
      %v7347 = vadd.f32 0.0, %v7346
      %v7348 = vpop.f32.mrf.mxu0
      %v7349 = vadd.f32 0.0, %v7348
      %7350 = vdwg.mxu0
      %7351 = vmatpush.bf16.msra.mxu0 %v7065
      %7352 = vmatpush.bf16.msra.mxu0 %v7061
      %7353 = vmatpush.bf16.msra.mxu0 %v7057
      %7354 = vmatpush.bf16.msra.mxu0 %v7053
      %7355 = vmatpush.bf16.msra.mxu0 %v7049
      %7356 = vmatpush.bf16.msra.mxu0 %v7045
      %7357 = vmatpush.bf16.msra.mxu0 %v7041
      %7358 = vmatpush.bf16.msra.mxu0 %v7037
      %7359 = vmatmul.bf16.gmra.mxu0 %v6784
      %v7360 = vpop.f32.mrf.mxu0
      %v7361 = vadd.f32 %v7317, %v7360
      %v7362 = vpop.f32.mrf.mxu0
      %v7363 = vadd.f32 %v7319, %v7362
      %7364 = vmatmul.bf16.gmra.mxu0 %v6786
      %v7365 = vpop.f32.mrf.mxu0
      %v7366 = vadd.f32 %v7322, %v7365
      %v7367 = vpop.f32.mrf.mxu0
      %v7368 = vadd.f32 %v7324, %v7367
      %7369 = vmatmul.bf16.gmra.mxu0 %v6788
      %v7370 = vpop.f32.mrf.mxu0
      %v7371 = vadd.f32 %v7327, %v7370
      %v7372 = vpop.f32.mrf.mxu0
      %v7373 = vadd.f32 %v7329, %v7372
      %7374 = vmatmul.bf16.gmra.mxu0 %v6790
      %v7375 = vpop.f32.mrf.mxu0
      %v7376 = vadd.f32 %v7332, %v7375
      %v7377 = vpop.f32.mrf.mxu0
      %v7378 = vadd.f32 %v7334, %v7377
      %7379 = vmatmul.bf16.gmra.mxu0 %v6792
      %v7380 = vpop.f32.mrf.mxu0
      %v7381 = vadd.f32 %v7337, %v7380
      %v7382 = vpop.f32.mrf.mxu0
      %v7383 = vadd.f32 %v7339, %v7382
      %7384 = vmatmul.bf16.gmra.mxu0 %v6794
      %v7385 = vpop.f32.mrf.mxu0
      %v7386 = vadd.f32 %v7342, %v7385
      %v7387 = vpop.f32.mrf.mxu0
      %v7388 = vadd.f32 %v7344, %v7387
      %7389 = vmatmul.bf16.gmra.mxu0 %v6796
      %v7390 = vpop.f32.mrf.mxu0
      %v7391 = vadd.f32 %v7347, %v7390
      %v7392 = vpop.f32.mrf.mxu0
      %v7393 = vadd.f32 %v7349, %v7392
      %7394 = vdwg.mxu0
      %7395 = vmatpush.bf16.msra.mxu0 %v7034
      %7396 = vmatpush.bf16.msra.mxu0 %v7030
      %7397 = vmatpush.bf16.msra.mxu0 %v7026
      %7398 = vmatpush.bf16.msra.mxu0 %v7022
      %7399 = vmatpush.bf16.msra.mxu0 %v7018
      %7400 = vmatpush.bf16.msra.mxu0 %v7014
      %7401 = vmatpush.bf16.msra.mxu0 %v7010
      %7402 = vmatpush.bf16.msra.mxu0 %v7006
      %7403 = vmatmul.bf16.gmra.mxu0 %v6783
      %v7404 = vpop.f32.mrf.mxu0
      %v7405 = vadd.f32 0.0, %v7404
      %v7406 = vpop.f32.mrf.mxu0
      %v7407 = vadd.f32 0.0, %v7406
      %7408 = vmatmul.bf16.gmra.mxu0 %v6785
      %v7409 = vpop.f32.mrf.mxu0
      %v7410 = vadd.f32 0.0, %v7409
      %v7411 = vpop.f32.mrf.mxu0
      %v7412 = vadd.f32 0.0, %v7411
      %7413 = vmatmul.bf16.gmra.mxu0 %v6787
      %v7414 = vpop.f32.mrf.mxu0
      %v7415 = vadd.f32 0.0, %v7414
      %v7416 = vpop.f32.mrf.mxu0
      %v7417 = vadd.f32 0.0, %v7416
      %7418 = vmatmul.bf16.gmra.mxu0 %v6789
      %v7419 = vpop.f32.mrf.mxu0
      %v7420 = vadd.f32 0.0, %v7419
      %v7421 = vpop.f32.mrf.mxu0
      %v7422 = vadd.f32 0.0, %v7421
      %7423 = vmatmul.bf16.gmra.mxu0 %v6791
      %v7424 = vpop.f32.mrf.mxu0
      %v7425 = vadd.f32 0.0, %v7424
      %v7426 = vpop.f32.mrf.mxu0
      %v7427 = vadd.f32 0.0, %v7426
      %7428 = vmatmul.bf16.gmra.mxu0 %v6793
      %v7429 = vpop.f32.mrf.mxu0
      %v7430 = vadd.f32 0.0, %v7429
      %v7431 = vpop.f32.mrf.mxu0
      %v7432 = vadd.f32 0.0, %v7431
      %7433 = vmatmul.bf16.gmra.mxu0 %v6795
      %v7434 = vpop.f32.mrf.mxu0
      %v7435 = vadd.f32 0.0, %v7434
      %v7436 = vpop.f32.mrf.mxu0
      %v7437 = vadd.f32 0.0, %v7436
      %7438 = vdwg.mxu0
      %7439 = vmatpush.bf16.msra.mxu0 %v7066
      %7440 = vmatpush.bf16.msra.mxu0 %v7062
      %7441 = vmatpush.bf16.msra.mxu0 %v7058
      %7442 = vmatpush.bf16.msra.mxu0 %v7054
      %7443 = vmatpush.bf16.msra.mxu0 %v7050
      %7444 = vmatpush.bf16.msra.mxu0 %v7046
      %7445 = vmatpush.bf16.msra.mxu0 %v7042
      %7446 = vmatpush.bf16.msra.mxu0 %v7038
      %7447 = vmatmul.bf16.gmra.mxu0 %v6784
      %v7448 = vpop.f32.mrf.mxu0
      %v7449 = vadd.f32 %v7405, %v7448
      %v7450 = vpop.f32.mrf.mxu0
      %v7451 = vadd.f32 %v7407, %v7450
      %7452 = vmatmul.bf16.gmra.mxu0 %v6786
      %v7453 = vpop.f32.mrf.mxu0
      %v7454 = vadd.f32 %v7410, %v7453
      %v7455 = vpop.f32.mrf.mxu0
      %v7456 = vadd.f32 %v7412, %v7455
      %7457 = vmatmul.bf16.gmra.mxu0 %v6788
      %v7458 = vpop.f32.mrf.mxu0
      %v7459 = vadd.f32 %v7415, %v7458
      %v7460 = vpop.f32.mrf.mxu0
      %v7461 = vadd.f32 %v7417, %v7460
      %7462 = vmatmul.bf16.gmra.mxu0 %v6790
      %v7463 = vpop.f32.mrf.mxu0
      %v7464 = vadd.f32 %v7420, %v7463
      %v7465 = vpop.f32.mrf.mxu0
      %v7466 = vadd.f32 %v7422, %v7465
      %7467 = vmatmul.bf16.gmra.mxu0 %v6792
      %v7468 = vpop.f32.mrf.mxu0
      %v7469 = vadd.f32 %v7425, %v7468
      %v7470 = vpop.f32.mrf.mxu0
      %v7471 = vadd.f32 %v7427, %v7470
      %7472 = vmatmul.bf16.gmra.mxu0 %v6794
      %v7473 = vpop.f32.mrf.mxu0
      %v7474 = vadd.f32 %v7430, %v7473
      %v7475 = vpop.f32.mrf.mxu0
      %v7476 = vadd.f32 %v7432, %v7475
      %7477 = vmatmul.bf16.gmra.mxu0 %v6796
      %v7478 = vpop.f32.mrf.mxu0
      %v7479 = vadd.f32 %v7435, %v7478
      %v7480 = vpop.f32.mrf.mxu0
      %v7481 = vadd.f32 %v7437, %v7480
      %7482 = vdwg.mxu0
      %v7497 = vunpack.c.l.b16 %v6542
      %v7498 = vunpack.c.h.b16 %v6542
      %v7499 = vunpack.c.l.b16 %v6543
      %v7500 = vunpack.c.h.b16 %v6543
      %v7501 = vunpack.c.l.b16 %v6544
      %v7502 = vunpack.c.h.b16 %v6544
      %v7503 = vunpack.c.l.b16 %v6545
      %v7504 = vunpack.c.h.b16 %v6545
      %v7505 = vunpack.c.l.b16 %v6546
      %v7506 = vunpack.c.h.b16 %v6546
      %v7507 = vunpack.c.l.b16 %v6547
      %v7508 = vunpack.c.h.b16 %v6547
      %v7509 = vunpack.c.l.b16 %v6548
      %v7510 = vunpack.c.h.b16 %v6548
      %v7511 = vunpack.c.l.b16 %v6549
      %v7512 = vunpack.c.h.b16 %v6549
      %v7513 = vunpack.c.l.b16 %v6550
      %v7514 = vunpack.c.h.b16 %v6550
      %v7515 = vunpack.c.l.b16 %v6551
      %v7516 = vunpack.c.h.b16 %v6551
      %v7517 = vunpack.c.l.b16 %v6552
      %v7518 = vunpack.c.h.b16 %v6552
      %v7519 = vunpack.c.l.b16 %v6553
      %v7520 = vunpack.c.h.b16 %v6553
      %v7521 = vunpack.c.l.b16 %v6554
      %v7522 = vunpack.c.h.b16 %v6554
      %v7523 = vunpack.c.l.b16 %v6555
      %v7524 = vunpack.c.h.b16 %v6555
      %v7525 = vpack.c.b16 %v7499, %v7497
      %v7526 = vpack.c.b16 %v7500, %v7498
      %v7527 = vpack.c.b16 %v7503, %v7501
      %v7528 = vpack.c.b16 %v7504, %v7502
      %v7529 = vpack.c.b16 %v7507, %v7505
      %v7530 = vpack.c.b16 %v7508, %v7506
      %v7531 = vpack.c.b16 %v7511, %v7509
      %v7532 = vpack.c.b16 %v7512, %v7510
      %v7533 = vpack.c.b16 %v7515, %v7513
      %v7534 = vpack.c.b16 %v7516, %v7514
      %v7535 = vpack.c.b16 %v7519, %v7517
      %v7536 = vpack.c.b16 %v7520, %v7518
      %v7537 = vpack.c.b16 %v7523, %v7521
      %v7538 = vpack.c.b16 %v7524, %v7522
      %v7617 = vunpack.c.l.b16 %v6612
      %v7618 = vunpack.c.h.b16 %v6612
      %v7619 = vunpack.c.l.b16 %v6613
      %v7620 = vunpack.c.h.b16 %v6613
      %v7621 = vunpack.c.l.b16 %v6614
      %v7622 = vunpack.c.h.b16 %v6614
      %v7623 = vunpack.c.l.b16 %v6615
      %v7624 = vunpack.c.h.b16 %v6615
      %v7625 = vunpack.c.l.b16 %v6616
      %v7626 = vunpack.c.h.b16 %v6616
      %v7627 = vunpack.c.l.b16 %v6617
      %v7628 = vunpack.c.h.b16 %v6617
      %v7629 = vunpack.c.l.b16 %v6618
      %v7630 = vunpack.c.h.b16 %v6618
      %v7631 = vunpack.c.l.b16 %v6619
      %v7632 = vunpack.c.h.b16 %v6619
      %v7633 = vunpack.c.l.b16 %v6620
      %v7634 = vunpack.c.h.b16 %v6620
      %v7635 = vunpack.c.l.b16 %v6621
      %v7636 = vunpack.c.h.b16 %v6621
      %v7637 = vunpack.c.l.b16 %v6622
      %v7638 = vunpack.c.h.b16 %v6622
      %v7639 = vunpack.c.l.b16 %v6623
      %v7640 = vunpack.c.h.b16 %v6623
      %v7641 = vunpack.c.l.b16 %v6624
      %v7642 = vunpack.c.h.b16 %v6624
      %v7643 = vunpack.c.l.b16 %v6625
      %v7644 = vunpack.c.h.b16 %v6625
      %v7645 = vunpack.c.l.b16 %v6626
      %v7646 = vunpack.c.h.b16 %v6626
      %v7647 = vunpack.c.l.b16 %v6627
      %v7648 = vunpack.c.h.b16 %v6627
      %v7649 = vunpack.c.l.b16 %v6628
      %v7650 = vunpack.c.h.b16 %v6628
      %v7651 = vunpack.c.l.b16 %v6629
      %v7652 = vunpack.c.h.b16 %v6629
      %v7653 = vunpack.c.l.b16 %v6630
      %v7654 = vunpack.c.h.b16 %v6630
      %v7655 = vunpack.c.l.b16 %v6631
      %v7656 = vunpack.c.h.b16 %v6631
      %v7657 = vunpack.c.l.b16 %v6632
      %v7658 = vunpack.c.h.b16 %v6632
      %v7659 = vunpack.c.l.b16 %v6633
      %v7660 = vunpack.c.h.b16 %v6633
      %v7661 = vunpack.c.l.b16 %v6634
      %v7662 = vunpack.c.h.b16 %v6634
      %v7663 = vunpack.c.l.b16 %v6635
      %v7664 = vunpack.c.h.b16 %v6635
      %v7665 = vunpack.c.l.b16 %v6636
      %v7666 = vunpack.c.h.b16 %v6636
      %v7667 = vunpack.c.l.b16 %v6637
      %v7668 = vunpack.c.h.b16 %v6637
      %v7669 = vunpack.c.l.b16 %v6638
      %v7670 = vunpack.c.h.b16 %v6638
      %v7671 = vunpack.c.l.b16 %v6639
      %v7672 = vunpack.c.h.b16 %v6639
      %v7673 = vunpack.c.l.b16 %v6640
      %v7674 = vunpack.c.h.b16 %v6640
      %v7675 = vunpack.c.l.b16 %v6641
      %v7676 = vunpack.c.h.b16 %v6641
      %v7677 = vunpack.c.l.b16 %v6642
      %v7678 = vunpack.c.h.b16 %v6642
      %v7679 = vunpack.c.l.b16 %v6643
      %v7680 = vunpack.c.h.b16 %v6643
      %v7681 = vunpack.c.l.b16 %v6644
      %v7682 = vunpack.c.h.b16 %v6644
      %v7683 = vunpack.c.l.b16 %v6645
      %v7684 = vunpack.c.h.b16 %v6645
      %v7685 = vunpack.c.l.b16 %v6646
      %v7686 = vunpack.c.h.b16 %v6646
      %v7687 = vunpack.c.l.b16 %v6647
      %v7688 = vunpack.c.h.b16 %v6647
      %v7689 = vunpack.c.l.b16 %v6648
      %v7690 = vunpack.c.h.b16 %v6648
      %v7691 = vunpack.c.l.b16 %v6649
      %v7692 = vunpack.c.h.b16 %v6649
      %v7693 = vunpack.c.l.b16 %v6650
      %v7694 = vunpack.c.h.b16 %v6650
      %v7695 = vunpack.c.l.b16 %v6651
      %v7696 = vunpack.c.h.b16 %v6651
      %v7697 = vunpack.c.l.b16 %v6652
      %v7698 = vunpack.c.h.b16 %v6652
      %v7699 = vunpack.c.l.b16 %v6653
      %v7700 = vunpack.c.h.b16 %v6653
      %v7701 = vunpack.c.l.b16 %v6654
      %v7702 = vunpack.c.h.b16 %v6654
      %v7703 = vunpack.c.l.b16 %v6655
      %v7704 = vunpack.c.h.b16 %v6655
      %v7705 = vunpack.c.l.b16 %v6656
      %v7706 = vunpack.c.h.b16 %v6656
      %v7707 = vunpack.c.l.b16 %v6657
      %v7708 = vunpack.c.h.b16 %v6657
      %v7709 = vunpack.c.l.b16 %v6658
      %v7710 = vunpack.c.h.b16 %v6658
      %v7711 = vunpack.c.l.b16 %v6659
      %v7712 = vunpack.c.h.b16 %v6659
      %v7713 = vunpack.c.l.b16 %v6660
      %v7714 = vunpack.c.h.b16 %v6660
      %v7715 = vunpack.c.l.b16 %v6661
      %v7716 = vunpack.c.h.b16 %v6661
      %v7717 = vunpack.c.l.b16 %v6662
      %v7718 = vunpack.c.h.b16 %v6662
      %v7719 = vunpack.c.l.b16 %v6663
      %v7720 = vunpack.c.h.b16 %v6663
      %v7721 = vunpack.c.l.b16 %v6664
      %v7722 = vunpack.c.h.b16 %v6664
      %v7723 = vunpack.c.l.b16 %v6665
      %v7724 = vunpack.c.h.b16 %v6665
      %v7725 = vunpack.c.l.b16 %v6666
      %v7726 = vunpack.c.h.b16 %v6666
      %v7727 = vunpack.c.l.b16 %v6667
      %v7728 = vunpack.c.h.b16 %v6667
      %v7729 = vunpack.c.l.b16 %v6668
      %v7730 = vunpack.c.h.b16 %v6668
      %v7731 = vunpack.c.l.b16 %v6669
      %v7732 = vunpack.c.h.b16 %v6669
      %v7733 = vunpack.c.l.b16 %v6670
      %v7734 = vunpack.c.h.b16 %v6670
      %v7735 = vunpack.c.l.b16 %v6671
      %v7736 = vunpack.c.h.b16 %v6671
      %v7737 = vunpack.c.l.b16 %v6672
      %v7738 = vunpack.c.h.b16 %v6672
      %v7739 = vunpack.c.l.b16 %v6673
      %v7740 = vunpack.c.h.b16 %v6673
      %v7741 = vunpack.c.l.b16 %v6674
      %v7742 = vunpack.c.h.b16 %v6674
      %v7743 = vunpack.c.l.b16 %v6675
      %v7744 = vunpack.c.h.b16 %v6675
      %v7745 = vpack.c.b16 %v7621, %v7617
      %v7746 = vpack.c.b16 %v7622, %v7618
      %v7747 = vpack.c.b16 %v7623, %v7619
      %v7748 = vpack.c.b16 %v7624, %v7620
      %v7749 = vpack.c.b16 %v7629, %v7625
      %v7750 = vpack.c.b16 %v7630, %v7626
      %v7751 = vpack.c.b16 %v7631, %v7627
      %v7752 = vpack.c.b16 %v7632, %v7628
      %v7753 = vpack.c.b16 %v7637, %v7633
      %v7754 = vpack.c.b16 %v7638, %v7634
      %v7755 = vpack.c.b16 %v7639, %v7635
      %v7756 = vpack.c.b16 %v7640, %v7636
      %v7757 = vpack.c.b16 %v7645, %v7641
      %v7758 = vpack.c.b16 %v7646, %v7642
      %v7759 = vpack.c.b16 %v7647, %v7643
      %v7760 = vpack.c.b16 %v7648, %v7644
      %v7761 = vpack.c.b16 %v7653, %v7649
      %v7762 = vpack.c.b16 %v7654, %v7650
      %v7763 = vpack.c.b16 %v7655, %v7651
      %v7764 = vpack.c.b16 %v7656, %v7652
      %v7765 = vpack.c.b16 %v7661, %v7657
      %v7766 = vpack.c.b16 %v7662, %v7658
      %v7767 = vpack.c.b16 %v7663, %v7659
      %v7768 = vpack.c.b16 %v7664, %v7660
      %v7769 = vpack.c.b16 %v7669, %v7665
      %v7770 = vpack.c.b16 %v7670, %v7666
      %v7771 = vpack.c.b16 %v7671, %v7667
      %v7772 = vpack.c.b16 %v7672, %v7668
      %v7773 = vpack.c.b16 %v7677, %v7673
      %v7774 = vpack.c.b16 %v7678, %v7674
      %v7775 = vpack.c.b16 %v7679, %v7675
      %v7776 = vpack.c.b16 %v7680, %v7676
      %v7777 = vpack.c.b16 %v7685, %v7681
      %v7778 = vpack.c.b16 %v7686, %v7682
      %v7779 = vpack.c.b16 %v7687, %v7683
      %v7780 = vpack.c.b16 %v7688, %v7684
      %v7781 = vpack.c.b16 %v7693, %v7689
      %v7782 = vpack.c.b16 %v7694, %v7690
      %v7783 = vpack.c.b16 %v7695, %v7691
      %v7784 = vpack.c.b16 %v7696, %v7692
      %v7785 = vpack.c.b16 %v7701, %v7697
      %v7786 = vpack.c.b16 %v7702, %v7698
      %v7787 = vpack.c.b16 %v7703, %v7699
      %v7788 = vpack.c.b16 %v7704, %v7700
      %v7789 = vpack.c.b16 %v7709, %v7705
      %v7790 = vpack.c.b16 %v7710, %v7706
      %v7791 = vpack.c.b16 %v7711, %v7707
      %v7792 = vpack.c.b16 %v7712, %v7708
      %v7793 = vpack.c.b16 %v7717, %v7713
      %v7794 = vpack.c.b16 %v7718, %v7714
      %v7795 = vpack.c.b16 %v7719, %v7715
      %v7796 = vpack.c.b16 %v7720, %v7716
      %v7797 = vpack.c.b16 %v7725, %v7721
      %v7798 = vpack.c.b16 %v7726, %v7722
      %v7799 = vpack.c.b16 %v7727, %v7723
      %v7800 = vpack.c.b16 %v7728, %v7724
      %v7801 = vpack.c.b16 %v7733, %v7729
      %v7802 = vpack.c.b16 %v7734, %v7730
      %v7803 = vpack.c.b16 %v7735, %v7731
      %v7804 = vpack.c.b16 %v7736, %v7732
      %v7805 = vpack.c.b16 %v7741, %v7737
      %v7806 = vpack.c.b16 %v7742, %v7738
      %v7807 = vpack.c.b16 %v7743, %v7739
      %v7808 = vpack.c.b16 %v7744, %v7740
      %7873 = vmatpush.bf16.msra.mxu0 %v7773
      %7874 = vmatpush.bf16.msra.mxu0 %v7769
      %7875 = vmatpush.bf16.msra.mxu0 %v7765
      %7876 = vmatpush.bf16.msra.mxu0 %v7761
      %7877 = vmatpush.bf16.msra.mxu0 %v7757
      %7878 = vmatpush.bf16.msra.mxu0 %v7753
      %7879 = vmatpush.bf16.msra.mxu0 %v7749
      %7880 = vmatpush.bf16.msra.mxu0 %v7745
      %7881 = vmatmul.bf16.gmra.mxu0 %v7525
      %v7882 = vpop.f32.mrf.mxu0
      %v7883 = vadd.f32 %v7185, %v7882
      %v7884 = vpop.f32.mrf.mxu0
      %v7885 = vadd.f32 %v7187, %v7884
      %7886 = vmatmul.bf16.gmra.mxu0 %v7527
      %v7887 = vpop.f32.mrf.mxu0
      %v7888 = vadd.f32 %v7190, %v7887
      %v7889 = vpop.f32.mrf.mxu0
      %v7890 = vadd.f32 %v7192, %v7889
      %7891 = vmatmul.bf16.gmra.mxu0 %v7529
      %v7892 = vpop.f32.mrf.mxu0
      %v7893 = vadd.f32 %v7195, %v7892
      %v7894 = vpop.f32.mrf.mxu0
      %v7895 = vadd.f32 %v7197, %v7894
      %7896 = vmatmul.bf16.gmra.mxu0 %v7531
      %v7897 = vpop.f32.mrf.mxu0
      %v7898 = vadd.f32 %v7200, %v7897
      %v7899 = vpop.f32.mrf.mxu0
      %v7900 = vadd.f32 %v7202, %v7899
      %7901 = vmatmul.bf16.gmra.mxu0 %v7533
      %v7902 = vpop.f32.mrf.mxu0
      %v7903 = vadd.f32 %v7205, %v7902
      %v7904 = vpop.f32.mrf.mxu0
      %v7905 = vadd.f32 %v7207, %v7904
      %7906 = vmatmul.bf16.gmra.mxu0 %v7535
      %v7907 = vpop.f32.mrf.mxu0
      %v7908 = vadd.f32 %v7210, %v7907
      %v7909 = vpop.f32.mrf.mxu0
      %v7910 = vadd.f32 %v7212, %v7909
      %7911 = vmatmul.bf16.gmra.mxu0 %v7537
      %v7912 = vpop.f32.mrf.mxu0
      %v7913 = vadd.f32 %v7215, %v7912
      %v7914 = vpop.f32.mrf.mxu0
      %v7915 = vadd.f32 %v7217, %v7914
      %7916 = vdwg.mxu0
      %7917 = vmatpush.bf16.msra.mxu0 %v7805
      %7918 = vmatpush.bf16.msra.mxu0 %v7801
      %7919 = vmatpush.bf16.msra.mxu0 %v7797
      %7920 = vmatpush.bf16.msra.mxu0 %v7793
      %7921 = vmatpush.bf16.msra.mxu0 %v7789
      %7922 = vmatpush.bf16.msra.mxu0 %v7785
      %7923 = vmatpush.bf16.msra.mxu0 %v7781
      %7924 = vmatpush.bf16.msra.mxu0 %v7777
      %7925 = vmatmul.bf16.gmra.mxu0 %v7526
      %v7926 = vpop.f32.mrf.mxu0
      %v7927 = vadd.f32 %v7883, %v7926
      %v7928 = vpop.f32.mrf.mxu0
      %v7929 = vadd.f32 %v7885, %v7928
      %7930 = vmatmul.bf16.gmra.mxu0 %v7528
      %v7931 = vpop.f32.mrf.mxu0
      %v7932 = vadd.f32 %v7888, %v7931
      %v7933 = vpop.f32.mrf.mxu0
      %v7934 = vadd.f32 %v7890, %v7933
      %7935 = vmatmul.bf16.gmra.mxu0 %v7530
      %v7936 = vpop.f32.mrf.mxu0
      %v7937 = vadd.f32 %v7893, %v7936
      %v7938 = vpop.f32.mrf.mxu0
      %v7939 = vadd.f32 %v7895, %v7938
      %7940 = vmatmul.bf16.gmra.mxu0 %v7532
      %v7941 = vpop.f32.mrf.mxu0
      %v7942 = vadd.f32 %v7898, %v7941
      %v7943 = vpop.f32.mrf.mxu0
      %v7944 = vadd.f32 %v7900, %v7943
      %7945 = vmatmul.bf16.gmra.mxu0 %v7534
      %v7946 = vpop.f32.mrf.mxu0
      %v7947 = vadd.f32 %v7903, %v7946
      %v7948 = vpop.f32.mrf.mxu0
      %v7949 = vadd.f32 %v7905, %v7948
      %7950 = vmatmul.bf16.gmra.mxu0 %v7536
      %v7951 = vpop.f32.mrf.mxu0
      %v7952 = vadd.f32 %v7908, %v7951
      %v7953 = vpop.f32.mrf.mxu0
      %v7954 = vadd.f32 %v7910, %v7953
      %7955 = vmatmul.bf16.gmra.mxu0 %v7538
      %v7956 = vpop.f32.mrf.mxu0
      %v7957 = vadd.f32 %v7913, %v7956
      %v7958 = vpop.f32.mrf.mxu0
      %v7959 = vadd.f32 %v7915, %v7958
      %7960 = vdwg.mxu0
      %7961 = vmatpush.bf16.msra.mxu0 %v7774
      %7962 = vmatpush.bf16.msra.mxu0 %v7770
      %7963 = vmatpush.bf16.msra.mxu0 %v7766
      %7964 = vmatpush.bf16.msra.mxu0 %v7762
      %7965 = vmatpush.bf16.msra.mxu0 %v7758
      %7966 = vmatpush.bf16.msra.mxu0 %v7754
      %7967 = vmatpush.bf16.msra.mxu0 %v7750
      %7968 = vmatpush.bf16.msra.mxu0 %v7746
      %7969 = vmatmul.bf16.gmra.mxu0 %v7525
      %v7970 = vpop.f32.mrf.mxu0
      %v7971 = vadd.f32 %v7273, %v7970
      %v7972 = vpop.f32.mrf.mxu0
      %v7973 = vadd.f32 %v7275, %v7972
      %7974 = vmatmul.bf16.gmra.mxu0 %v7527
      %v7975 = vpop.f32.mrf.mxu0
      %v7976 = vadd.f32 %v7278, %v7975
      %v7977 = vpop.f32.mrf.mxu0
      %v7978 = vadd.f32 %v7280, %v7977
      %7979 = vmatmul.bf16.gmra.mxu0 %v7529
      %v7980 = vpop.f32.mrf.mxu0
      %v7981 = vadd.f32 %v7283, %v7980
      %v7982 = vpop.f32.mrf.mxu0
      %v7983 = vadd.f32 %v7285, %v7982
      %7984 = vmatmul.bf16.gmra.mxu0 %v7531
      %v7985 = vpop.f32.mrf.mxu0
      %v7986 = vadd.f32 %v7288, %v7985
      %v7987 = vpop.f32.mrf.mxu0
      %v7988 = vadd.f32 %v7290, %v7987
      %7989 = vmatmul.bf16.gmra.mxu0 %v7533
      %v7990 = vpop.f32.mrf.mxu0
      %v7991 = vadd.f32 %v7293, %v7990
      %v7992 = vpop.f32.mrf.mxu0
      %v7993 = vadd.f32 %v7295, %v7992
      %7994 = vmatmul.bf16.gmra.mxu0 %v7535
      %v7995 = vpop.f32.mrf.mxu0
      %v7996 = vadd.f32 %v7298, %v7995
      %v7997 = vpop.f32.mrf.mxu0
      %v7998 = vadd.f32 %v7300, %v7997
      %7999 = vmatmul.bf16.gmra.mxu0 %v7537
      %v8000 = vpop.f32.mrf.mxu0
      %v8001 = vadd.f32 %v7303, %v8000
      %v8002 = vpop.f32.mrf.mxu0
      %v8003 = vadd.f32 %v7305, %v8002
      %8004 = vdwg.mxu0
      %8005 = vmatpush.bf16.msra.mxu0 %v7806
      %8006 = vmatpush.bf16.msra.mxu0 %v7802
      %8007 = vmatpush.bf16.msra.mxu0 %v7798
      %8008 = vmatpush.bf16.msra.mxu0 %v7794
      %8009 = vmatpush.bf16.msra.mxu0 %v7790
      %8010 = vmatpush.bf16.msra.mxu0 %v7786
      %8011 = vmatpush.bf16.msra.mxu0 %v7782
      %8012 = vmatpush.bf16.msra.mxu0 %v7778
      %8013 = vmatmul.bf16.gmra.mxu0 %v7526
      %v8014 = vpop.f32.mrf.mxu0
      %v8015 = vadd.f32 %v7971, %v8014
      %v8016 = vpop.f32.mrf.mxu0
      %v8017 = vadd.f32 %v7973, %v8016
      %8018 = vmatmul.bf16.gmra.mxu0 %v7528
      %v8019 = vpop.f32.mrf.mxu0
      %v8020 = vadd.f32 %v7976, %v8019
      %v8021 = vpop.f32.mrf.mxu0
      %v8022 = vadd.f32 %v7978, %v8021
      %8023 = vmatmul.bf16.gmra.mxu0 %v7530
      %v8024 = vpop.f32.mrf.mxu0
      %v8025 = vadd.f32 %v7981, %v8024
      %v8026 = vpop.f32.mrf.mxu0
      %v8027 = vadd.f32 %v7983, %v8026
      %8028 = vmatmul.bf16.gmra.mxu0 %v7532
      %v8029 = vpop.f32.mrf.mxu0
      %v8030 = vadd.f32 %v7986, %v8029
      %v8031 = vpop.f32.mrf.mxu0
      %v8032 = vadd.f32 %v7988, %v8031
      %8033 = vmatmul.bf16.gmra.mxu0 %v7534
      %v8034 = vpop.f32.mrf.mxu0
      %v8035 = vadd.f32 %v7991, %v8034
      %v8036 = vpop.f32.mrf.mxu0
      %v8037 = vadd.f32 %v7993, %v8036
      %8038 = vmatmul.bf16.gmra.mxu0 %v7536
      %v8039 = vpop.f32.mrf.mxu0
      %v8040 = vadd.f32 %v7996, %v8039
      %v8041 = vpop.f32.mrf.mxu0
      %v8042 = vadd.f32 %v7998, %v8041
      %8043 = vmatmul.bf16.gmra.mxu0 %v7538
      %v8044 = vpop.f32.mrf.mxu0
      %v8045 = vadd.f32 %v8001, %v8044
      %v8046 = vpop.f32.mrf.mxu0
      %v8047 = vadd.f32 %v8003, %v8046
      %8048 = vdwg.mxu0
      %8049 = vmatpush.bf16.msra.mxu0 %v7775
      %8050 = vmatpush.bf16.msra.mxu0 %v7771
      %8051 = vmatpush.bf16.msra.mxu0 %v7767
      %8052 = vmatpush.bf16.msra.mxu0 %v7763
      %8053 = vmatpush.bf16.msra.mxu0 %v7759
      %8054 = vmatpush.bf16.msra.mxu0 %v7755
      %8055 = vmatpush.bf16.msra.mxu0 %v7751
      %8056 = vmatpush.bf16.msra.mxu0 %v7747
      %8057 = vmatmul.bf16.gmra.mxu0 %v7525
      %v8058 = vpop.f32.mrf.mxu0
      %v8059 = vadd.f32 %v7361, %v8058
      %v8060 = vpop.f32.mrf.mxu0
      %v8061 = vadd.f32 %v7363, %v8060
      %8062 = vmatmul.bf16.gmra.mxu0 %v7527
      %v8063 = vpop.f32.mrf.mxu0
      %v8064 = vadd.f32 %v7366, %v8063
      %v8065 = vpop.f32.mrf.mxu0
      %v8066 = vadd.f32 %v7368, %v8065
      %8067 = vmatmul.bf16.gmra.mxu0 %v7529
      %v8068 = vpop.f32.mrf.mxu0
      %v8069 = vadd.f32 %v7371, %v8068
      %v8070 = vpop.f32.mrf.mxu0
      %v8071 = vadd.f32 %v7373, %v8070
      %8072 = vmatmul.bf16.gmra.mxu0 %v7531
      %v8073 = vpop.f32.mrf.mxu0
      %v8074 = vadd.f32 %v7376, %v8073
      %v8075 = vpop.f32.mrf.mxu0
      %v8076 = vadd.f32 %v7378, %v8075
      %8077 = vmatmul.bf16.gmra.mxu0 %v7533
      %v8078 = vpop.f32.mrf.mxu0
      %v8079 = vadd.f32 %v7381, %v8078
      %v8080 = vpop.f32.mrf.mxu0
      %v8081 = vadd.f32 %v7383, %v8080
      %8082 = vmatmul.bf16.gmra.mxu0 %v7535
      %v8083 = vpop.f32.mrf.mxu0
      %v8084 = vadd.f32 %v7386, %v8083
      %v8085 = vpop.f32.mrf.mxu0
      %v8086 = vadd.f32 %v7388, %v8085
      %8087 = vmatmul.bf16.gmra.mxu0 %v7537
      %v8088 = vpop.f32.mrf.mxu0
      %v8089 = vadd.f32 %v7391, %v8088
      %v8090 = vpop.f32.mrf.mxu0
      %v8091 = vadd.f32 %v7393, %v8090
      %8092 = vdwg.mxu0
      %8093 = vmatpush.bf16.msra.mxu0 %v7807
      %8094 = vmatpush.bf16.msra.mxu0 %v7803
      %8095 = vmatpush.bf16.msra.mxu0 %v7799
      %8096 = vmatpush.bf16.msra.mxu0 %v7795
      %8097 = vmatpush.bf16.msra.mxu0 %v7791
      %8098 = vmatpush.bf16.msra.mxu0 %v7787
      %8099 = vmatpush.bf16.msra.mxu0 %v7783
      %8100 = vmatpush.bf16.msra.mxu0 %v7779
      %8101 = vmatmul.bf16.gmra.mxu0 %v7526
      %v8102 = vpop.f32.mrf.mxu0
      %v8103 = vadd.f32 %v8059, %v8102
      %v8104 = vpop.f32.mrf.mxu0
      %v8105 = vadd.f32 %v8061, %v8104
      %8106 = vmatmul.bf16.gmra.mxu0 %v7528
      %v8107 = vpop.f32.mrf.mxu0
      %v8108 = vadd.f32 %v8064, %v8107
      %v8109 = vpop.f32.mrf.mxu0
      %v8110 = vadd.f32 %v8066, %v8109
      %8111 = vmatmul.bf16.gmra.mxu0 %v7530
      %v8112 = vpop.f32.mrf.mxu0
      %v8113 = vadd.f32 %v8069, %v8112
      %v8114 = vpop.f32.mrf.mxu0
      %v8115 = vadd.f32 %v8071, %v8114
      %8116 = vmatmul.bf16.gmra.mxu0 %v7532
      %v8117 = vpop.f32.mrf.mxu0
      %v8118 = vadd.f32 %v8074, %v8117
      %v8119 = vpop.f32.mrf.mxu0
      %v8120 = vadd.f32 %v8076, %v8119
      %8121 = vmatmul.bf16.gmra.mxu0 %v7534
      %v8122 = vpop.f32.mrf.mxu0
      %v8123 = vadd.f32 %v8079, %v8122
      %v8124 = vpop.f32.mrf.mxu0
      %v8125 = vadd.f32 %v8081, %v8124
      %8126 = vmatmul.bf16.gmra.mxu0 %v7536
      %v8127 = vpop.f32.mrf.mxu0
      %v8128 = vadd.f32 %v8084, %v8127
      %v8129 = vpop.f32.mrf.mxu0
      %v8130 = vadd.f32 %v8086, %v8129
      %8131 = vmatmul.bf16.gmra.mxu0 %v7538
      %v8132 = vpop.f32.mrf.mxu0
      %v8133 = vadd.f32 %v8089, %v8132
      %v8134 = vpop.f32.mrf.mxu0
      %v8135 = vadd.f32 %v8091, %v8134
      %8136 = vdwg.mxu0
      %8137 = vmatpush.bf16.msra.mxu0 %v7776
      %8138 = vmatpush.bf16.msra.mxu0 %v7772
      %8139 = vmatpush.bf16.msra.mxu0 %v7768
      %8140 = vmatpush.bf16.msra.mxu0 %v7764
      %8141 = vmatpush.bf16.msra.mxu0 %v7760
      %8142 = vmatpush.bf16.msra.mxu0 %v7756
      %8143 = vmatpush.bf16.msra.mxu0 %v7752
      %8144 = vmatpush.bf16.msra.mxu0 %v7748
      %8145 = vmatmul.bf16.gmra.mxu0 %v7525
      %v8146 = vpop.f32.mrf.mxu0
      %v8147 = vadd.f32 %v7449, %v8146
      %v8148 = vpop.f32.mrf.mxu0
      %v8149 = vadd.f32 %v7451, %v8148
      %8150 = vmatmul.bf16.gmra.mxu0 %v7527
      %v8151 = vpop.f32.mrf.mxu0
      %v8152 = vadd.f32 %v7454, %v8151
      %v8153 = vpop.f32.mrf.mxu0
      %v8154 = vadd.f32 %v7456, %v8153
      %8155 = vmatmul.bf16.gmra.mxu0 %v7529
      %v8156 = vpop.f32.mrf.mxu0
      %v8157 = vadd.f32 %v7459, %v8156
      %v8158 = vpop.f32.mrf.mxu0
      %v8159 = vadd.f32 %v7461, %v8158
      %8160 = vmatmul.bf16.gmra.mxu0 %v7531
      %v8161 = vpop.f32.mrf.mxu0
      %v8162 = vadd.f32 %v7464, %v8161
      %v8163 = vpop.f32.mrf.mxu0
      %v8164 = vadd.f32 %v7466, %v8163
      %8165 = vmatmul.bf16.gmra.mxu0 %v7533
      %v8166 = vpop.f32.mrf.mxu0
      %v8167 = vadd.f32 %v7469, %v8166
      %v8168 = vpop.f32.mrf.mxu0
      %v8169 = vadd.f32 %v7471, %v8168
      %8170 = vmatmul.bf16.gmra.mxu0 %v7535
      %v8171 = vpop.f32.mrf.mxu0
      %v8172 = vadd.f32 %v7474, %v8171
      %v8173 = vpop.f32.mrf.mxu0
      %v8174 = vadd.f32 %v7476, %v8173
      %8175 = vmatmul.bf16.gmra.mxu0 %v7537
      %v8176 = vpop.f32.mrf.mxu0
      %v8177 = vadd.f32 %v7479, %v8176
      %v8178 = vpop.f32.mrf.mxu0
      %v8179 = vadd.f32 %v7481, %v8178
      %8180 = vdwg.mxu0
      %8181 = vmatpush.bf16.msra.mxu0 %v7808
      %8182 = vmatpush.bf16.msra.mxu0 %v7804
      %8183 = vmatpush.bf16.msra.mxu0 %v7800
      %8184 = vmatpush.bf16.msra.mxu0 %v7796
      %8185 = vmatpush.bf16.msra.mxu0 %v7792
      %8186 = vmatpush.bf16.msra.mxu0 %v7788
      %8187 = vmatpush.bf16.msra.mxu0 %v7784
      %8188 = vmatpush.bf16.msra.mxu0 %v7780
      %8189 = vmatmul.bf16.gmra.mxu0 %v7526
      %v8190 = vpop.f32.mrf.mxu0
      %v8191 = vadd.f32 %v8147, %v8190
      %v8192 = vpop.f32.mrf.mxu0
      %v8193 = vadd.f32 %v8149, %v8192
      %8194 = vmatmul.bf16.gmra.mxu0 %v7528
      %v8195 = vpop.f32.mrf.mxu0
      %v8196 = vadd.f32 %v8152, %v8195
      %v8197 = vpop.f32.mrf.mxu0
      %v8198 = vadd.f32 %v8154, %v8197
      %8199 = vmatmul.bf16.gmra.mxu0 %v7530
      %v8200 = vpop.f32.mrf.mxu0
      %v8201 = vadd.f32 %v8157, %v8200
      %v8202 = vpop.f32.mrf.mxu0
      %v8203 = vadd.f32 %v8159, %v8202
      %8204 = vmatmul.bf16.gmra.mxu0 %v7532
      %v8205 = vpop.f32.mrf.mxu0
      %v8206 = vadd.f32 %v8162, %v8205
      %v8207 = vpop.f32.mrf.mxu0
      %v8208 = vadd.f32 %v8164, %v8207
      %8209 = vmatmul.bf16.gmra.mxu0 %v7534
      %v8210 = vpop.f32.mrf.mxu0
      %v8211 = vadd.f32 %v8167, %v8210
      %v8212 = vpop.f32.mrf.mxu0
      %v8213 = vadd.f32 %v8169, %v8212
      %8214 = vmatmul.bf16.gmra.mxu0 %v7536
      %v8215 = vpop.f32.mrf.mxu0
      %v8216 = vadd.f32 %v8172, %v8215
      %v8217 = vpop.f32.mrf.mxu0
      %v8218 = vadd.f32 %v8174, %v8217
      %8219 = vmatmul.bf16.gmra.mxu0 %v7538
      %v8220 = vpop.f32.mrf.mxu0
      %v8221 = vadd.f32 %v8177, %v8220
      %v8222 = vpop.f32.mrf.mxu0
      %v8223 = vadd.f32 %v8179, %v8222
      %8224 = vdwg.mxu0
      %s8225 = scalar_lea.vmem %s7, 1024
      %v8226 = vld [vmem:[%s8225] sm:$0xff]
      %v8227 = vld [vmem:[%s8225 + $0x8] sm:$0xff]
      %v8228 = vld [vmem:[%s8225 + $0x10] sm:$0xff]
      %v8229 = vld [vmem:[%s8225 + $0x18] sm:$0xff]
      %v8230 = vld [vmem:[%s8225 + $0x20] sm:$0xff]
      %v8231 = vld [vmem:[%s8225 + $0x28] sm:$0xff]
      %v8232 = vld [vmem:[%s8225 + $0x30] sm:$0xff]
      %v8233 = vld [vmem:[%s8225 + $0x38] sm:$0xff]
      %v8234 = vld [vmem:[%s8225 + $0x40] sm:$0xff]
      %v8235 = vld [vmem:[%s8225 + $0x48] sm:$0xff]
      %v8236 = vld [vmem:[%s8225 + $0x50] sm:$0xff]
      %v8237 = vld [vmem:[%s8225 + $0x58] sm:$0xff]
      %v8238 = vld [vmem:[%s8225 + $0x60] sm:$0xff]
      %v8239 = vld [vmem:[%s8225 + $0x68] sm:$0xff]
      %v8240 = vld [vmem:[%s8225 + $0x70] sm:$0xff]
      %v8241 = vld [vmem:[%s8225 + $0x78] sm:$0xff]
      %v8242 = vld [vmem:[%s8225 + $0x80] sm:$0xff]
      %v8243 = vld [vmem:[%s8225 + $0x88] sm:$0xff]
      %v8244 = vld [vmem:[%s8225 + $0x90] sm:$0xff]
      %v8245 = vld [vmem:[%s8225 + $0x98] sm:$0xff]
      %v8246 = vld [vmem:[%s8225 + $0xa0] sm:$0xff]
      %v8247 = vld [vmem:[%s8225 + $0xa8] sm:$0xff]
      %v8248 = vld [vmem:[%s8225 + $0xb0] sm:$0xff]
      %v8249 = vld [vmem:[%s8225 + $0xb8] sm:$0xff]
      %v8250 = vld [vmem:[%s8225 + $0xc0] sm:$0xff]
      %v8251 = vld [vmem:[%s8225 + $0xc8] sm:$0xff]
      %v8252 = vld [vmem:[%s8225 + $0xd0] sm:$0xff]
      %v8253 = vld [vmem:[%s8225 + $0xd8] sm:$0xff]
      %v8254 = vld [vmem:[%s8225 + $0xe0] sm:$0xff]
      %v8255 = vld [vmem:[%s8225 + $0xe8] sm:$0xff]
      %v8256 = vld [vmem:[%s8225 + $0xf0] sm:$0xff]
      %v8257 = vld [vmem:[%s8225 + $0xf8] sm:$0xff]
      %v8258 = vld [vmem:[%s8225 + $0x100] sm:$0xff]
      %v8259 = vld [vmem:[%s8225 + $0x108] sm:$0xff]
      %v8260 = vld [vmem:[%s8225 + $0x110] sm:$0xff]
      %v8261 = vld [vmem:[%s8225 + $0x118] sm:$0xff]
      %v8262 = vld [vmem:[%s8225 + $0x120] sm:$0xff]
      %v8263 = vld [vmem:[%s8225 + $0x128] sm:$0xff]
      %v8264 = vld [vmem:[%s8225 + $0x130] sm:$0xff]
      %v8265 = vld [vmem:[%s8225 + $0x138] sm:$0xff]
      %v8266 = vld [vmem:[%s8225 + $0x140] sm:$0xff]
      %v8267 = vld [vmem:[%s8225 + $0x148] sm:$0xff]
      %v8268 = vld [vmem:[%s8225 + $0x150] sm:$0xff]
      %v8269 = vld [vmem:[%s8225 + $0x158] sm:$0xff]
      %v8270 = vld [vmem:[%s8225 + $0x160] sm:$0xff]
      %v8271 = vld [vmem:[%s8225 + $0x168] sm:$0xff]
      %v8272 = vld [vmem:[%s8225 + $0x170] sm:$0xff]
      %v8273 = vld [vmem:[%s8225 + $0x178] sm:$0xff]
      %v8274 = vld [vmem:[%s8225 + $0x180] sm:$0xff]
      %v8275 = vld [vmem:[%s8225 + $0x188] sm:$0xff]
      %v8276 = vld [vmem:[%s8225 + $0x190] sm:$0xff]
      %v8277 = vld [vmem:[%s8225 + $0x198] sm:$0xff]
      %v8278 = vld [vmem:[%s8225 + $0x1a0] sm:$0xff]
      %v8279 = vld [vmem:[%s8225 + $0x1a8] sm:$0xff]
      %v8280 = vld [vmem:[%s8225 + $0x1b0] sm:$0xff]
      %v8281 = vld [vmem:[%s8225 + $0x1b8] sm:$0xff]
      %v8282 = vld [vmem:[%s8225 + $0x1c0] sm:$0xff]
      %v8283 = vld [vmem:[%s8225 + $0x1c8] sm:$0xff]
      %v8284 = vld [vmem:[%s8225 + $0x1d0] sm:$0xff]
      %v8285 = vld [vmem:[%s8225 + $0x1d8] sm:$0xff]
      %v8286 = vld [vmem:[%s8225 + $0x1e0] sm:$0xff]
      %v8287 = vld [vmem:[%s8225 + $0x1e8] sm:$0xff]
      %v8288 = vld [vmem:[%s8225 + $0x1f0] sm:$0xff]
      %v8289 = vld [vmem:[%s8225 + $0x1f8] sm:$0xff]
      %v8304 = vunpack.c.l.b16 %v6570
      %v8305 = vunpack.c.h.b16 %v6570
      %v8306 = vunpack.c.l.b16 %v6571
      %v8307 = vunpack.c.h.b16 %v6571
      %v8308 = vunpack.c.l.b16 %v6572
      %v8309 = vunpack.c.h.b16 %v6572
      %v8310 = vunpack.c.l.b16 %v6573
      %v8311 = vunpack.c.h.b16 %v6573
      %v8312 = vunpack.c.l.b16 %v6574
      %v8313 = vunpack.c.h.b16 %v6574
      %v8314 = vunpack.c.l.b16 %v6575
      %v8315 = vunpack.c.h.b16 %v6575
      %v8316 = vunpack.c.l.b16 %v6576
      %v8317 = vunpack.c.h.b16 %v6576
      %v8318 = vunpack.c.l.b16 %v6577
      %v8319 = vunpack.c.h.b16 %v6577
      %v8320 = vunpack.c.l.b16 %v6578
      %v8321 = vunpack.c.h.b16 %v6578
      %v8322 = vunpack.c.l.b16 %v6579
      %v8323 = vunpack.c.h.b16 %v6579
      %v8324 = vunpack.c.l.b16 %v6580
      %v8325 = vunpack.c.h.b16 %v6580
      %v8326 = vunpack.c.l.b16 %v6581
      %v8327 = vunpack.c.h.b16 %v6581
      %v8328 = vunpack.c.l.b16 %v6582
      %v8329 = vunpack.c.h.b16 %v6582
      %v8330 = vunpack.c.l.b16 %v6583
      %v8331 = vunpack.c.h.b16 %v6583
      %v8332 = vpack.c.b16 %v8306, %v8304
      %v8333 = vpack.c.b16 %v8307, %v8305
      %v8334 = vpack.c.b16 %v8310, %v8308
      %v8335 = vpack.c.b16 %v8311, %v8309
      %v8336 = vpack.c.b16 %v8314, %v8312
      %v8337 = vpack.c.b16 %v8315, %v8313
      %v8338 = vpack.c.b16 %v8318, %v8316
      %v8339 = vpack.c.b16 %v8319, %v8317
      %v8340 = vpack.c.b16 %v8322, %v8320
      %v8341 = vpack.c.b16 %v8323, %v8321
      %v8342 = vpack.c.b16 %v8326, %v8324
      %v8343 = vpack.c.b16 %v8327, %v8325
      %v8344 = vpack.c.b16 %v8330, %v8328
      %v8345 = vpack.c.b16 %v8331, %v8329
      %v8424 = vunpack.c.l.b16 %v8226
      %v8425 = vunpack.c.h.b16 %v8226
      %v8426 = vunpack.c.l.b16 %v8227
      %v8427 = vunpack.c.h.b16 %v8227
      %v8428 = vunpack.c.l.b16 %v8228
      %v8429 = vunpack.c.h.b16 %v8228
      %v8430 = vunpack.c.l.b16 %v8229
      %v8431 = vunpack.c.h.b16 %v8229
      %v8432 = vunpack.c.l.b16 %v8230
      %v8433 = vunpack.c.h.b16 %v8230
      %v8434 = vunpack.c.l.b16 %v8231
      %v8435 = vunpack.c.h.b16 %v8231
      %v8436 = vunpack.c.l.b16 %v8232
      %v8437 = vunpack.c.h.b16 %v8232
      %v8438 = vunpack.c.l.b16 %v8233
      %v8439 = vunpack.c.h.b16 %v8233
      %v8440 = vunpack.c.l.b16 %v8234
      %v8441 = vunpack.c.h.b16 %v8234
      %v8442 = vunpack.c.l.b16 %v8235
      %v8443 = vunpack.c.h.b16 %v8235
      %v8444 = vunpack.c.l.b16 %v8236
      %v8445 = vunpack.c.h.b16 %v8236
      %v8446 = vunpack.c.l.b16 %v8237
      %v8447 = vunpack.c.h.b16 %v8237
      %v8448 = vunpack.c.l.b16 %v8238
      %v8449 = vunpack.c.h.b16 %v8238
      %v8450 = vunpack.c.l.b16 %v8239
      %v8451 = vunpack.c.h.b16 %v8239
      %v8452 = vunpack.c.l.b16 %v8240
      %v8453 = vunpack.c.h.b16 %v8240
      %v8454 = vunpack.c.l.b16 %v8241
      %v8455 = vunpack.c.h.b16 %v8241
      %v8456 = vunpack.c.l.b16 %v8242
      %v8457 = vunpack.c.h.b16 %v8242
      %v8458 = vunpack.c.l.b16 %v8243
      %v8459 = vunpack.c.h.b16 %v8243
      %v8460 = vunpack.c.l.b16 %v8244
      %v8461 = vunpack.c.h.b16 %v8244
      %v8462 = vunpack.c.l.b16 %v8245
      %v8463 = vunpack.c.h.b16 %v8245
      %v8464 = vunpack.c.l.b16 %v8246
      %v8465 = vunpack.c.h.b16 %v8246
      %v8466 = vunpack.c.l.b16 %v8247
      %v8467 = vunpack.c.h.b16 %v8247
      %v8468 = vunpack.c.l.b16 %v8248
      %v8469 = vunpack.c.h.b16 %v8248
      %v8470 = vunpack.c.l.b16 %v8249
      %v8471 = vunpack.c.h.b16 %v8249
      %v8472 = vunpack.c.l.b16 %v8250
      %v8473 = vunpack.c.h.b16 %v8250
      %v8474 = vunpack.c.l.b16 %v8251
      %v8475 = vunpack.c.h.b16 %v8251
      %v8476 = vunpack.c.l.b16 %v8252
      %v8477 = vunpack.c.h.b16 %v8252
      %v8478 = vunpack.c.l.b16 %v8253
      %v8479 = vunpack.c.h.b16 %v8253
      %v8480 = vunpack.c.l.b16 %v8254
      %v8481 = vunpack.c.h.b16 %v8254
      %v8482 = vunpack.c.l.b16 %v8255
      %v8483 = vunpack.c.h.b16 %v8255
      %v8484 = vunpack.c.l.b16 %v8256
      %v8485 = vunpack.c.h.b16 %v8256
      %v8486 = vunpack.c.l.b16 %v8257
      %v8487 = vunpack.c.h.b16 %v8257
      %v8488 = vunpack.c.l.b16 %v8258
      %v8489 = vunpack.c.h.b16 %v8258
      %v8490 = vunpack.c.l.b16 %v8259
      %v8491 = vunpack.c.h.b16 %v8259
      %v8492 = vunpack.c.l.b16 %v8260
      %v8493 = vunpack.c.h.b16 %v8260
      %v8494 = vunpack.c.l.b16 %v8261
      %v8495 = vunpack.c.h.b16 %v8261
      %v8496 = vunpack.c.l.b16 %v8262
      %v8497 = vunpack.c.h.b16 %v8262
      %v8498 = vunpack.c.l.b16 %v8263
      %v8499 = vunpack.c.h.b16 %v8263
      %v8500 = vunpack.c.l.b16 %v8264
      %v8501 = vunpack.c.h.b16 %v8264
      %v8502 = vunpack.c.l.b16 %v8265
      %v8503 = vunpack.c.h.b16 %v8265
      %v8504 = vunpack.c.l.b16 %v8266
      %v8505 = vunpack.c.h.b16 %v8266
      %v8506 = vunpack.c.l.b16 %v8267
      %v8507 = vunpack.c.h.b16 %v8267
      %v8508 = vunpack.c.l.b16 %v8268
      %v8509 = vunpack.c.h.b16 %v8268
      %v8510 = vunpack.c.l.b16 %v8269
      %v8511 = vunpack.c.h.b16 %v8269
      %v8512 = vunpack.c.l.b16 %v8270
      %v8513 = vunpack.c.h.b16 %v8270
      %v8514 = vunpack.c.l.b16 %v8271
      %v8515 = vunpack.c.h.b16 %v8271
      %v8516 = vunpack.c.l.b16 %v8272
      %v8517 = vunpack.c.h.b16 %v8272
      %v8518 = vunpack.c.l.b16 %v8273
      %v8519 = vunpack.c.h.b16 %v8273
      %v8520 = vunpack.c.l.b16 %v8274
      %v8521 = vunpack.c.h.b16 %v8274
      %v8522 = vunpack.c.l.b16 %v8275
      %v8523 = vunpack.c.h.b16 %v8275
      %v8524 = vunpack.c.l.b16 %v8276
      %v8525 = vunpack.c.h.b16 %v8276
      %v8526 = vunpack.c.l.b16 %v8277
      %v8527 = vunpack.c.h.b16 %v8277
      %v8528 = vunpack.c.l.b16 %v8278
      %v8529 = vunpack.c.h.b16 %v8278
      %v8530 = vunpack.c.l.b16 %v8279
      %v8531 = vunpack.c.h.b16 %v8279
      %v8532 = vunpack.c.l.b16 %v8280
      %v8533 = vunpack.c.h.b16 %v8280
      %v8534 = vunpack.c.l.b16 %v8281
      %v8535 = vunpack.c.h.b16 %v8281
      %v8536 = vunpack.c.l.b16 %v8282
      %v8537 = vunpack.c.h.b16 %v8282
      %v8538 = vunpack.c.l.b16 %v8283
      %v8539 = vunpack.c.h.b16 %v8283
      %v8540 = vunpack.c.l.b16 %v8284
      %v8541 = vunpack.c.h.b16 %v8284
      %v8542 = vunpack.c.l.b16 %v8285
      %v8543 = vunpack.c.h.b16 %v8285
      %v8544 = vunpack.c.l.b16 %v8286
      %v8545 = vunpack.c.h.b16 %v8286
      %v8546 = vunpack.c.l.b16 %v8287
      %v8547 = vunpack.c.h.b16 %v8287
      %v8548 = vunpack.c.l.b16 %v8288
      %v8549 = vunpack.c.h.b16 %v8288
      %v8550 = vunpack.c.l.b16 %v8289
      %v8551 = vunpack.c.h.b16 %v8289
      %v8552 = vpack.c.b16 %v8428, %v8424
      %v8553 = vpack.c.b16 %v8429, %v8425
      %v8554 = vpack.c.b16 %v8430, %v8426
      %v8555 = vpack.c.b16 %v8431, %v8427
      %v8556 = vpack.c.b16 %v8436, %v8432
      %v8557 = vpack.c.b16 %v8437, %v8433
      %v8558 = vpack.c.b16 %v8438, %v8434
      %v8559 = vpack.c.b16 %v8439, %v8435
      %v8560 = vpack.c.b16 %v8444, %v8440
      %v8561 = vpack.c.b16 %v8445, %v8441
      %v8562 = vpack.c.b16 %v8446, %v8442
      %v8563 = vpack.c.b16 %v8447, %v8443
      %v8564 = vpack.c.b16 %v8452, %v8448
      %v8565 = vpack.c.b16 %v8453, %v8449
      %v8566 = vpack.c.b16 %v8454, %v8450
      %v8567 = vpack.c.b16 %v8455, %v8451
      %v8568 = vpack.c.b16 %v8460, %v8456
      %v8569 = vpack.c.b16 %v8461, %v8457
      %v8570 = vpack.c.b16 %v8462, %v8458
      %v8571 = vpack.c.b16 %v8463, %v8459
      %v8572 = vpack.c.b16 %v8468, %v8464
      %v8573 = vpack.c.b16 %v8469, %v8465
      %v8574 = vpack.c.b16 %v8470, %v8466
      %v8575 = vpack.c.b16 %v8471, %v8467
      %v8576 = vpack.c.b16 %v8476, %v8472
      %v8577 = vpack.c.b16 %v8477, %v8473
      %v8578 = vpack.c.b16 %v8478, %v8474
      %v8579 = vpack.c.b16 %v8479, %v8475
      %v8580 = vpack.c.b16 %v8484, %v8480
      %v8581 = vpack.c.b16 %v8485, %v8481
      %v8582 = vpack.c.b16 %v8486, %v8482
      %v8583 = vpack.c.b16 %v8487, %v8483
      %v8584 = vpack.c.b16 %v8492, %v8488
      %v8585 = vpack.c.b16 %v8493, %v8489
      %v8586 = vpack.c.b16 %v8494, %v8490
      %v8587 = vpack.c.b16 %v8495, %v8491
      %v8588 = vpack.c.b16 %v8500, %v8496
      %v8589 = vpack.c.b16 %v8501, %v8497
      %v8590 = vpack.c.b16 %v8502, %v8498
      %v8591 = vpack.c.b16 %v8503, %v8499
      %v8592 = vpack.c.b16 %v8508, %v8504
      %v8593 = vpack.c.b16 %v8509, %v8505
      %v8594 = vpack.c.b16 %v8510, %v8506
      %v8595 = vpack.c.b16 %v8511, %v8507
      %v8596 = vpack.c.b16 %v8516, %v8512
      %v8597 = vpack.c.b16 %v8517, %v8513
      %v8598 = vpack.c.b16 %v8518, %v8514
      %v8599 = vpack.c.b16 %v8519, %v8515
      %v8600 = vpack.c.b16 %v8524, %v8520
      %v8601 = vpack.c.b16 %v8525, %v8521
      %v8602 = vpack.c.b16 %v8526, %v8522
      %v8603 = vpack.c.b16 %v8527, %v8523
      %v8604 = vpack.c.b16 %v8532, %v8528
      %v8605 = vpack.c.b16 %v8533, %v8529
      %v8606 = vpack.c.b16 %v8534, %v8530
      %v8607 = vpack.c.b16 %v8535, %v8531
      %v8608 = vpack.c.b16 %v8540, %v8536
      %v8609 = vpack.c.b16 %v8541, %v8537
      %v8610 = vpack.c.b16 %v8542, %v8538
      %v8611 = vpack.c.b16 %v8543, %v8539
      %v8612 = vpack.c.b16 %v8548, %v8544
      %v8613 = vpack.c.b16 %v8549, %v8545
      %v8614 = vpack.c.b16 %v8550, %v8546
      %v8615 = vpack.c.b16 %v8551, %v8547
      %8680 = vmatpush.bf16.msra.mxu0 %v8580
      %8681 = vmatpush.bf16.msra.mxu0 %v8576
      %8682 = vmatpush.bf16.msra.mxu0 %v8572
      %8683 = vmatpush.bf16.msra.mxu0 %v8568
      %8684 = vmatpush.bf16.msra.mxu0 %v8564
      %8685 = vmatpush.bf16.msra.mxu0 %v8560
      %8686 = vmatpush.bf16.msra.mxu0 %v8556
      %8687 = vmatpush.bf16.msra.mxu0 %v8552
      %8688 = vmatmul.bf16.gmra.mxu0 %v8332
      %v8689 = vpop.f32.mrf.mxu0
      %v8690 = vadd.f32 0.0, %v8689
      %v8691 = vpop.f32.mrf.mxu0
      %v8692 = vadd.f32 0.0, %v8691
      %8693 = vmatmul.bf16.gmra.mxu0 %v8334
      %v8694 = vpop.f32.mrf.mxu0
      %v8695 = vadd.f32 0.0, %v8694
      %v8696 = vpop.f32.mrf.mxu0
      %v8697 = vadd.f32 0.0, %v8696
      %8698 = vmatmul.bf16.gmra.mxu0 %v8336
      %v8699 = vpop.f32.mrf.mxu0
      %v8700 = vadd.f32 0.0, %v8699
      %v8701 = vpop.f32.mrf.mxu0
      %v8702 = vadd.f32 0.0, %v8701
      %8703 = vmatmul.bf16.gmra.mxu0 %v8338
      %v8704 = vpop.f32.mrf.mxu0
      %v8705 = vadd.f32 0.0, %v8704
      %v8706 = vpop.f32.mrf.mxu0
      %v8707 = vadd.f32 0.0, %v8706
      %8708 = vmatmul.bf16.gmra.mxu0 %v8340
      %v8709 = vpop.f32.mrf.mxu0
      %v8710 = vadd.f32 0.0, %v8709
      %v8711 = vpop.f32.mrf.mxu0
      %v8712 = vadd.f32 0.0, %v8711
      %8713 = vmatmul.bf16.gmra.mxu0 %v8342
      %v8714 = vpop.f32.mrf.mxu0
      %v8715 = vadd.f32 0.0, %v8714
      %v8716 = vpop.f32.mrf.mxu0
      %v8717 = vadd.f32 0.0, %v8716
      %8718 = vmatmul.bf16.gmra.mxu0 %v8344
      %v8719 = vpop.f32.mrf.mxu0
      %v8720 = vadd.f32 0.0, %v8719
      %v8721 = vpop.f32.mrf.mxu0
      %v8722 = vadd.f32 0.0, %v8721
      %8723 = vdwg.mxu0
      %8724 = vmatpush.bf16.msra.mxu0 %v8612
      %8725 = vmatpush.bf16.msra.mxu0 %v8608
      %8726 = vmatpush.bf16.msra.mxu0 %v8604
      %8727 = vmatpush.bf16.msra.mxu0 %v8600
      %8728 = vmatpush.bf16.msra.mxu0 %v8596
      %8729 = vmatpush.bf16.msra.mxu0 %v8592
      %8730 = vmatpush.bf16.msra.mxu0 %v8588
      %8731 = vmatpush.bf16.msra.mxu0 %v8584
      %8732 = vmatmul.bf16.gmra.mxu0 %v8333
      %v8733 = vpop.f32.mrf.mxu0
      %v8734 = vadd.f32 %v8690, %v8733
      %v8735 = vpop.f32.mrf.mxu0
      %v8736 = vadd.f32 %v8692, %v8735
      %8737 = vmatmul.bf16.gmra.mxu0 %v8335
      %v8738 = vpop.f32.mrf.mxu0
      %v8739 = vadd.f32 %v8695, %v8738
      %v8740 = vpop.f32.mrf.mxu0
      %v8741 = vadd.f32 %v8697, %v8740
      %8742 = vmatmul.bf16.gmra.mxu0 %v8337
      %v8743 = vpop.f32.mrf.mxu0
      %v8744 = vadd.f32 %v8700, %v8743
      %v8745 = vpop.f32.mrf.mxu0
      %v8746 = vadd.f32 %v8702, %v8745
      %8747 = vmatmul.bf16.gmra.mxu0 %v8339
      %v8748 = vpop.f32.mrf.mxu0
      %v8749 = vadd.f32 %v8705, %v8748
      %v8750 = vpop.f32.mrf.mxu0
      %v8751 = vadd.f32 %v8707, %v8750
      %8752 = vmatmul.bf16.gmra.mxu0 %v8341
      %v8753 = vpop.f32.mrf.mxu0
      %v8754 = vadd.f32 %v8710, %v8753
      %v8755 = vpop.f32.mrf.mxu0
      %v8756 = vadd.f32 %v8712, %v8755
      %8757 = vmatmul.bf16.gmra.mxu0 %v8343
      %v8758 = vpop.f32.mrf.mxu0
      %v8759 = vadd.f32 %v8715, %v8758
      %v8760 = vpop.f32.mrf.mxu0
      %v8761 = vadd.f32 %v8717, %v8760
      %8762 = vmatmul.bf16.gmra.mxu0 %v8345
      %v8763 = vpop.f32.mrf.mxu0
      %v8764 = vadd.f32 %v8720, %v8763
      %v8765 = vpop.f32.mrf.mxu0
      %v8766 = vadd.f32 %v8722, %v8765
      %8767 = vdwg.mxu0
      %8768 = vmatpush.bf16.msra.mxu0 %v8581
      %8769 = vmatpush.bf16.msra.mxu0 %v8577
      %8770 = vmatpush.bf16.msra.mxu0 %v8573
      %8771 = vmatpush.bf16.msra.mxu0 %v8569
      %8772 = vmatpush.bf16.msra.mxu0 %v8565
      %8773 = vmatpush.bf16.msra.mxu0 %v8561
      %8774 = vmatpush.bf16.msra.mxu0 %v8557
      %8775 = vmatpush.bf16.msra.mxu0 %v8553
      %8776 = vmatmul.bf16.gmra.mxu0 %v8332
      %v8777 = vpop.f32.mrf.mxu0
      %v8778 = vadd.f32 0.0, %v8777
      %v8779 = vpop.f32.mrf.mxu0
      %v8780 = vadd.f32 0.0, %v8779
      %8781 = vmatmul.bf16.gmra.mxu0 %v8334
      %v8782 = vpop.f32.mrf.mxu0
      %v8783 = vadd.f32 0.0, %v8782
      %v8784 = vpop.f32.mrf.mxu0
      %v8785 = vadd.f32 0.0, %v8784
      %8786 = vmatmul.bf16.gmra.mxu0 %v8336
      %v8787 = vpop.f32.mrf.mxu0
      %v8788 = vadd.f32 0.0, %v8787
      %v8789 = vpop.f32.mrf.mxu0
      %v8790 = vadd.f32 0.0, %v8789
      %8791 = vmatmul.bf16.gmra.mxu0 %v8338
      %v8792 = vpop.f32.mrf.mxu0
      %v8793 = vadd.f32 0.0, %v8792
      %v8794 = vpop.f32.mrf.mxu0
      %v8795 = vadd.f32 0.0, %v8794
      %8796 = vmatmul.bf16.gmra.mxu0 %v8340
      %v8797 = vpop.f32.mrf.mxu0
      %v8798 = vadd.f32 0.0, %v8797
      %v8799 = vpop.f32.mrf.mxu0
      %v8800 = vadd.f32 0.0, %v8799
      %8801 = vmatmul.bf16.gmra.mxu0 %v8342
      %v8802 = vpop.f32.mrf.mxu0
      %v8803 = vadd.f32 0.0, %v8802
      %v8804 = vpop.f32.mrf.mxu0
      %v8805 = vadd.f32 0.0, %v8804
      %8806 = vmatmul.bf16.gmra.mxu0 %v8344
      %v8807 = vpop.f32.mrf.mxu0
      %v8808 = vadd.f32 0.0, %v8807
      %v8809 = vpop.f32.mrf.mxu0
      %v8810 = vadd.f32 0.0, %v8809
      %8811 = vdwg.mxu0
      %8812 = vmatpush.bf16.msra.mxu0 %v8613
      %8813 = vmatpush.bf16.msra.mxu0 %v8609
      %8814 = vmatpush.bf16.msra.mxu0 %v8605
      %8815 = vmatpush.bf16.msra.mxu0 %v8601
      %8816 = vmatpush.bf16.msra.mxu0 %v8597
      %8817 = vmatpush.bf16.msra.mxu0 %v8593
      %8818 = vmatpush.bf16.msra.mxu0 %v8589
      %8819 = vmatpush.bf16.msra.mxu0 %v8585
      %8820 = vmatmul.bf16.gmra.mxu0 %v8333
      %v8821 = vpop.f32.mrf.mxu0
      %v8822 = vadd.f32 %v8778, %v8821
      %v8823 = vpop.f32.mrf.mxu0
      %v8824 = vadd.f32 %v8780, %v8823
      %8825 = vmatmul.bf16.gmra.mxu0 %v8335
      %v8826 = vpop.f32.mrf.mxu0
      %v8827 = vadd.f32 %v8783, %v8826
      %v8828 = vpop.f32.mrf.mxu0
      %v8829 = vadd.f32 %v8785, %v8828
      %8830 = vmatmul.bf16.gmra.mxu0 %v8337
      %v8831 = vpop.f32.mrf.mxu0
      %v8832 = vadd.f32 %v8788, %v8831
      %v8833 = vpop.f32.mrf.mxu0
      %v8834 = vadd.f32 %v8790, %v8833
      %8835 = vmatmul.bf16.gmra.mxu0 %v8339
      %v8836 = vpop.f32.mrf.mxu0
      %v8837 = vadd.f32 %v8793, %v8836
      %v8838 = vpop.f32.mrf.mxu0
      %v8839 = vadd.f32 %v8795, %v8838
      %8840 = vmatmul.bf16.gmra.mxu0 %v8341
      %v8841 = vpop.f32.mrf.mxu0
      %v8842 = vadd.f32 %v8798, %v8841
      %v8843 = vpop.f32.mrf.mxu0
      %v8844 = vadd.f32 %v8800, %v8843
      %8845 = vmatmul.bf16.gmra.mxu0 %v8343
      %v8846 = vpop.f32.mrf.mxu0
      %v8847 = vadd.f32 %v8803, %v8846
      %v8848 = vpop.f32.mrf.mxu0
      %v8849 = vadd.f32 %v8805, %v8848
      %8850 = vmatmul.bf16.gmra.mxu0 %v8345
      %v8851 = vpop.f32.mrf.mxu0
      %v8852 = vadd.f32 %v8808, %v8851
      %v8853 = vpop.f32.mrf.mxu0
      %v8854 = vadd.f32 %v8810, %v8853
      %8855 = vdwg.mxu0
      %8856 = vmatpush.bf16.msra.mxu0 %v8582
      %8857 = vmatpush.bf16.msra.mxu0 %v8578
      %8858 = vmatpush.bf16.msra.mxu0 %v8574
      %8859 = vmatpush.bf16.msra.mxu0 %v8570
      %8860 = vmatpush.bf16.msra.mxu0 %v8566
      %8861 = vmatpush.bf16.msra.mxu0 %v8562
      %8862 = vmatpush.bf16.msra.mxu0 %v8558
      %8863 = vmatpush.bf16.msra.mxu0 %v8554
      %8864 = vmatmul.bf16.gmra.mxu0 %v8332
      %v8865 = vpop.f32.mrf.mxu0
      %v8866 = vadd.f32 0.0, %v8865
      %v8867 = vpop.f32.mrf.mxu0
      %v8868 = vadd.f32 0.0, %v8867
      %8869 = vmatmul.bf16.gmra.mxu0 %v8334
      %v8870 = vpop.f32.mrf.mxu0
      %v8871 = vadd.f32 0.0, %v8870
      %v8872 = vpop.f32.mrf.mxu0
      %v8873 = vadd.f32 0.0, %v8872
      %8874 = vmatmul.bf16.gmra.mxu0 %v8336
      %v8875 = vpop.f32.mrf.mxu0
      %v8876 = vadd.f32 0.0, %v8875
      %v8877 = vpop.f32.mrf.mxu0
      %v8878 = vadd.f32 0.0, %v8877
      %8879 = vmatmul.bf16.gmra.mxu0 %v8338
      %v8880 = vpop.f32.mrf.mxu0
      %v8881 = vadd.f32 0.0, %v8880
      %v8882 = vpop.f32.mrf.mxu0
      %v8883 = vadd.f32 0.0, %v8882
      %8884 = vmatmul.bf16.gmra.mxu0 %v8340
      %v8885 = vpop.f32.mrf.mxu0
      %v8886 = vadd.f32 0.0, %v8885
      %v8887 = vpop.f32.mrf.mxu0
      %v8888 = vadd.f32 0.0, %v8887
      %8889 = vmatmul.bf16.gmra.mxu0 %v8342
      %v8890 = vpop.f32.mrf.mxu0
      %v8891 = vadd.f32 0.0, %v8890
      %v8892 = vpop.f32.mrf.mxu0
      %v8893 = vadd.f32 0.0, %v8892
      %8894 = vmatmul.bf16.gmra.mxu0 %v8344
      %v8895 = vpop.f32.mrf.mxu0
      %v8896 = vadd.f32 0.0, %v8895
      %v8897 = vpop.f32.mrf.mxu0
      %v8898 = vadd.f32 0.0, %v8897
      %8899 = vdwg.mxu0
      %8900 = vmatpush.bf16.msra.mxu0 %v8614
      %8901 = vmatpush.bf16.msra.mxu0 %v8610
      %8902 = vmatpush.bf16.msra.mxu0 %v8606
      %8903 = vmatpush.bf16.msra.mxu0 %v8602
      %8904 = vmatpush.bf16.msra.mxu0 %v8598
      %8905 = vmatpush.bf16.msra.mxu0 %v8594
      %8906 = vmatpush.bf16.msra.mxu0 %v8590
      %8907 = vmatpush.bf16.msra.mxu0 %v8586
      %8908 = vmatmul.bf16.gmra.mxu0 %v8333
      %v8909 = vpop.f32.mrf.mxu0
      %v8910 = vadd.f32 %v8866, %v8909
      %v8911 = vpop.f32.mrf.mxu0
      %v8912 = vadd.f32 %v8868, %v8911
      %8913 = vmatmul.bf16.gmra.mxu0 %v8335
      %v8914 = vpop.f32.mrf.mxu0
      %v8915 = vadd.f32 %v8871, %v8914
      %v8916 = vpop.f32.mrf.mxu0
      %v8917 = vadd.f32 %v8873, %v8916
      %8918 = vmatmul.bf16.gmra.mxu0 %v8337
      %v8919 = vpop.f32.mrf.mxu0
      %v8920 = vadd.f32 %v8876, %v8919
      %v8921 = vpop.f32.mrf.mxu0
      %v8922 = vadd.f32 %v8878, %v8921
      %8923 = vmatmul.bf16.gmra.mxu0 %v8339
      %v8924 = vpop.f32.mrf.mxu0
      %v8925 = vadd.f32 %v8881, %v8924
      %v8926 = vpop.f32.mrf.mxu0
      %v8927 = vadd.f32 %v8883, %v8926
      %8928 = vmatmul.bf16.gmra.mxu0 %v8341
      %v8929 = vpop.f32.mrf.mxu0
      %v8930 = vadd.f32 %v8886, %v8929
      %v8931 = vpop.f32.mrf.mxu0
      %v8932 = vadd.f32 %v8888, %v8931
      %8933 = vmatmul.bf16.gmra.mxu0 %v8343
      %v8934 = vpop.f32.mrf.mxu0
      %v8935 = vadd.f32 %v8891, %v8934
      %v8936 = vpop.f32.mrf.mxu0
      %v8937 = vadd.f32 %v8893, %v8936
      %8938 = vmatmul.bf16.gmra.mxu0 %v8345
      %v8939 = vpop.f32.mrf.mxu0
      %v8940 = vadd.f32 %v8896, %v8939
      %v8941 = vpop.f32.mrf.mxu0
      %v8942 = vadd.f32 %v8898, %v8941
      %8943 = vdwg.mxu0
      %8944 = vmatpush.bf16.msra.mxu0 %v8583
      %8945 = vmatpush.bf16.msra.mxu0 %v8579
      %8946 = vmatpush.bf16.msra.mxu0 %v8575
      %8947 = vmatpush.bf16.msra.mxu0 %v8571
      %8948 = vmatpush.bf16.msra.mxu0 %v8567
      %8949 = vmatpush.bf16.msra.mxu0 %v8563
      %8950 = vmatpush.bf16.msra.mxu0 %v8559
      %8951 = vmatpush.bf16.msra.mxu0 %v8555
      %8952 = vmatmul.bf16.gmra.mxu0 %v8332
      %v8953 = vpop.f32.mrf.mxu0
      %v8954 = vadd.f32 0.0, %v8953
      %v8955 = vpop.f32.mrf.mxu0
      %v8956 = vadd.f32 0.0, %v8955
      %8957 = vmatmul.bf16.gmra.mxu0 %v8334
      %v8958 = vpop.f32.mrf.mxu0
      %v8959 = vadd.f32 0.0, %v8958
      %v8960 = vpop.f32.mrf.mxu0
      %v8961 = vadd.f32 0.0, %v8960
      %8962 = vmatmul.bf16.gmra.mxu0 %v8336
      %v8963 = vpop.f32.mrf.mxu0
      %v8964 = vadd.f32 0.0, %v8963
      %v8965 = vpop.f32.mrf.mxu0
      %v8966 = vadd.f32 0.0, %v8965
      %8967 = vmatmul.bf16.gmra.mxu0 %v8338
      %v8968 = vpop.f32.mrf.mxu0
      %v8969 = vadd.f32 0.0, %v8968
      %v8970 = vpop.f32.mrf.mxu0
      %v8971 = vadd.f32 0.0, %v8970
      %8972 = vmatmul.bf16.gmra.mxu0 %v8340
      %v8973 = vpop.f32.mrf.mxu0
      %v8974 = vadd.f32 0.0, %v8973
      %v8975 = vpop.f32.mrf.mxu0
      %v8976 = vadd.f32 0.0, %v8975
      %8977 = vmatmul.bf16.gmra.mxu0 %v8342
      %v8978 = vpop.f32.mrf.mxu0
      %v8979 = vadd.f32 0.0, %v8978
      %v8980 = vpop.f32.mrf.mxu0
      %v8981 = vadd.f32 0.0, %v8980
      %8982 = vmatmul.bf16.gmra.mxu0 %v8344
      %v8983 = vpop.f32.mrf.mxu0
      %v8984 = vadd.f32 0.0, %v8983
      %v8985 = vpop.f32.mrf.mxu0
      %v8986 = vadd.f32 0.0, %v8985
      %8987 = vdwg.mxu0
      %8988 = vmatpush.bf16.msra.mxu0 %v8615
      %8989 = vmatpush.bf16.msra.mxu0 %v8611
      %8990 = vmatpush.bf16.msra.mxu0 %v8607
      %8991 = vmatpush.bf16.msra.mxu0 %v8603
      %8992 = vmatpush.bf16.msra.mxu0 %v8599
      %8993 = vmatpush.bf16.msra.mxu0 %v8595
      %8994 = vmatpush.bf16.msra.mxu0 %v8591
      %8995 = vmatpush.bf16.msra.mxu0 %v8587
      %8996 = vmatmul.bf16.gmra.mxu0 %v8333
      %v8997 = vpop.f32.mrf.mxu0
      %v8998 = vadd.f32 %v8954, %v8997
      %v8999 = vpop.f32.mrf.mxu0
      %v9000 = vadd.f32 %v8956, %v8999
      %9001 = vmatmul.bf16.gmra.mxu0 %v8335
      %v9002 = vpop.f32.mrf.mxu0
      %v9003 = vadd.f32 %v8959, %v9002
      %v9004 = vpop.f32.mrf.mxu0
      %v9005 = vadd.f32 %v8961, %v9004
      %9006 = vmatmul.bf16.gmra.mxu0 %v8337
      %v9007 = vpop.f32.mrf.mxu0
      %v9008 = vadd.f32 %v8964, %v9007
      %v9009 = vpop.f32.mrf.mxu0
      %v9010 = vadd.f32 %v8966, %v9009
      %9011 = vmatmul.bf16.gmra.mxu0 %v8339
      %v9012 = vpop.f32.mrf.mxu0
      %v9013 = vadd.f32 %v8969, %v9012
      %v9014 = vpop.f32.mrf.mxu0
      %v9015 = vadd.f32 %v8971, %v9014
      %9016 = vmatmul.bf16.gmra.mxu0 %v8341
      %v9017 = vpop.f32.mrf.mxu0
      %v9018 = vadd.f32 %v8974, %v9017
      %v9019 = vpop.f32.mrf.mxu0
      %v9020 = vadd.f32 %v8976, %v9019
      %9021 = vmatmul.bf16.gmra.mxu0 %v8343
      %v9022 = vpop.f32.mrf.mxu0
      %v9023 = vadd.f32 %v8979, %v9022
      %v9024 = vpop.f32.mrf.mxu0
      %v9025 = vadd.f32 %v8981, %v9024
      %9026 = vmatmul.bf16.gmra.mxu0 %v8345
      %v9027 = vpop.f32.mrf.mxu0
      %v9028 = vadd.f32 %v8984, %v9027
      %v9029 = vpop.f32.mrf.mxu0
      %v9030 = vadd.f32 %v8986, %v9029
      %9031 = vdwg.mxu0
      %v9032 = vadd.f32 %v7927, %v8734
      %v9033 = vadd.f32 %v8015, %v8822
      %v9034 = vadd.f32 %v8103, %v8910
      %v9035 = vadd.f32 %v8191, %v8998
      %v9036 = vadd.f32 %v7929, %v8736
      %v9037 = vadd.f32 %v8017, %v8824
      %v9038 = vadd.f32 %v8105, %v8912
      %v9039 = vadd.f32 %v8193, %v9000
      %v9040 = vadd.f32 %v7932, %v8739
      %v9041 = vadd.f32 %v8020, %v8827
      %v9042 = vadd.f32 %v8108, %v8915
      %v9043 = vadd.f32 %v8196, %v9003
      %v9044 = vadd.f32 %v7934, %v8741
      %v9045 = vadd.f32 %v8022, %v8829
      %v9046 = vadd.f32 %v8110, %v8917
      %v9047 = vadd.f32 %v8198, %v9005
      %v9048 = vadd.f32 %v7937, %v8744
      %v9049 = vadd.f32 %v8025, %v8832
      %v9050 = vadd.f32 %v8113, %v8920
      %v9051 = vadd.f32 %v8201, %v9008
      %v9052 = vadd.f32 %v7939, %v8746
      %v9053 = vadd.f32 %v8027, %v8834
      %v9054 = vadd.f32 %v8115, %v8922
      %v9055 = vadd.f32 %v8203, %v9010
      %v9056 = vadd.f32 %v7942, %v8749
      %v9057 = vadd.f32 %v8030, %v8837
      %v9058 = vadd.f32 %v8118, %v8925
      %v9059 = vadd.f32 %v8206, %v9013
      %v9060 = vadd.f32 %v7944, %v8751
      %v9061 = vadd.f32 %v8032, %v8839
      %v9062 = vadd.f32 %v8120, %v8927
      %v9063 = vadd.f32 %v8208, %v9015
      %v9064 = vadd.f32 %v7947, %v8754
      %v9065 = vadd.f32 %v8035, %v8842
      %v9066 = vadd.f32 %v8123, %v8930
      %v9067 = vadd.f32 %v8211, %v9018
      %v9068 = vadd.f32 %v7949, %v8756
      %v9069 = vadd.f32 %v8037, %v8844
      %v9070 = vadd.f32 %v8125, %v8932
      %v9071 = vadd.f32 %v8213, %v9020
      %v9072 = vadd.f32 %v7952, %v8759
      %v9073 = vadd.f32 %v8040, %v8847
      %v9074 = vadd.f32 %v8128, %v8935
      %v9075 = vadd.f32 %v8216, %v9023
      %v9076 = vadd.f32 %v7954, %v8761
      %v9077 = vadd.f32 %v8042, %v8849
      %v9078 = vadd.f32 %v8130, %v8937
      %v9079 = vadd.f32 %v8218, %v9025
      %v9080 = vadd.f32 %v7957, %v8764
      %v9081 = vadd.f32 %v8045, %v8852
      %v9082 = vadd.f32 %v8133, %v8940
      %v9083 = vadd.f32 %v8221, %v9028
      %v9084 = vadd.f32 %v7959, %v8766
      %v9085 = vadd.f32 %v8047, %v8854
      %v9086 = vadd.f32 %v8135, %v8942
      %v9087 = vadd.f32 %v8223, %v9030
      %s9088 = scalar_lea.vmem %s7, 1536
      %v9089 = vld [vmem:[%s9088] sm:$0xff]
      %v9090 = vld [vmem:[%s9088 + $0x8] sm:$0xff]
      %v9091 = vld [vmem:[%s9088 + $0x10] sm:$0xff]
      %v9092 = vld [vmem:[%s9088 + $0x18] sm:$0xff]
      %v9093 = vld [vmem:[%s9088 + $0x20] sm:$0xff]
      %v9094 = vld [vmem:[%s9088 + $0x28] sm:$0xff]
      %v9095 = vld [vmem:[%s9088 + $0x30] sm:$0xff]
      %v9096 = vld [vmem:[%s9088 + $0x38] sm:$0xff]
      %v9097 = vld [vmem:[%s9088 + $0x40] sm:$0xff]
      %v9098 = vld [vmem:[%s9088 + $0x48] sm:$0xff]
      %v9099 = vld [vmem:[%s9088 + $0x50] sm:$0xff]
      %v9100 = vld [vmem:[%s9088 + $0x58] sm:$0xff]
      %v9101 = vld [vmem:[%s9088 + $0x60] sm:$0xff]
      %v9102 = vld [vmem:[%s9088 + $0x68] sm:$0xff]
      %v9103 = vld [vmem:[%s9088 + $0x70] sm:$0xff]
      %v9104 = vld [vmem:[%s9088 + $0x78] sm:$0xff]
      %v9105 = vld [vmem:[%s9088 + $0x80] sm:$0xff]
      %v9106 = vld [vmem:[%s9088 + $0x88] sm:$0xff]
      %v9107 = vld [vmem:[%s9088 + $0x90] sm:$0xff]
      %v9108 = vld [vmem:[%s9088 + $0x98] sm:$0xff]
      %v9109 = vld [vmem:[%s9088 + $0xa0] sm:$0xff]
      %v9110 = vld [vmem:[%s9088 + $0xa8] sm:$0xff]
      %v9111 = vld [vmem:[%s9088 + $0xb0] sm:$0xff]
      %v9112 = vld [vmem:[%s9088 + $0xb8] sm:$0xff]
      %v9113 = vld [vmem:[%s9088 + $0xc0] sm:$0xff]
      %v9114 = vld [vmem:[%s9088 + $0xc8] sm:$0xff]
      %v9115 = vld [vmem:[%s9088 + $0xd0] sm:$0xff]
      %v9116 = vld [vmem:[%s9088 + $0xd8] sm:$0xff]
      %v9117 = vld [vmem:[%s9088 + $0xe0] sm:$0xff]
      %v9118 = vld [vmem:[%s9088 + $0xe8] sm:$0xff]
      %v9119 = vld [vmem:[%s9088 + $0xf0] sm:$0xff]
      %v9120 = vld [vmem:[%s9088 + $0xf8] sm:$0xff]
      %v9121 = vld [vmem:[%s9088 + $0x100] sm:$0xff]
      %v9122 = vld [vmem:[%s9088 + $0x108] sm:$0xff]
      %v9123 = vld [vmem:[%s9088 + $0x110] sm:$0xff]
      %v9124 = vld [vmem:[%s9088 + $0x118] sm:$0xff]
      %v9125 = vld [vmem:[%s9088 + $0x120] sm:$0xff]
      %v9126 = vld [vmem:[%s9088 + $0x128] sm:$0xff]
      %v9127 = vld [vmem:[%s9088 + $0x130] sm:$0xff]
      %v9128 = vld [vmem:[%s9088 + $0x138] sm:$0xff]
      %v9129 = vld [vmem:[%s9088 + $0x140] sm:$0xff]
      %v9130 = vld [vmem:[%s9088 + $0x148] sm:$0xff]
      %v9131 = vld [vmem:[%s9088 + $0x150] sm:$0xff]
      %v9132 = vld [vmem:[%s9088 + $0x158] sm:$0xff]
      %v9133 = vld [vmem:[%s9088 + $0x160] sm:$0xff]
      %v9134 = vld [vmem:[%s9088 + $0x168] sm:$0xff]
      %v9135 = vld [vmem:[%s9088 + $0x170] sm:$0xff]
      %v9136 = vld [vmem:[%s9088 + $0x178] sm:$0xff]
      %v9137 = vld [vmem:[%s9088 + $0x180] sm:$0xff]
      %v9138 = vld [vmem:[%s9088 + $0x188] sm:$0xff]
      %v9139 = vld [vmem:[%s9088 + $0x190] sm:$0xff]
      %v9140 = vld [vmem:[%s9088 + $0x198] sm:$0xff]
      %v9141 = vld [vmem:[%s9088 + $0x1a0] sm:$0xff]
      %v9142 = vld [vmem:[%s9088 + $0x1a8] sm:$0xff]
      %v9143 = vld [vmem:[%s9088 + $0x1b0] sm:$0xff]
      %v9144 = vld [vmem:[%s9088 + $0x1b8] sm:$0xff]
      %v9145 = vld [vmem:[%s9088 + $0x1c0] sm:$0xff]
      %v9146 = vld [vmem:[%s9088 + $0x1c8] sm:$0xff]
      %v9147 = vld [vmem:[%s9088 + $0x1d0] sm:$0xff]
      %v9148 = vld [vmem:[%s9088 + $0x1d8] sm:$0xff]
      %v9149 = vld [vmem:[%s9088 + $0x1e0] sm:$0xff]
      %v9150 = vld [vmem:[%s9088 + $0x1e8] sm:$0xff]
      %v9151 = vld [vmem:[%s9088 + $0x1f0] sm:$0xff]
      %v9152 = vld [vmem:[%s9088 + $0x1f8] sm:$0xff]
      %v9167 = vunpack.c.l.b16 %v6584
      %v9168 = vunpack.c.h.b16 %v6584
      %v9169 = vunpack.c.l.b16 %v6585
      %v9170 = vunpack.c.h.b16 %v6585
      %v9171 = vunpack.c.l.b16 %v6586
      %v9172 = vunpack.c.h.b16 %v6586
      %v9173 = vunpack.c.l.b16 %v6587
      %v9174 = vunpack.c.h.b16 %v6587
      %v9175 = vunpack.c.l.b16 %v6588
      %v9176 = vunpack.c.h.b16 %v6588
      %v9177 = vunpack.c.l.b16 %v6589
      %v9178 = vunpack.c.h.b16 %v6589
      %v9179 = vunpack.c.l.b16 %v6590
      %v9180 = vunpack.c.h.b16 %v6590
      %v9181 = vunpack.c.l.b16 %v6591
      %v9182 = vunpack.c.h.b16 %v6591
      %v9183 = vunpack.c.l.b16 %v6592
      %v9184 = vunpack.c.h.b16 %v6592
      %v9185 = vunpack.c.l.b16 %v6593
      %v9186 = vunpack.c.h.b16 %v6593
      %v9187 = vunpack.c.l.b16 %v6594
      %v9188 = vunpack.c.h.b16 %v6594
      %v9189 = vunpack.c.l.b16 %v6595
      %v9190 = vunpack.c.h.b16 %v6595
      %v9191 = vunpack.c.l.b16 %v6596
      %v9192 = vunpack.c.h.b16 %v6596
      %v9193 = vunpack.c.l.b16 %v6597
      %v9194 = vunpack.c.h.b16 %v6597
      %v9195 = vpack.c.b16 %v9169, %v9167
      %v9196 = vpack.c.b16 %v9170, %v9168
      %v9197 = vpack.c.b16 %v9173, %v9171
      %v9198 = vpack.c.b16 %v9174, %v9172
      %v9199 = vpack.c.b16 %v9177, %v9175
      %v9200 = vpack.c.b16 %v9178, %v9176
      %v9201 = vpack.c.b16 %v9181, %v9179
      %v9202 = vpack.c.b16 %v9182, %v9180
      %v9203 = vpack.c.b16 %v9185, %v9183
      %v9204 = vpack.c.b16 %v9186, %v9184
      %v9205 = vpack.c.b16 %v9189, %v9187
      %v9206 = vpack.c.b16 %v9190, %v9188
      %v9207 = vpack.c.b16 %v9193, %v9191
      %v9208 = vpack.c.b16 %v9194, %v9192
      %v9287 = vunpack.c.l.b16 %v9089
      %v9288 = vunpack.c.h.b16 %v9089
      %v9289 = vunpack.c.l.b16 %v9090
      %v9290 = vunpack.c.h.b16 %v9090
      %v9291 = vunpack.c.l.b16 %v9091
      %v9292 = vunpack.c.h.b16 %v9091
      %v9293 = vunpack.c.l.b16 %v9092
      %v9294 = vunpack.c.h.b16 %v9092
      %v9295 = vunpack.c.l.b16 %v9093
      %v9296 = vunpack.c.h.b16 %v9093
      %v9297 = vunpack.c.l.b16 %v9094
      %v9298 = vunpack.c.h.b16 %v9094
      %v9299 = vunpack.c.l.b16 %v9095
      %v9300 = vunpack.c.h.b16 %v9095
      %v9301 = vunpack.c.l.b16 %v9096
      %v9302 = vunpack.c.h.b16 %v9096
      %v9303 = vunpack.c.l.b16 %v9097
      %v9304 = vunpack.c.h.b16 %v9097
      %v9305 = vunpack.c.l.b16 %v9098
      %v9306 = vunpack.c.h.b16 %v9098
      %v9307 = vunpack.c.l.b16 %v9099
      %v9308 = vunpack.c.h.b16 %v9099
      %v9309 = vunpack.c.l.b16 %v9100
      %v9310 = vunpack.c.h.b16 %v9100
      %v9311 = vunpack.c.l.b16 %v9101
      %v9312 = vunpack.c.h.b16 %v9101
      %v9313 = vunpack.c.l.b16 %v9102
      %v9314 = vunpack.c.h.b16 %v9102
      %v9315 = vunpack.c.l.b16 %v9103
      %v9316 = vunpack.c.h.b16 %v9103
      %v9317 = vunpack.c.l.b16 %v9104
      %v9318 = vunpack.c.h.b16 %v9104
      %v9319 = vunpack.c.l.b16 %v9105
      %v9320 = vunpack.c.h.b16 %v9105
      %v9321 = vunpack.c.l.b16 %v9106
      %v9322 = vunpack.c.h.b16 %v9106
      %v9323 = vunpack.c.l.b16 %v9107
      %v9324 = vunpack.c.h.b16 %v9107
      %v9325 = vunpack.c.l.b16 %v9108
      %v9326 = vunpack.c.h.b16 %v9108
      %v9327 = vunpack.c.l.b16 %v9109
      %v9328 = vunpack.c.h.b16 %v9109
      %v9329 = vunpack.c.l.b16 %v9110
      %v9330 = vunpack.c.h.b16 %v9110
      %v9331 = vunpack.c.l.b16 %v9111
      %v9332 = vunpack.c.h.b16 %v9111
      %v9333 = vunpack.c.l.b16 %v9112
      %v9334 = vunpack.c.h.b16 %v9112
      %v9335 = vunpack.c.l.b16 %v9113
      %v9336 = vunpack.c.h.b16 %v9113
      %v9337 = vunpack.c.l.b16 %v9114
      %v9338 = vunpack.c.h.b16 %v9114
      %v9339 = vunpack.c.l.b16 %v9115
      %v9340 = vunpack.c.h.b16 %v9115
      %v9341 = vunpack.c.l.b16 %v9116
      %v9342 = vunpack.c.h.b16 %v9116
      %v9343 = vunpack.c.l.b16 %v9117
      %v9344 = vunpack.c.h.b16 %v9117
      %v9345 = vunpack.c.l.b16 %v9118
      %v9346 = vunpack.c.h.b16 %v9118
      %v9347 = vunpack.c.l.b16 %v9119
      %v9348 = vunpack.c.h.b16 %v9119
      %v9349 = vunpack.c.l.b16 %v9120
      %v9350 = vunpack.c.h.b16 %v9120
      %v9351 = vunpack.c.l.b16 %v9121
      %v9352 = vunpack.c.h.b16 %v9121
      %v9353 = vunpack.c.l.b16 %v9122
      %v9354 = vunpack.c.h.b16 %v9122
      %v9355 = vunpack.c.l.b16 %v9123
      %v9356 = vunpack.c.h.b16 %v9123
      %v9357 = vunpack.c.l.b16 %v9124
      %v9358 = vunpack.c.h.b16 %v9124
      %v9359 = vunpack.c.l.b16 %v9125
      %v9360 = vunpack.c.h.b16 %v9125
      %v9361 = vunpack.c.l.b16 %v9126
      %v9362 = vunpack.c.h.b16 %v9126
      %v9363 = vunpack.c.l.b16 %v9127
      %v9364 = vunpack.c.h.b16 %v9127
      %v9365 = vunpack.c.l.b16 %v9128
      %v9366 = vunpack.c.h.b16 %v9128
      %v9367 = vunpack.c.l.b16 %v9129
      %v9368 = vunpack.c.h.b16 %v9129
      %v9369 = vunpack.c.l.b16 %v9130
      %v9370 = vunpack.c.h.b16 %v9130
      %v9371 = vunpack.c.l.b16 %v9131
      %v9372 = vunpack.c.h.b16 %v9131
      %v9373 = vunpack.c.l.b16 %v9132
      %v9374 = vunpack.c.h.b16 %v9132
      %v9375 = vunpack.c.l.b16 %v9133
      %v9376 = vunpack.c.h.b16 %v9133
      %v9377 = vunpack.c.l.b16 %v9134
      %v9378 = vunpack.c.h.b16 %v9134
      %v9379 = vunpack.c.l.b16 %v9135
      %v9380 = vunpack.c.h.b16 %v9135
      %v9381 = vunpack.c.l.b16 %v9136
      %v9382 = vunpack.c.h.b16 %v9136
      %v9383 = vunpack.c.l.b16 %v9137
      %v9384 = vunpack.c.h.b16 %v9137
      %v9385 = vunpack.c.l.b16 %v9138
      %v9386 = vunpack.c.h.b16 %v9138
      %v9387 = vunpack.c.l.b16 %v9139
      %v9388 = vunpack.c.h.b16 %v9139
      %v9389 = vunpack.c.l.b16 %v9140
      %v9390 = vunpack.c.h.b16 %v9140
      %v9391 = vunpack.c.l.b16 %v9141
      %v9392 = vunpack.c.h.b16 %v9141
      %v9393 = vunpack.c.l.b16 %v9142
      %v9394 = vunpack.c.h.b16 %v9142
      %v9395 = vunpack.c.l.b16 %v9143
      %v9396 = vunpack.c.h.b16 %v9143
      %v9397 = vunpack.c.l.b16 %v9144
      %v9398 = vunpack.c.h.b16 %v9144
      %v9399 = vunpack.c.l.b16 %v9145
      %v9400 = vunpack.c.h.b16 %v9145
      %v9401 = vunpack.c.l.b16 %v9146
      %v9402 = vunpack.c.h.b16 %v9146
      %v9403 = vunpack.c.l.b16 %v9147
      %v9404 = vunpack.c.h.b16 %v9147
      %v9405 = vunpack.c.l.b16 %v9148
      %v9406 = vunpack.c.h.b16 %v9148
      %v9407 = vunpack.c.l.b16 %v9149
      %v9408 = vunpack.c.h.b16 %v9149
      %v9409 = vunpack.c.l.b16 %v9150
      %v9410 = vunpack.c.h.b16 %v9150
      %v9411 = vunpack.c.l.b16 %v9151
      %v9412 = vunpack.c.h.b16 %v9151
      %v9413 = vunpack.c.l.b16 %v9152
      %v9414 = vunpack.c.h.b16 %v9152
      %v9415 = vpack.c.b16 %v9291, %v9287
      %v9416 = vpack.c.b16 %v9292, %v9288
      %v9417 = vpack.c.b16 %v9293, %v9289
      %v9418 = vpack.c.b16 %v9294, %v9290
      %v9419 = vpack.c.b16 %v9299, %v9295
      %v9420 = vpack.c.b16 %v9300, %v9296
      %v9421 = vpack.c.b16 %v9301, %v9297
      %v9422 = vpack.c.b16 %v9302, %v9298
      %v9423 = vpack.c.b16 %v9307, %v9303
      %v9424 = vpack.c.b16 %v9308, %v9304
      %v9425 = vpack.c.b16 %v9309, %v9305
      %v9426 = vpack.c.b16 %v9310, %v9306
      %v9427 = vpack.c.b16 %v9315, %v9311
      %v9428 = vpack.c.b16 %v9316, %v9312
      %v9429 = vpack.c.b16 %v9317, %v9313
      %v9430 = vpack.c.b16 %v9318, %v9314
      %v9431 = vpack.c.b16 %v9323, %v9319
      %v9432 = vpack.c.b16 %v9324, %v9320
      %v9433 = vpack.c.b16 %v9325, %v9321
      %v9434 = vpack.c.b16 %v9326, %v9322
      %v9435 = vpack.c.b16 %v9331, %v9327
      %v9436 = vpack.c.b16 %v9332, %v9328
      %v9437 = vpack.c.b16 %v9333, %v9329
      %v9438 = vpack.c.b16 %v9334, %v9330
      %v9439 = vpack.c.b16 %v9339, %v9335
      %v9440 = vpack.c.b16 %v9340, %v9336
      %v9441 = vpack.c.b16 %v9341, %v9337
      %v9442 = vpack.c.b16 %v9342, %v9338
      %v9443 = vpack.c.b16 %v9347, %v9343
      %v9444 = vpack.c.b16 %v9348, %v9344
      %v9445 = vpack.c.b16 %v9349, %v9345
      %v9446 = vpack.c.b16 %v9350, %v9346
      %v9447 = vpack.c.b16 %v9355, %v9351
      %v9448 = vpack.c.b16 %v9356, %v9352
      %v9449 = vpack.c.b16 %v9357, %v9353
      %v9450 = vpack.c.b16 %v9358, %v9354
      %v9451 = vpack.c.b16 %v9363, %v9359
      %v9452 = vpack.c.b16 %v9364, %v9360
      %v9453 = vpack.c.b16 %v9365, %v9361
      %v9454 = vpack.c.b16 %v9366, %v9362
      %v9455 = vpack.c.b16 %v9371, %v9367
      %v9456 = vpack.c.b16 %v9372, %v9368
      %v9457 = vpack.c.b16 %v9373, %v9369
      %v9458 = vpack.c.b16 %v9374, %v9370
      %v9459 = vpack.c.b16 %v9379, %v9375
      %v9460 = vpack.c.b16 %v9380, %v9376
      %v9461 = vpack.c.b16 %v9381, %v9377
      %v9462 = vpack.c.b16 %v9382, %v9378
      %v9463 = vpack.c.b16 %v9387, %v9383
      %v9464 = vpack.c.b16 %v9388, %v9384
      %v9465 = vpack.c.b16 %v9389, %v9385
      %v9466 = vpack.c.b16 %v9390, %v9386
      %v9467 = vpack.c.b16 %v9395, %v9391
      %v9468 = vpack.c.b16 %v9396, %v9392
      %v9469 = vpack.c.b16 %v9397, %v9393
      %v9470 = vpack.c.b16 %v9398, %v9394
      %v9471 = vpack.c.b16 %v9403, %v9399
      %v9472 = vpack.c.b16 %v9404, %v9400
      %v9473 = vpack.c.b16 %v9405, %v9401
      %v9474 = vpack.c.b16 %v9406, %v9402
      %v9475 = vpack.c.b16 %v9411, %v9407
      %v9476 = vpack.c.b16 %v9412, %v9408
      %v9477 = vpack.c.b16 %v9413, %v9409
      %v9478 = vpack.c.b16 %v9414, %v9410
      %9543 = vmatpush.bf16.msra.mxu0 %v9443
      %9544 = vmatpush.bf16.msra.mxu0 %v9439
      %9545 = vmatpush.bf16.msra.mxu0 %v9435
      %9546 = vmatpush.bf16.msra.mxu0 %v9431
      %9547 = vmatpush.bf16.msra.mxu0 %v9427
      %9548 = vmatpush.bf16.msra.mxu0 %v9423
      %9549 = vmatpush.bf16.msra.mxu0 %v9419
      %9550 = vmatpush.bf16.msra.mxu0 %v9415
      %9551 = vmatmul.bf16.gmra.mxu0 %v9195
      %v9552 = vpop.f32.mrf.mxu0
      %v9553 = vadd.f32 0.0, %v9552
      %v9554 = vpop.f32.mrf.mxu0
      %v9555 = vadd.f32 0.0, %v9554
      %9556 = vmatmul.bf16.gmra.mxu0 %v9197
      %v9557 = vpop.f32.mrf.mxu0
      %v9558 = vadd.f32 0.0, %v9557
      %v9559 = vpop.f32.mrf.mxu0
      %v9560 = vadd.f32 0.0, %v9559
      %9561 = vmatmul.bf16.gmra.mxu0 %v9199
      %v9562 = vpop.f32.mrf.mxu0
      %v9563 = vadd.f32 0.0, %v9562
      %v9564 = vpop.f32.mrf.mxu0
      %v9565 = vadd.f32 0.0, %v9564
      %9566 = vmatmul.bf16.gmra.mxu0 %v9201
      %v9567 = vpop.f32.mrf.mxu0
      %v9568 = vadd.f32 0.0, %v9567
      %v9569 = vpop.f32.mrf.mxu0
      %v9570 = vadd.f32 0.0, %v9569
      %9571 = vmatmul.bf16.gmra.mxu0 %v9203
      %v9572 = vpop.f32.mrf.mxu0
      %v9573 = vadd.f32 0.0, %v9572
      %v9574 = vpop.f32.mrf.mxu0
      %v9575 = vadd.f32 0.0, %v9574
      %9576 = vmatmul.bf16.gmra.mxu0 %v9205
      %v9577 = vpop.f32.mrf.mxu0
      %v9578 = vadd.f32 0.0, %v9577
      %v9579 = vpop.f32.mrf.mxu0
      %v9580 = vadd.f32 0.0, %v9579
      %9581 = vmatmul.bf16.gmra.mxu0 %v9207
      %v9582 = vpop.f32.mrf.mxu0
      %v9583 = vadd.f32 0.0, %v9582
      %v9584 = vpop.f32.mrf.mxu0
      %v9585 = vadd.f32 0.0, %v9584
      %9586 = vdwg.mxu0
      %9587 = vmatpush.bf16.msra.mxu0 %v9475
      %9588 = vmatpush.bf16.msra.mxu0 %v9471
      %9589 = vmatpush.bf16.msra.mxu0 %v9467
      %9590 = vmatpush.bf16.msra.mxu0 %v9463
      %9591 = vmatpush.bf16.msra.mxu0 %v9459
      %9592 = vmatpush.bf16.msra.mxu0 %v9455
      %9593 = vmatpush.bf16.msra.mxu0 %v9451
      %9594 = vmatpush.bf16.msra.mxu0 %v9447
      %9595 = vmatmul.bf16.gmra.mxu0 %v9196
      %v9596 = vpop.f32.mrf.mxu0
      %v9597 = vadd.f32 %v9553, %v9596
      %v9598 = vpop.f32.mrf.mxu0
      %v9599 = vadd.f32 %v9555, %v9598
      %9600 = vmatmul.bf16.gmra.mxu0 %v9198
      %v9601 = vpop.f32.mrf.mxu0
      %v9602 = vadd.f32 %v9558, %v9601
      %v9603 = vpop.f32.mrf.mxu0
      %v9604 = vadd.f32 %v9560, %v9603
      %9605 = vmatmul.bf16.gmra.mxu0 %v9200
      %v9606 = vpop.f32.mrf.mxu0
      %v9607 = vadd.f32 %v9563, %v9606
      %v9608 = vpop.f32.mrf.mxu0
      %v9609 = vadd.f32 %v9565, %v9608
      %9610 = vmatmul.bf16.gmra.mxu0 %v9202
      %v9611 = vpop.f32.mrf.mxu0
      %v9612 = vadd.f32 %v9568, %v9611
      %v9613 = vpop.f32.mrf.mxu0
      %v9614 = vadd.f32 %v9570, %v9613
      %9615 = vmatmul.bf16.gmra.mxu0 %v9204
      %v9616 = vpop.f32.mrf.mxu0
      %v9617 = vadd.f32 %v9573, %v9616
      %v9618 = vpop.f32.mrf.mxu0
      %v9619 = vadd.f32 %v9575, %v9618
      %9620 = vmatmul.bf16.gmra.mxu0 %v9206
      %v9621 = vpop.f32.mrf.mxu0
      %v9622 = vadd.f32 %v9578, %v9621
      %v9623 = vpop.f32.mrf.mxu0
      %v9624 = vadd.f32 %v9580, %v9623
      %9625 = vmatmul.bf16.gmra.mxu0 %v9208
      %v9626 = vpop.f32.mrf.mxu0
      %v9627 = vadd.f32 %v9583, %v9626
      %v9628 = vpop.f32.mrf.mxu0
      %v9629 = vadd.f32 %v9585, %v9628
      %9630 = vdwg.mxu0
      %9631 = vmatpush.bf16.msra.mxu0 %v9444
      %9632 = vmatpush.bf16.msra.mxu0 %v9440
      %9633 = vmatpush.bf16.msra.mxu0 %v9436
      %9634 = vmatpush.bf16.msra.mxu0 %v9432
      %9635 = vmatpush.bf16.msra.mxu0 %v9428
      %9636 = vmatpush.bf16.msra.mxu0 %v9424
      %9637 = vmatpush.bf16.msra.mxu0 %v9420
      %9638 = vmatpush.bf16.msra.mxu0 %v9416
      %9639 = vmatmul.bf16.gmra.mxu0 %v9195
      %v9640 = vpop.f32.mrf.mxu0
      %v9641 = vadd.f32 0.0, %v9640
      %v9642 = vpop.f32.mrf.mxu0
      %v9643 = vadd.f32 0.0, %v9642
      %9644 = vmatmul.bf16.gmra.mxu0 %v9197
      %v9645 = vpop.f32.mrf.mxu0
      %v9646 = vadd.f32 0.0, %v9645
      %v9647 = vpop.f32.mrf.mxu0
      %v9648 = vadd.f32 0.0, %v9647
      %9649 = vmatmul.bf16.gmra.mxu0 %v9199
      %v9650 = vpop.f32.mrf.mxu0
      %v9651 = vadd.f32 0.0, %v9650
      %v9652 = vpop.f32.mrf.mxu0
      %v9653 = vadd.f32 0.0, %v9652
      %9654 = vmatmul.bf16.gmra.mxu0 %v9201
      %v9655 = vpop.f32.mrf.mxu0
      %v9656 = vadd.f32 0.0, %v9655
      %v9657 = vpop.f32.mrf.mxu0
      %v9658 = vadd.f32 0.0, %v9657
      %9659 = vmatmul.bf16.gmra.mxu0 %v9203
      %v9660 = vpop.f32.mrf.mxu0
      %v9661 = vadd.f32 0.0, %v9660
      %v9662 = vpop.f32.mrf.mxu0
      %v9663 = vadd.f32 0.0, %v9662
      %9664 = vmatmul.bf16.gmra.mxu0 %v9205
      %v9665 = vpop.f32.mrf.mxu0
      %v9666 = vadd.f32 0.0, %v9665
      %v9667 = vpop.f32.mrf.mxu0
      %v9668 = vadd.f32 0.0, %v9667
      %9669 = vmatmul.bf16.gmra.mxu0 %v9207
      %v9670 = vpop.f32.mrf.mxu0
      %v9671 = vadd.f32 0.0, %v9670
      %v9672 = vpop.f32.mrf.mxu0
      %v9673 = vadd.f32 0.0, %v9672
      %9674 = vdwg.mxu0
      %9675 = vmatpush.bf16.msra.mxu0 %v9476
      %9676 = vmatpush.bf16.msra.mxu0 %v9472
      %9677 = vmatpush.bf16.msra.mxu0 %v9468
      %9678 = vmatpush.bf16.msra.mxu0 %v9464
      %9679 = vmatpush.bf16.msra.mxu0 %v9460
      %9680 = vmatpush.bf16.msra.mxu0 %v9456
      %9681 = vmatpush.bf16.msra.mxu0 %v9452
      %9682 = vmatpush.bf16.msra.mxu0 %v9448
      %9683 = vmatmul.bf16.gmra.mxu0 %v9196
      %v9684 = vpop.f32.mrf.mxu0
      %v9685 = vadd.f32 %v9641, %v9684
      %v9686 = vpop.f32.mrf.mxu0
      %v9687 = vadd.f32 %v9643, %v9686
      %9688 = vmatmul.bf16.gmra.mxu0 %v9198
      %v9689 = vpop.f32.mrf.mxu0
      %v9690 = vadd.f32 %v9646, %v9689
      %v9691 = vpop.f32.mrf.mxu0
      %v9692 = vadd.f32 %v9648, %v9691
      %9693 = vmatmul.bf16.gmra.mxu0 %v9200
      %v9694 = vpop.f32.mrf.mxu0
      %v9695 = vadd.f32 %v9651, %v9694
      %v9696 = vpop.f32.mrf.mxu0
      %v9697 = vadd.f32 %v9653, %v9696
      %9698 = vmatmul.bf16.gmra.mxu0 %v9202
      %v9699 = vpop.f32.mrf.mxu0
      %v9700 = vadd.f32 %v9656, %v9699
      %v9701 = vpop.f32.mrf.mxu0
      %v9702 = vadd.f32 %v9658, %v9701
      %9703 = vmatmul.bf16.gmra.mxu0 %v9204
      %v9704 = vpop.f32.mrf.mxu0
      %v9705 = vadd.f32 %v9661, %v9704
      %v9706 = vpop.f32.mrf.mxu0
      %v9707 = vadd.f32 %v9663, %v9706
      %9708 = vmatmul.bf16.gmra.mxu0 %v9206
      %v9709 = vpop.f32.mrf.mxu0
      %v9710 = vadd.f32 %v9666, %v9709
      %v9711 = vpop.f32.mrf.mxu0
      %v9712 = vadd.f32 %v9668, %v9711
      %9713 = vmatmul.bf16.gmra.mxu0 %v9208
      %v9714 = vpop.f32.mrf.mxu0
      %v9715 = vadd.f32 %v9671, %v9714
      %v9716 = vpop.f32.mrf.mxu0
      %v9717 = vadd.f32 %v9673, %v9716
      %9718 = vdwg.mxu0
      %9719 = vmatpush.bf16.msra.mxu0 %v9445
      %9720 = vmatpush.bf16.msra.mxu0 %v9441
      %9721 = vmatpush.bf16.msra.mxu0 %v9437
      %9722 = vmatpush.bf16.msra.mxu0 %v9433
      %9723 = vmatpush.bf16.msra.mxu0 %v9429
      %9724 = vmatpush.bf16.msra.mxu0 %v9425
      %9725 = vmatpush.bf16.msra.mxu0 %v9421
      %9726 = vmatpush.bf16.msra.mxu0 %v9417
      %9727 = vmatmul.bf16.gmra.mxu0 %v9195
      %v9728 = vpop.f32.mrf.mxu0
      %v9729 = vadd.f32 0.0, %v9728
      %v9730 = vpop.f32.mrf.mxu0
      %v9731 = vadd.f32 0.0, %v9730
      %9732 = vmatmul.bf16.gmra.mxu0 %v9197
      %v9733 = vpop.f32.mrf.mxu0
      %v9734 = vadd.f32 0.0, %v9733
      %v9735 = vpop.f32.mrf.mxu0
      %v9736 = vadd.f32 0.0, %v9735
      %9737 = vmatmul.bf16.gmra.mxu0 %v9199
      %v9738 = vpop.f32.mrf.mxu0
      %v9739 = vadd.f32 0.0, %v9738
      %v9740 = vpop.f32.mrf.mxu0
      %v9741 = vadd.f32 0.0, %v9740
      %9742 = vmatmul.bf16.gmra.mxu0 %v9201
      %v9743 = vpop.f32.mrf.mxu0
      %v9744 = vadd.f32 0.0, %v9743
      %v9745 = vpop.f32.mrf.mxu0
      %v9746 = vadd.f32 0.0, %v9745
      %9747 = vmatmul.bf16.gmra.mxu0 %v9203
      %v9748 = vpop.f32.mrf.mxu0
      %v9749 = vadd.f32 0.0, %v9748
      %v9750 = vpop.f32.mrf.mxu0
      %v9751 = vadd.f32 0.0, %v9750
      %9752 = vmatmul.bf16.gmra.mxu0 %v9205
      %v9753 = vpop.f32.mrf.mxu0
      %v9754 = vadd.f32 0.0, %v9753
      %v9755 = vpop.f32.mrf.mxu0
      %v9756 = vadd.f32 0.0, %v9755
      %9757 = vmatmul.bf16.gmra.mxu0 %v9207
      %v9758 = vpop.f32.mrf.mxu0
      %v9759 = vadd.f32 0.0, %v9758
      %v9760 = vpop.f32.mrf.mxu0
      %v9761 = vadd.f32 0.0, %v9760
      %9762 = vdwg.mxu0
      %9763 = vmatpush.bf16.msra.mxu0 %v9477
      %9764 = vmatpush.bf16.msra.mxu0 %v9473
      %9765 = vmatpush.bf16.msra.mxu0 %v9469
      %9766 = vmatpush.bf16.msra.mxu0 %v9465
      %9767 = vmatpush.bf16.msra.mxu0 %v9461
      %9768 = vmatpush.bf16.msra.mxu0 %v9457
      %9769 = vmatpush.bf16.msra.mxu0 %v9453
      %9770 = vmatpush.bf16.msra.mxu0 %v9449
      %9771 = vmatmul.bf16.gmra.mxu0 %v9196
      %v9772 = vpop.f32.mrf.mxu0
      %v9773 = vadd.f32 %v9729, %v9772
      %v9774 = vpop.f32.mrf.mxu0
      %v9775 = vadd.f32 %v9731, %v9774
      %9776 = vmatmul.bf16.gmra.mxu0 %v9198
      %v9777 = vpop.f32.mrf.mxu0
      %v9778 = vadd.f32 %v9734, %v9777
      %v9779 = vpop.f32.mrf.mxu0
      %v9780 = vadd.f32 %v9736, %v9779
      %9781 = vmatmul.bf16.gmra.mxu0 %v9200
      %v9782 = vpop.f32.mrf.mxu0
      %v9783 = vadd.f32 %v9739, %v9782
      %v9784 = vpop.f32.mrf.mxu0
      %v9785 = vadd.f32 %v9741, %v9784
      %9786 = vmatmul.bf16.gmra.mxu0 %v9202
      %v9787 = vpop.f32.mrf.mxu0
      %v9788 = vadd.f32 %v9744, %v9787
      %v9789 = vpop.f32.mrf.mxu0
      %v9790 = vadd.f32 %v9746, %v9789
      %9791 = vmatmul.bf16.gmra.mxu0 %v9204
      %v9792 = vpop.f32.mrf.mxu0
      %v9793 = vadd.f32 %v9749, %v9792
      %v9794 = vpop.f32.mrf.mxu0
      %v9795 = vadd.f32 %v9751, %v9794
      %9796 = vmatmul.bf16.gmra.mxu0 %v9206
      %v9797 = vpop.f32.mrf.mxu0
      %v9798 = vadd.f32 %v9754, %v9797
      %v9799 = vpop.f32.mrf.mxu0
      %v9800 = vadd.f32 %v9756, %v9799
      %9801 = vmatmul.bf16.gmra.mxu0 %v9208
      %v9802 = vpop.f32.mrf.mxu0
      %v9803 = vadd.f32 %v9759, %v9802
      %v9804 = vpop.f32.mrf.mxu0
      %v9805 = vadd.f32 %v9761, %v9804
      %9806 = vdwg.mxu0
      %9807 = vmatpush.bf16.msra.mxu0 %v9446
      %9808 = vmatpush.bf16.msra.mxu0 %v9442
      %9809 = vmatpush.bf16.msra.mxu0 %v9438
      %9810 = vmatpush.bf16.msra.mxu0 %v9434
      %9811 = vmatpush.bf16.msra.mxu0 %v9430
      %9812 = vmatpush.bf16.msra.mxu0 %v9426
      %9813 = vmatpush.bf16.msra.mxu0 %v9422
      %9814 = vmatpush.bf16.msra.mxu0 %v9418
      %9815 = vmatmul.bf16.gmra.mxu0 %v9195
      %v9816 = vpop.f32.mrf.mxu0
      %v9817 = vadd.f32 0.0, %v9816
      %v9818 = vpop.f32.mrf.mxu0
      %v9819 = vadd.f32 0.0, %v9818
      %9820 = vmatmul.bf16.gmra.mxu0 %v9197
      %v9821 = vpop.f32.mrf.mxu0
      %v9822 = vadd.f32 0.0, %v9821
      %v9823 = vpop.f32.mrf.mxu0
      %v9824 = vadd.f32 0.0, %v9823
      %9825 = vmatmul.bf16.gmra.mxu0 %v9199
      %v9826 = vpop.f32.mrf.mxu0
      %v9827 = vadd.f32 0.0, %v9826
      %v9828 = vpop.f32.mrf.mxu0
      %v9829 = vadd.f32 0.0, %v9828
      %9830 = vmatmul.bf16.gmra.mxu0 %v9201
      %v9831 = vpop.f32.mrf.mxu0
      %v9832 = vadd.f32 0.0, %v9831
      %v9833 = vpop.f32.mrf.mxu0
      %v9834 = vadd.f32 0.0, %v9833
      %9835 = vmatmul.bf16.gmra.mxu0 %v9203
      %v9836 = vpop.f32.mrf.mxu0
      %v9837 = vadd.f32 0.0, %v9836
      %v9838 = vpop.f32.mrf.mxu0
      %v9839 = vadd.f32 0.0, %v9838
      %9840 = vmatmul.bf16.gmra.mxu0 %v9205
      %v9841 = vpop.f32.mrf.mxu0
      %v9842 = vadd.f32 0.0, %v9841
      %v9843 = vpop.f32.mrf.mxu0
      %v9844 = vadd.f32 0.0, %v9843
      %9845 = vmatmul.bf16.gmra.mxu0 %v9207
      %v9846 = vpop.f32.mrf.mxu0
      %v9847 = vadd.f32 0.0, %v9846
      %v9848 = vpop.f32.mrf.mxu0
      %v9849 = vadd.f32 0.0, %v9848
      %9850 = vdwg.mxu0
      %9851 = vmatpush.bf16.msra.mxu0 %v9478
      %9852 = vmatpush.bf16.msra.mxu0 %v9474
      %9853 = vmatpush.bf16.msra.mxu0 %v9470
      %9854 = vmatpush.bf16.msra.mxu0 %v9466
      %9855 = vmatpush.bf16.msra.mxu0 %v9462
      %9856 = vmatpush.bf16.msra.mxu0 %v9458
      %9857 = vmatpush.bf16.msra.mxu0 %v9454
      %9858 = vmatpush.bf16.msra.mxu0 %v9450
      %9859 = vmatmul.bf16.gmra.mxu0 %v9196
      %v9860 = vpop.f32.mrf.mxu0
      %v9861 = vadd.f32 %v9817, %v9860
      %v9862 = vpop.f32.mrf.mxu0
      %v9863 = vadd.f32 %v9819, %v9862
      %9864 = vmatmul.bf16.gmra.mxu0 %v9198
      %v9865 = vpop.f32.mrf.mxu0
      %v9866 = vadd.f32 %v9822, %v9865
      %v9867 = vpop.f32.mrf.mxu0
      %v9868 = vadd.f32 %v9824, %v9867
      %9869 = vmatmul.bf16.gmra.mxu0 %v9200
      %v9870 = vpop.f32.mrf.mxu0
      %v9871 = vadd.f32 %v9827, %v9870
      %v9872 = vpop.f32.mrf.mxu0
      %v9873 = vadd.f32 %v9829, %v9872
      %9874 = vmatmul.bf16.gmra.mxu0 %v9202
      %v9875 = vpop.f32.mrf.mxu0
      %v9876 = vadd.f32 %v9832, %v9875
      %v9877 = vpop.f32.mrf.mxu0
      %v9878 = vadd.f32 %v9834, %v9877
      %9879 = vmatmul.bf16.gmra.mxu0 %v9204
      %v9880 = vpop.f32.mrf.mxu0
      %v9881 = vadd.f32 %v9837, %v9880
      %v9882 = vpop.f32.mrf.mxu0
      %v9883 = vadd.f32 %v9839, %v9882
      %9884 = vmatmul.bf16.gmra.mxu0 %v9206
      %v9885 = vpop.f32.mrf.mxu0
      %v9886 = vadd.f32 %v9842, %v9885
      %v9887 = vpop.f32.mrf.mxu0
      %v9888 = vadd.f32 %v9844, %v9887
      %9889 = vmatmul.bf16.gmra.mxu0 %v9208
      %v9890 = vpop.f32.mrf.mxu0
      %v9891 = vadd.f32 %v9847, %v9890
      %v9892 = vpop.f32.mrf.mxu0
      %v9893 = vadd.f32 %v9849, %v9892
      %9894 = vdwg.mxu0
      %v9895 = vadd.f32 %v9032, %v9597
      %v9896 = vadd.f32 %v9033, %v9685
      %v9897 = vadd.f32 %v9034, %v9773
      %v9898 = vadd.f32 %v9035, %v9861
      %v9899 = vadd.f32 %v9036, %v9599
      %v9900 = vadd.f32 %v9037, %v9687
      %v9901 = vadd.f32 %v9038, %v9775
      %v9902 = vadd.f32 %v9039, %v9863
      %v9903 = vadd.f32 %v9040, %v9602
      %v9904 = vadd.f32 %v9041, %v9690
      %v9905 = vadd.f32 %v9042, %v9778
      %v9906 = vadd.f32 %v9043, %v9866
      %v9907 = vadd.f32 %v9044, %v9604
      %v9908 = vadd.f32 %v9045, %v9692
      %v9909 = vadd.f32 %v9046, %v9780
      %v9910 = vadd.f32 %v9047, %v9868
      %v9911 = vadd.f32 %v9048, %v9607
      %v9912 = vadd.f32 %v9049, %v9695
      %v9913 = vadd.f32 %v9050, %v9783
      %v9914 = vadd.f32 %v9051, %v9871
      %v9915 = vadd.f32 %v9052, %v9609
      %v9916 = vadd.f32 %v9053, %v9697
      %v9917 = vadd.f32 %v9054, %v9785
      %v9918 = vadd.f32 %v9055, %v9873
      %v9919 = vadd.f32 %v9056, %v9612
      %v9920 = vadd.f32 %v9057, %v9700
      %v9921 = vadd.f32 %v9058, %v9788
      %v9922 = vadd.f32 %v9059, %v9876
      %v9923 = vadd.f32 %v9060, %v9614
      %v9924 = vadd.f32 %v9061, %v9702
      %v9925 = vadd.f32 %v9062, %v9790
      %v9926 = vadd.f32 %v9063, %v9878
      %v9927 = vadd.f32 %v9064, %v9617
      %v9928 = vadd.f32 %v9065, %v9705
      %v9929 = vadd.f32 %v9066, %v9793
      %v9930 = vadd.f32 %v9067, %v9881
      %v9931 = vadd.f32 %v9068, %v9619
      %v9932 = vadd.f32 %v9069, %v9707
      %v9933 = vadd.f32 %v9070, %v9795
      %v9934 = vadd.f32 %v9071, %v9883
      %v9935 = vadd.f32 %v9072, %v9622
      %v9936 = vadd.f32 %v9073, %v9710
      %v9937 = vadd.f32 %v9074, %v9798
      %v9938 = vadd.f32 %v9075, %v9886
      %v9939 = vadd.f32 %v9076, %v9624
      %v9940 = vadd.f32 %v9077, %v9712
      %v9941 = vadd.f32 %v9078, %v9800
      %v9942 = vadd.f32 %v9079, %v9888
      %v9943 = vadd.f32 %v9080, %v9627
      %v9944 = vadd.f32 %v9081, %v9715
      %v9945 = vadd.f32 %v9082, %v9803
      %v9946 = vadd.f32 %v9083, %v9891
      %v9947 = vadd.f32 %v9084, %v9629
      %v9948 = vadd.f32 %v9085, %v9717
      %v9949 = vadd.f32 %v9086, %v9805
      %v9950 = vadd.f32 %v9087, %v9893
      %s9951 = scalar_lea.vmem %s7, 2048
      %v9952 = vld [vmem:[%s9951] sm:$0xff]
      %v9953 = vld [vmem:[%s9951 + $0x8] sm:$0xff]
      %v9954 = vld [vmem:[%s9951 + $0x10] sm:$0xff]
      %v9955 = vld [vmem:[%s9951 + $0x18] sm:$0xff]
      %v9956 = vld [vmem:[%s9951 + $0x20] sm:$0xff]
      %v9957 = vld [vmem:[%s9951 + $0x28] sm:$0xff]
      %v9958 = vld [vmem:[%s9951 + $0x30] sm:$0xff]
      %v9959 = vld [vmem:[%s9951 + $0x38] sm:$0xff]
      %v9960 = vld [vmem:[%s9951 + $0x40] sm:$0xff]
      %v9961 = vld [vmem:[%s9951 + $0x48] sm:$0xff]
      %v9962 = vld [vmem:[%s9951 + $0x50] sm:$0xff]
      %v9963 = vld [vmem:[%s9951 + $0x58] sm:$0xff]
      %v9964 = vld [vmem:[%s9951 + $0x60] sm:$0xff]
      %v9965 = vld [vmem:[%s9951 + $0x68] sm:$0xff]
      %v9966 = vld [vmem:[%s9951 + $0x70] sm:$0xff]
      %v9967 = vld [vmem:[%s9951 + $0x78] sm:$0xff]
      %v9968 = vld [vmem:[%s9951 + $0x80] sm:$0xff]
      %v9969 = vld [vmem:[%s9951 + $0x88] sm:$0xff]
      %v9970 = vld [vmem:[%s9951 + $0x90] sm:$0xff]
      %v9971 = vld [vmem:[%s9951 + $0x98] sm:$0xff]
      %v9972 = vld [vmem:[%s9951 + $0xa0] sm:$0xff]
      %v9973 = vld [vmem:[%s9951 + $0xa8] sm:$0xff]
      %v9974 = vld [vmem:[%s9951 + $0xb0] sm:$0xff]
      %v9975 = vld [vmem:[%s9951 + $0xb8] sm:$0xff]
      %v9976 = vld [vmem:[%s9951 + $0xc0] sm:$0xff]
      %v9977 = vld [vmem:[%s9951 + $0xc8] sm:$0xff]
      %v9978 = vld [vmem:[%s9951 + $0xd0] sm:$0xff]
      %v9979 = vld [vmem:[%s9951 + $0xd8] sm:$0xff]
      %v9980 = vld [vmem:[%s9951 + $0xe0] sm:$0xff]
      %v9981 = vld [vmem:[%s9951 + $0xe8] sm:$0xff]
      %v9982 = vld [vmem:[%s9951 + $0xf0] sm:$0xff]
      %v9983 = vld [vmem:[%s9951 + $0xf8] sm:$0xff]
      %v9984 = vld [vmem:[%s9951 + $0x100] sm:$0xff]
      %v9985 = vld [vmem:[%s9951 + $0x108] sm:$0xff]
      %v9986 = vld [vmem:[%s9951 + $0x110] sm:$0xff]
      %v9987 = vld [vmem:[%s9951 + $0x118] sm:$0xff]
      %v9988 = vld [vmem:[%s9951 + $0x120] sm:$0xff]
      %v9989 = vld [vmem:[%s9951 + $0x128] sm:$0xff]
      %v9990 = vld [vmem:[%s9951 + $0x130] sm:$0xff]
      %v9991 = vld [vmem:[%s9951 + $0x138] sm:$0xff]
      %v9992 = vld [vmem:[%s9951 + $0x140] sm:$0xff]
      %v9993 = vld [vmem:[%s9951 + $0x148] sm:$0xff]
      %v9994 = vld [vmem:[%s9951 + $0x150] sm:$0xff]
      %v9995 = vld [vmem:[%s9951 + $0x158] sm:$0xff]
      %v9996 = vld [vmem:[%s9951 + $0x160] sm:$0xff]
      %v9997 = vld [vmem:[%s9951 + $0x168] sm:$0xff]
      %v9998 = vld [vmem:[%s9951 + $0x170] sm:$0xff]
      %v9999 = vld [vmem:[%s9951 + $0x178] sm:$0xff]
      %v10000 = vld [vmem:[%s9951 + $0x180] sm:$0xff]
      %v10001 = vld [vmem:[%s9951 + $0x188] sm:$0xff]
      %v10002 = vld [vmem:[%s9951 + $0x190] sm:$0xff]
      %v10003 = vld [vmem:[%s9951 + $0x198] sm:$0xff]
      %v10004 = vld [vmem:[%s9951 + $0x1a0] sm:$0xff]
      %v10005 = vld [vmem:[%s9951 + $0x1a8] sm:$0xff]
      %v10006 = vld [vmem:[%s9951 + $0x1b0] sm:$0xff]
      %v10007 = vld [vmem:[%s9951 + $0x1b8] sm:$0xff]
      %v10008 = vld [vmem:[%s9951 + $0x1c0] sm:$0xff]
      %v10009 = vld [vmem:[%s9951 + $0x1c8] sm:$0xff]
      %v10010 = vld [vmem:[%s9951 + $0x1d0] sm:$0xff]
      %v10011 = vld [vmem:[%s9951 + $0x1d8] sm:$0xff]
      %v10012 = vld [vmem:[%s9951 + $0x1e0] sm:$0xff]
      %v10013 = vld [vmem:[%s9951 + $0x1e8] sm:$0xff]
      %v10014 = vld [vmem:[%s9951 + $0x1f0] sm:$0xff]
      %v10015 = vld [vmem:[%s9951 + $0x1f8] sm:$0xff]
      %v10030 = vunpack.c.l.b16 %v6598
      %v10031 = vunpack.c.h.b16 %v6598
      %v10032 = vunpack.c.l.b16 %v6599
      %v10033 = vunpack.c.h.b16 %v6599
      %v10034 = vunpack.c.l.b16 %v6600
      %v10035 = vunpack.c.h.b16 %v6600
      %v10036 = vunpack.c.l.b16 %v6601
      %v10037 = vunpack.c.h.b16 %v6601
      %v10038 = vunpack.c.l.b16 %v6602
      %v10039 = vunpack.c.h.b16 %v6602
      %v10040 = vunpack.c.l.b16 %v6603
      %v10041 = vunpack.c.h.b16 %v6603
      %v10042 = vunpack.c.l.b16 %v6604
      %v10043 = vunpack.c.h.b16 %v6604
      %v10044 = vunpack.c.l.b16 %v6605
      %v10045 = vunpack.c.h.b16 %v6605
      %v10046 = vunpack.c.l.b16 %v6606
      %v10047 = vunpack.c.h.b16 %v6606
      %v10048 = vunpack.c.l.b16 %v6607
      %v10049 = vunpack.c.h.b16 %v6607
      %v10050 = vunpack.c.l.b16 %v6608
      %v10051 = vunpack.c.h.b16 %v6608
      %v10052 = vunpack.c.l.b16 %v6609
      %v10053 = vunpack.c.h.b16 %v6609
      %v10054 = vunpack.c.l.b16 %v6610
      %v10055 = vunpack.c.h.b16 %v6610
      %v10056 = vunpack.c.l.b16 %v6611
      %v10057 = vunpack.c.h.b16 %v6611
      %v10058 = vpack.c.b16 %v10032, %v10030
      %v10059 = vpack.c.b16 %v10033, %v10031
      %v10060 = vpack.c.b16 %v10036, %v10034
      %v10061 = vpack.c.b16 %v10037, %v10035
      %v10062 = vpack.c.b16 %v10040, %v10038
      %v10063 = vpack.c.b16 %v10041, %v10039
      %v10064 = vpack.c.b16 %v10044, %v10042
      %v10065 = vpack.c.b16 %v10045, %v10043
      %v10066 = vpack.c.b16 %v10048, %v10046
      %v10067 = vpack.c.b16 %v10049, %v10047
      %v10068 = vpack.c.b16 %v10052, %v10050
      %v10069 = vpack.c.b16 %v10053, %v10051
      %v10070 = vpack.c.b16 %v10056, %v10054
      %v10071 = vpack.c.b16 %v10057, %v10055
      %v10150 = vunpack.c.l.b16 %v9952
      %v10151 = vunpack.c.h.b16 %v9952
      %v10152 = vunpack.c.l.b16 %v9953
      %v10153 = vunpack.c.h.b16 %v9953
      %v10154 = vunpack.c.l.b16 %v9954
      %v10155 = vunpack.c.h.b16 %v9954
      %v10156 = vunpack.c.l.b16 %v9955
      %v10157 = vunpack.c.h.b16 %v9955
      %v10158 = vunpack.c.l.b16 %v9956
      %v10159 = vunpack.c.h.b16 %v9956
      %v10160 = vunpack.c.l.b16 %v9957
      %v10161 = vunpack.c.h.b16 %v9957
      %v10162 = vunpack.c.l.b16 %v9958
      %v10163 = vunpack.c.h.b16 %v9958
      %v10164 = vunpack.c.l.b16 %v9959
      %v10165 = vunpack.c.h.b16 %v9959
      %v10166 = vunpack.c.l.b16 %v9960
      %v10167 = vunpack.c.h.b16 %v9960
      %v10168 = vunpack.c.l.b16 %v9961
      %v10169 = vunpack.c.h.b16 %v9961
      %v10170 = vunpack.c.l.b16 %v9962
      %v10171 = vunpack.c.h.b16 %v9962
      %v10172 = vunpack.c.l.b16 %v9963
      %v10173 = vunpack.c.h.b16 %v9963
      %v10174 = vunpack.c.l.b16 %v9964
      %v10175 = vunpack.c.h.b16 %v9964
      %v10176 = vunpack.c.l.b16 %v9965
      %v10177 = vunpack.c.h.b16 %v9965
      %v10178 = vunpack.c.l.b16 %v9966
      %v10179 = vunpack.c.h.b16 %v9966
      %v10180 = vunpack.c.l.b16 %v9967
      %v10181 = vunpack.c.h.b16 %v9967
      %v10182 = vunpack.c.l.b16 %v9968
      %v10183 = vunpack.c.h.b16 %v9968
      %v10184 = vunpack.c.l.b16 %v9969
      %v10185 = vunpack.c.h.b16 %v9969
      %v10186 = vunpack.c.l.b16 %v9970
      %v10187 = vunpack.c.h.b16 %v9970
      %v10188 = vunpack.c.l.b16 %v9971
      %v10189 = vunpack.c.h.b16 %v9971
      %v10190 = vunpack.c.l.b16 %v9972
      %v10191 = vunpack.c.h.b16 %v9972
      %v10192 = vunpack.c.l.b16 %v9973
      %v10193 = vunpack.c.h.b16 %v9973
      %v10194 = vunpack.c.l.b16 %v9974
      %v10195 = vunpack.c.h.b16 %v9974
      %v10196 = vunpack.c.l.b16 %v9975
      %v10197 = vunpack.c.h.b16 %v9975
      %v10198 = vunpack.c.l.b16 %v9976
      %v10199 = vunpack.c.h.b16 %v9976
      %v10200 = vunpack.c.l.b16 %v9977
      %v10201 = vunpack.c.h.b16 %v9977
      %v10202 = vunpack.c.l.b16 %v9978
      %v10203 = vunpack.c.h.b16 %v9978
      %v10204 = vunpack.c.l.b16 %v9979
      %v10205 = vunpack.c.h.b16 %v9979
      %v10206 = vunpack.c.l.b16 %v9980
      %v10207 = vunpack.c.h.b16 %v9980
      %v10208 = vunpack.c.l.b16 %v9981
      %v10209 = vunpack.c.h.b16 %v9981
      %v10210 = vunpack.c.l.b16 %v9982
      %v10211 = vunpack.c.h.b16 %v9982
      %v10212 = vunpack.c.l.b16 %v9983
      %v10213 = vunpack.c.h.b16 %v9983
      %v10214 = vunpack.c.l.b16 %v9984
      %v10215 = vunpack.c.h.b16 %v9984
      %v10216 = vunpack.c.l.b16 %v9985
      %v10217 = vunpack.c.h.b16 %v9985
      %v10218 = vunpack.c.l.b16 %v9986
      %v10219 = vunpack.c.h.b16 %v9986
      %v10220 = vunpack.c.l.b16 %v9987
      %v10221 = vunpack.c.h.b16 %v9987
      %v10222 = vunpack.c.l.b16 %v9988
      %v10223 = vunpack.c.h.b16 %v9988
      %v10224 = vunpack.c.l.b16 %v9989
      %v10225 = vunpack.c.h.b16 %v9989
      %v10226 = vunpack.c.l.b16 %v9990
      %v10227 = vunpack.c.h.b16 %v9990
      %v10228 = vunpack.c.l.b16 %v9991
      %v10229 = vunpack.c.h.b16 %v9991
      %v10230 = vunpack.c.l.b16 %v9992
      %v10231 = vunpack.c.h.b16 %v9992
      %v10232 = vunpack.c.l.b16 %v9993
      %v10233 = vunpack.c.h.b16 %v9993
      %v10234 = vunpack.c.l.b16 %v9994
      %v10235 = vunpack.c.h.b16 %v9994
      %v10236 = vunpack.c.l.b16 %v9995
      %v10237 = vunpack.c.h.b16 %v9995
      %v10238 = vunpack.c.l.b16 %v9996
      %v10239 = vunpack.c.h.b16 %v9996
      %v10240 = vunpack.c.l.b16 %v9997
      %v10241 = vunpack.c.h.b16 %v9997
      %v10242 = vunpack.c.l.b16 %v9998
      %v10243 = vunpack.c.h.b16 %v9998
      %v10244 = vunpack.c.l.b16 %v9999
      %v10245 = vunpack.c.h.b16 %v9999
      %v10246 = vunpack.c.l.b16 %v10000
      %v10247 = vunpack.c.h.b16 %v10000
      %v10248 = vunpack.c.l.b16 %v10001
      %v10249 = vunpack.c.h.b16 %v10001
      %v10250 = vunpack.c.l.b16 %v10002
      %v10251 = vunpack.c.h.b16 %v10002
      %v10252 = vunpack.c.l.b16 %v10003
      %v10253 = vunpack.c.h.b16 %v10003
      %v10254 = vunpack.c.l.b16 %v10004
      %v10255 = vunpack.c.h.b16 %v10004
      %v10256 = vunpack.c.l.b16 %v10005
      %v10257 = vunpack.c.h.b16 %v10005
      %v10258 = vunpack.c.l.b16 %v10006
      %v10259 = vunpack.c.h.b16 %v10006
      %v10260 = vunpack.c.l.b16 %v10007
      %v10261 = vunpack.c.h.b16 %v10007
      %v10262 = vunpack.c.l.b16 %v10008
      %v10263 = vunpack.c.h.b16 %v10008
      %v10264 = vunpack.c.l.b16 %v10009
      %v10265 = vunpack.c.h.b16 %v10009
      %v10266 = vunpack.c.l.b16 %v10010
      %v10267 = vunpack.c.h.b16 %v10010
      %v10268 = vunpack.c.l.b16 %v10011
      %v10269 = vunpack.c.h.b16 %v10011
      %v10270 = vunpack.c.l.b16 %v10012
      %v10271 = vunpack.c.h.b16 %v10012
      %v10272 = vunpack.c.l.b16 %v10013
      %v10273 = vunpack.c.h.b16 %v10013
      %v10274 = vunpack.c.l.b16 %v10014
      %v10275 = vunpack.c.h.b16 %v10014
      %v10276 = vunpack.c.l.b16 %v10015
      %v10277 = vunpack.c.h.b16 %v10015
      %v10278 = vpack.c.b16 %v10154, %v10150
      %v10279 = vpack.c.b16 %v10155, %v10151
      %v10280 = vpack.c.b16 %v10156, %v10152
      %v10281 = vpack.c.b16 %v10157, %v10153
      %v10282 = vpack.c.b16 %v10162, %v10158
      %v10283 = vpack.c.b16 %v10163, %v10159
      %v10284 = vpack.c.b16 %v10164, %v10160
      %v10285 = vpack.c.b16 %v10165, %v10161
      %v10286 = vpack.c.b16 %v10170, %v10166
      %v10287 = vpack.c.b16 %v10171, %v10167
      %v10288 = vpack.c.b16 %v10172, %v10168
      %v10289 = vpack.c.b16 %v10173, %v10169
      %v10290 = vpack.c.b16 %v10178, %v10174
      %v10291 = vpack.c.b16 %v10179, %v10175
      %v10292 = vpack.c.b16 %v10180, %v10176
      %v10293 = vpack.c.b16 %v10181, %v10177
      %v10294 = vpack.c.b16 %v10186, %v10182
      %v10295 = vpack.c.b16 %v10187, %v10183
      %v10296 = vpack.c.b16 %v10188, %v10184
      %v10297 = vpack.c.b16 %v10189, %v10185
      %v10298 = vpack.c.b16 %v10194, %v10190
      %v10299 = vpack.c.b16 %v10195, %v10191
      %v10300 = vpack.c.b16 %v10196, %v10192
      %v10301 = vpack.c.b16 %v10197, %v10193
      %v10302 = vpack.c.b16 %v10202, %v10198
      %v10303 = vpack.c.b16 %v10203, %v10199
      %v10304 = vpack.c.b16 %v10204, %v10200
      %v10305 = vpack.c.b16 %v10205, %v10201
      %v10306 = vpack.c.b16 %v10210, %v10206
      %v10307 = vpack.c.b16 %v10211, %v10207
      %v10308 = vpack.c.b16 %v10212, %v10208
      %v10309 = vpack.c.b16 %v10213, %v10209
      %v10310 = vpack.c.b16 %v10218, %v10214
      %v10311 = vpack.c.b16 %v10219, %v10215
      %v10312 = vpack.c.b16 %v10220, %v10216
      %v10313 = vpack.c.b16 %v10221, %v10217
      %v10314 = vpack.c.b16 %v10226, %v10222
      %v10315 = vpack.c.b16 %v10227, %v10223
      %v10316 = vpack.c.b16 %v10228, %v10224
      %v10317 = vpack.c.b16 %v10229, %v10225
      %v10318 = vpack.c.b16 %v10234, %v10230
      %v10319 = vpack.c.b16 %v10235, %v10231
      %v10320 = vpack.c.b16 %v10236, %v10232
      %v10321 = vpack.c.b16 %v10237, %v10233
      %v10322 = vpack.c.b16 %v10242, %v10238
      %v10323 = vpack.c.b16 %v10243, %v10239
      %v10324 = vpack.c.b16 %v10244, %v10240
      %v10325 = vpack.c.b16 %v10245, %v10241
      %v10326 = vpack.c.b16 %v10250, %v10246
      %v10327 = vpack.c.b16 %v10251, %v10247
      %v10328 = vpack.c.b16 %v10252, %v10248
      %v10329 = vpack.c.b16 %v10253, %v10249
      %v10330 = vpack.c.b16 %v10258, %v10254
      %v10331 = vpack.c.b16 %v10259, %v10255
      %v10332 = vpack.c.b16 %v10260, %v10256
      %v10333 = vpack.c.b16 %v10261, %v10257
      %v10334 = vpack.c.b16 %v10266, %v10262
      %v10335 = vpack.c.b16 %v10267, %v10263
      %v10336 = vpack.c.b16 %v10268, %v10264
      %v10337 = vpack.c.b16 %v10269, %v10265
      %v10338 = vpack.c.b16 %v10274, %v10270
      %v10339 = vpack.c.b16 %v10275, %v10271
      %v10340 = vpack.c.b16 %v10276, %v10272
      %v10341 = vpack.c.b16 %v10277, %v10273
      %10406 = vmatpush.bf16.msra.mxu0 %v10306
      %10407 = vmatpush.bf16.msra.mxu0 %v10302
      %10408 = vmatpush.bf16.msra.mxu0 %v10298
      %10409 = vmatpush.bf16.msra.mxu0 %v10294
      %10410 = vmatpush.bf16.msra.mxu0 %v10290
      %10411 = vmatpush.bf16.msra.mxu0 %v10286
      %10412 = vmatpush.bf16.msra.mxu0 %v10282
      %10413 = vmatpush.bf16.msra.mxu0 %v10278
      %10414 = vmatmul.bf16.gmra.mxu0 %v10058
      %v10415 = vpop.f32.mrf.mxu0
      %v10416 = vadd.f32 0.0, %v10415
      %v10417 = vpop.f32.mrf.mxu0
      %v10418 = vadd.f32 0.0, %v10417
      %10419 = vmatmul.bf16.gmra.mxu0 %v10060
      %v10420 = vpop.f32.mrf.mxu0
      %v10421 = vadd.f32 0.0, %v10420
      %v10422 = vpop.f32.mrf.mxu0
      %v10423 = vadd.f32 0.0, %v10422
      %10424 = vmatmul.bf16.gmra.mxu0 %v10062
      %v10425 = vpop.f32.mrf.mxu0
      %v10426 = vadd.f32 0.0, %v10425
      %v10427 = vpop.f32.mrf.mxu0
      %v10428 = vadd.f32 0.0, %v10427
      %10429 = vmatmul.bf16.gmra.mxu0 %v10064
      %v10430 = vpop.f32.mrf.mxu0
      %v10431 = vadd.f32 0.0, %v10430
      %v10432 = vpop.f32.mrf.mxu0
      %v10433 = vadd.f32 0.0, %v10432
      %10434 = vmatmul.bf16.gmra.mxu0 %v10066
      %v10435 = vpop.f32.mrf.mxu0
      %v10436 = vadd.f32 0.0, %v10435
      %v10437 = vpop.f32.mrf.mxu0
      %v10438 = vadd.f32 0.0, %v10437
      %10439 = vmatmul.bf16.gmra.mxu0 %v10068
      %v10440 = vpop.f32.mrf.mxu0
      %v10441 = vadd.f32 0.0, %v10440
      %v10442 = vpop.f32.mrf.mxu0
      %v10443 = vadd.f32 0.0, %v10442
      %10444 = vmatmul.bf16.gmra.mxu0 %v10070
      %v10445 = vpop.f32.mrf.mxu0
      %v10446 = vadd.f32 0.0, %v10445
      %v10447 = vpop.f32.mrf.mxu0
      %v10448 = vadd.f32 0.0, %v10447
      %10449 = vdwg.mxu0
      %10450 = vmatpush.bf16.msra.mxu0 %v10338
      %10451 = vmatpush.bf16.msra.mxu0 %v10334
      %10452 = vmatpush.bf16.msra.mxu0 %v10330
      %10453 = vmatpush.bf16.msra.mxu0 %v10326
      %10454 = vmatpush.bf16.msra.mxu0 %v10322
      %10455 = vmatpush.bf16.msra.mxu0 %v10318
      %10456 = vmatpush.bf16.msra.mxu0 %v10314
      %10457 = vmatpush.bf16.msra.mxu0 %v10310
      %10458 = vmatmul.bf16.gmra.mxu0 %v10059
      %v10459 = vpop.f32.mrf.mxu0
      %v10460 = vadd.f32 %v10416, %v10459
      %v10461 = vpop.f32.mrf.mxu0
      %v10462 = vadd.f32 %v10418, %v10461
      %10463 = vmatmul.bf16.gmra.mxu0 %v10061
      %v10464 = vpop.f32.mrf.mxu0
      %v10465 = vadd.f32 %v10421, %v10464
      %v10466 = vpop.f32.mrf.mxu0
      %v10467 = vadd.f32 %v10423, %v10466
      %10468 = vmatmul.bf16.gmra.mxu0 %v10063
      %v10469 = vpop.f32.mrf.mxu0
      %v10470 = vadd.f32 %v10426, %v10469
      %v10471 = vpop.f32.mrf.mxu0
      %v10472 = vadd.f32 %v10428, %v10471
      %10473 = vmatmul.bf16.gmra.mxu0 %v10065
      %v10474 = vpop.f32.mrf.mxu0
      %v10475 = vadd.f32 %v10431, %v10474
      %v10476 = vpop.f32.mrf.mxu0
      %v10477 = vadd.f32 %v10433, %v10476
      %10478 = vmatmul.bf16.gmra.mxu0 %v10067
      %v10479 = vpop.f32.mrf.mxu0
      %v10480 = vadd.f32 %v10436, %v10479
      %v10481 = vpop.f32.mrf.mxu0
      %v10482 = vadd.f32 %v10438, %v10481
      %10483 = vmatmul.bf16.gmra.mxu0 %v10069
      %v10484 = vpop.f32.mrf.mxu0
      %v10485 = vadd.f32 %v10441, %v10484
      %v10486 = vpop.f32.mrf.mxu0
      %v10487 = vadd.f32 %v10443, %v10486
      %10488 = vmatmul.bf16.gmra.mxu0 %v10071
      %v10489 = vpop.f32.mrf.mxu0
      %v10490 = vadd.f32 %v10446, %v10489
      %v10491 = vpop.f32.mrf.mxu0
      %v10492 = vadd.f32 %v10448, %v10491
      %10493 = vdwg.mxu0
      %10494 = vmatpush.bf16.msra.mxu0 %v10307
      %10495 = vmatpush.bf16.msra.mxu0 %v10303
      %10496 = vmatpush.bf16.msra.mxu0 %v10299
      %10497 = vmatpush.bf16.msra.mxu0 %v10295
      %10498 = vmatpush.bf16.msra.mxu0 %v10291
      %10499 = vmatpush.bf16.msra.mxu0 %v10287
      %10500 = vmatpush.bf16.msra.mxu0 %v10283
      %10501 = vmatpush.bf16.msra.mxu0 %v10279
      %10502 = vmatmul.bf16.gmra.mxu0 %v10058
      %v10503 = vpop.f32.mrf.mxu0
      %v10504 = vadd.f32 0.0, %v10503
      %v10505 = vpop.f32.mrf.mxu0
      %v10506 = vadd.f32 0.0, %v10505
      %10507 = vmatmul.bf16.gmra.mxu0 %v10060
      %v10508 = vpop.f32.mrf.mxu0
      %v10509 = vadd.f32 0.0, %v10508
      %v10510 = vpop.f32.mrf.mxu0
      %v10511 = vadd.f32 0.0, %v10510
      %10512 = vmatmul.bf16.gmra.mxu0 %v10062
      %v10513 = vpop.f32.mrf.mxu0
      %v10514 = vadd.f32 0.0, %v10513
      %v10515 = vpop.f32.mrf.mxu0
      %v10516 = vadd.f32 0.0, %v10515
      %10517 = vmatmul.bf16.gmra.mxu0 %v10064
      %v10518 = vpop.f32.mrf.mxu0
      %v10519 = vadd.f32 0.0, %v10518
      %v10520 = vpop.f32.mrf.mxu0
      %v10521 = vadd.f32 0.0, %v10520
      %10522 = vmatmul.bf16.gmra.mxu0 %v10066
      %v10523 = vpop.f32.mrf.mxu0
      %v10524 = vadd.f32 0.0, %v10523
      %v10525 = vpop.f32.mrf.mxu0
      %v10526 = vadd.f32 0.0, %v10525
      %10527 = vmatmul.bf16.gmra.mxu0 %v10068
      %v10528 = vpop.f32.mrf.mxu0
      %v10529 = vadd.f32 0.0, %v10528
      %v10530 = vpop.f32.mrf.mxu0
      %v10531 = vadd.f32 0.0, %v10530
      %10532 = vmatmul.bf16.gmra.mxu0 %v10070
      %v10533 = vpop.f32.mrf.mxu0
      %v10534 = vadd.f32 0.0, %v10533
      %v10535 = vpop.f32.mrf.mxu0
      %v10536 = vadd.f32 0.0, %v10535
      %10537 = vdwg.mxu0
      %10538 = vmatpush.bf16.msra.mxu0 %v10339
      %10539 = vmatpush.bf16.msra.mxu0 %v10335
      %10540 = vmatpush.bf16.msra.mxu0 %v10331
      %10541 = vmatpush.bf16.msra.mxu0 %v10327
      %10542 = vmatpush.bf16.msra.mxu0 %v10323
      %10543 = vmatpush.bf16.msra.mxu0 %v10319
      %10544 = vmatpush.bf16.msra.mxu0 %v10315
      %10545 = vmatpush.bf16.msra.mxu0 %v10311
      %10546 = vmatmul.bf16.gmra.mxu0 %v10059
      %v10547 = vpop.f32.mrf.mxu0
      %v10548 = vadd.f32 %v10504, %v10547
      %v10549 = vpop.f32.mrf.mxu0
      %v10550 = vadd.f32 %v10506, %v10549
      %10551 = vmatmul.bf16.gmra.mxu0 %v10061
      %v10552 = vpop.f32.mrf.mxu0
      %v10553 = vadd.f32 %v10509, %v10552
      %v10554 = vpop.f32.mrf.mxu0
      %v10555 = vadd.f32 %v10511, %v10554
      %10556 = vmatmul.bf16.gmra.mxu0 %v10063
      %v10557 = vpop.f32.mrf.mxu0
      %v10558 = vadd.f32 %v10514, %v10557
      %v10559 = vpop.f32.mrf.mxu0
      %v10560 = vadd.f32 %v10516, %v10559
      %10561 = vmatmul.bf16.gmra.mxu0 %v10065
      %v10562 = vpop.f32.mrf.mxu0
      %v10563 = vadd.f32 %v10519, %v10562
      %v10564 = vpop.f32.mrf.mxu0
      %v10565 = vadd.f32 %v10521, %v10564
      %10566 = vmatmul.bf16.gmra.mxu0 %v10067
      %v10567 = vpop.f32.mrf.mxu0
      %v10568 = vadd.f32 %v10524, %v10567
      %v10569 = vpop.f32.mrf.mxu0
      %v10570 = vadd.f32 %v10526, %v10569
      %10571 = vmatmul.bf16.gmra.mxu0 %v10069
      %v10572 = vpop.f32.mrf.mxu0
      %v10573 = vadd.f32 %v10529, %v10572
      %v10574 = vpop.f32.mrf.mxu0
      %v10575 = vadd.f32 %v10531, %v10574
      %10576 = vmatmul.bf16.gmra.mxu0 %v10071
      %v10577 = vpop.f32.mrf.mxu0
      %v10578 = vadd.f32 %v10534, %v10577
      %v10579 = vpop.f32.mrf.mxu0
      %v10580 = vadd.f32 %v10536, %v10579
      %10581 = vdwg.mxu0
      %10582 = vmatpush.bf16.msra.mxu0 %v10308
      %10583 = vmatpush.bf16.msra.mxu0 %v10304
      %10584 = vmatpush.bf16.msra.mxu0 %v10300
      %10585 = vmatpush.bf16.msra.mxu0 %v10296
      %10586 = vmatpush.bf16.msra.mxu0 %v10292
      %10587 = vmatpush.bf16.msra.mxu0 %v10288
      %10588 = vmatpush.bf16.msra.mxu0 %v10284
      %10589 = vmatpush.bf16.msra.mxu0 %v10280
      %10590 = vmatmul.bf16.gmra.mxu0 %v10058
      %v10591 = vpop.f32.mrf.mxu0
      %v10592 = vadd.f32 0.0, %v10591
      %v10593 = vpop.f32.mrf.mxu0
      %v10594 = vadd.f32 0.0, %v10593
      %10595 = vmatmul.bf16.gmra.mxu0 %v10060
      %v10596 = vpop.f32.mrf.mxu0
      %v10597 = vadd.f32 0.0, %v10596
      %v10598 = vpop.f32.mrf.mxu0
      %v10599 = vadd.f32 0.0, %v10598
      %10600 = vmatmul.bf16.gmra.mxu0 %v10062
      %v10601 = vpop.f32.mrf.mxu0
      %v10602 = vadd.f32 0.0, %v10601
      %v10603 = vpop.f32.mrf.mxu0
      %v10604 = vadd.f32 0.0, %v10603
      %10605 = vmatmul.bf16.gmra.mxu0 %v10064
      %v10606 = vpop.f32.mrf.mxu0
      %v10607 = vadd.f32 0.0, %v10606
      %v10608 = vpop.f32.mrf.mxu0
      %v10609 = vadd.f32 0.0, %v10608
      %10610 = vmatmul.bf16.gmra.mxu0 %v10066
      %v10611 = vpop.f32.mrf.mxu0
      %v10612 = vadd.f32 0.0, %v10611
      %v10613 = vpop.f32.mrf.mxu0
      %v10614 = vadd.f32 0.0, %v10613
      %10615 = vmatmul.bf16.gmra.mxu0 %v10068
      %v10616 = vpop.f32.mrf.mxu0
      %v10617 = vadd.f32 0.0, %v10616
      %v10618 = vpop.f32.mrf.mxu0
      %v10619 = vadd.f32 0.0, %v10618
      %10620 = vmatmul.bf16.gmra.mxu0 %v10070
      %v10621 = vpop.f32.mrf.mxu0
      %v10622 = vadd.f32 0.0, %v10621
      %v10623 = vpop.f32.mrf.mxu0
      %v10624 = vadd.f32 0.0, %v10623
      %10625 = vdwg.mxu0
      %10626 = vmatpush.bf16.msra.mxu0 %v10340
      %10627 = vmatpush.bf16.msra.mxu0 %v10336
      %10628 = vmatpush.bf16.msra.mxu0 %v10332
      %10629 = vmatpush.bf16.msra.mxu0 %v10328
      %10630 = vmatpush.bf16.msra.mxu0 %v10324
      %10631 = vmatpush.bf16.msra.mxu0 %v10320
      %10632 = vmatpush.bf16.msra.mxu0 %v10316
      %10633 = vmatpush.bf16.msra.mxu0 %v10312
      %10634 = vmatmul.bf16.gmra.mxu0 %v10059
      %v10635 = vpop.f32.mrf.mxu0
      %v10636 = vadd.f32 %v10592, %v10635
      %v10637 = vpop.f32.mrf.mxu0
      %v10638 = vadd.f32 %v10594, %v10637
      %10639 = vmatmul.bf16.gmra.mxu0 %v10061
      %v10640 = vpop.f32.mrf.mxu0
      %v10641 = vadd.f32 %v10597, %v10640
      %v10642 = vpop.f32.mrf.mxu0
      %v10643 = vadd.f32 %v10599, %v10642
      %10644 = vmatmul.bf16.gmra.mxu0 %v10063
      %v10645 = vpop.f32.mrf.mxu0
      %v10646 = vadd.f32 %v10602, %v10645
      %v10647 = vpop.f32.mrf.mxu0
      %v10648 = vadd.f32 %v10604, %v10647
      %10649 = vmatmul.bf16.gmra.mxu0 %v10065
      %v10650 = vpop.f32.mrf.mxu0
      %v10651 = vadd.f32 %v10607, %v10650
      %v10652 = vpop.f32.mrf.mxu0
      %v10653 = vadd.f32 %v10609, %v10652
      %10654 = vmatmul.bf16.gmra.mxu0 %v10067
      %v10655 = vpop.f32.mrf.mxu0
      %v10656 = vadd.f32 %v10612, %v10655
      %v10657 = vpop.f32.mrf.mxu0
      %v10658 = vadd.f32 %v10614, %v10657
      %10659 = vmatmul.bf16.gmra.mxu0 %v10069
      %v10660 = vpop.f32.mrf.mxu0
      %v10661 = vadd.f32 %v10617, %v10660
      %v10662 = vpop.f32.mrf.mxu0
      %v10663 = vadd.f32 %v10619, %v10662
      %10664 = vmatmul.bf16.gmra.mxu0 %v10071
      %v10665 = vpop.f32.mrf.mxu0
      %v10666 = vadd.f32 %v10622, %v10665
      %v10667 = vpop.f32.mrf.mxu0
      %v10668 = vadd.f32 %v10624, %v10667
      %10669 = vdwg.mxu0
      %10670 = vmatpush.bf16.msra.mxu0 %v10309
      %10671 = vmatpush.bf16.msra.mxu0 %v10305
      %10672 = vmatpush.bf16.msra.mxu0 %v10301
      %10673 = vmatpush.bf16.msra.mxu0 %v10297
      %10674 = vmatpush.bf16.msra.mxu0 %v10293
      %10675 = vmatpush.bf16.msra.mxu0 %v10289
      %10676 = vmatpush.bf16.msra.mxu0 %v10285
      %10677 = vmatpush.bf16.msra.mxu0 %v10281
      %10678 = vmatmul.bf16.gmra.mxu0 %v10058
      %v10679 = vpop.f32.mrf.mxu0
      %v10680 = vadd.f32 0.0, %v10679
      %v10681 = vpop.f32.mrf.mxu0
      %v10682 = vadd.f32 0.0, %v10681
      %10683 = vmatmul.bf16.gmra.mxu0 %v10060
      %v10684 = vpop.f32.mrf.mxu0
      %v10685 = vadd.f32 0.0, %v10684
      %v10686 = vpop.f32.mrf.mxu0
      %v10687 = vadd.f32 0.0, %v10686
      %10688 = vmatmul.bf16.gmra.mxu0 %v10062
      %v10689 = vpop.f32.mrf.mxu0
      %v10690 = vadd.f32 0.0, %v10689
      %v10691 = vpop.f32.mrf.mxu0
      %v10692 = vadd.f32 0.0, %v10691
      %10693 = vmatmul.bf16.gmra.mxu0 %v10064
      %v10694 = vpop.f32.mrf.mxu0
      %v10695 = vadd.f32 0.0, %v10694
      %v10696 = vpop.f32.mrf.mxu0
      %v10697 = vadd.f32 0.0, %v10696
      %10698 = vmatmul.bf16.gmra.mxu0 %v10066
      %v10699 = vpop.f32.mrf.mxu0
      %v10700 = vadd.f32 0.0, %v10699
      %v10701 = vpop.f32.mrf.mxu0
      %v10702 = vadd.f32 0.0, %v10701
      %10703 = vmatmul.bf16.gmra.mxu0 %v10068
      %v10704 = vpop.f32.mrf.mxu0
      %v10705 = vadd.f32 0.0, %v10704
      %v10706 = vpop.f32.mrf.mxu0
      %v10707 = vadd.f32 0.0, %v10706
      %10708 = vmatmul.bf16.gmra.mxu0 %v10070
      %v10709 = vpop.f32.mrf.mxu0
      %v10710 = vadd.f32 0.0, %v10709
      %v10711 = vpop.f32.mrf.mxu0
      %v10712 = vadd.f32 0.0, %v10711
      %10713 = vdwg.mxu0
      %10714 = vmatpush.bf16.msra.mxu0 %v10341
      %10715 = vmatpush.bf16.msra.mxu0 %v10337
      %10716 = vmatpush.bf16.msra.mxu0 %v10333
      %10717 = vmatpush.bf16.msra.mxu0 %v10329
      %10718 = vmatpush.bf16.msra.mxu0 %v10325
      %10719 = vmatpush.bf16.msra.mxu0 %v10321
      %10720 = vmatpush.bf16.msra.mxu0 %v10317
      %10721 = vmatpush.bf16.msra.mxu0 %v10313
      %10722 = vmatmul.bf16.gmra.mxu0 %v10059
      %v10723 = vpop.f32.mrf.mxu0
      %v10724 = vadd.f32 %v10680, %v10723
      %v10725 = vpop.f32.mrf.mxu0
      %v10726 = vadd.f32 %v10682, %v10725
      %10727 = vmatmul.bf16.gmra.mxu0 %v10061
      %v10728 = vpop.f32.mrf.mxu0
      %v10729 = vadd.f32 %v10685, %v10728
      %v10730 = vpop.f32.mrf.mxu0
      %v10731 = vadd.f32 %v10687, %v10730
      %10732 = vmatmul.bf16.gmra.mxu0 %v10063
      %v10733 = vpop.f32.mrf.mxu0
      %v10734 = vadd.f32 %v10690, %v10733
      %v10735 = vpop.f32.mrf.mxu0
      %v10736 = vadd.f32 %v10692, %v10735
      %10737 = vmatmul.bf16.gmra.mxu0 %v10065
      %v10738 = vpop.f32.mrf.mxu0
      %v10739 = vadd.f32 %v10695, %v10738
      %v10740 = vpop.f32.mrf.mxu0
      %v10741 = vadd.f32 %v10697, %v10740
      %10742 = vmatmul.bf16.gmra.mxu0 %v10067
      %v10743 = vpop.f32.mrf.mxu0
      %v10744 = vadd.f32 %v10700, %v10743
      %v10745 = vpop.f32.mrf.mxu0
      %v10746 = vadd.f32 %v10702, %v10745
      %10747 = vmatmul.bf16.gmra.mxu0 %v10069
      %v10748 = vpop.f32.mrf.mxu0
      %v10749 = vadd.f32 %v10705, %v10748
      %v10750 = vpop.f32.mrf.mxu0
      %v10751 = vadd.f32 %v10707, %v10750
      %10752 = vmatmul.bf16.gmra.mxu0 %v10071
      %v10753 = vpop.f32.mrf.mxu0
      %v10754 = vadd.f32 %v10710, %v10753
      %v10755 = vpop.f32.mrf.mxu0
      %v10756 = vadd.f32 %v10712, %v10755
      %10757 = vdwg.mxu0
      %v10758 = vadd.f32 %v9895, %v10460
      %v10759 = vadd.f32 %v9896, %v10548
      %v10760 = vadd.f32 %v9897, %v10636
      %v10761 = vadd.f32 %v9898, %v10724
      %v10762 = vadd.f32 %v9899, %v10462
      %v10763 = vadd.f32 %v9900, %v10550
      %v10764 = vadd.f32 %v9901, %v10638
      %v10765 = vadd.f32 %v9902, %v10726
      %v10766 = vadd.f32 %v9903, %v10465
      %v10767 = vadd.f32 %v9904, %v10553
      %v10768 = vadd.f32 %v9905, %v10641
      %v10769 = vadd.f32 %v9906, %v10729
      %v10770 = vadd.f32 %v9907, %v10467
      %v10771 = vadd.f32 %v9908, %v10555
      %v10772 = vadd.f32 %v9909, %v10643
      %v10773 = vadd.f32 %v9910, %v10731
      %v10774 = vadd.f32 %v9911, %v10470
      %v10775 = vadd.f32 %v9912, %v10558
      %v10776 = vadd.f32 %v9913, %v10646
      %v10777 = vadd.f32 %v9914, %v10734
      %v10778 = vadd.f32 %v9915, %v10472
      %v10779 = vadd.f32 %v9916, %v10560
      %v10780 = vadd.f32 %v9917, %v10648
      %v10781 = vadd.f32 %v9918, %v10736
      %v10782 = vadd.f32 %v9919, %v10475
      %v10783 = vadd.f32 %v9920, %v10563
      %v10784 = vadd.f32 %v9921, %v10651
      %v10785 = vadd.f32 %v9922, %v10739
      %v10786 = vadd.f32 %v9923, %v10477
      %v10787 = vadd.f32 %v9924, %v10565
      %v10788 = vadd.f32 %v9925, %v10653
      %v10789 = vadd.f32 %v9926, %v10741
      %v10790 = vadd.f32 %v9927, %v10480
      %v10791 = vadd.f32 %v9928, %v10568
      %v10792 = vadd.f32 %v9929, %v10656
      %v10793 = vadd.f32 %v9930, %v10744
      %v10794 = vadd.f32 %v9931, %v10482
      %v10795 = vadd.f32 %v9932, %v10570
      %v10796 = vadd.f32 %v9933, %v10658
      %v10797 = vadd.f32 %v9934, %v10746
      %v10798 = vadd.f32 %v9935, %v10485
      %v10799 = vadd.f32 %v9936, %v10573
      %v10800 = vadd.f32 %v9937, %v10661
      %v10801 = vadd.f32 %v9938, %v10749
      %v10802 = vadd.f32 %v9939, %v10487
      %v10803 = vadd.f32 %v9940, %v10575
      %v10804 = vadd.f32 %v9941, %v10663
      %v10805 = vadd.f32 %v9942, %v10751
      %v10806 = vadd.f32 %v9943, %v10490
      %v10807 = vadd.f32 %v9944, %v10578
      %v10808 = vadd.f32 %v9945, %v10666
      %v10809 = vadd.f32 %v9946, %v10754
      %v10810 = vadd.f32 %v9947, %v10492
      %v10811 = vadd.f32 %v9948, %v10580
      %v10812 = vadd.f32 %v9949, %v10668
      %v10813 = vadd.f32 %v9950, %v10756
      %v10814 = vmax.f32 %v10758, %v10760
      %v10815 = vmax.f32 %v10759, %v10761
      %v10816 = vmax.f32 %v10762, %v10764
      %v10817 = vmax.f32 %v10763, %v10765
      %v10818 = vmax.f32 %v10766, %v10768
      %v10819 = vmax.f32 %v10767, %v10769
      %v10820 = vmax.f32 %v10770, %v10772
      %v10821 = vmax.f32 %v10771, %v10773
      %v10822 = vmax.f32 %v10774, %v10776
      %v10823 = vmax.f32 %v10775, %v10777
      %v10824 = vmax.f32 %v10778, %v10780
      %v10825 = vmax.f32 %v10779, %v10781
      %v10826 = vmax.f32 %v10782, %v10784
      %v10827 = vmax.f32 %v10783, %v10785
      %v10828 = vmax.f32 %v10786, %v10788
      %v10829 = vmax.f32 %v10787, %v10789
      %v10830 = vmax.f32 %v10790, %v10792
      %v10831 = vmax.f32 %v10791, %v10793
      %v10832 = vmax.f32 %v10794, %v10796
      %v10833 = vmax.f32 %v10795, %v10797
      %v10834 = vmax.f32 %v10798, %v10800
      %v10835 = vmax.f32 %v10799, %v10801
      %v10836 = vmax.f32 %v10802, %v10804
      %v10837 = vmax.f32 %v10803, %v10805
      %v10838 = vmax.f32 %v10806, %v10808
      %v10839 = vmax.f32 %v10807, %v10809
      %v10840 = vmax.f32 %v10810, %v10812
      %v10841 = vmax.f32 %v10811, %v10813
      %v10842 = vld [vmem:[%s8] sm:$0x3]
      %v10844 = vperm.slane %v10842, 0
      %v10845 = vperm.slane %v10842, 1
      %v10848 = vadd.f32 %v10814, %v10844
      %v10849 = vadd.f32 %v10815, %v10845
      %v10850 = vadd.f32 %v10816, %v10844
      %v10851 = vadd.f32 %v10817, %v10845
      %v10852 = vadd.f32 %v10818, %v10844
      %v10853 = vadd.f32 %v10819, %v10845
      %v10854 = vadd.f32 %v10820, %v10844
      %v10855 = vadd.f32 %v10821, %v10845
      %v10856 = vadd.f32 %v10822, %v10844
      %v10857 = vadd.f32 %v10823, %v10845
      %v10858 = vadd.f32 %v10824, %v10844
      %v10859 = vadd.f32 %v10825, %v10845
      %v10860 = vadd.f32 %v10826, %v10844
      %v10861 = vadd.f32 %v10827, %v10845
      %v10862 = vadd.f32 %v10828, %v10844
      %v10863 = vadd.f32 %v10829, %v10845
      %v10864 = vadd.f32 %v10830, %v10844
      %v10865 = vadd.f32 %v10831, %v10845
      %v10866 = vadd.f32 %v10832, %v10844
      %v10867 = vadd.f32 %v10833, %v10845
      %v10868 = vadd.f32 %v10834, %v10844
      %v10869 = vadd.f32 %v10835, %v10845
      %v10870 = vadd.f32 %v10836, %v10844
      %v10871 = vadd.f32 %v10837, %v10845
      %v10872 = vadd.f32 %v10838, %v10844
      %v10873 = vadd.f32 %v10839, %v10845
      %v10874 = vadd.f32 %v10840, %v10844
      %v10875 = vadd.f32 %v10841, %v10845
      %v10876 = vmax.f32 %v10848, 0.0
      %v10877 = vmax.f32 %v10849, 0.0
      %v10878 = vmax.f32 %v10850, 0.0
      %v10879 = vmax.f32 %v10851, 0.0
      %v10880 = vmax.f32 %v10852, 0.0
      %v10881 = vmax.f32 %v10853, 0.0
      %v10882 = vmax.f32 %v10854, 0.0
      %v10883 = vmax.f32 %v10855, 0.0
      %v10884 = vmax.f32 %v10856, 0.0
      %v10885 = vmax.f32 %v10857, 0.0
      %v10886 = vmax.f32 %v10858, 0.0
      %v10887 = vmax.f32 %v10859, 0.0
      %v10888 = vmax.f32 %v10860, 0.0
      %v10889 = vmax.f32 %v10861, 0.0
      %v10890 = vmax.f32 %v10862, 0.0
      %v10891 = vmax.f32 %v10863, 0.0
      %v10892 = vmax.f32 %v10864, 0.0
      %v10893 = vmax.f32 %v10865, 0.0
      %v10894 = vmax.f32 %v10866, 0.0
      %v10895 = vmax.f32 %v10867, 0.0
      %v10896 = vmax.f32 %v10868, 0.0
      %v10897 = vmax.f32 %v10869, 0.0
      %v10898 = vmax.f32 %v10870, 0.0
      %v10899 = vmax.f32 %v10871, 0.0
      %v10900 = vmax.f32 %v10872, 0.0
      %v10901 = vmax.f32 %v10873, 0.0
      %v10902 = vmax.f32 %v10874, 0.0
      %v10903 = vmax.f32 %v10875, 0.0
      %v10904 = vmax.f32 %v10876, %v10878
      %v10905 = vmax.f32 %v10877, %v10879
      %v10906 = vmax.f32 %v10880, %v10882
      %v10907 = vmax.f32 %v10881, %v10883
      %v10908 = vmax.f32 %v10884, %v10886
      %v10909 = vmax.f32 %v10885, %v10887
      %v10910 = vmax.f32 %v10888, %v10890
      %v10911 = vmax.f32 %v10889, %v10891
      %v10912 = vmax.f32 %v10892, %v10894
      %v10913 = vmax.f32 %v10893, %v10895
      %v10914 = vmax.f32 %v10896, %v10898
      %v10915 = vmax.f32 %v10897, %v10899
      %v10916 = vmax.f32 %v10900, %v10902
      %v10917 = vmax.f32 %v10901, %v10903
      %v10918 = vpack.c.bf16 %v10904, %v10904
      %v10919 = vpack.c.bf16 %v10905, %v10905
      %v10920 = vpack.c.bf16 %v10906, %v10906
      %v10921 = vpack.c.bf16 %v10907, %v10907
      %v10922 = vpack.c.bf16 %v10908, %v10908
      %v10923 = vpack.c.bf16 %v10909, %v10909
      %v10924 = vpack.c.bf16 %v10910, %v10910
      %v10925 = vpack.c.bf16 %v10911, %v10911
      %v10926 = vpack.c.bf16 %v10912, %v10912
      %v10927 = vpack.c.bf16 %v10913, %v10913
      %v10928 = vpack.c.bf16 %v10914, %v10914
      %v10929 = vpack.c.bf16 %v10915, %v10915
      %v10930 = vpack.c.bf16 %v10916, %v10916
      %v10931 = vpack.c.bf16 %v10917, %v10917
      %v10932 = vld [vmem:[%s9] sm:$0xf]
      %v10933 = vld [vmem:[%s9 + $0x4] sm:$0xf]
      %v10934 = vld [vmem:[%s9 + $0x8] sm:$0xf]
      %v10935 = vld [vmem:[%s9 + $0xc] sm:$0xf]
      %v10936 = vld [vmem:[%s9 + $0x10] sm:$0xf]
      %v10937 = vld [vmem:[%s9 + $0x14] sm:$0xf]
      %v10938 = vld [vmem:[%s9 + $0x18] sm:$0xf]
      %v10939 = vld [vmem:[%s9 + $0x1c] sm:$0xf]
      %v10940 = vld [vmem:[%s9 + $0x20] sm:$0xf]
      %v10941 = vld [vmem:[%s9 + $0x24] sm:$0xf]
      %v10942 = vld [vmem:[%s9 + $0x28] sm:$0xf]
      %v10943 = vld [vmem:[%s9 + $0x2c] sm:$0xf]
      %v10944 = vld [vmem:[%s9 + $0x30] sm:$0xf]
      %v10945 = vld [vmem:[%s9 + $0x34] sm:$0xf]
      %v10946 = vld [vmem:[%s9 + $0x38] sm:$0xf]
      %v10947 = vld [vmem:[%s9 + $0x3c] sm:$0xf]
      %v10948 = vld [vmem:[%s9 + $0x40] sm:$0xf]
      %v10949 = vld [vmem:[%s9 + $0x44] sm:$0xf]
      %v10950 = vld [vmem:[%s9 + $0x48] sm:$0xf]
      %v10951 = vld [vmem:[%s9 + $0x4c] sm:$0xf]
      %v10952 = vld [vmem:[%s9 + $0x50] sm:$0xf]
      %v10953 = vld [vmem:[%s9 + $0x54] sm:$0xf]
      %v10954 = vld [vmem:[%s9 + $0x58] sm:$0xf]
      %v10955 = vld [vmem:[%s9 + $0x5c] sm:$0xf]
      %v10956 = vld [vmem:[%s9 + $0x60] sm:$0xf]
      %v10957 = vld [vmem:[%s9 + $0x64] sm:$0xf]
      %v10958 = vld [vmem:[%s9 + $0x68] sm:$0xf]
      %v10959 = vld [vmem:[%s9 + $0x6c] sm:$0xf]
      %v10960 = vld [vmem:[%s9 + $0x70] sm:$0xf]
      %v10961 = vld [vmem:[%s9 + $0x74] sm:$0xf]
      %v10962 = vld [vmem:[%s9 + $0x78] sm:$0xf]
      %v10963 = vld [vmem:[%s9 + $0x7c] sm:$0xf]
      %v10964 = vld [vmem:[%s9 + $0x80] sm:$0xf]
      %v10965 = vld [vmem:[%s9 + $0x84] sm:$0xf]
      %v10966 = vld [vmem:[%s9 + $0x88] sm:$0xf]
      %v10967 = vld [vmem:[%s9 + $0x8c] sm:$0xf]
      %v10968 = vld [vmem:[%s9 + $0x90] sm:$0xf]
      %v10969 = vld [vmem:[%s9 + $0x94] sm:$0xf]
      %v10970 = vld [vmem:[%s9 + $0x98] sm:$0xf]
      %v10971 = vld [vmem:[%s9 + $0x9c] sm:$0xf]
      %v10972 = vld [vmem:[%s9 + $0xa0] sm:$0xf]
      %v10973 = vld [vmem:[%s9 + $0xa4] sm:$0xf]
      %v10974 = vld [vmem:[%s9 + $0xa8] sm:$0xf]
      %v10975 = vld [vmem:[%s9 + $0xac] sm:$0xf]
      %v10976 = vld [vmem:[%s9 + $0xb0] sm:$0xf]
      %v10977 = vld [vmem:[%s9 + $0xb4] sm:$0xf]
      %v10978 = vld [vmem:[%s9 + $0xb8] sm:$0xf]
      %v10979 = vld [vmem:[%s9 + $0xbc] sm:$0xf]
      %v10980 = vld [vmem:[%s9 + $0xc0] sm:$0xf]
      %v10981 = vld [vmem:[%s9 + $0xc4] sm:$0xf]
      %v10982 = vld [vmem:[%s9 + $0xc8] sm:$0xf]
      %v10983 = vld [vmem:[%s9 + $0xcc] sm:$0xf]
      %v10984 = vld [vmem:[%s9 + $0xd0] sm:$0xf]
      %v10985 = vld [vmem:[%s9 + $0xd4] sm:$0xf]
      %v10986 = vld [vmem:[%s9 + $0xd8] sm:$0xf]
      %v10987 = vld [vmem:[%s9 + $0xdc] sm:$0xf]
      %v10988 = vld [vmem:[%s9 + $0xe0] sm:$0xf]
      %v10989 = vld [vmem:[%s9 + $0xe4] sm:$0xf]
      %v10990 = vld [vmem:[%s9 + $0xe8] sm:$0xf]
      %v10991 = vld [vmem:[%s9 + $0xec] sm:$0xf]
      %v10992 = vld [vmem:[%s9 + $0xf0] sm:$0xf]
      %v10993 = vld [vmem:[%s9 + $0xf4] sm:$0xf]
      %v10994 = vld [vmem:[%s9 + $0xf8] sm:$0xf]
      %v10995 = vld [vmem:[%s9 + $0xfc] sm:$0xf]
      %v10996 = vld [vmem:[%s9 + $0x100] sm:$0xf]
      %v10997 = vld [vmem:[%s9 + $0x104] sm:$0xf]
      %v10998 = vld [vmem:[%s9 + $0x108] sm:$0xf]
      %v10999 = vld [vmem:[%s9 + $0x10c] sm:$0xf]
      %v11000 = vld [vmem:[%s9 + $0x110] sm:$0xf]
      %v11001 = vld [vmem:[%s9 + $0x114] sm:$0xf]
      %v11002 = vld [vmem:[%s9 + $0x118] sm:$0xf]
      %v11003 = vld [vmem:[%s9 + $0x11c] sm:$0xf]
      %v11004 = vld [vmem:[%s9 + $0x120] sm:$0xf]
      %v11005 = vld [vmem:[%s9 + $0x124] sm:$0xf]
      %v11006 = vld [vmem:[%s9 + $0x128] sm:$0xf]
      %v11007 = vld [vmem:[%s9 + $0x12c] sm:$0xf]
      %v11008 = vld [vmem:[%s9 + $0x130] sm:$0xf]
      %v11009 = vld [vmem:[%s9 + $0x134] sm:$0xf]
      %v11010 = vld [vmem:[%s9 + $0x138] sm:$0xf]
      %v11011 = vld [vmem:[%s9 + $0x13c] sm:$0xf]
      %v11012 = vld [vmem:[%s9 + $0x140] sm:$0xf]
      %v11013 = vld [vmem:[%s9 + $0x144] sm:$0xf]
      %v11014 = vld [vmem:[%s9 + $0x148] sm:$0xf]
      %v11015 = vld [vmem:[%s9 + $0x14c] sm:$0xf]
      %v11016 = vld [vmem:[%s9 + $0x150] sm:$0xf]
      %v11017 = vld [vmem:[%s9 + $0x154] sm:$0xf]
      %v11018 = vld [vmem:[%s9 + $0x158] sm:$0xf]
      %v11019 = vld [vmem:[%s9 + $0x15c] sm:$0xf]
      %v11020 = vld [vmem:[%s9 + $0x160] sm:$0xf]
      %v11021 = vld [vmem:[%s9 + $0x164] sm:$0xf]
      %v11022 = vld [vmem:[%s9 + $0x168] sm:$0xf]
      %v11023 = vld [vmem:[%s9 + $0x16c] sm:$0xf]
      %v11024 = vld [vmem:[%s9 + $0x170] sm:$0xf]
      %v11025 = vld [vmem:[%s9 + $0x174] sm:$0xf]
      %v11026 = vld [vmem:[%s9 + $0x178] sm:$0xf]
      %v11027 = vld [vmem:[%s9 + $0x17c] sm:$0xf]
      %v11028 = vld [vmem:[%s9 + $0x180] sm:$0xf]
      %v11029 = vld [vmem:[%s9 + $0x184] sm:$0xf]
      %v11030 = vld [vmem:[%s9 + $0x188] sm:$0xf]
      %v11031 = vld [vmem:[%s9 + $0x18c] sm:$0xf]
      %v11032 = vld [vmem:[%s9 + $0x190] sm:$0xf]
      %v11033 = vld [vmem:[%s9 + $0x194] sm:$0xf]
      %v11034 = vld [vmem:[%s9 + $0x198] sm:$0xf]
      %v11035 = vld [vmem:[%s9 + $0x19c] sm:$0xf]
      %v11036 = vld [vmem:[%s9 + $0x1a0] sm:$0xf]
      %v11037 = vld [vmem:[%s9 + $0x1a4] sm:$0xf]
      %v11038 = vld [vmem:[%s9 + $0x1a8] sm:$0xf]
      %v11039 = vld [vmem:[%s9 + $0x1ac] sm:$0xf]
      %v11040 = vld [vmem:[%s9 + $0x1b0] sm:$0xf]
      %v11041 = vld [vmem:[%s9 + $0x1b4] sm:$0xf]
      %v11042 = vld [vmem:[%s9 + $0x1b8] sm:$0xf]
      %v11043 = vld [vmem:[%s9 + $0x1bc] sm:$0xf]
      %v11044 = vld [vmem:[%s9 + $0x1c0] sm:$0xf]
      %v11045 = vld [vmem:[%s9 + $0x1c4] sm:$0xf]
      %v11046 = vld [vmem:[%s9 + $0x1c8] sm:$0xf]
      %v11047 = vld [vmem:[%s9 + $0x1cc] sm:$0xf]
      %v11048 = vld [vmem:[%s9 + $0x1d0] sm:$0xf]
      %v11049 = vld [vmem:[%s9 + $0x1d4] sm:$0xf]
      %v11050 = vld [vmem:[%s9 + $0x1d8] sm:$0xf]
      %v11051 = vld [vmem:[%s9 + $0x1dc] sm:$0xf]
      %v11052 = vld [vmem:[%s9 + $0x1e0] sm:$0xf]
      %v11053 = vld [vmem:[%s9 + $0x1e4] sm:$0xf]
      %v11054 = vld [vmem:[%s9 + $0x1e8] sm:$0xf]
      %v11055 = vld [vmem:[%s9 + $0x1ec] sm:$0xf]
      %v11056 = vld [vmem:[%s9 + $0x1f0] sm:$0xf]
      %v11057 = vld [vmem:[%s9 + $0x1f4] sm:$0xf]
      %v11058 = vld [vmem:[%s9 + $0x1f8] sm:$0xf]
      %v11059 = vld [vmem:[%s9 + $0x1fc] sm:$0xf]
      %v11060 = vld [vmem:[%s9 + $0x200] sm:$0xf]
      %v11061 = vld [vmem:[%s9 + $0x204] sm:$0xf]
      %v11062 = vld [vmem:[%s9 + $0x208] sm:$0xf]
      %v11063 = vld [vmem:[%s9 + $0x20c] sm:$0xf]
      %v11064 = vld [vmem:[%s9 + $0x210] sm:$0xf]
      %v11065 = vld [vmem:[%s9 + $0x214] sm:$0xf]
      %v11066 = vld [vmem:[%s9 + $0x218] sm:$0xf]
      %v11067 = vld [vmem:[%s9 + $0x21c] sm:$0xf]
      %v11068 = vld [vmem:[%s9 + $0x220] sm:$0xf]
      %v11069 = vld [vmem:[%s9 + $0x224] sm:$0xf]
      %v11070 = vld [vmem:[%s9 + $0x228] sm:$0xf]
      %v11071 = vld [vmem:[%s9 + $0x22c] sm:$0xf]
      %v11072 = vld [vmem:[%s9 + $0x230] sm:$0xf]
      %v11073 = vld [vmem:[%s9 + $0x234] sm:$0xf]
      %v11074 = vld [vmem:[%s9 + $0x238] sm:$0xf]
      %v11075 = vld [vmem:[%s9 + $0x23c] sm:$0xf]
      %v11076 = vld [vmem:[%s9 + $0x240] sm:$0xf]
      %v11077 = vld [vmem:[%s9 + $0x244] sm:$0xf]
      %v11078 = vld [vmem:[%s9 + $0x248] sm:$0xf]
      %v11079 = vld [vmem:[%s9 + $0x24c] sm:$0xf]
      %v11080 = vld [vmem:[%s9 + $0x250] sm:$0xf]
      %v11081 = vld [vmem:[%s9 + $0x254] sm:$0xf]
      %v11082 = vld [vmem:[%s9 + $0x258] sm:$0xf]
      %v11083 = vld [vmem:[%s9 + $0x25c] sm:$0xf]
      %v11084 = vld [vmem:[%s9 + $0x260] sm:$0xf]
      %v11085 = vld [vmem:[%s9 + $0x264] sm:$0xf]
      %v11086 = vld [vmem:[%s9 + $0x268] sm:$0xf]
      %v11087 = vld [vmem:[%s9 + $0x26c] sm:$0xf]
      %v11088 = vld [vmem:[%s9 + $0x270] sm:$0xf]
      %v11089 = vld [vmem:[%s9 + $0x274] sm:$0xf]
      %v11090 = vld [vmem:[%s9 + $0x278] sm:$0xf]
      %v11091 = vld [vmem:[%s9 + $0x27c] sm:$0xf]
      %v11092 = vld [vmem:[%s9 + $0x280] sm:$0xf]
      %v11093 = vld [vmem:[%s9 + $0x284] sm:$0xf]
      %v11094 = vld [vmem:[%s9 + $0x288] sm:$0xf]
      %v11095 = vld [vmem:[%s9 + $0x28c] sm:$0xf]
      %v11096 = vld [vmem:[%s9 + $0x290] sm:$0xf]
      %v11097 = vld [vmem:[%s9 + $0x294] sm:$0xf]
      %v11098 = vld [vmem:[%s9 + $0x298] sm:$0xf]
      %v11099 = vld [vmem:[%s9 + $0x29c] sm:$0xf]
      %v11100 = vld [vmem:[%s9 + $0x2a0] sm:$0xf]
      %v11101 = vld [vmem:[%s9 + $0x2a4] sm:$0xf]
      %v11102 = vld [vmem:[%s9 + $0x2a8] sm:$0xf]
      %v11103 = vld [vmem:[%s9 + $0x2ac] sm:$0xf]
      %v11104 = vld [vmem:[%s9 + $0x2b0] sm:$0xf]
      %v11105 = vld [vmem:[%s9 + $0x2b4] sm:$0xf]
      %v11106 = vld [vmem:[%s9 + $0x2b8] sm:$0xf]
      %v11107 = vld [vmem:[%s9 + $0x2bc] sm:$0xf]
      %v11108 = vld [vmem:[%s9 + $0x2c0] sm:$0xf]
      %v11109 = vld [vmem:[%s9 + $0x2c4] sm:$0xf]
      %v11110 = vld [vmem:[%s9 + $0x2c8] sm:$0xf]
      %v11111 = vld [vmem:[%s9 + $0x2cc] sm:$0xf]
      %v11112 = vld [vmem:[%s9 + $0x2d0] sm:$0xf]
      %v11113 = vld [vmem:[%s9 + $0x2d4] sm:$0xf]
      %v11114 = vld [vmem:[%s9 + $0x2d8] sm:$0xf]
      %v11115 = vld [vmem:[%s9 + $0x2dc] sm:$0xf]
      %v11116 = vld [vmem:[%s9 + $0x2e0] sm:$0xf]
      %v11117 = vld [vmem:[%s9 + $0x2e4] sm:$0xf]
      %v11118 = vld [vmem:[%s9 + $0x2e8] sm:$0xf]
      %v11119 = vld [vmem:[%s9 + $0x2ec] sm:$0xf]
      %v11120 = vld [vmem:[%s9 + $0x2f0] sm:$0xf]
      %v11121 = vld [vmem:[%s9 + $0x2f4] sm:$0xf]
      %v11122 = vld [vmem:[%s9 + $0x2f8] sm:$0xf]
      %v11123 = vld [vmem:[%s9 + $0x2fc] sm:$0xf]
      %v11124 = vld [vmem:[%s9 + $0x300] sm:$0xf]
      %v11125 = vld [vmem:[%s9 + $0x304] sm:$0xf]
      %v11126 = vld [vmem:[%s9 + $0x308] sm:$0xf]
      %v11127 = vld [vmem:[%s9 + $0x30c] sm:$0xf]
      %v11128 = vld [vmem:[%s9 + $0x310] sm:$0xf]
      %v11129 = vld [vmem:[%s9 + $0x314] sm:$0xf]
      %v11130 = vld [vmem:[%s9 + $0x318] sm:$0xf]
      %v11131 = vld [vmem:[%s9 + $0x31c] sm:$0xf]
      %v11132 = vld [vmem:[%s9 + $0x320] sm:$0xf]
      %v11133 = vld [vmem:[%s9 + $0x324] sm:$0xf]
      %v11134 = vld [vmem:[%s9 + $0x328] sm:$0xf]
      %v11135 = vld [vmem:[%s9 + $0x32c] sm:$0xf]
      %v11136 = vld [vmem:[%s9 + $0x330] sm:$0xf]
      %v11137 = vld [vmem:[%s9 + $0x334] sm:$0xf]
      %v11138 = vld [vmem:[%s9 + $0x338] sm:$0xf]
      %v11139 = vld [vmem:[%s9 + $0x33c] sm:$0xf]
      %v11140 = vld [vmem:[%s9 + $0x340] sm:$0xf]
      %v11141 = vld [vmem:[%s9 + $0x344] sm:$0xf]
      %v11142 = vld [vmem:[%s9 + $0x348] sm:$0xf]
      %v11143 = vld [vmem:[%s9 + $0x34c] sm:$0xf]
      %v11144 = vld [vmem:[%s9 + $0x350] sm:$0xf]
      %v11145 = vld [vmem:[%s9 + $0x354] sm:$0xf]
      %v11146 = vld [vmem:[%s9 + $0x358] sm:$0xf]
      %v11147 = vld [vmem:[%s9 + $0x35c] sm:$0xf]
      %v11148 = vld [vmem:[%s9 + $0x360] sm:$0xf]
      %v11149 = vld [vmem:[%s9 + $0x364] sm:$0xf]
      %v11150 = vld [vmem:[%s9 + $0x368] sm:$0xf]
      %v11151 = vld [vmem:[%s9 + $0x36c] sm:$0xf]
      %v11152 = vld [vmem:[%s9 + $0x370] sm:$0xf]
      %v11153 = vld [vmem:[%s9 + $0x374] sm:$0xf]
      %v11154 = vld [vmem:[%s9 + $0x378] sm:$0xf]
      %v11155 = vld [vmem:[%s9 + $0x37c] sm:$0xf]
      %v11156 = vld [vmem:[%s10] sm:$0x1]
      %v11158 = vperm.slane %v11156, 0
      %v11384 = vunpack.c.l.b16 %v10932
      %v11385 = vunpack.c.l.b16 %v10933
      %v11386 = vunpack.c.l.b16 %v10934
      %v11387 = vunpack.c.l.b16 %v10935
      %v11388 = vunpack.c.l.b16 %v10936
      %v11389 = vunpack.c.l.b16 %v10937
      %v11390 = vunpack.c.l.b16 %v10938
      %v11391 = vunpack.c.l.b16 %v10939
      %v11392 = vunpack.c.l.b16 %v10940
      %v11393 = vunpack.c.l.b16 %v10941
      %v11394 = vunpack.c.l.b16 %v10942
      %v11395 = vunpack.c.l.b16 %v10943
      %v11396 = vunpack.c.l.b16 %v10944
      %v11397 = vunpack.c.l.b16 %v10945
      %v11398 = vunpack.c.l.b16 %v10946
      %v11399 = vunpack.c.l.b16 %v10947
      %v11400 = vunpack.c.l.b16 %v10948
      %v11401 = vunpack.c.l.b16 %v10949
      %v11402 = vunpack.c.l.b16 %v10950
      %v11403 = vunpack.c.l.b16 %v10951
      %v11404 = vunpack.c.l.b16 %v10952
      %v11405 = vunpack.c.l.b16 %v10953
      %v11406 = vunpack.c.l.b16 %v10954
      %v11407 = vunpack.c.l.b16 %v10955
      %v11408 = vunpack.c.l.b16 %v10956
      %v11409 = vunpack.c.l.b16 %v10957
      %v11410 = vunpack.c.l.b16 %v10958
      %v11411 = vunpack.c.l.b16 %v10959
      %v11412 = vunpack.c.l.b16 %v10960
      %v11413 = vunpack.c.l.b16 %v10961
      %v11414 = vunpack.c.l.b16 %v10962
      %v11415 = vunpack.c.l.b16 %v10963
      %v11416 = vunpack.c.l.b16 %v10964
      %v11417 = vunpack.c.l.b16 %v10965
      %v11418 = vunpack.c.l.b16 %v10966
      %v11419 = vunpack.c.l.b16 %v10967
      %v11420 = vunpack.c.l.b16 %v10968
      %v11421 = vunpack.c.l.b16 %v10969
      %v11422 = vunpack.c.l.b16 %v10970
      %v11423 = vunpack.c.l.b16 %v10971
      %v11424 = vunpack.c.l.b16 %v10972
      %v11425 = vunpack.c.l.b16 %v10973
      %v11426 = vunpack.c.l.b16 %v10974
      %v11427 = vunpack.c.l.b16 %v10975
      %v11428 = vunpack.c.l.b16 %v10976
      %v11429 = vunpack.c.l.b16 %v10977
      %v11430 = vunpack.c.l.b16 %v10978
      %v11431 = vunpack.c.l.b16 %v10979
      %v11432 = vunpack.c.l.b16 %v10980
      %v11433 = vunpack.c.l.b16 %v10981
      %v11434 = vunpack.c.l.b16 %v10982
      %v11435 = vunpack.c.l.b16 %v10983
      %v11436 = vunpack.c.l.b16 %v10984
      %v11437 = vunpack.c.l.b16 %v10985
      %v11438 = vunpack.c.l.b16 %v10986
      %v11439 = vunpack.c.l.b16 %v10987
      %v11440 = vunpack.c.l.b16 %v10988
      %v11441 = vunpack.c.l.b16 %v10989
      %v11442 = vunpack.c.l.b16 %v10990
      %v11443 = vunpack.c.l.b16 %v10991
      %v11444 = vunpack.c.l.b16 %v10992
      %v11445 = vunpack.c.l.b16 %v10993
      %v11446 = vunpack.c.l.b16 %v10994
      %v11447 = vunpack.c.l.b16 %v10995
      %v11448 = vunpack.c.l.b16 %v10996
      %v11449 = vunpack.c.l.b16 %v10997
      %v11450 = vunpack.c.l.b16 %v10998
      %v11451 = vunpack.c.l.b16 %v10999
      %v11452 = vunpack.c.l.b16 %v11000
      %v11453 = vunpack.c.l.b16 %v11001
      %v11454 = vunpack.c.l.b16 %v11002
      %v11455 = vunpack.c.l.b16 %v11003
      %v11456 = vunpack.c.l.b16 %v11004
      %v11457 = vunpack.c.l.b16 %v11005
      %v11458 = vunpack.c.l.b16 %v11006
      %v11459 = vunpack.c.l.b16 %v11007
      %v11460 = vunpack.c.l.b16 %v11008
      %v11461 = vunpack.c.l.b16 %v11009
      %v11462 = vunpack.c.l.b16 %v11010
      %v11463 = vunpack.c.l.b16 %v11011
      %v11464 = vunpack.c.l.b16 %v11012
      %v11465 = vunpack.c.l.b16 %v11013
      %v11466 = vunpack.c.l.b16 %v11014
      %v11467 = vunpack.c.l.b16 %v11015
      %v11468 = vunpack.c.l.b16 %v11016
      %v11469 = vunpack.c.l.b16 %v11017
      %v11470 = vunpack.c.l.b16 %v11018
      %v11471 = vunpack.c.l.b16 %v11019
      %v11472 = vunpack.c.l.b16 %v11020
      %v11473 = vunpack.c.l.b16 %v11021
      %v11474 = vunpack.c.l.b16 %v11022
      %v11475 = vunpack.c.l.b16 %v11023
      %v11476 = vunpack.c.l.b16 %v11024
      %v11477 = vunpack.c.l.b16 %v11025
      %v11478 = vunpack.c.l.b16 %v11026
      %v11479 = vunpack.c.l.b16 %v11027
      %v11480 = vunpack.c.l.b16 %v11028
      %v11481 = vunpack.c.l.b16 %v11029
      %v11482 = vunpack.c.l.b16 %v11030
      %v11483 = vunpack.c.l.b16 %v11031
      %v11484 = vunpack.c.l.b16 %v11032
      %v11485 = vunpack.c.l.b16 %v11033
      %v11486 = vunpack.c.l.b16 %v11034
      %v11487 = vunpack.c.l.b16 %v11035
      %v11488 = vunpack.c.l.b16 %v11036
      %v11489 = vunpack.c.l.b16 %v11037
      %v11490 = vunpack.c.l.b16 %v11038
      %v11491 = vunpack.c.l.b16 %v11039
      %v11492 = vunpack.c.l.b16 %v11040
      %v11493 = vunpack.c.l.b16 %v11041
      %v11494 = vunpack.c.l.b16 %v11042
      %v11495 = vunpack.c.l.b16 %v11043
      %v11496 = vunpack.c.l.b16 %v11044
      %v11497 = vunpack.c.l.b16 %v11045
      %v11498 = vunpack.c.l.b16 %v11046
      %v11499 = vunpack.c.l.b16 %v11047
      %v11500 = vunpack.c.l.b16 %v11048
      %v11501 = vunpack.c.l.b16 %v11049
      %v11502 = vunpack.c.l.b16 %v11050
      %v11503 = vunpack.c.l.b16 %v11051
      %v11504 = vunpack.c.l.b16 %v11052
      %v11505 = vunpack.c.l.b16 %v11053
      %v11506 = vunpack.c.l.b16 %v11054
      %v11507 = vunpack.c.l.b16 %v11055
      %v11508 = vunpack.c.l.b16 %v11056
      %v11509 = vunpack.c.l.b16 %v11057
      %v11510 = vunpack.c.l.b16 %v11058
      %v11511 = vunpack.c.l.b16 %v11059
      %v11512 = vunpack.c.l.b16 %v11060
      %v11513 = vunpack.c.l.b16 %v11061
      %v11514 = vunpack.c.l.b16 %v11062
      %v11515 = vunpack.c.l.b16 %v11063
      %v11516 = vunpack.c.l.b16 %v11064
      %v11517 = vunpack.c.l.b16 %v11065
      %v11518 = vunpack.c.l.b16 %v11066
      %v11519 = vunpack.c.l.b16 %v11067
      %v11520 = vunpack.c.l.b16 %v11068
      %v11521 = vunpack.c.l.b16 %v11069
      %v11522 = vunpack.c.l.b16 %v11070
      %v11523 = vunpack.c.l.b16 %v11071
      %v11524 = vunpack.c.l.b16 %v11072
      %v11525 = vunpack.c.l.b16 %v11073
      %v11526 = vunpack.c.l.b16 %v11074
      %v11527 = vunpack.c.l.b16 %v11075
      %v11528 = vunpack.c.l.b16 %v11076
      %v11529 = vunpack.c.l.b16 %v11077
      %v11530 = vunpack.c.l.b16 %v11078
      %v11531 = vunpack.c.l.b16 %v11079
      %v11532 = vunpack.c.l.b16 %v11080
      %v11533 = vunpack.c.l.b16 %v11081
      %v11534 = vunpack.c.l.b16 %v11082
      %v11535 = vunpack.c.l.b16 %v11083
      %v11536 = vunpack.c.l.b16 %v11084
      %v11537 = vunpack.c.l.b16 %v11085
      %v11538 = vunpack.c.l.b16 %v11086
      %v11539 = vunpack.c.l.b16 %v11087
      %v11540 = vunpack.c.l.b16 %v11088
      %v11541 = vunpack.c.l.b16 %v11089
      %v11542 = vunpack.c.l.b16 %v11090
      %v11543 = vunpack.c.l.b16 %v11091
      %v11544 = vunpack.c.l.b16 %v11092
      %v11545 = vunpack.c.l.b16 %v11093
      %v11546 = vunpack.c.l.b16 %v11094
      %v11547 = vunpack.c.l.b16 %v11095
      %v11548 = vunpack.c.l.b16 %v11096
      %v11549 = vunpack.c.l.b16 %v11097
      %v11550 = vunpack.c.l.b16 %v11098
      %v11551 = vunpack.c.l.b16 %v11099
      %v11552 = vunpack.c.l.b16 %v11100
      %v11553 = vunpack.c.l.b16 %v11101
      %v11554 = vunpack.c.l.b16 %v11102
      %v11555 = vunpack.c.l.b16 %v11103
      %v11556 = vunpack.c.l.b16 %v11104
      %v11557 = vunpack.c.l.b16 %v11105
      %v11558 = vunpack.c.l.b16 %v11106
      %v11559 = vunpack.c.l.b16 %v11107
      %v11560 = vunpack.c.l.b16 %v11108
      %v11561 = vunpack.c.l.b16 %v11109
      %v11562 = vunpack.c.l.b16 %v11110
      %v11563 = vunpack.c.l.b16 %v11111
      %v11564 = vunpack.c.l.b16 %v11112
      %v11565 = vunpack.c.l.b16 %v11113
      %v11566 = vunpack.c.l.b16 %v11114
      %v11567 = vunpack.c.l.b16 %v11115
      %v11568 = vunpack.c.l.b16 %v11116
      %v11569 = vunpack.c.l.b16 %v11117
      %v11570 = vunpack.c.l.b16 %v11118
      %v11571 = vunpack.c.l.b16 %v11119
      %v11572 = vunpack.c.l.b16 %v11120
      %v11573 = vunpack.c.l.b16 %v11121
      %v11574 = vunpack.c.l.b16 %v11122
      %v11575 = vunpack.c.l.b16 %v11123
      %v11576 = vunpack.c.l.b16 %v11124
      %v11577 = vunpack.c.l.b16 %v11125
      %v11578 = vunpack.c.l.b16 %v11126
      %v11579 = vunpack.c.l.b16 %v11127
      %v11580 = vunpack.c.l.b16 %v11128
      %v11581 = vunpack.c.l.b16 %v11129
      %v11582 = vunpack.c.l.b16 %v11130
      %v11583 = vunpack.c.l.b16 %v11131
      %v11584 = vunpack.c.l.b16 %v11132
      %v11585 = vunpack.c.l.b16 %v11133
      %v11586 = vunpack.c.l.b16 %v11134
      %v11587 = vunpack.c.l.b16 %v11135
      %v11588 = vunpack.c.l.b16 %v11136
      %v11589 = vunpack.c.l.b16 %v11137
      %v11590 = vunpack.c.l.b16 %v11138
      %v11591 = vunpack.c.l.b16 %v11139
      %v11592 = vunpack.c.l.b16 %v11140
      %v11593 = vunpack.c.l.b16 %v11141
      %v11594 = vunpack.c.l.b16 %v11142
      %v11595 = vunpack.c.l.b16 %v11143
      %v11596 = vunpack.c.l.b16 %v11144
      %v11597 = vunpack.c.l.b16 %v11145
      %v11598 = vunpack.c.l.b16 %v11146
      %v11599 = vunpack.c.l.b16 %v11147
      %v11600 = vunpack.c.l.b16 %v11148
      %v11601 = vunpack.c.l.b16 %v11149
      %v11602 = vunpack.c.l.b16 %v11150
      %v11603 = vunpack.c.l.b16 %v11151
      %v11604 = vunpack.c.l.b16 %v11152
      %v11605 = vunpack.c.l.b16 %v11153
      %v11606 = vunpack.c.l.b16 %v11154
      %v11607 = vunpack.c.l.b16 %v11155
      %v11608 = vpack.c.b16 %v11385, %v11384
      %v11609 = vpack.c.b16 %v11387, %v11386
      %v11610 = vpack.c.b16 %v11389, %v11388
      %v11611 = vpack.c.b16 %v11391, %v11390
      %v11612 = vpack.c.b16 %v11393, %v11392
      %v11613 = vpack.c.b16 %v11395, %v11394
      %v11614 = vpack.c.b16 %v11397, %v11396
      %v11615 = vpack.c.b16 %v11399, %v11398
      %v11616 = vpack.c.b16 %v11401, %v11400
      %v11617 = vpack.c.b16 %v11403, %v11402
      %v11618 = vpack.c.b16 %v11405, %v11404
      %v11619 = vpack.c.b16 %v11407, %v11406
      %v11620 = vpack.c.b16 %v11409, %v11408
      %v11621 = vpack.c.b16 %v11411, %v11410
      %v11622 = vpack.c.b16 %v11413, %v11412
      %v11623 = vpack.c.b16 %v11415, %v11414
      %v11624 = vpack.c.b16 %v11417, %v11416
      %v11625 = vpack.c.b16 %v11419, %v11418
      %v11626 = vpack.c.b16 %v11421, %v11420
      %v11627 = vpack.c.b16 %v11423, %v11422
      %v11628 = vpack.c.b16 %v11425, %v11424
      %v11629 = vpack.c.b16 %v11427, %v11426
      %v11630 = vpack.c.b16 %v11429, %v11428
      %v11631 = vpack.c.b16 %v11431, %v11430
      %v11632 = vpack.c.b16 %v11433, %v11432
      %v11633 = vpack.c.b16 %v11435, %v11434
      %v11634 = vpack.c.b16 %v11437, %v11436
      %v11635 = vpack.c.b16 %v11439, %v11438
      %v11636 = vpack.c.b16 %v11441, %v11440
      %v11637 = vpack.c.b16 %v11443, %v11442
      %v11638 = vpack.c.b16 %v11445, %v11444
      %v11639 = vpack.c.b16 %v11447, %v11446
      %v11640 = vpack.c.b16 %v11449, %v11448
      %v11641 = vpack.c.b16 %v11451, %v11450
      %v11642 = vpack.c.b16 %v11453, %v11452
      %v11643 = vpack.c.b16 %v11455, %v11454
      %v11644 = vpack.c.b16 %v11457, %v11456
      %v11645 = vpack.c.b16 %v11459, %v11458
      %v11646 = vpack.c.b16 %v11461, %v11460
      %v11647 = vpack.c.b16 %v11463, %v11462
      %v11648 = vpack.c.b16 %v11465, %v11464
      %v11649 = vpack.c.b16 %v11467, %v11466
      %v11650 = vpack.c.b16 %v11469, %v11468
      %v11651 = vpack.c.b16 %v11471, %v11470
      %v11652 = vpack.c.b16 %v11473, %v11472
      %v11653 = vpack.c.b16 %v11475, %v11474
      %v11654 = vpack.c.b16 %v11477, %v11476
      %v11655 = vpack.c.b16 %v11479, %v11478
      %v11656 = vpack.c.b16 %v11481, %v11480
      %v11657 = vpack.c.b16 %v11483, %v11482
      %v11658 = vpack.c.b16 %v11485, %v11484
      %v11659 = vpack.c.b16 %v11487, %v11486
      %v11660 = vpack.c.b16 %v11489, %v11488
      %v11661 = vpack.c.b16 %v11491, %v11490
      %v11662 = vpack.c.b16 %v11493, %v11492
      %v11663 = vpack.c.b16 %v11495, %v11494
      %v11664 = vpack.c.b16 %v11497, %v11496
      %v11665 = vpack.c.b16 %v11499, %v11498
      %v11666 = vpack.c.b16 %v11501, %v11500
      %v11667 = vpack.c.b16 %v11503, %v11502
      %v11668 = vpack.c.b16 %v11505, %v11504
      %v11669 = vpack.c.b16 %v11507, %v11506
      %v11670 = vpack.c.b16 %v11509, %v11508
      %v11671 = vpack.c.b16 %v11511, %v11510
      %v11672 = vpack.c.b16 %v11513, %v11512
      %v11673 = vpack.c.b16 %v11515, %v11514
      %v11674 = vpack.c.b16 %v11517, %v11516
      %v11675 = vpack.c.b16 %v11519, %v11518
      %v11676 = vpack.c.b16 %v11521, %v11520
      %v11677 = vpack.c.b16 %v11523, %v11522
      %v11678 = vpack.c.b16 %v11525, %v11524
      %v11679 = vpack.c.b16 %v11527, %v11526
      %v11680 = vpack.c.b16 %v11529, %v11528
      %v11681 = vpack.c.b16 %v11531, %v11530
      %v11682 = vpack.c.b16 %v11533, %v11532
      %v11683 = vpack.c.b16 %v11535, %v11534
      %v11684 = vpack.c.b16 %v11537, %v11536
      %v11685 = vpack.c.b16 %v11539, %v11538
      %v11686 = vpack.c.b16 %v11541, %v11540
      %v11687 = vpack.c.b16 %v11543, %v11542
      %v11688 = vpack.c.b16 %v11545, %v11544
      %v11689 = vpack.c.b16 %v11547, %v11546
      %v11690 = vpack.c.b16 %v11549, %v11548
      %v11691 = vpack.c.b16 %v11551, %v11550
      %v11692 = vpack.c.b16 %v11553, %v11552
      %v11693 = vpack.c.b16 %v11555, %v11554
      %v11694 = vpack.c.b16 %v11557, %v11556
      %v11695 = vpack.c.b16 %v11559, %v11558
      %v11696 = vpack.c.b16 %v11561, %v11560
      %v11697 = vpack.c.b16 %v11563, %v11562
      %v11698 = vpack.c.b16 %v11565, %v11564
      %v11699 = vpack.c.b16 %v11567, %v11566
      %v11700 = vpack.c.b16 %v11569, %v11568
      %v11701 = vpack.c.b16 %v11571, %v11570
      %v11702 = vpack.c.b16 %v11573, %v11572
      %v11703 = vpack.c.b16 %v11575, %v11574
      %v11704 = vpack.c.b16 %v11577, %v11576
      %v11705 = vpack.c.b16 %v11579, %v11578
      %v11706 = vpack.c.b16 %v11581, %v11580
      %v11707 = vpack.c.b16 %v11583, %v11582
      %v11708 = vpack.c.b16 %v11585, %v11584
      %v11709 = vpack.c.b16 %v11587, %v11586
      %v11710 = vpack.c.b16 %v11589, %v11588
      %v11711 = vpack.c.b16 %v11591, %v11590
      %v11712 = vpack.c.b16 %v11593, %v11592
      %v11713 = vpack.c.b16 %v11595, %v11594
      %v11714 = vpack.c.b16 %v11597, %v11596
      %v11715 = vpack.c.b16 %v11599, %v11598
      %v11716 = vpack.c.b16 %v11601, %v11600
      %v11717 = vpack.c.b16 %v11603, %v11602
      %v11718 = vpack.c.b16 %v11605, %v11604
      %v11719 = vpack.c.b16 %v11607, %v11606
      %11832 = vmatpush.bf16.msra.mxu0 %v11615
      %11833 = vmatpush.bf16.msra.mxu0 %v11614
      %11834 = vmatpush.bf16.msra.mxu0 %v11613
      %11835 = vmatpush.bf16.msra.mxu0 %v11612
      %11836 = vmatpush.bf16.msra.mxu0 %v11611
      %11837 = vmatpush.bf16.msra.mxu0 %v11610
      %11838 = vmatpush.bf16.msra.mxu0 %v11609
      %11839 = vmatpush.bf16.msra.mxu0 %v11608
      %11840 = vmatmul.bf16.gmra.mxu0 %v10918
      %v11841 = vpop.f32.mrf.mxu0
      %v11842 = vadd.f32 %v11158, %v11841
      %v11843 = vpop.f32.mrf.mxu0
      %11844 = vdwg.mxu0
      %11845 = vmatpush.bf16.msra.mxu0 %v11623
      %11846 = vmatpush.bf16.msra.mxu0 %v11622
      %11847 = vmatpush.bf16.msra.mxu0 %v11621
      %11848 = vmatpush.bf16.msra.mxu0 %v11620
      %11849 = vmatpush.bf16.msra.mxu0 %v11619
      %11850 = vmatpush.bf16.msra.mxu0 %v11618
      %11851 = vmatpush.bf16.msra.mxu0 %v11617
      %11852 = vmatpush.bf16.msra.mxu0 %v11616
      %11853 = vmatmul.bf16.gmra.mxu0 %v10919
      %v11854 = vpop.f32.mrf.mxu0
      %v11855 = vadd.f32 %v11842, %v11854
      %v11856 = vpop.f32.mrf.mxu0
      %11857 = vdwg.mxu0
      %11858 = vmatpush.bf16.msra.mxu0 %v11631
      %11859 = vmatpush.bf16.msra.mxu0 %v11630
      %11860 = vmatpush.bf16.msra.mxu0 %v11629
      %11861 = vmatpush.bf16.msra.mxu0 %v11628
      %11862 = vmatpush.bf16.msra.mxu0 %v11627
      %11863 = vmatpush.bf16.msra.mxu0 %v11626
      %11864 = vmatpush.bf16.msra.mxu0 %v11625
      %11865 = vmatpush.bf16.msra.mxu0 %v11624
      %11866 = vmatmul.bf16.gmra.mxu0 %v10920
      %v11867 = vpop.f32.mrf.mxu0
      %v11868 = vadd.f32 %v11855, %v11867
      %v11869 = vpop.f32.mrf.mxu0
      %11870 = vdwg.mxu0
      %11871 = vmatpush.bf16.msra.mxu0 %v11639
      %11872 = vmatpush.bf16.msra.mxu0 %v11638
      %11873 = vmatpush.bf16.msra.mxu0 %v11637
      %11874 = vmatpush.bf16.msra.mxu0 %v11636
      %11875 = vmatpush.bf16.msra.mxu0 %v11635
      %11876 = vmatpush.bf16.msra.mxu0 %v11634
      %11877 = vmatpush.bf16.msra.mxu0 %v11633
      %11878 = vmatpush.bf16.msra.mxu0 %v11632
      %11879 = vmatmul.bf16.gmra.mxu0 %v10921
      %v11880 = vpop.f32.mrf.mxu0
      %v11881 = vadd.f32 %v11868, %v11880
      %v11882 = vpop.f32.mrf.mxu0
      %11883 = vdwg.mxu0
      %11884 = vmatpush.bf16.msra.mxu0 %v11647
      %11885 = vmatpush.bf16.msra.mxu0 %v11646
      %11886 = vmatpush.bf16.msra.mxu0 %v11645
      %11887 = vmatpush.bf16.msra.mxu0 %v11644
      %11888 = vmatpush.bf16.msra.mxu0 %v11643
      %11889 = vmatpush.bf16.msra.mxu0 %v11642
      %11890 = vmatpush.bf16.msra.mxu0 %v11641
      %11891 = vmatpush.bf16.msra.mxu0 %v11640
      %11892 = vmatmul.bf16.gmra.mxu0 %v10922
      %v11893 = vpop.f32.mrf.mxu0
      %v11894 = vadd.f32 %v11881, %v11893
      %v11895 = vpop.f32.mrf.mxu0
      %11896 = vdwg.mxu0
      %11897 = vmatpush.bf16.msra.mxu0 %v11655
      %11898 = vmatpush.bf16.msra.mxu0 %v11654
      %11899 = vmatpush.bf16.msra.mxu0 %v11653
      %11900 = vmatpush.bf16.msra.mxu0 %v11652
      %11901 = vmatpush.bf16.msra.mxu0 %v11651
      %11902 = vmatpush.bf16.msra.mxu0 %v11650
      %11903 = vmatpush.bf16.msra.mxu0 %v11649
      %11904 = vmatpush.bf16.msra.mxu0 %v11648
      %11905 = vmatmul.bf16.gmra.mxu0 %v10923
      %v11906 = vpop.f32.mrf.mxu0
      %v11907 = vadd.f32 %v11894, %v11906
      %v11908 = vpop.f32.mrf.mxu0
      %11909 = vdwg.mxu0
      %11910 = vmatpush.bf16.msra.mxu0 %v11663
      %11911 = vmatpush.bf16.msra.mxu0 %v11662
      %11912 = vmatpush.bf16.msra.mxu0 %v11661
      %11913 = vmatpush.bf16.msra.mxu0 %v11660
      %11914 = vmatpush.bf16.msra.mxu0 %v11659
      %11915 = vmatpush.bf16.msra.mxu0 %v11658
      %11916 = vmatpush.bf16.msra.mxu0 %v11657
      %11917 = vmatpush.bf16.msra.mxu0 %v11656
      %11918 = vmatmul.bf16.gmra.mxu0 %v10924
      %v11919 = vpop.f32.mrf.mxu0
      %v11920 = vadd.f32 %v11907, %v11919
      %v11921 = vpop.f32.mrf.mxu0
      %11922 = vdwg.mxu0
      %11923 = vmatpush.bf16.msra.mxu0 %v11671
      %11924 = vmatpush.bf16.msra.mxu0 %v11670
      %11925 = vmatpush.bf16.msra.mxu0 %v11669
      %11926 = vmatpush.bf16.msra.mxu0 %v11668
      %11927 = vmatpush.bf16.msra.mxu0 %v11667
      %11928 = vmatpush.bf16.msra.mxu0 %v11666
      %11929 = vmatpush.bf16.msra.mxu0 %v11665
      %11930 = vmatpush.bf16.msra.mxu0 %v11664
      %11931 = vmatmul.bf16.gmra.mxu0 %v10925
      %v11932 = vpop.f32.mrf.mxu0
      %v11933 = vadd.f32 %v11920, %v11932
      %v11934 = vpop.f32.mrf.mxu0
      %11935 = vdwg.mxu0
      %11936 = vmatpush.bf16.msra.mxu0 %v11679
      %11937 = vmatpush.bf16.msra.mxu0 %v11678
      %11938 = vmatpush.bf16.msra.mxu0 %v11677
      %11939 = vmatpush.bf16.msra.mxu0 %v11676
      %11940 = vmatpush.bf16.msra.mxu0 %v11675
      %11941 = vmatpush.bf16.msra.mxu0 %v11674
      %11942 = vmatpush.bf16.msra.mxu0 %v11673
      %11943 = vmatpush.bf16.msra.mxu0 %v11672
      %11944 = vmatmul.bf16.gmra.mxu0 %v10926
      %v11945 = vpop.f32.mrf.mxu0
      %v11946 = vadd.f32 %v11933, %v11945
      %v11947 = vpop.f32.mrf.mxu0
      %11948 = vdwg.mxu0
      %11949 = vmatpush.bf16.msra.mxu0 %v11687
      %11950 = vmatpush.bf16.msra.mxu0 %v11686
      %11951 = vmatpush.bf16.msra.mxu0 %v11685
      %11952 = vmatpush.bf16.msra.mxu0 %v11684
      %11953 = vmatpush.bf16.msra.mxu0 %v11683
      %11954 = vmatpush.bf16.msra.mxu0 %v11682
      %11955 = vmatpush.bf16.msra.mxu0 %v11681
      %11956 = vmatpush.bf16.msra.mxu0 %v11680
      %11957 = vmatmul.bf16.gmra.mxu0 %v10927
      %v11958 = vpop.f32.mrf.mxu0
      %v11959 = vadd.f32 %v11946, %v11958
      %v11960 = vpop.f32.mrf.mxu0
      %11961 = vdwg.mxu0
      %11962 = vmatpush.bf16.msra.mxu0 %v11695
      %11963 = vmatpush.bf16.msra.mxu0 %v11694
      %11964 = vmatpush.bf16.msra.mxu0 %v11693
      %11965 = vmatpush.bf16.msra.mxu0 %v11692
      %11966 = vmatpush.bf16.msra.mxu0 %v11691
      %11967 = vmatpush.bf16.msra.mxu0 %v11690
      %11968 = vmatpush.bf16.msra.mxu0 %v11689
      %11969 = vmatpush.bf16.msra.mxu0 %v11688
      %11970 = vmatmul.bf16.gmra.mxu0 %v10928
      %v11971 = vpop.f32.mrf.mxu0
      %v11972 = vadd.f32 %v11959, %v11971
      %v11973 = vpop.f32.mrf.mxu0
      %11974 = vdwg.mxu0
      %11975 = vmatpush.bf16.msra.mxu0 %v11703
      %11976 = vmatpush.bf16.msra.mxu0 %v11702
      %11977 = vmatpush.bf16.msra.mxu0 %v11701
      %11978 = vmatpush.bf16.msra.mxu0 %v11700
      %11979 = vmatpush.bf16.msra.mxu0 %v11699
      %11980 = vmatpush.bf16.msra.mxu0 %v11698
      %11981 = vmatpush.bf16.msra.mxu0 %v11697
      %11982 = vmatpush.bf16.msra.mxu0 %v11696
      %11983 = vmatmul.bf16.gmra.mxu0 %v10929
      %v11984 = vpop.f32.mrf.mxu0
      %v11985 = vadd.f32 %v11972, %v11984
      %v11986 = vpop.f32.mrf.mxu0
      %11987 = vdwg.mxu0
      %11988 = vmatpush.bf16.msra.mxu0 %v11711
      %11989 = vmatpush.bf16.msra.mxu0 %v11710
      %11990 = vmatpush.bf16.msra.mxu0 %v11709
      %11991 = vmatpush.bf16.msra.mxu0 %v11708
      %11992 = vmatpush.bf16.msra.mxu0 %v11707
      %11993 = vmatpush.bf16.msra.mxu0 %v11706
      %11994 = vmatpush.bf16.msra.mxu0 %v11705
      %11995 = vmatpush.bf16.msra.mxu0 %v11704
      %11996 = vmatmul.bf16.gmra.mxu0 %v10930
      %v11997 = vpop.f32.mrf.mxu0
      %v11998 = vadd.f32 %v11985, %v11997
      %v11999 = vpop.f32.mrf.mxu0
      %12000 = vdwg.mxu0
      %12001 = vmatpush.bf16.msra.mxu0 %v11719
      %12002 = vmatpush.bf16.msra.mxu0 %v11718
      %12003 = vmatpush.bf16.msra.mxu0 %v11717
      %12004 = vmatpush.bf16.msra.mxu0 %v11716
      %12005 = vmatpush.bf16.msra.mxu0 %v11715
      %12006 = vmatpush.bf16.msra.mxu0 %v11714
      %12007 = vmatpush.bf16.msra.mxu0 %v11713
      %12008 = vmatpush.bf16.msra.mxu0 %v11712
      %12009 = vmatmul.bf16.gmra.mxu0 %v10931
      %v12010 = vpop.f32.mrf.mxu0
      %v12011 = vadd.f32 %v11998, %v12010
      %v12012 = vpop.f32.mrf.mxu0
      %12013 = vdwg.mxu0
      %12014 = vst [vmem:[%s386] sm:$0xff] %v12011
      %p12015 = scmp.lt.s32.totalorder %s22, 3
      %s12016 = scalar_select %p12015, %s22, 3
      %s12017 = smul.addr %s12016, 8
      %s12018 = scalar_lea.vmem %s11, %s12017
      // Predicated region
      $region65: #{my_dnn_forward.1} parent=63 // pred_check
        %p12019 = pneg %p276
      $region66: #{my_dnn_forward.1} parent=63 // pred_check_branch
        %12021 = sbr.rel (%p12019) target = $region68
      $region67: #{my_dnn_forward.1} parent=63 // pred_region
        _
      $region68: #{my_dnn_forward.1} parent=63 // pred_fallthru
        _
    $region64: #{my_dnn_forward.1} parent=5 // pred_fallthru
      _
    %p12022 = scmp.le.s32.totalorder 2, %s17
    // Predicated region
    $region69: #{my_dnn_forward.1} parent=5 // pred_check
      %p12023 = pneg %p12022
    $region70: #{my_dnn_forward.1} parent=5 // pred_check_branch
      %12025 = sbr.rel (%p12023) target = $region72
    $region71: #{my_dnn_forward.1} parent=5 // pred_region
      %s12026 = ssub.s32 %s17, 2
      // Predicated region
      $region73: #{my_dnn_forward.1} parent=71 // pred_check
        %p12027 = pneg %p282
      $region74: #{my_dnn_forward.1} parent=71 // pred_check_branch
        %12029 = sbr.rel (%p12027) target = $region76
      $region75: #{my_dnn_forward.1} parent=71 // pred_region
        %p12030 = scmp.lt.s32.totalorder %s23, 3
        %s12031 = scalar_select %p12030, %s23, 3
        %s12032 = smul.addr %s12031, 8
        %s12033 = scalar_lea.vmem %s11, %s12032
      $region76: #{my_dnn_forward.1} parent=71 // pred_fallthru
        _
    $region72: #{my_dnn_forward.1} parent=5 // pred_fallthru
      _
  $region6: #{my_dnn_forward.1} parent=0 // loop_footer
    %s21 = sadd.s32 1, %s17
  $region7: #{my_dnn_forward.1} parent=0 // loop_footer_branch
    %16 = sbr.rel target = $region3
  $region8: #{my_dnn_forward.1} parent=0 // loop_exit
    _

</llo_original>
